<compile_context>
chip_gen: v7x
topology: tpu7x:2x2x1
jax: 0.10.0
libtpu: 0.0.40
codegen_flags: <defaults>
</compile_context>

<pallas_src>
import functools

import jax
import jax.numpy as jnp
from jax.experimental import pallas as pl
from jax.experimental.pallas import tpu as pltpu

# Original (PyTorch) layer dims and the lane-dense padded output widths.
LAYER_DIMS = [(784, 520), (520, 320), (320, 240), (240, 120), (120, 10)]
PADDED_OUT = [640, 384, 256, 128, 128]          # multiples of 128
IN_DIM = 784
NUM_CLASSES = 10


def mlp_kernel(x_ref,
               w1_ref, b1_ref,
               w2_ref, b2_ref,
               w3_ref, b3_ref,
               w4_ref, b4_ref,
               w5_ref, b5_ref,
               o_ref, *, compute_dtype):
    """Fused 5-layer MLP forward on one batch tile.

    Matmul operands are `compute_dtype` (bf16 by default) with f32 MXU
    accumulation; bias add + ReLU run in f32 on the VPU; activations are cast
    back to `compute_dtype` only to feed the next matmul.
    """
    h = x_ref[...]
    for w_ref, b_ref in ((w1_ref, b1_ref), (w2_ref, b2_ref),
                         (w3_ref, b3_ref), (w4_ref, b4_ref)):
        acc = jnp.dot(h, w_ref[...], preferred_element_type=jnp.float32)
        h = jnp.maximum(acc + b_ref[...], 0.0).astype(compute_dtype)
    # Final layer: logits (no ReLU), stored in f32 into a lane-dense 128-wide block.
    acc = jnp.dot(h, w5_ref[...], preferred_element_type=jnp.float32)
    o_ref[...] = (acc + b5_ref[...]).astype(o_ref.dtype)


def net_forward(x, params, *, batch_tile=256, compute_dtype=jnp.bfloat16):
    """x: any shape with trailing elements multiple of 784 (e.g. (B,1,28,28)).
    params: PyTorch-convention weights W_i (out,in) and biases b_i (out,)."""
    x2d = x.reshape(-1, IN_DIM).astype(jnp.float32)        # x.view(-1, 784)
    B = x2d.shape[0]
    B_pad = ((B + batch_tile - 1) // batch_tile) * batch_tile
    if B_pad != B:
        x2d = jnp.pad(x2d, ((0, B_pad - B), (0, 0)))
    x2d = x2d.astype(compute_dtype)

    # Pre-transpose (out,in) -> (in,out) and zero-pad every output width to a
    # multiple of 128. Padded activations stay exactly 0 (zero weights + zero
    # bias through ReLU), and padded weight rows contribute nothing downstream,
    # so results are bit-identical to the unpadded math (up to dtype rounding).
    wts = []
    prev_pad = IN_DIM
    for i, ((din, dout), dout_pad) in enumerate(zip(LAYER_DIMS, PADDED_OUT), start=1):
        W = jnp.asarray(params[f"W{i}"], jnp.float32)       # (out, in)
        b = jnp.asarray(params[f"b{i}"], jnp.float32)       # (out,)
        assert W.shape == (dout, din) and b.shape == (dout,)
        Wt = jnp.pad(W.T, ((0, prev_pad - din), (0, dout_pad - dout)))
        bp = jnp.pad(b, (0, dout_pad - dout)).reshape(1, dout_pad)
        wts.append(Wt.astype(compute_dtype))                # matmul operand
        wts.append(bp.astype(jnp.float32))                  # f32 bias add
        prev_pad = dout_pad

    grid = (B_pad // batch_tile,)

    x_spec = pl.BlockSpec((batch_tile, IN_DIM), lambda i: (i, 0))
    param_specs = []
    prev_pad = IN_DIM
    for dout_pad in PADDED_OUT:
        # Full-extent blocks; constant index_map keeps them VMEM-resident.
        param_specs.append(pl.BlockSpec((prev_pad, dout_pad), lambda i: (0, 0)))
        param_specs.append(pl.BlockSpec((1, dout_pad), lambda i: (0, 0)))
        prev_pad = dout_pad
    out_spec = pl.BlockSpec((batch_tile, PADDED_OUT[-1]), lambda i: (i, 0))

    # Advisory cost estimate for the XLA scheduler.
    flops = 2 * B_pad * sum(a * b for a, b in
                            zip([IN_DIM] + PADDED_OUT[:-1], PADDED_OUT))
    bytes_w = sum(int(w.size) * w.dtype.itemsize for w in wts)
    bytes_accessed = (bytes_w
                      + int(x2d.size) * x2d.dtype.itemsize
                      + B_pad * PADDED_OUT[-1] * 4)
    cost = pl.CostEstimate(flops=flops, transcendentals=0,
                           bytes_accessed=bytes_accessed)

    fn = pl.pallas_call(
        functools.partial(mlp_kernel, compute_dtype=compute_dtype),
        out_shape=jax.ShapeDtypeStruct((B_pad, PADDED_OUT[-1]), jnp.float32),
        grid_spec=pltpu.PrefetchScalarGridSpec(
            num_scalar_prefetch=0,
            grid=grid,
            in_specs=[x_spec] + param_specs,
            out_specs=out_spec,
        ),
        compiler_params=pltpu.CompilerParams(
            dimension_semantics=("parallel",),
        ),
        cost_estimate=cost,
    )
    logits = fn(x2d, *wts)
    return logits[:B, :NUM_CLASSES]


def init_params(key):
    """Deterministic synthetic parameters with PyTorch nn.Linear shapes."""
    params = {}
    for i, (din, dout) in enumerate(LAYER_DIMS, start=1):
        key, kw, kb = jax.random.split(key, 3)
        bound = 1.0 / (din ** 0.5)   # nn.Linear default U(-1/sqrt(in), 1/sqrt(in))
        params[f"W{i}"] = jax.random.uniform(
            kw, (dout, din), jnp.float32, minval=-bound, maxval=bound)
        params[f"b{i}"] = jax.random.uniform(
            kb, (dout,), jnp.float32, minval=-bound, maxval=bound)
    return params


def reference_forward(x, params):
    """Pure-JAX f32 reference mirroring the PyTorch forward."""
    h = x.reshape(-1, IN_DIM).astype(jnp.float32)
    for i in range(1, 5):
        h = jnp.maximum(h @ params[f"W{i}"].T + params[f"b{i}"], 0.0)
    return h @ params["W5"].T + params["b5"]


if __name__ == "__main__":
    key = jax.random.PRNGKey(0)
    kx, kp = jax.random.split(key)

    # MNIST-like NCHW input. 512 rows -> two 256-row grid steps, so the batch
    # grid can spread across both v7x TensorCores while staying small (~1.6 MB).
    B = 512
    x = jax.random.normal(kx, (B, 1, 28, 28), dtype=jnp.float32)
    params = init_params(kp)

    out = net_forward(x, params)
    out = jax.block_until_ready(out)

    ref = reference_forward(x, params)
    assert out.shape == (B, 10)
    # bf16 matmul operands with f32 accumulation vs pure-f32 reference:
    # loose-but-safe tolerance (observed error is ~1e-3 scale).
    max_err = float(jnp.max(jnp.abs(out - ref)))
    assert max_err < 5e-2, f"mismatch vs reference: max abs err {max_err}"

    print("KERNEL_OK")
</pallas_src>

<mosaic_0001>
module attributes {stable_mosaic.version = 11 : i64} {
  func.func @mlp_kernel(%arg0: i32, %arg1: memref<256x784xbf16, #tpu.memory_space<vmem>>, %arg2: memref<784x640xbf16, #tpu.memory_space<vmem>>, %arg3: memref<1x640xf32, #tpu.memory_space<vmem>>, %arg4: memref<640x384xbf16, #tpu.memory_space<vmem>>, %arg5: memref<1x384xf32, #tpu.memory_space<vmem>>, %arg6: memref<384x256xbf16, #tpu.memory_space<vmem>>, %arg7: memref<1x256xf32, #tpu.memory_space<vmem>>, %arg8: memref<256x128xbf16, #tpu.memory_space<vmem>>, %arg9: memref<1x128xf32, #tpu.memory_space<vmem>>, %arg10: memref<128x128xbf16, #tpu.memory_space<vmem>>, %arg11: memref<1x128xf32, #tpu.memory_space<vmem>>, %arg12: memref<256x128xf32, #tpu.memory_space<vmem>>) attributes {dimension_semantics = [#tpu.dimension_semantics<parallel>], iteration_bounds = array<i64: 2>, scalar_prefetch = 0 : i64, scratch_operands = 0 : i64, tpu.core_type = #tpu.core_type<tc>, window_params = [{transform_indices = @transform_0, window_bounds = array<i64: 256, 784>}, {pipeline_mode = #tpu.pipeline_mode<synchronous>, transform_indices = @transform_1, window_bounds = array<i64: 784, 640>}, {pipeline_mode = #tpu.pipeline_mode<synchronous>, transform_indices = @transform_2, window_bounds = array<i64: 1, 640>}, {pipeline_mode = #tpu.pipeline_mode<synchronous>, transform_indices = @transform_3, window_bounds = array<i64: 640, 384>}, {pipeline_mode = #tpu.pipeline_mode<synchronous>, transform_indices = @transform_4, window_bounds = array<i64: 1, 384>}, {pipeline_mode = #tpu.pipeline_mode<synchronous>, transform_indices = @transform_5, window_bounds = array<i64: 384, 256>}, {pipeline_mode = #tpu.pipeline_mode<synchronous>, transform_indices = @transform_6, window_bounds = array<i64: 1, 256>}, {pipeline_mode = #tpu.pipeline_mode<synchronous>, transform_indices = @transform_7, window_bounds = array<i64: 256, 128>}, {pipeline_mode = #tpu.pipeline_mode<synchronous>, transform_indices = @transform_8, window_bounds = array<i64: 1, 128>}, {pipeline_mode = #tpu.pipeline_mode<synchronous>, transform_indices = @transform_9, window_bounds = array<i64: 128, 128>}, {pipeline_mode = #tpu.pipeline_mode<synchronous>, transform_indices = @transform_10, window_bounds = array<i64: 1, 128>}, {transform_indices = @transform_11, window_bounds = array<i64: 256, 128>}]} {
    %c0 = arith.constant 0 : index
    %c0_0 = arith.constant 0 : index
    %0 = vector.load %arg1[%c0, %c0_0] : memref<256x784xbf16, #tpu.memory_space<vmem>>, vector<256x784xbf16>
    %c0_1 = arith.constant 0 : index
    %c0_2 = arith.constant 0 : index
    %1 = vector.load %arg2[%c0_1, %c0_2] : memref<784x640xbf16, #tpu.memory_space<vmem>>, vector<784x640xbf16>
    %cst = arith.constant dense<0.000000e+00> : vector<256x640xf32>
    %2 = tpu.matmul %0, %1, %cst {dimension_numbers = #tpu.dot_dimension_numbers<[1], [0], [0], [1], [0, 0, 1, 1], [], []>} : vector<256x784xbf16>, vector<784x640xbf16>, vector<256x640xf32> -> vector<256x640xf32>
    %c0_3 = arith.constant 0 : index
    %c0_4 = arith.constant 0 : index
    %3 = vector.load %arg3[%c0_3, %c0_4] : memref<1x640xf32, #tpu.memory_space<vmem>>, vector<1x640xf32>
    %4 = vector.broadcast %3 : vector<1x640xf32> to vector<256x640xf32>
    %5 = arith.addf %2, %4 : vector<256x640xf32>
    %cst_5 = arith.constant 0.000000e+00 : f32
    %6 = vector.broadcast %cst_5 : f32 to vector<256x640xf32>
    %7 = arith.maximumf %5, %6 : vector<256x640xf32>
    %8 = arith.truncf %7 : vector<256x640xf32> to vector<256x640xbf16>
    %c0_6 = arith.constant 0 : index
    %c0_7 = arith.constant 0 : index
    %9 = vector.load %arg4[%c0_6, %c0_7] : memref<640x384xbf16, #tpu.memory_space<vmem>>, vector<640x384xbf16>
    %cst_8 = arith.constant dense<0.000000e+00> : vector<256x384xf32>
    %10 = tpu.matmul %8, %9, %cst_8 {dimension_numbers = #tpu.dot_dimension_numbers<[1], [0], [0], [1], [0, 0, 1, 1], [], []>} : vector<256x640xbf16>, vector<640x384xbf16>, vector<256x384xf32> -> vector<256x384xf32>
    %c0_9 = arith.constant 0 : index
    %c0_10 = arith.constant 0 : index
    %11 = vector.load %arg5[%c0_9, %c0_10] : memref<1x384xf32, #tpu.memory_space<vmem>>, vector<1x384xf32>
    %12 = vector.broadcast %11 : vector<1x384xf32> to vector<256x384xf32>
    %13 = arith.addf %10, %12 : vector<256x384xf32>
    %cst_11 = arith.constant 0.000000e+00 : f32
    %14 = vector.broadcast %cst_11 : f32 to vector<256x384xf32>
    %15 = arith.maximumf %13, %14 : vector<256x384xf32>
    %16 = arith.truncf %15 : vector<256x384xf32> to vector<256x384xbf16>
    %c0_12 = arith.constant 0 : index
    %c0_13 = arith.constant 0 : index
    %17 = vector.load %arg6[%c0_12, %c0_13] : memref<384x256xbf16, #tpu.memory_space<vmem>>, vector<384x256xbf16>
    %cst_14 = arith.constant dense<0.000000e+00> : vector<256x256xf32>
    %18 = tpu.matmul %16, %17, %cst_14 {dimension_numbers = #tpu.dot_dimension_numbers<[1], [0], [0], [1], [0, 0, 1, 1], [], []>} : vector<256x384xbf16>, vector<384x256xbf16>, vector<256x256xf32> -> vector<256x256xf32>
    %c0_15 = arith.constant 0 : index
    %c0_16 = arith.constant 0 : index
    %19 = vector.load %arg7[%c0_15, %c0_16] : memref<1x256xf32, #tpu.memory_space<vmem>>, vector<1x256xf32>
    %20 = vector.broadcast %19 : vector<1x256xf32> to vector<256x256xf32>
    %21 = arith.addf %18, %20 : vector<256x256xf32>
    %cst_17 = arith.constant 0.000000e+00 : f32
    %22 = vector.broadcast %cst_17 : f32 to vector<256x256xf32>
    %23 = arith.maximumf %21, %22 : vector<256x256xf32>
    %24 = arith.truncf %23 : vector<256x256xf32> to vector<256x256xbf16>
    %c0_18 = arith.constant 0 : index
    %c0_19 = arith.constant 0 : index
    %25 = vector.load %arg8[%c0_18, %c0_19] : memref<256x128xbf16, #tpu.memory_space<vmem>>, vector<256x128xbf16>
    %cst_20 = arith.constant dense<0.000000e+00> : vector<256x128xf32>
    %26 = tpu.matmul %24, %25, %cst_20 {dimension_numbers = #tpu.dot_dimension_numbers<[1], [0], [0], [1], [0, 0, 1, 1], [], []>} : vector<256x256xbf16>, vector<256x128xbf16>, vector<256x128xf32> -> vector<256x128xf32>
    %c0_21 = arith.constant 0 : index
    %c0_22 = arith.constant 0 : index
    %27 = vector.load %arg9[%c0_21, %c0_22] : memref<1x128xf32, #tpu.memory_space<vmem>>, vector<1x128xf32>
    %28 = vector.broadcast %27 : vector<1x128xf32> to vector<256x128xf32>
    %29 = arith.addf %26, %28 : vector<256x128xf32>
    %cst_23 = arith.constant 0.000000e+00 : f32
    %30 = vector.broadcast %cst_23 : f32 to vector<256x128xf32>
    %31 = arith.maximumf %29, %30 : vector<256x128xf32>
    %32 = arith.truncf %31 : vector<256x128xf32> to vector<256x128xbf16>
    %c0_24 = arith.constant 0 : index
    %c0_25 = arith.constant 0 : index
    %33 = vector.load %arg10[%c0_24, %c0_25] : memref<128x128xbf16, #tpu.memory_space<vmem>>, vector<128x128xbf16>
    %cst_26 = arith.constant dense<0.000000e+00> : vector<256x128xf32>
    %34 = tpu.matmul %32, %33, %cst_26 {dimension_numbers = #tpu.dot_dimension_numbers<[1], [0], [0], [1], [0, 0, 1, 1], [], []>} : vector<256x128xbf16>, vector<128x128xbf16>, vector<256x128xf32> -> vector<256x128xf32>
    %c0_27 = arith.constant 0 : index
    %c0_28 = arith.constant 0 : index
    %35 = vector.load %arg11[%c0_27, %c0_28] : memref<1x128xf32, #tpu.memory_space<vmem>>, vector<1x128xf32>
    %36 = vector.broadcast %35 : vector<1x128xf32> to vector<256x128xf32>
    %37 = arith.addf %34, %36 : vector<256x128xf32>
    %c0_29 = arith.constant 0 : index
    %c0_30 = arith.constant 0 : index
    %38 = vector.load %arg12[%c0_29, %c0_30] : memref<256x128xf32, #tpu.memory_space<vmem>>, vector<256x128xf32>
    tpu.vector_store %arg12[%c0_29, %c0_30], %37 {strides = array<i32>} : memref<256x128xf32, #tpu.memory_space<vmem>>, vector<256x128xf32>,
    return
  }
  func.func @transform_0(%arg0: i32) -> (i32, i32) {
    %c0_i32 = arith.constant 0 : i32
    %c0_i32_0 = arith.constant 0 : i32
    return %arg0, %c0_i32 : i32, i32
  }
  func.func @transform_1(%arg0: i32) -> (i32, i32) {
    %c0_i32 = arith.constant 0 : i32
    %c0_i32_0 = arith.constant 0 : i32
    %c0_i32_1 = arith.constant 0 : i32
    return %c0_i32, %c0_i32_0 : i32, i32
  }
  func.func @transform_2(%arg0: i32) -> (i32, i32) {
    %c0_i32 = arith.constant 0 : i32
    %c0_i32_0 = arith.constant 0 : i32
    %c0_i32_1 = arith.constant 0 : i32
    return %c0_i32, %c0_i32_0 : i32, i32
  }
  func.func @transform_3(%arg0: i32) -> (i32, i32) {
    %c0_i32 = arith.constant 0 : i32
    %c0_i32_0 = arith.constant 0 : i32
    %c0_i32_1 = arith.constant 0 : i32
    return %c0_i32, %c0_i32_0 : i32, i32
  }
  func.func @transform_4(%arg0: i32) -> (i32, i32) {
    %c0_i32 = arith.constant 0 : i32
    %c0_i32_0 = arith.constant 0 : i32
    %c0_i32_1 = arith.constant 0 : i32
    return %c0_i32, %c0_i32_0 : i32, i32
  }
  func.func @transform_5(%arg0: i32) -> (i32, i32) {
    %c0_i32 = arith.constant 0 : i32
    %c0_i32_0 = arith.constant 0 : i32
    %c0_i32_1 = arith.constant 0 : i32
    return %c0_i32, %c0_i32_0 : i32, i32
  }
  func.func @transform_6(%arg0: i32) -> (i32, i32) {
    %c0_i32 = arith.constant 0 : i32
    %c0_i32_0 = arith.constant 0 : i32
    %c0_i32_1 = arith.constant 0 : i32
    return %c0_i32, %c0_i32_0 : i32, i32
  }
  func.func @transform_7(%arg0: i32) -> (i32, i32) {
    %c0_i32 = arith.constant 0 : i32
    %c0_i32_0 = arith.constant 0 : i32
    %c0_i32_1 = arith.constant 0 : i32
    return %c0_i32, %c0_i32_0 : i32, i32
  }
  func.func @transform_8(%arg0: i32) -> (i32, i32) {
    %c0_i32 = arith.constant 0 : i32
    %c0_i32_0 = arith.constant 0 : i32
    %c0_i32_1 = arith.constant 0 : i32
    return %c0_i32, %c0_i32_0 : i32, i32
  }
  func.func @transform_9(%arg0: i32) -> (i32, i32) {
    %c0_i32 = arith.constant 0 : i32
    %c0_i32_0 = arith.constant 0 : i32
    %c0_i32_1 = arith.constant 0 : i32
    return %c0_i32, %c0_i32_0 : i32, i32
  }
  func.func @transform_10(%arg0: i32) -> (i32, i32) {
    %c0_i32 = arith.constant 0 : i32
    %c0_i32_0 = arith.constant 0 : i32
    %c0_i32_1 = arith.constant 0 : i32
    return %c0_i32, %c0_i32_0 : i32, i32
  }
  func.func @transform_11(%arg0: i32) -> (i32, i32) {
    %c0_i32 = arith.constant 0 : i32
    %c0_i32_0 = arith.constant 0 : i32
    return %arg0, %c0_i32 : i32, i32
  }
}

</mosaic_0001>

<llo_original>
// kernel: tpu_custom_call.1
$region0: #{tpu_custom_call.1}
  #allocation0 [shape = 'u32[]', space=smem, size = 0x4, offset = 0x4, fixed_abs, tag = 'smem constant byte address 0x4 - core index']
  #allocation1 [shape = 'u32[144,128]{1,0:T(1,128)}', space=vmem, size = 0x12000, scoped, tag = 'internal scratch']
  %s0 = inlined_call_operand.vmem [shape: bf16[512,784], index: 0, kind: input, shape index: {}]
  %s1 = inlined_call_operand.vmem [shape: bf16[784,640], index: 1, kind: input, shape index: {}]
  %s2 = inlined_call_operand.vmem [shape: f32[1,640], index: 2, kind: input, shape index: {}]
  %s3 = inlined_call_operand.vmem [shape: bf16[640,384], index: 3, kind: input, shape index: {}]
  %s4 = inlined_call_operand.vmem [shape: f32[1,384], index: 4, kind: input, shape index: {}]
  %s5 = inlined_call_operand.vmem [shape: bf16[384,256], index: 5, kind: input, shape index: {}]
  %s6 = inlined_call_operand.vmem [shape: f32[1,256], index: 6, kind: input, shape index: {}]
  %s7 = inlined_call_operand.hbm [shape: bf16[256,128], index: 7, kind: input, shape index: {}]
  %s8 = inlined_call_operand.vmem [shape: f32[1,128], index: 8, kind: input, shape index: {}]
  %s9 = inlined_call_operand.vmem [shape: bf16[128,128], index: 9, kind: input, shape index: {}]
  %s10 = inlined_call_operand.vmem [shape: f32[1,128], index: 10, kind: input, shape index: {}]
  %s11 = inlined_call_operand.hbm [shape: f32[512,128], index: 11, kind: output, shape index: {}]
  %s12 = sld [smem:[#allocation0]]
  $region81: #{tpu_custom_call.1} parent=0
    _
  %s14 = ssub.s32 1, %s12
  %s15 = scalar_select 0, %s14, %s12
  $region1: #{tpu_custom_call.1} parent=0
    #allocation2 [shape = 'u8[65536]{0}', space=vmem, size = 0x10000, scoped, tag = 'input window, operand 7, single buffered']
    #allocation3 [shape = 's32[2]{0}', space=sflag, size = 0x8, scoped, tag = 'scoped memory for tpu_custom_call.1']
    #allocation4 [shape = 's32[2]{0}', space=sflag, size = 0x8, scoped, tag = 'scoped memory for tpu_custom_call.1']
    #allocation5 [shape = 'u8[262144]{0}', space=vmem, size = 0x40000, scoped, tag = 'output window, operand 0']
    %16 = vsyncpa [#allocation3], 0
    %17 = vsyncpa [#allocation4], 0
    %s18 = scalar_lea.sflag [#allocation4], 1
    %19 = vsyncpa %s18, 0
    loop: start=0, step=1, limit=4
    $region2: #{tpu_custom_call.1} parent=1 // loop_pre_header
      _
    $region3: #{tpu_custom_call.1} parent=1 // loop_header
      %s21 = sphi 0, %s25
      %p22 = scmp.ge.s32.totalorder %s21, 4
      %s31 = sphi 0, %s33
      %s34 = sphi 0, %s31
      %s35 = sphi 0, %s34
      %s51 = sphi 0, %s35
      %s55 = sphi 0, %s55
      %s57 = sphi 0, %s55
      %s58 = sphi 0, %s57
      %s72 = sphi 0, %s58
      %s76 = sphi 0, %s76
      %s78 = sphi 0, %s76
      %s79 = sphi 0, %s78
      %s93 = sphi 0, %s79
      %s97 = sphi 0, %s97
      %s99 = sphi 0, %s97
      %s100 = sphi 0, %s99
      %s114 = sphi 0, %s100
      %s118 = sphi 0, %s118
      %s120 = sphi 0, %s118
      %s121 = sphi 0, %s120
      %s135 = sphi 0, %s121
      %s139 = sphi 0, %s139
      %s141 = sphi 0, %s139
      %s142 = sphi 0, %s141
      %s156 = sphi 0, %s142
      %s160 = sphi 0, %s160
      %s162 = sphi 0, %s160
      %s163 = sphi 0, %s162
      %s177 = sphi 0, %s163
      %s181 = sphi 0, %s181
      %s183 = sphi 0, %s181
      %s184 = sphi 0, %s183
      %s198 = sphi 0, %s184
      %s202 = sphi 0, %s202
      %s204 = sphi 0, %s202
      %s205 = sphi 0, %s204
      %s219 = sphi 0, %s205
      %s223 = sphi 0, %s223
      %s225 = sphi 0, %s223
      %s226 = sphi 0, %s225
      %s240 = sphi 0, %s226
      %s244 = sphi 0, %s244
      %s246 = sphi 0, %s244
      %s247 = sphi 0, %s246
      %s261 = sphi 0, %s247
      %s267 = sphi 0, %s269
      %s270 = sphi 0, %s267
      %s271 = sphi 0, %s270
      %s287 = sphi 0, %s271
    $region4: #{tpu_custom_call.1} parent=1 // loop_header_branch
      %24 = sbr.rel (%p22) target = $region8
    $region5: #{tpu_custom_call.1} parent=1 // loop_body
      %s26 = ssub.s32 %s21, 1
      %s27 = ssub.s32 %s21, 2
      %s28 = sadd.s32 %s21, 1
      %s29 = ssub.s32 %s21, %s28
      %p30 = scmp.eq.s32.totalorder %s29, 0
      %s32 = sadd.s32 %s31, 1
      %s33 = scalar_select %p30, %s31, %s32
      %p36 = pneg %p30
      %p37 = scmp.eq.s32.totalorder %s21, 1
      %p38 = por %p36, %p37
      %p39 = scmp.ne.s32.totalorder %s31, %s34
      %p40 = scmp.eq.s32.totalorder %s21, 0
      %p41 = por %p39, %p40
      %p42 = scmp.ne.s32.totalorder %s31, %s34
      %p43 = scmp.eq.s32.totalorder %s26, 1
      %p44 = por %p42, %p43
      %p45 = scmp.ne.s32.totalorder %s34, %s35
      %p46 = scmp.eq.s32.totalorder %s26, 0
      %p47 = por %p45, %p46
      %p48 = scmp.ne.s32.totalorder %s34, %s35
      %p49 = scmp.eq.s32.totalorder %s27, 1
      %p50 = por %p48, %p49
      %p52 = scmp.ne.s32.totalorder %s35, %s51
      %p53 = scmp.eq.s32.totalorder %s27, 0
      %p54 = por %p52, %p53
      %s56 = sadd.s32 %s55, 1
      %p59 = scmp.eq.s32.totalorder %s21, 1
      %p60 = scmp.ne.s32.totalorder %s55, %s57
      %p61 = scmp.eq.s32.totalorder %s21, 0
      %p62 = por %p60, %p61
      %p63 = scmp.ne.s32.totalorder %s55, %s57
      %p64 = scmp.eq.s32.totalorder %s26, 1
      %p65 = por %p63, %p64
      %p66 = scmp.ne.s32.totalorder %s57, %s58
      %p67 = scmp.eq.s32.totalorder %s26, 0
      %p68 = por %p66, %p67
      %p69 = scmp.ne.s32.totalorder %s57, %s58
      %p70 = scmp.eq.s32.totalorder %s27, 1
      %p71 = por %p69, %p70
      %p73 = scmp.ne.s32.totalorder %s58, %s72
      %p74 = scmp.eq.s32.totalorder %s27, 0
      %p75 = por %p73, %p74
      %s77 = sadd.s32 %s76, 1
      %p80 = scmp.eq.s32.totalorder %s21, 1
      %p81 = scmp.ne.s32.totalorder %s76, %s78
      %p82 = scmp.eq.s32.totalorder %s21, 0
      %p83 = por %p81, %p82
      %p84 = scmp.ne.s32.totalorder %s76, %s78
      %p85 = scmp.eq.s32.totalorder %s26, 1
      %p86 = por %p84, %p85
      %p87 = scmp.ne.s32.totalorder %s78, %s79
      %p88 = scmp.eq.s32.totalorder %s26, 0
      %p89 = por %p87, %p88
      %p90 = scmp.ne.s32.totalorder %s78, %s79
      %p91 = scmp.eq.s32.totalorder %s27, 1
      %p92 = por %p90, %p91
      %p94 = scmp.ne.s32.totalorder %s79, %s93
      %p95 = scmp.eq.s32.totalorder %s27, 0
      %p96 = por %p94, %p95
      %s98 = sadd.s32 %s97, 1
      %p101 = scmp.eq.s32.totalorder %s21, 1
      %p102 = scmp.ne.s32.totalorder %s97, %s99
      %p103 = scmp.eq.s32.totalorder %s21, 0
      %p104 = por %p102, %p103
      %p105 = scmp.ne.s32.totalorder %s97, %s99
      %p106 = scmp.eq.s32.totalorder %s26, 1
      %p107 = por %p105, %p106
      %p108 = scmp.ne.s32.totalorder %s99, %s100
      %p109 = scmp.eq.s32.totalorder %s26, 0
      %p110 = por %p108, %p109
      %p111 = scmp.ne.s32.totalorder %s99, %s100
      %p112 = scmp.eq.s32.totalorder %s27, 1
      %p113 = por %p111, %p112
      %p115 = scmp.ne.s32.totalorder %s100, %s114
      %p116 = scmp.eq.s32.totalorder %s27, 0
      %p117 = por %p115, %p116
      %s119 = sadd.s32 %s118, 1
      %p122 = scmp.eq.s32.totalorder %s21, 1
      %p123 = scmp.ne.s32.totalorder %s118, %s120
      %p124 = scmp.eq.s32.totalorder %s21, 0
      %p125 = por %p123, %p124
      %p126 = scmp.ne.s32.totalorder %s118, %s120
      %p127 = scmp.eq.s32.totalorder %s26, 1
      %p128 = por %p126, %p127
      %p129 = scmp.ne.s32.totalorder %s120, %s121
      %p130 = scmp.eq.s32.totalorder %s26, 0
      %p131 = por %p129, %p130
      %p132 = scmp.ne.s32.totalorder %s120, %s121
      %p133 = scmp.eq.s32.totalorder %s27, 1
      %p134 = por %p132, %p133
      %p136 = scmp.ne.s32.totalorder %s121, %s135
      %p137 = scmp.eq.s32.totalorder %s27, 0
      %p138 = por %p136, %p137
      %s140 = sadd.s32 %s139, 1
      %p143 = scmp.eq.s32.totalorder %s21, 1
      %p144 = scmp.ne.s32.totalorder %s139, %s141
      %p145 = scmp.eq.s32.totalorder %s21, 0
      %p146 = por %p144, %p145
      %p147 = scmp.ne.s32.totalorder %s139, %s141
      %p148 = scmp.eq.s32.totalorder %s26, 1
      %p149 = por %p147, %p148
      %p150 = scmp.ne.s32.totalorder %s141, %s142
      %p151 = scmp.eq.s32.totalorder %s26, 0
      %p152 = por %p150, %p151
      %p153 = scmp.ne.s32.totalorder %s141, %s142
      %p154 = scmp.eq.s32.totalorder %s27, 1
      %p155 = por %p153, %p154
      %p157 = scmp.ne.s32.totalorder %s142, %s156
      %p158 = scmp.eq.s32.totalorder %s27, 0
      %p159 = por %p157, %p158
      %s161 = sadd.s32 %s160, 1
      %p164 = scmp.eq.s32.totalorder %s21, 1
      %p165 = scmp.ne.s32.totalorder %s160, %s162
      %p166 = scmp.eq.s32.totalorder %s21, 0
      %p167 = por %p165, %p166
      %p168 = scmp.ne.s32.totalorder %s160, %s162
      %p169 = scmp.eq.s32.totalorder %s26, 1
      %p170 = por %p168, %p169
      %p171 = scmp.ne.s32.totalorder %s162, %s163
      %p172 = scmp.eq.s32.totalorder %s26, 0
      %p173 = por %p171, %p172
      %p174 = scmp.ne.s32.totalorder %s162, %s163
      %p175 = scmp.eq.s32.totalorder %s27, 1
      %p176 = por %p174, %p175
      %p178 = scmp.ne.s32.totalorder %s163, %s177
      %p179 = scmp.eq.s32.totalorder %s27, 0
      %p180 = por %p178, %p179
      %s182 = sadd.s32 %s181, 1
      %p185 = scmp.eq.s32.totalorder %s21, 1
      %p186 = scmp.ne.s32.totalorder %s181, %s183
      %p187 = scmp.eq.s32.totalorder %s21, 0
      %p188 = por %p186, %p187
      %p189 = scmp.ne.s32.totalorder %s181, %s183
      %p190 = scmp.eq.s32.totalorder %s26, 1
      %p191 = por %p189, %p190
      %p192 = scmp.ne.s32.totalorder %s183, %s184
      %p193 = scmp.eq.s32.totalorder %s26, 0
      %p194 = por %p192, %p193
      %p195 = scmp.ne.s32.totalorder %s183, %s184
      %p196 = scmp.eq.s32.totalorder %s27, 1
      %p197 = por %p195, %p196
      %p199 = scmp.ne.s32.totalorder %s184, %s198
      %p200 = scmp.eq.s32.totalorder %s27, 0
      %p201 = por %p199, %p200
      %s203 = sadd.s32 %s202, 1
      %p206 = scmp.eq.s32.totalorder %s21, 1
      %p207 = scmp.ne.s32.totalorder %s202, %s204
      %p208 = scmp.eq.s32.totalorder %s21, 0
      %p209 = por %p207, %p208
      %p210 = scmp.ne.s32.totalorder %s202, %s204
      %p211 = scmp.eq.s32.totalorder %s26, 1
      %p212 = por %p210, %p211
      %p213 = scmp.ne.s32.totalorder %s204, %s205
      %p214 = scmp.eq.s32.totalorder %s26, 0
      %p215 = por %p213, %p214
      %p216 = scmp.ne.s32.totalorder %s204, %s205
      %p217 = scmp.eq.s32.totalorder %s27, 1
      %p218 = por %p216, %p217
      %p220 = scmp.ne.s32.totalorder %s205, %s219
      %p221 = scmp.eq.s32.totalorder %s27, 0
      %p222 = por %p220, %p221
      %s224 = sadd.s32 %s223, 1
      %p227 = scmp.eq.s32.totalorder %s21, 1
      %p228 = scmp.ne.s32.totalorder %s223, %s225
      %p229 = scmp.eq.s32.totalorder %s21, 0
      %p230 = por %p228, %p229
      %p231 = scmp.ne.s32.totalorder %s223, %s225
      %p232 = scmp.eq.s32.totalorder %s26, 1
      %p233 = por %p231, %p232
      %p234 = scmp.ne.s32.totalorder %s225, %s226
      %p235 = scmp.eq.s32.totalorder %s26, 0
      %p236 = por %p234, %p235
      %p237 = scmp.ne.s32.totalorder %s225, %s226
      %p238 = scmp.eq.s32.totalorder %s27, 1
      %p239 = por %p237, %p238
      %p241 = scmp.ne.s32.totalorder %s226, %s240
      %p242 = scmp.eq.s32.totalorder %s27, 0
      %p243 = por %p241, %p242
      %s245 = sadd.s32 %s244, 1
      %p248 = scmp.eq.s32.totalorder %s21, 1
      %p249 = scmp.ne.s32.totalorder %s244, %s246
      %p250 = scmp.eq.s32.totalorder %s21, 0
      %p251 = por %p249, %p250
      %p252 = scmp.ne.s32.totalorder %s244, %s246
      %p253 = scmp.eq.s32.totalorder %s26, 1
      %p254 = por %p252, %p253
      %p255 = scmp.ne.s32.totalorder %s246, %s247
      %p256 = scmp.eq.s32.totalorder %s26, 0
      %p257 = por %p255, %p256
      %p258 = scmp.ne.s32.totalorder %s246, %s247
      %p259 = scmp.eq.s32.totalorder %s27, 1
      %p260 = por %p258, %p259
      %p262 = scmp.ne.s32.totalorder %s247, %s261
      %p263 = scmp.eq.s32.totalorder %s27, 0
      %p264 = por %p262, %p263
      %s265 = ssub.s32 %s21, %s28
      %p266 = scmp.eq.s32.totalorder %s265, 0
      %s268 = sadd.s32 %s267, 1
      %s269 = scalar_select %p266, %s267, %s268
      %p272 = pneg %p266
      %p273 = scmp.eq.s32.totalorder %s21, 1
      %p274 = por %p272, %p273
      %p275 = scmp.ne.s32.totalorder %s267, %s270
      %p276 = scmp.eq.s32.totalorder %s21, 0
      %p277 = por %p275, %p276
      %p278 = scmp.ne.s32.totalorder %s267, %s270
      %p279 = scmp.eq.s32.totalorder %s26, 1
      %p280 = por %p278, %p279
      %p281 = scmp.ne.s32.totalorder %s270, %s271
      %p282 = scmp.eq.s32.totalorder %s26, 0
      %p283 = por %p281, %p282
      %p284 = scmp.ne.s32.totalorder %s270, %s271
      %p285 = scmp.eq.s32.totalorder %s27, 1
      %p286 = por %p284, %p285
      %p288 = scmp.ne.s32.totalorder %s271, %s287
      %p289 = scmp.eq.s32.totalorder %s27, 0
      %p290 = por %p288, %p289
      %p291 = scmp.le.s32.totalorder 1, %s21
      %p292 = scmp.lt.s32.totalorder %s21, 3
      %p293 = pnand %p291, %p292
      %p294 = pneg %p293
      // Predicated region
      $region9: #{tpu_custom_call.1} parent=5 // pred_check
        _
      $region10: #{tpu_custom_call.1} parent=5 // pred_check_branch
        %296 = sbr.rel (%p293) target = $region12
      $region11: #{tpu_custom_call.1} parent=5 // pred_region
        %s297 = ssub.s32 %s21, 1
        // Predicated region
        $region13: #{tpu_custom_call.1} parent=11 // pred_check
          %p298 = pneg %p68
        $region14: #{tpu_custom_call.1} parent=11 // pred_check_branch
          %300 = sbr.rel (%p298) target = $region16
        $region15: #{tpu_custom_call.1} parent=11 // pred_region
          _
        $region16: #{tpu_custom_call.1} parent=11 // pred_fallthru
          _
        // Predicated region
        $region17: #{tpu_custom_call.1} parent=11 // pred_check
          %p301 = pneg %p89
        $region18: #{tpu_custom_call.1} parent=11 // pred_check_branch
          %303 = sbr.rel (%p301) target = $region20
        $region19: #{tpu_custom_call.1} parent=11 // pred_region
          _
        $region20: #{tpu_custom_call.1} parent=11 // pred_fallthru
          _
        // Predicated region
        $region21: #{tpu_custom_call.1} parent=11 // pred_check
          %p304 = pneg %p110
        $region22: #{tpu_custom_call.1} parent=11 // pred_check_branch
          %306 = sbr.rel (%p304) target = $region24
        $region23: #{tpu_custom_call.1} parent=11 // pred_region
          _
        $region24: #{tpu_custom_call.1} parent=11 // pred_fallthru
          _
        // Predicated region
        $region25: #{tpu_custom_call.1} parent=11 // pred_check
          %p307 = pneg %p131
        $region26: #{tpu_custom_call.1} parent=11 // pred_check_branch
          %309 = sbr.rel (%p307) target = $region28
        $region27: #{tpu_custom_call.1} parent=11 // pred_region
          _
        $region28: #{tpu_custom_call.1} parent=11 // pred_fallthru
          _
        // Predicated region
        $region29: #{tpu_custom_call.1} parent=11 // pred_check
          %p310 = pneg %p152
        $region30: #{tpu_custom_call.1} parent=11 // pred_check_branch
          %312 = sbr.rel (%p310) target = $region32
        $region31: #{tpu_custom_call.1} parent=11 // pred_region
          _
        $region32: #{tpu_custom_call.1} parent=11 // pred_fallthru
          _
        // Predicated region
        $region33: #{tpu_custom_call.1} parent=11 // pred_check
          %p313 = pneg %p173
        $region34: #{tpu_custom_call.1} parent=11 // pred_check_branch
          %315 = sbr.rel (%p313) target = $region36
        $region35: #{tpu_custom_call.1} parent=11 // pred_region
          _
        $region36: #{tpu_custom_call.1} parent=11 // pred_fallthru
          _
        // Predicated region
        $region37: #{tpu_custom_call.1} parent=11 // pred_check
          %p316 = pneg %p194
        $region38: #{tpu_custom_call.1} parent=11 // pred_check_branch
          %318 = sbr.rel (%p316) target = $region40
        $region39: #{tpu_custom_call.1} parent=11 // pred_region
          %s320 = ssub.s32 2048, 2048
          %321 = vsyncadd [#allocation3], %s320
          %s322 = sshll.u32 [#allocation2], 4
          %s323 = int_to_ptr.vmem [resolvable:$true] %s322
          %328 = dma.hbm_to_vmem [thread:$0]  %s7, 2048, %s323, [#allocation3], 64, 64, 4
        $region40: #{tpu_custom_call.1} parent=11 // pred_fallthru
          _
        // Predicated region
        $region41: #{tpu_custom_call.1} parent=11 // pred_check
          %p329 = pneg %p215
        $region42: #{tpu_custom_call.1} parent=11 // pred_check_branch
          %331 = sbr.rel (%p329) target = $region44
        $region43: #{tpu_custom_call.1} parent=11 // pred_region
          _
        $region44: #{tpu_custom_call.1} parent=11 // pred_fallthru
          _
        // Predicated region
        $region45: #{tpu_custom_call.1} parent=11 // pred_check
          %p332 = pneg %p236
        $region46: #{tpu_custom_call.1} parent=11 // pred_check_branch
          %334 = sbr.rel (%p332) target = $region48
        $region47: #{tpu_custom_call.1} parent=11 // pred_region
          _
        $region48: #{tpu_custom_call.1} parent=11 // pred_fallthru
          _
        // Predicated region
        $region49: #{tpu_custom_call.1} parent=11 // pred_check
          %p335 = pneg %p257
        $region50: #{tpu_custom_call.1} parent=11 // pred_check_branch
          %337 = sbr.rel (%p335) target = $region52
        $region51: #{tpu_custom_call.1} parent=11 // pred_region
          _
        $region52: #{tpu_custom_call.1} parent=11 // pred_fallthru
          _
      $region12: #{tpu_custom_call.1} parent=5 // pred_fallthru
        _
      %p338 = scmp.lt.s32.totalorder %s21, 2
      // Predicated region
      $region53: #{tpu_custom_call.1} parent=5 // pred_check
        %p339 = pneg %p338
      $region54: #{tpu_custom_call.1} parent=5 // pred_check_branch
        %341 = sbr.rel (%p339) target = $region56
      $region55: #{tpu_custom_call.1} parent=5 // pred_region
        // Predicated region
        $region57: #{tpu_custom_call.1} parent=55 // pred_check
          %p342 = pneg %p41
        $region58: #{tpu_custom_call.1} parent=55 // pred_check_branch
          %344 = sbr.rel (%p342) target = $region60
        $region59: #{tpu_custom_call.1} parent=55 // pred_region
          %s345 = smul.u32 32, %s21
          %p346 = scmp.lt.s32.totalorder %s345, 63
          %s347 = scalar_select %p346, %s345, 63
          %s348 = smul.addr %s347, 7
          %s349 = smul.addr %s348, 4
          %s350 = scalar_lea.vmem %s0, %s349
          %s351 = smul.u32 32, %s21
        $region60: #{tpu_custom_call.1} parent=55 // pred_fallthru
          _
      $region56: #{tpu_custom_call.1} parent=5 // pred_fallthru
        _
      %p352 = scmp.le.s32.totalorder 1, %s21
      %p353 = scmp.lt.s32.totalorder %s21, 3
      %p354 = pnand %p352, %p353
      %p355 = pneg %p354
      // Predicated region
      $region61: #{tpu_custom_call.1} parent=5 // pred_check
        _
      $region62: #{tpu_custom_call.1} parent=5 // pred_check_branch
        %357 = sbr.rel (%p354) target = $region64
      $region63: #{tpu_custom_call.1} parent=5 // pred_region
        %s358 = ssub.s32 %s21, 1
        // Predicated region
        $region65: #{tpu_custom_call.1} parent=63 // pred_check
          %p359 = pneg %p194
        $region66: #{tpu_custom_call.1} parent=63 // pred_check_branch
          %361 = sbr.rel (%p359) target = $region68
        $region67: #{tpu_custom_call.1} parent=63 // pred_region
          %362 = dma.done [#allocation3], 2048
        $region68: #{tpu_custom_call.1} parent=63 // pred_fallthru
          _
        %s363 = smul.u32 32, %s26
        %p364 = scmp.lt.s32.totalorder %s363, 63
        %s365 = scalar_select %p364, %s363, 63
        %s366 = smul.addr %s365, 7
        %s367 = smul.addr %s366, 4
        %s368 = scalar_lea.vmem %s0, %s367
        %p369 = pneg %p47
        %p370 = pneg %p44
        %p371 = pneg %p68
        %p372 = pneg %p65
        %p373 = pneg %p89
        %p374 = pneg %p86
        %p375 = pneg %p110
        %p376 = pneg %p107
        %p377 = pneg %p131
        %p378 = pneg %p128
        %p379 = pneg %p152
        %p380 = pneg %p149
        %p381 = pneg %p173
        %p382 = pneg %p170
        %p383 = pneg %p194
        %p384 = pneg %p191
        %p385 = pneg %p215
        %p386 = pneg %p212
        %p387 = pneg %p236
        %p388 = pneg %p233
        %p389 = pneg %p257
        %p390 = pneg %p254
        %p391 = pneg %p283
        %p392 = pneg %p280
        %s393 = sand.u32 %s270, 1
        %s394 = scalar_lea.sflag [#allocation4], %s393
        %s395 = sand.u32 %s270, 1
        %s396 = smul.addr %s395, 256
        %s397 = scalar_lea.vmem [#allocation5], %s396
        %s398 = smul.u32 32, %s26
        %p399 = scmp.lt.s32.totalorder %s398, 63
        %s400 = scalar_select %p399, %s398, 63
        %s401 = smul.addr %s400, 7
        %s402 = smul.addr %s401, 4
        %s403 = scalar_lea.vmem %s0, %s402
        %s404 = smul.u32 32, %s26
        %s405 = smul.u32 32, %s26
        %v407 = vld [vmem:[%s403] sm:$0xff]
        %v408 = vld [vmem:[%s403 + $0x8] sm:$0xff]
        %v409 = vld [vmem:[%s403 + $0x10] sm:$0xff]
        %v410 = vld [vmem:[%s403 + $0x18] sm:$0xf]
        %v411 = vld [vmem:[%s403 + $0x1c] sm:$0xff]
        %v412 = vld [vmem:[%s403 + $0x24] sm:$0xff]
        %v413 = vld [vmem:[%s403 + $0x2c] sm:$0xff]
        %v414 = vld [vmem:[%s403 + $0x34] sm:$0xf]
        %v415 = vld [vmem:[%s403 + $0x38] sm:$0xff]
        %v416 = vld [vmem:[%s403 + $0x40] sm:$0xff]
        %v417 = vld [vmem:[%s403 + $0x48] sm:$0xff]
        %v418 = vld [vmem:[%s403 + $0x50] sm:$0xf]
        %v419 = vld [vmem:[%s403 + $0x54] sm:$0xff]
        %v420 = vld [vmem:[%s403 + $0x5c] sm:$0xff]
        %v421 = vld [vmem:[%s403 + $0x64] sm:$0xff]
        %v422 = vld [vmem:[%s403 + $0x6c] sm:$0xf]
        %v423 = vld [vmem:[%s403 + $0x70] sm:$0xff]
        %v424 = vld [vmem:[%s403 + $0x78] sm:$0xff]
        %v425 = vld [vmem:[%s403 + $0x80] sm:$0xff]
        %v426 = vld [vmem:[%s403 + $0x88] sm:$0xf]
        %v427 = vld [vmem:[%s403 + $0x8c] sm:$0xff]
        %v428 = vld [vmem:[%s403 + $0x94] sm:$0xff]
        %v429 = vld [vmem:[%s403 + $0x9c] sm:$0xff]
        %v430 = vld [vmem:[%s403 + $0xa4] sm:$0xf]
        %v431 = vld [vmem:[%s403 + $0xa8] sm:$0xff]
        %v432 = vld [vmem:[%s403 + $0xb0] sm:$0xff]
        %v433 = vld [vmem:[%s403 + $0xb8] sm:$0xff]
        %v434 = vld [vmem:[%s403 + $0xc0] sm:$0xf]
        %v435 = vld [vmem:[%s403 + $0xc4] sm:$0xff]
        %v436 = vld [vmem:[%s403 + $0xcc] sm:$0xff]
        %v437 = vld [vmem:[%s403 + $0xd4] sm:$0xff]
        %v438 = vld [vmem:[%s403 + $0xdc] sm:$0xf]
        %v439 = vld [vmem:[%s403 + $0xe0] sm:$0xff]
        %v440 = vld [vmem:[%s403 + $0xe8] sm:$0xff]
        %v441 = vld [vmem:[%s403 + $0xf0] sm:$0xff]
        %v442 = vld [vmem:[%s403 + $0xf8] sm:$0xf]
        %v443 = vld [vmem:[%s403 + $0xfc] sm:$0xff]
        %v444 = vld [vmem:[%s403 + $0x104] sm:$0xff]
        %v445 = vld [vmem:[%s403 + $0x10c] sm:$0xff]
        %v446 = vld [vmem:[%s403 + $0x114] sm:$0xf]
        %v447 = vld [vmem:[%s403 + $0x118] sm:$0xff]
        %v448 = vld [vmem:[%s403 + $0x120] sm:$0xff]
        %v449 = vld [vmem:[%s403 + $0x128] sm:$0xff]
        %v450 = vld [vmem:[%s403 + $0x130] sm:$0xf]
        %v451 = vld [vmem:[%s403 + $0x134] sm:$0xff]
        %v452 = vld [vmem:[%s403 + $0x13c] sm:$0xff]
        %v453 = vld [vmem:[%s403 + $0x144] sm:$0xff]
        %v454 = vld [vmem:[%s403 + $0x14c] sm:$0xf]
        %v455 = vld [vmem:[%s403 + $0x150] sm:$0xff]
        %v456 = vld [vmem:[%s403 + $0x158] sm:$0xff]
        %v457 = vld [vmem:[%s403 + $0x160] sm:$0xff]
        %v458 = vld [vmem:[%s403 + $0x168] sm:$0xf]
        %v459 = vld [vmem:[%s403 + $0x16c] sm:$0xff]
        %v460 = vld [vmem:[%s403 + $0x174] sm:$0xff]
        %v461 = vld [vmem:[%s403 + $0x17c] sm:$0xff]
        %v462 = vld [vmem:[%s403 + $0x184] sm:$0xf]
        %v463 = vld [vmem:[%s403 + $0x188] sm:$0xff]
        %v464 = vld [vmem:[%s403 + $0x190] sm:$0xff]
        %v465 = vld [vmem:[%s403 + $0x198] sm:$0xff]
        %v466 = vld [vmem:[%s403 + $0x1a0] sm:$0xf]
        %v467 = vld [vmem:[%s403 + $0x1a4] sm:$0xff]
        %v468 = vld [vmem:[%s403 + $0x1ac] sm:$0xff]
        %v469 = vld [vmem:[%s403 + $0x1b4] sm:$0xff]
        %v470 = vld [vmem:[%s403 + $0x1bc] sm:$0xf]
        %v471 = vld [vmem:[%s403 + $0x1c0] sm:$0xff]
        %v472 = vld [vmem:[%s403 + $0x1c8] sm:$0xff]
        %v473 = vld [vmem:[%s403 + $0x1d0] sm:$0xff]
        %v474 = vld [vmem:[%s403 + $0x1d8] sm:$0xf]
        %v475 = vld [vmem:[%s403 + $0x1dc] sm:$0xff]
        %v476 = vld [vmem:[%s403 + $0x1e4] sm:$0xff]
        %v477 = vld [vmem:[%s403 + $0x1ec] sm:$0xff]
        %v478 = vld [vmem:[%s403 + $0x1f4] sm:$0xf]
        %v479 = vld [vmem:[%s403 + $0x1f8] sm:$0xff]
        %v480 = vld [vmem:[%s403 + $0x200] sm:$0xff]
        %v481 = vld [vmem:[%s403 + $0x208] sm:$0xff]
        %v482 = vld [vmem:[%s403 + $0x210] sm:$0xf]
        %v483 = vld [vmem:[%s403 + $0x214] sm:$0xff]
        %v484 = vld [vmem:[%s403 + $0x21c] sm:$0xff]
        %v485 = vld [vmem:[%s403 + $0x224] sm:$0xff]
        %v486 = vld [vmem:[%s403 + $0x22c] sm:$0xf]
        %v487 = vld [vmem:[%s403 + $0x230] sm:$0xff]
        %v488 = vld [vmem:[%s403 + $0x238] sm:$0xff]
        %v489 = vld [vmem:[%s403 + $0x240] sm:$0xff]
        %v490 = vld [vmem:[%s403 + $0x248] sm:$0xf]
        %v491 = vld [vmem:[%s403 + $0x24c] sm:$0xff]
        %v492 = vld [vmem:[%s403 + $0x254] sm:$0xff]
        %v493 = vld [vmem:[%s403 + $0x25c] sm:$0xff]
        %v494 = vld [vmem:[%s403 + $0x264] sm:$0xf]
        %v495 = vld [vmem:[%s403 + $0x268] sm:$0xff]
        %v496 = vld [vmem:[%s403 + $0x270] sm:$0xff]
        %v497 = vld [vmem:[%s403 + $0x278] sm:$0xff]
        %v498 = vld [vmem:[%s403 + $0x280] sm:$0xf]
        %v499 = vld [vmem:[%s403 + $0x284] sm:$0xff]
        %v500 = vld [vmem:[%s403 + $0x28c] sm:$0xff]
        %v501 = vld [vmem:[%s403 + $0x294] sm:$0xff]
        %v502 = vld [vmem:[%s403 + $0x29c] sm:$0xf]
        %v503 = vld [vmem:[%s403 + $0x2a0] sm:$0xff]
        %v504 = vld [vmem:[%s403 + $0x2a8] sm:$0xff]
        %v505 = vld [vmem:[%s403 + $0x2b0] sm:$0xff]
        %v506 = vld [vmem:[%s403 + $0x2b8] sm:$0xf]
        %v507 = vld [vmem:[%s403 + $0x2bc] sm:$0xff]
        %v508 = vld [vmem:[%s403 + $0x2c4] sm:$0xff]
        %v509 = vld [vmem:[%s403 + $0x2cc] sm:$0xff]
        %v510 = vld [vmem:[%s403 + $0x2d4] sm:$0xf]
        %v511 = vld [vmem:[%s403 + $0x2d8] sm:$0xff]
        %v512 = vld [vmem:[%s403 + $0x2e0] sm:$0xff]
        %v513 = vld [vmem:[%s403 + $0x2e8] sm:$0xff]
        %v514 = vld [vmem:[%s403 + $0x2f0] sm:$0xf]
        %v515 = vld [vmem:[%s403 + $0x2f4] sm:$0xff]
        %v516 = vld [vmem:[%s403 + $0x2fc] sm:$0xff]
        %v517 = vld [vmem:[%s403 + $0x304] sm:$0xff]
        %v518 = vld [vmem:[%s403 + $0x30c] sm:$0xf]
        %v519 = vld [vmem:[%s403 + $0x310] sm:$0xff]
        %v520 = vld [vmem:[%s403 + $0x318] sm:$0xff]
        %v521 = vld [vmem:[%s403 + $0x320] sm:$0xff]
        %v522 = vld [vmem:[%s403 + $0x328] sm:$0xf]
        %v523 = vld [vmem:[%s403 + $0x32c] sm:$0xff]
        %v524 = vld [vmem:[%s403 + $0x334] sm:$0xff]
        %v525 = vld [vmem:[%s403 + $0x33c] sm:$0xff]
        %v526 = vld [vmem:[%s403 + $0x344] sm:$0xf]
        %v527 = vld [vmem:[%s403 + $0x348] sm:$0xff]
        %v528 = vld [vmem:[%s403 + $0x350] sm:$0xff]
        %v529 = vld [vmem:[%s403 + $0x358] sm:$0xff]
        %v530 = vld [vmem:[%s403 + $0x360] sm:$0xf]
        %v531 = vld [vmem:[%s403 + $0x364] sm:$0xff]
        %v532 = vld [vmem:[%s403 + $0x36c] sm:$0xff]
        %v533 = vld [vmem:[%s403 + $0x374] sm:$0xff]
        %v534 = vld [vmem:[%s403 + $0x37c] sm:$0xf]
        %v535 = vld [vmem:[%s1] sm:$0xff]
        %v536 = vld [vmem:[%s1 + $0x8] sm:$0xff]
        %v537 = vld [vmem:[%s1 + $0x10] sm:$0xf]
        %v538 = vld [vmem:[%s1 + $0x14] sm:$0xff]
        %v539 = vld [vmem:[%s1 + $0x1c] sm:$0xff]
        %v540 = vld [vmem:[%s1 + $0x24] sm:$0xf]
        %v541 = vld [vmem:[%s1 + $0x28] sm:$0xff]
        %v542 = vld [vmem:[%s1 + $0x30] sm:$0xff]
        %v543 = vld [vmem:[%s1 + $0x38] sm:$0xf]
        %v544 = vld [vmem:[%s1 + $0x3c] sm:$0xff]
        %v545 = vld [vmem:[%s1 + $0x44] sm:$0xff]
        %v546 = vld [vmem:[%s1 + $0x4c] sm:$0xf]
        %v547 = vld [vmem:[%s1 + $0x50] sm:$0xff]
        %v548 = vld [vmem:[%s1 + $0x58] sm:$0xff]
        %v549 = vld [vmem:[%s1 + $0x60] sm:$0xf]
        %v550 = vld [vmem:[%s1 + $0x64] sm:$0xff]
        %v551 = vld [vmem:[%s1 + $0x6c] sm:$0xff]
        %v552 = vld [vmem:[%s1 + $0x74] sm:$0xf]
        %v553 = vld [vmem:[%s1 + $0x78] sm:$0xff]
        %v554 = vld [vmem:[%s1 + $0x80] sm:$0xff]
        %v555 = vld [vmem:[%s1 + $0x88] sm:$0xf]
        %v556 = vld [vmem:[%s1 + $0x8c] sm:$0xff]
        %v557 = vld [vmem:[%s1 + $0x94] sm:$0xff]
        %v558 = vld [vmem:[%s1 + $0x9c] sm:$0xf]
        %v559 = vld [vmem:[%s1 + $0xa0] sm:$0xff]
        %v560 = vld [vmem:[%s1 + $0xa8] sm:$0xff]
        %v561 = vld [vmem:[%s1 + $0xb0] sm:$0xf]
        %v562 = vld [vmem:[%s1 + $0xb4] sm:$0xff]
        %v563 = vld [vmem:[%s1 + $0xbc] sm:$0xff]
        %v564 = vld [vmem:[%s1 + $0xc4] sm:$0xf]
        %v565 = vld [vmem:[%s1 + $0xc8] sm:$0xff]
        %v566 = vld [vmem:[%s1 + $0xd0] sm:$0xff]
        %v567 = vld [vmem:[%s1 + $0xd8] sm:$0xf]
        %v568 = vld [vmem:[%s1 + $0xdc] sm:$0xff]
        %v569 = vld [vmem:[%s1 + $0xe4] sm:$0xff]
        %v570 = vld [vmem:[%s1 + $0xec] sm:$0xf]
        %v571 = vld [vmem:[%s1 + $0xf0] sm:$0xff]
        %v572 = vld [vmem:[%s1 + $0xf8] sm:$0xff]
        %v573 = vld [vmem:[%s1 + $0x100] sm:$0xf]
        %v574 = vld [vmem:[%s1 + $0x104] sm:$0xff]
        %v575 = vld [vmem:[%s1 + $0x10c] sm:$0xff]
        %v576 = vld [vmem:[%s1 + $0x114] sm:$0xf]
        %v577 = vld [vmem:[%s1 + $0x118] sm:$0xff]
        %v578 = vld [vmem:[%s1 + $0x120] sm:$0xff]
        %v579 = vld [vmem:[%s1 + $0x128] sm:$0xf]
        %v580 = vld [vmem:[%s1 + $0x12c] sm:$0xff]
        %v581 = vld [vmem:[%s1 + $0x134] sm:$0xff]
        %v582 = vld [vmem:[%s1 + $0x13c] sm:$0xf]
        %v583 = vld [vmem:[%s1 + $0x140] sm:$0xff]
        %v584 = vld [vmem:[%s1 + $0x148] sm:$0xff]
        %v585 = vld [vmem:[%s1 + $0x150] sm:$0xf]
        %v586 = vld [vmem:[%s1 + $0x154] sm:$0xff]
        %v587 = vld [vmem:[%s1 + $0x15c] sm:$0xff]
        %v588 = vld [vmem:[%s1 + $0x164] sm:$0xf]
        %v589 = vld [vmem:[%s1 + $0x168] sm:$0xff]
        %v590 = vld [vmem:[%s1 + $0x170] sm:$0xff]
        %v591 = vld [vmem:[%s1 + $0x178] sm:$0xf]
        %v592 = vld [vmem:[%s1 + $0x17c] sm:$0xff]
        %v593 = vld [vmem:[%s1 + $0x184] sm:$0xff]
        %v594 = vld [vmem:[%s1 + $0x18c] sm:$0xf]
        %v595 = vld [vmem:[%s1 + $0x190] sm:$0xff]
        %v596 = vld [vmem:[%s1 + $0x198] sm:$0xff]
        %v597 = vld [vmem:[%s1 + $0x1a0] sm:$0xf]
        %v598 = vld [vmem:[%s1 + $0x1a4] sm:$0xff]
        %v599 = vld [vmem:[%s1 + $0x1ac] sm:$0xff]
        %v600 = vld [vmem:[%s1 + $0x1b4] sm:$0xf]
        %v601 = vld [vmem:[%s1 + $0x1b8] sm:$0xff]
        %v602 = vld [vmem:[%s1 + $0x1c0] sm:$0xff]
        %v603 = vld [vmem:[%s1 + $0x1c8] sm:$0xf]
        %v604 = vld [vmem:[%s1 + $0x1cc] sm:$0xff]
        %v605 = vld [vmem:[%s1 + $0x1d4] sm:$0xff]
        %v606 = vld [vmem:[%s1 + $0x1dc] sm:$0xf]
        %v607 = vld [vmem:[%s1 + $0x1e0] sm:$0xff]
        %v608 = vld [vmem:[%s1 + $0x1e8] sm:$0xff]
        %v609 = vld [vmem:[%s1 + $0x1f0] sm:$0xf]
        %v610 = vld [vmem:[%s1 + $0x1f4] sm:$0xff]
        %v611 = vld [vmem:[%s1 + $0x1fc] sm:$0xff]
        %v612 = vld [vmem:[%s1 + $0x204] sm:$0xf]
        %v613 = vld [vmem:[%s1 + $0x208] sm:$0xff]
        %v614 = vld [vmem:[%s1 + $0x210] sm:$0xff]
        %v615 = vld [vmem:[%s1 + $0x218] sm:$0xf]
        %v616 = vld [vmem:[%s1 + $0x21c] sm:$0xff]
        %v617 = vld [vmem:[%s1 + $0x224] sm:$0xff]
        %v618 = vld [vmem:[%s1 + $0x22c] sm:$0xf]
        %v619 = vld [vmem:[%s1 + $0x230] sm:$0xff]
        %v620 = vld [vmem:[%s1 + $0x238] sm:$0xff]
        %v621 = vld [vmem:[%s1 + $0x240] sm:$0xf]
        %v622 = vld [vmem:[%s1 + $0x244] sm:$0xff]
        %v623 = vld [vmem:[%s1 + $0x24c] sm:$0xff]
        %v624 = vld [vmem:[%s1 + $0x254] sm:$0xf]
        %v625 = vld [vmem:[%s1 + $0x258] sm:$0xff]
        %v626 = vld [vmem:[%s1 + $0x260] sm:$0xff]
        %v627 = vld [vmem:[%s1 + $0x268] sm:$0xf]
        %v628 = vld [vmem:[%s1 + $0x26c] sm:$0xff]
        %v629 = vld [vmem:[%s1 + $0x274] sm:$0xff]
        %v630 = vld [vmem:[%s1 + $0x27c] sm:$0xf]
        %v631 = vld [vmem:[%s1 + $0x280] sm:$0xff]
        %v632 = vld [vmem:[%s1 + $0x288] sm:$0xff]
        %v633 = vld [vmem:[%s1 + $0x290] sm:$0xf]
        %v634 = vld [vmem:[%s1 + $0x294] sm:$0xff]
        %v635 = vld [vmem:[%s1 + $0x29c] sm:$0xff]
        %v636 = vld [vmem:[%s1 + $0x2a4] sm:$0xf]
        %v637 = vld [vmem:[%s1 + $0x2a8] sm:$0xff]
        %v638 = vld [vmem:[%s1 + $0x2b0] sm:$0xff]
        %v639 = vld [vmem:[%s1 + $0x2b8] sm:$0xf]
        %v640 = vld [vmem:[%s1 + $0x2bc] sm:$0xff]
        %v641 = vld [vmem:[%s1 + $0x2c4] sm:$0xff]
        %v642 = vld [vmem:[%s1 + $0x2cc] sm:$0xf]
        %v643 = vld [vmem:[%s1 + $0x2d0] sm:$0xff]
        %v644 = vld [vmem:[%s1 + $0x2d8] sm:$0xff]
        %v645 = vld [vmem:[%s1 + $0x2e0] sm:$0xf]
        %v646 = vld [vmem:[%s1 + $0x2e4] sm:$0xff]
        %v647 = vld [vmem:[%s1 + $0x2ec] sm:$0xff]
        %v648 = vld [vmem:[%s1 + $0x2f4] sm:$0xf]
        %v649 = vld [vmem:[%s1 + $0x2f8] sm:$0xff]
        %v650 = vld [vmem:[%s1 + $0x300] sm:$0xff]
        %v651 = vld [vmem:[%s1 + $0x308] sm:$0xf]
        %v652 = vld [vmem:[%s1 + $0x30c] sm:$0xff]
        %v653 = vld [vmem:[%s1 + $0x314] sm:$0xff]
        %v654 = vld [vmem:[%s1 + $0x31c] sm:$0xf]
        %v655 = vld [vmem:[%s1 + $0x320] sm:$0xff]
        %v656 = vld [vmem:[%s1 + $0x328] sm:$0xff]
        %v657 = vld [vmem:[%s1 + $0x330] sm:$0xf]
        %v658 = vld [vmem:[%s1 + $0x334] sm:$0xff]
        %v659 = vld [vmem:[%s1 + $0x33c] sm:$0xff]
        %v660 = vld [vmem:[%s1 + $0x344] sm:$0xf]
        %v661 = vld [vmem:[%s1 + $0x348] sm:$0xff]
        %v662 = vld [vmem:[%s1 + $0x350] sm:$0xff]
        %v663 = vld [vmem:[%s1 + $0x358] sm:$0xf]
        %v664 = vld [vmem:[%s1 + $0x35c] sm:$0xff]
        %v665 = vld [vmem:[%s1 + $0x364] sm:$0xff]
        %v666 = vld [vmem:[%s1 + $0x36c] sm:$0xf]
        %v667 = vld [vmem:[%s1 + $0x370] sm:$0xff]
        %v668 = vld [vmem:[%s1 + $0x378] sm:$0xff]
        %v669 = vld [vmem:[%s1 + $0x380] sm:$0xf]
        %v670 = vld [vmem:[%s1 + $0x384] sm:$0xff]
        %v671 = vld [vmem:[%s1 + $0x38c] sm:$0xff]
        %v672 = vld [vmem:[%s1 + $0x394] sm:$0xf]
        %v673 = vld [vmem:[%s1 + $0x398] sm:$0xff]
        %v674 = vld [vmem:[%s1 + $0x3a0] sm:$0xff]
        %v675 = vld [vmem:[%s1 + $0x3a8] sm:$0xf]
        %v676 = vld [vmem:[%s1 + $0x3ac] sm:$0xff]
        %v677 = vld [vmem:[%s1 + $0x3b4] sm:$0xff]
        %v678 = vld [vmem:[%s1 + $0x3bc] sm:$0xf]
        %v679 = vld [vmem:[%s1 + $0x3c0] sm:$0xff]
        %v680 = vld [vmem:[%s1 + $0x3c8] sm:$0xff]
        %v681 = vld [vmem:[%s1 + $0x3d0] sm:$0xf]
        %v682 = vld [vmem:[%s1 + $0x3d4] sm:$0xff]
        %v683 = vld [vmem:[%s1 + $0x3dc] sm:$0xff]
        %v684 = vld [vmem:[%s1 + $0x3e4] sm:$0xf]
        %v685 = vld [vmem:[%s1 + $0x3e8] sm:$0xff]
        %v686 = vld [vmem:[%s1 + $0x3f0] sm:$0xff]
        %v687 = vld [vmem:[%s1 + $0x3f8] sm:$0xf]
        %v688 = vld [vmem:[%s1 + $0x3fc] sm:$0xff]
        %v689 = vld [vmem:[%s1 + $0x404] sm:$0xff]
        %v690 = vld [vmem:[%s1 + $0x40c] sm:$0xf]
        %v691 = vld [vmem:[%s1 + $0x410] sm:$0xff]
        %v692 = vld [vmem:[%s1 + $0x418] sm:$0xff]
        %v693 = vld [vmem:[%s1 + $0x420] sm:$0xf]
        %v694 = vld [vmem:[%s1 + $0x424] sm:$0xff]
        %v695 = vld [vmem:[%s1 + $0x42c] sm:$0xff]
        %v696 = vld [vmem:[%s1 + $0x434] sm:$0xf]
        %v697 = vld [vmem:[%s1 + $0x438] sm:$0xff]
        %v698 = vld [vmem:[%s1 + $0x440] sm:$0xff]
        %v699 = vld [vmem:[%s1 + $0x448] sm:$0xf]
        %v700 = vld [vmem:[%s1 + $0x44c] sm:$0xff]
        %v701 = vld [vmem:[%s1 + $0x454] sm:$0xff]
        %v702 = vld [vmem:[%s1 + $0x45c] sm:$0xf]
        %v703 = vld [vmem:[%s1 + $0x460] sm:$0xff]
        %v704 = vld [vmem:[%s1 + $0x468] sm:$0xff]
        %v705 = vld [vmem:[%s1 + $0x470] sm:$0xf]
        %v706 = vld [vmem:[%s1 + $0x474] sm:$0xff]
        %v707 = vld [vmem:[%s1 + $0x47c] sm:$0xff]
        %v708 = vld [vmem:[%s1 + $0x484] sm:$0xf]
        %v709 = vld [vmem:[%s1 + $0x488] sm:$0xff]
        %v710 = vld [vmem:[%s1 + $0x490] sm:$0xff]
        %v711 = vld [vmem:[%s1 + $0x498] sm:$0xf]
        %v712 = vld [vmem:[%s1 + $0x49c] sm:$0xff]
        %v713 = vld [vmem:[%s1 + $0x4a4] sm:$0xff]
        %v714 = vld [vmem:[%s1 + $0x4ac] sm:$0xf]
        %v715 = vld [vmem:[%s1 + $0x4b0] sm:$0xff]
        %v716 = vld [vmem:[%s1 + $0x4b8] sm:$0xff]
        %v717 = vld [vmem:[%s1 + $0x4c0] sm:$0xf]
        %v718 = vld [vmem:[%s1 + $0x4c4] sm:$0xff]
        %v719 = vld [vmem:[%s1 + $0x4cc] sm:$0xff]
        %v720 = vld [vmem:[%s1 + $0x4d4] sm:$0xf]
        %v721 = vld [vmem:[%s1 + $0x4d8] sm:$0xff]
        %v722 = vld [vmem:[%s1 + $0x4e0] sm:$0xff]
        %v723 = vld [vmem:[%s1 + $0x4e8] sm:$0xf]
        %v724 = vld [vmem:[%s1 + $0x4ec] sm:$0xff]
        %v725 = vld [vmem:[%s1 + $0x4f4] sm:$0xff]
        %v726 = vld [vmem:[%s1 + $0x4fc] sm:$0xf]
        %v727 = vld [vmem:[%s1 + $0x500] sm:$0xff]
        %v728 = vld [vmem:[%s1 + $0x508] sm:$0xff]
        %v729 = vld [vmem:[%s1 + $0x510] sm:$0xf]
        %v730 = vld [vmem:[%s1 + $0x514] sm:$0xff]
        %v731 = vld [vmem:[%s1 + $0x51c] sm:$0xff]
        %v732 = vld [vmem:[%s1 + $0x524] sm:$0xf]
        %v733 = vld [vmem:[%s1 + $0x528] sm:$0xff]
        %v734 = vld [vmem:[%s1 + $0x530] sm:$0xff]
        %v735 = vld [vmem:[%s1 + $0x538] sm:$0xf]
        %v736 = vld [vmem:[%s1 + $0x53c] sm:$0xff]
        %v737 = vld [vmem:[%s1 + $0x544] sm:$0xff]
        %v738 = vld [vmem:[%s1 + $0x54c] sm:$0xf]
        %v739 = vld [vmem:[%s1 + $0x550] sm:$0xff]
        %v740 = vld [vmem:[%s1 + $0x558] sm:$0xff]
        %v741 = vld [vmem:[%s1 + $0x560] sm:$0xf]
        %v742 = vld [vmem:[%s1 + $0x564] sm:$0xff]
        %v743 = vld [vmem:[%s1 + $0x56c] sm:$0xff]
        %v744 = vld [vmem:[%s1 + $0x574] sm:$0xf]
        %v745 = vld [vmem:[%s1 + $0x578] sm:$0xff]
        %v746 = vld [vmem:[%s1 + $0x580] sm:$0xff]
        %v747 = vld [vmem:[%s1 + $0x588] sm:$0xf]
        %v748 = vld [vmem:[%s1 + $0x58c] sm:$0xff]
        %v749 = vld [vmem:[%s1 + $0x594] sm:$0xff]
        %v750 = vld [vmem:[%s1 + $0x59c] sm:$0xf]
        %v751 = vld [vmem:[%s1 + $0x5a0] sm:$0xff]
        %v752 = vld [vmem:[%s1 + $0x5a8] sm:$0xff]
        %v753 = vld [vmem:[%s1 + $0x5b0] sm:$0xf]
        %v754 = vld [vmem:[%s1 + $0x5b4] sm:$0xff]
        %v755 = vld [vmem:[%s1 + $0x5bc] sm:$0xff]
        %v756 = vld [vmem:[%s1 + $0x5c4] sm:$0xf]
        %v757 = vld [vmem:[%s1 + $0x5c8] sm:$0xff]
        %v758 = vld [vmem:[%s1 + $0x5d0] sm:$0xff]
        %v759 = vld [vmem:[%s1 + $0x5d8] sm:$0xf]
        %v760 = vld [vmem:[%s1 + $0x5dc] sm:$0xff]
        %v761 = vld [vmem:[%s1 + $0x5e4] sm:$0xff]
        %v762 = vld [vmem:[%s1 + $0x5ec] sm:$0xf]
        %v763 = vld [vmem:[%s1 + $0x5f0] sm:$0xff]
        %v764 = vld [vmem:[%s1 + $0x5f8] sm:$0xff]
        %v765 = vld [vmem:[%s1 + $0x600] sm:$0xf]
        %v766 = vld [vmem:[%s1 + $0x604] sm:$0xff]
        %v767 = vld [vmem:[%s1 + $0x60c] sm:$0xff]
        %v768 = vld [vmem:[%s1 + $0x614] sm:$0xf]
        %v769 = vld [vmem:[%s1 + $0x618] sm:$0xff]
        %v770 = vld [vmem:[%s1 + $0x620] sm:$0xff]
        %v771 = vld [vmem:[%s1 + $0x628] sm:$0xf]
        %v772 = vld [vmem:[%s1 + $0x62c] sm:$0xff]
        %v773 = vld [vmem:[%s1 + $0x634] sm:$0xff]
        %v774 = vld [vmem:[%s1 + $0x63c] sm:$0xf]
        %v775 = vld [vmem:[%s1 + $0x640] sm:$0xff]
        %v776 = vld [vmem:[%s1 + $0x648] sm:$0xff]
        %v777 = vld [vmem:[%s1 + $0x650] sm:$0xf]
        %v778 = vld [vmem:[%s1 + $0x654] sm:$0xff]
        %v779 = vld [vmem:[%s1 + $0x65c] sm:$0xff]
        %v780 = vld [vmem:[%s1 + $0x664] sm:$0xf]
        %v781 = vld [vmem:[%s1 + $0x668] sm:$0xff]
        %v782 = vld [vmem:[%s1 + $0x670] sm:$0xff]
        %v783 = vld [vmem:[%s1 + $0x678] sm:$0xf]
        %v784 = vld [vmem:[%s1 + $0x67c] sm:$0xff]
        %v785 = vld [vmem:[%s1 + $0x684] sm:$0xff]
        %v786 = vld [vmem:[%s1 + $0x68c] sm:$0xf]
        %v787 = vld [vmem:[%s1 + $0x690] sm:$0xff]
        %v788 = vld [vmem:[%s1 + $0x698] sm:$0xff]
        %v789 = vld [vmem:[%s1 + $0x6a0] sm:$0xf]
        %v790 = vld [vmem:[%s1 + $0x6a4] sm:$0xff]
        %v791 = vld [vmem:[%s1 + $0x6ac] sm:$0xff]
        %v792 = vld [vmem:[%s1 + $0x6b4] sm:$0xf]
        %v793 = vld [vmem:[%s1 + $0x6b8] sm:$0xff]
        %v794 = vld [vmem:[%s1 + $0x6c0] sm:$0xff]
        %v795 = vld [vmem:[%s1 + $0x6c8] sm:$0xf]
        %v796 = vld [vmem:[%s1 + $0x6cc] sm:$0xff]
        %v797 = vld [vmem:[%s1 + $0x6d4] sm:$0xff]
        %v798 = vld [vmem:[%s1 + $0x6dc] sm:$0xf]
        %v799 = vld [vmem:[%s1 + $0x6e0] sm:$0xff]
        %v800 = vld [vmem:[%s1 + $0x6e8] sm:$0xff]
        %v801 = vld [vmem:[%s1 + $0x6f0] sm:$0xf]
        %v802 = vld [vmem:[%s1 + $0x6f4] sm:$0xff]
        %v803 = vld [vmem:[%s1 + $0x6fc] sm:$0xff]
        %v804 = vld [vmem:[%s1 + $0x704] sm:$0xf]
        %v805 = vld [vmem:[%s1 + $0x708] sm:$0xff]
        %v806 = vld [vmem:[%s1 + $0x710] sm:$0xff]
        %v807 = vld [vmem:[%s1 + $0x718] sm:$0xf]
        %v808 = vld [vmem:[%s1 + $0x71c] sm:$0xff]
        %v809 = vld [vmem:[%s1 + $0x724] sm:$0xff]
        %v810 = vld [vmem:[%s1 + $0x72c] sm:$0xf]
        %v811 = vld [vmem:[%s1 + $0x730] sm:$0xff]
        %v812 = vld [vmem:[%s1 + $0x738] sm:$0xff]
        %v813 = vld [vmem:[%s1 + $0x740] sm:$0xf]
        %v814 = vld [vmem:[%s1 + $0x744] sm:$0xff]
        %v815 = vld [vmem:[%s1 + $0x74c] sm:$0xff]
        %v816 = vld [vmem:[%s1 + $0x754] sm:$0xf]
        %v817 = vld [vmem:[%s1 + $0x758] sm:$0xff]
        %v818 = vld [vmem:[%s1 + $0x760] sm:$0xff]
        %v819 = vld [vmem:[%s1 + $0x768] sm:$0xf]
        %v820 = vld [vmem:[%s1 + $0x76c] sm:$0xff]
        %v821 = vld [vmem:[%s1 + $0x774] sm:$0xff]
        %v822 = vld [vmem:[%s1 + $0x77c] sm:$0xf]
        %v823 = vld [vmem:[%s1 + $0x780] sm:$0xff]
        %v824 = vld [vmem:[%s1 + $0x788] sm:$0xff]
        %v825 = vld [vmem:[%s1 + $0x790] sm:$0xf]
        %v826 = vld [vmem:[%s1 + $0x794] sm:$0xff]
        %v827 = vld [vmem:[%s1 + $0x79c] sm:$0xff]
        %v828 = vld [vmem:[%s1 + $0x7a4] sm:$0xf]
        %v829 = vld [vmem:[%s2] sm:$0x1f]
        %v831 = vlaneseq
        %v832 = vshrl.u32 %v831, 7
        %v833 = vsub.s32 0, %v832
        %v834 = vrot.slane %v829, %v833
        %v835 = vlaneseq
        %v836 = vshrl.u32 %v835, 7
        %v837 = vsub.s32 1, %v836
        %v838 = vrot.slane %v829, %v837
        %v839 = vlaneseq
        %v840 = vshrl.u32 %v839, 7
        %v841 = vsub.s32 2, %v840
        %v842 = vrot.slane %v829, %v841
        %v843 = vlaneseq
        %v844 = vshrl.u32 %v843, 7
        %v845 = vsub.s32 3, %v844
        %v846 = vrot.slane %v829, %v845
        %v847 = vlaneseq
        %v848 = vshrl.u32 %v847, 7
        %v849 = vsub.s32 4, %v848
        %v850 = vrot.slane %v829, %v849
        %v984 = vunpack.c.l.b16 %v407
        %v985 = vunpack.c.h.b16 %v407
        %v986 = vunpack.c.l.b16 %v408
        %v987 = vunpack.c.h.b16 %v408
        %v988 = vunpack.c.l.b16 %v409
        %v989 = vunpack.c.h.b16 %v409
        %v990 = vunpack.c.l.b16 %v410
        %v991 = vunpack.c.l.b16 %v411
        %v992 = vunpack.c.h.b16 %v411
        %v993 = vunpack.c.l.b16 %v412
        %v994 = vunpack.c.h.b16 %v412
        %v995 = vunpack.c.l.b16 %v413
        %v996 = vunpack.c.h.b16 %v413
        %v997 = vunpack.c.l.b16 %v414
        %v998 = vunpack.c.l.b16 %v415
        %v999 = vunpack.c.h.b16 %v415
        %v1000 = vunpack.c.l.b16 %v416
        %v1001 = vunpack.c.h.b16 %v416
        %v1002 = vunpack.c.l.b16 %v417
        %v1003 = vunpack.c.h.b16 %v417
        %v1004 = vunpack.c.l.b16 %v418
        %v1005 = vunpack.c.l.b16 %v419
        %v1006 = vunpack.c.h.b16 %v419
        %v1007 = vunpack.c.l.b16 %v420
        %v1008 = vunpack.c.h.b16 %v420
        %v1009 = vunpack.c.l.b16 %v421
        %v1010 = vunpack.c.h.b16 %v421
        %v1011 = vunpack.c.l.b16 %v422
        %v1012 = vunpack.c.l.b16 %v423
        %v1013 = vunpack.c.h.b16 %v423
        %v1014 = vunpack.c.l.b16 %v424
        %v1015 = vunpack.c.h.b16 %v424
        %v1016 = vunpack.c.l.b16 %v425
        %v1017 = vunpack.c.h.b16 %v425
        %v1018 = vunpack.c.l.b16 %v426
        %v1019 = vunpack.c.l.b16 %v427
        %v1020 = vunpack.c.h.b16 %v427
        %v1021 = vunpack.c.l.b16 %v428
        %v1022 = vunpack.c.h.b16 %v428
        %v1023 = vunpack.c.l.b16 %v429
        %v1024 = vunpack.c.h.b16 %v429
        %v1025 = vunpack.c.l.b16 %v430
        %v1026 = vunpack.c.l.b16 %v431
        %v1027 = vunpack.c.h.b16 %v431
        %v1028 = vunpack.c.l.b16 %v432
        %v1029 = vunpack.c.h.b16 %v432
        %v1030 = vunpack.c.l.b16 %v433
        %v1031 = vunpack.c.h.b16 %v433
        %v1032 = vunpack.c.l.b16 %v434
        %v1033 = vunpack.c.l.b16 %v435
        %v1034 = vunpack.c.h.b16 %v435
        %v1035 = vunpack.c.l.b16 %v436
        %v1036 = vunpack.c.h.b16 %v436
        %v1037 = vunpack.c.l.b16 %v437
        %v1038 = vunpack.c.h.b16 %v437
        %v1039 = vunpack.c.l.b16 %v438
        %v1040 = vunpack.c.l.b16 %v439
        %v1041 = vunpack.c.h.b16 %v439
        %v1042 = vunpack.c.l.b16 %v440
        %v1043 = vunpack.c.h.b16 %v440
        %v1044 = vunpack.c.l.b16 %v441
        %v1045 = vunpack.c.h.b16 %v441
        %v1046 = vunpack.c.l.b16 %v442
        %v1047 = vunpack.c.l.b16 %v443
        %v1048 = vunpack.c.h.b16 %v443
        %v1049 = vunpack.c.l.b16 %v444
        %v1050 = vunpack.c.h.b16 %v444
        %v1051 = vunpack.c.l.b16 %v445
        %v1052 = vunpack.c.h.b16 %v445
        %v1053 = vunpack.c.l.b16 %v446
        %v1054 = vunpack.c.l.b16 %v447
        %v1055 = vunpack.c.h.b16 %v447
        %v1056 = vunpack.c.l.b16 %v448
        %v1057 = vunpack.c.h.b16 %v448
        %v1058 = vunpack.c.l.b16 %v449
        %v1059 = vunpack.c.h.b16 %v449
        %v1060 = vunpack.c.l.b16 %v450
        %v1061 = vunpack.c.l.b16 %v451
        %v1062 = vunpack.c.h.b16 %v451
        %v1063 = vunpack.c.l.b16 %v452
        %v1064 = vunpack.c.h.b16 %v452
        %v1065 = vunpack.c.l.b16 %v453
        %v1066 = vunpack.c.h.b16 %v453
        %v1067 = vunpack.c.l.b16 %v454
        %v1068 = vunpack.c.l.b16 %v455
        %v1069 = vunpack.c.h.b16 %v455
        %v1070 = vunpack.c.l.b16 %v456
        %v1071 = vunpack.c.h.b16 %v456
        %v1072 = vunpack.c.l.b16 %v457
        %v1073 = vunpack.c.h.b16 %v457
        %v1074 = vunpack.c.l.b16 %v458
        %v1075 = vunpack.c.l.b16 %v459
        %v1076 = vunpack.c.h.b16 %v459
        %v1077 = vunpack.c.l.b16 %v460
        %v1078 = vunpack.c.h.b16 %v460
        %v1079 = vunpack.c.l.b16 %v461
        %v1080 = vunpack.c.h.b16 %v461
        %v1081 = vunpack.c.l.b16 %v462
        %v1082 = vunpack.c.l.b16 %v463
        %v1083 = vunpack.c.h.b16 %v463
        %v1084 = vunpack.c.l.b16 %v464
        %v1085 = vunpack.c.h.b16 %v464
        %v1086 = vunpack.c.l.b16 %v465
        %v1087 = vunpack.c.h.b16 %v465
        %v1088 = vunpack.c.l.b16 %v466
        %v1089 = vunpack.c.l.b16 %v467
        %v1090 = vunpack.c.h.b16 %v467
        %v1091 = vunpack.c.l.b16 %v468
        %v1092 = vunpack.c.h.b16 %v468
        %v1093 = vunpack.c.l.b16 %v469
        %v1094 = vunpack.c.h.b16 %v469
        %v1095 = vunpack.c.l.b16 %v470
        %v1096 = vunpack.c.l.b16 %v471
        %v1097 = vunpack.c.h.b16 %v471
        %v1098 = vunpack.c.l.b16 %v472
        %v1099 = vunpack.c.h.b16 %v472
        %v1100 = vunpack.c.l.b16 %v473
        %v1101 = vunpack.c.h.b16 %v473
        %v1102 = vunpack.c.l.b16 %v474
        %v1103 = vunpack.c.l.b16 %v475
        %v1104 = vunpack.c.h.b16 %v475
        %v1105 = vunpack.c.l.b16 %v476
        %v1106 = vunpack.c.h.b16 %v476
        %v1107 = vunpack.c.l.b16 %v477
        %v1108 = vunpack.c.h.b16 %v477
        %v1109 = vunpack.c.l.b16 %v478
        %v1110 = vunpack.c.l.b16 %v479
        %v1111 = vunpack.c.h.b16 %v479
        %v1112 = vunpack.c.l.b16 %v480
        %v1113 = vunpack.c.h.b16 %v480
        %v1114 = vunpack.c.l.b16 %v481
        %v1115 = vunpack.c.h.b16 %v481
        %v1116 = vunpack.c.l.b16 %v482
        %v1117 = vunpack.c.l.b16 %v483
        %v1118 = vunpack.c.h.b16 %v483
        %v1119 = vunpack.c.l.b16 %v484
        %v1120 = vunpack.c.h.b16 %v484
        %v1121 = vunpack.c.l.b16 %v485
        %v1122 = vunpack.c.h.b16 %v485
        %v1123 = vunpack.c.l.b16 %v486
        %v1124 = vunpack.c.l.b16 %v487
        %v1125 = vunpack.c.h.b16 %v487
        %v1126 = vunpack.c.l.b16 %v488
        %v1127 = vunpack.c.h.b16 %v488
        %v1128 = vunpack.c.l.b16 %v489
        %v1129 = vunpack.c.h.b16 %v489
        %v1130 = vunpack.c.l.b16 %v490
        %v1131 = vunpack.c.l.b16 %v491
        %v1132 = vunpack.c.h.b16 %v491
        %v1133 = vunpack.c.l.b16 %v492
        %v1134 = vunpack.c.h.b16 %v492
        %v1135 = vunpack.c.l.b16 %v493
        %v1136 = vunpack.c.h.b16 %v493
        %v1137 = vunpack.c.l.b16 %v494
        %v1138 = vunpack.c.l.b16 %v495
        %v1139 = vunpack.c.h.b16 %v495
        %v1140 = vunpack.c.l.b16 %v496
        %v1141 = vunpack.c.h.b16 %v496
        %v1142 = vunpack.c.l.b16 %v497
        %v1143 = vunpack.c.h.b16 %v497
        %v1144 = vunpack.c.l.b16 %v498
        %v1145 = vunpack.c.l.b16 %v499
        %v1146 = vunpack.c.h.b16 %v499
        %v1147 = vunpack.c.l.b16 %v500
        %v1148 = vunpack.c.h.b16 %v500
        %v1149 = vunpack.c.l.b16 %v501
        %v1150 = vunpack.c.h.b16 %v501
        %v1151 = vunpack.c.l.b16 %v502
        %v1152 = vunpack.c.l.b16 %v503
        %v1153 = vunpack.c.h.b16 %v503
        %v1154 = vunpack.c.l.b16 %v504
        %v1155 = vunpack.c.h.b16 %v504
        %v1156 = vunpack.c.l.b16 %v505
        %v1157 = vunpack.c.h.b16 %v505
        %v1158 = vunpack.c.l.b16 %v506
        %v1159 = vunpack.c.l.b16 %v507
        %v1160 = vunpack.c.h.b16 %v507
        %v1161 = vunpack.c.l.b16 %v508
        %v1162 = vunpack.c.h.b16 %v508
        %v1163 = vunpack.c.l.b16 %v509
        %v1164 = vunpack.c.h.b16 %v509
        %v1165 = vunpack.c.l.b16 %v510
        %v1166 = vunpack.c.l.b16 %v511
        %v1167 = vunpack.c.h.b16 %v511
        %v1168 = vunpack.c.l.b16 %v512
        %v1169 = vunpack.c.h.b16 %v512
        %v1170 = vunpack.c.l.b16 %v513
        %v1171 = vunpack.c.h.b16 %v513
        %v1172 = vunpack.c.l.b16 %v514
        %v1173 = vunpack.c.l.b16 %v515
        %v1174 = vunpack.c.h.b16 %v515
        %v1175 = vunpack.c.l.b16 %v516
        %v1176 = vunpack.c.h.b16 %v516
        %v1177 = vunpack.c.l.b16 %v517
        %v1178 = vunpack.c.h.b16 %v517
        %v1179 = vunpack.c.l.b16 %v518
        %v1180 = vunpack.c.l.b16 %v519
        %v1181 = vunpack.c.h.b16 %v519
        %v1182 = vunpack.c.l.b16 %v520
        %v1183 = vunpack.c.h.b16 %v520
        %v1184 = vunpack.c.l.b16 %v521
        %v1185 = vunpack.c.h.b16 %v521
        %v1186 = vunpack.c.l.b16 %v522
        %v1187 = vunpack.c.l.b16 %v523
        %v1188 = vunpack.c.h.b16 %v523
        %v1189 = vunpack.c.l.b16 %v524
        %v1190 = vunpack.c.h.b16 %v524
        %v1191 = vunpack.c.l.b16 %v525
        %v1192 = vunpack.c.h.b16 %v525
        %v1193 = vunpack.c.l.b16 %v526
        %v1194 = vunpack.c.l.b16 %v527
        %v1195 = vunpack.c.h.b16 %v527
        %v1196 = vunpack.c.l.b16 %v528
        %v1197 = vunpack.c.h.b16 %v528
        %v1198 = vunpack.c.l.b16 %v529
        %v1199 = vunpack.c.h.b16 %v529
        %v1200 = vunpack.c.l.b16 %v530
        %v1201 = vunpack.c.l.b16 %v531
        %v1202 = vunpack.c.h.b16 %v531
        %v1203 = vunpack.c.l.b16 %v532
        %v1204 = vunpack.c.h.b16 %v532
        %v1205 = vunpack.c.l.b16 %v533
        %v1206 = vunpack.c.h.b16 %v533
        %v1207 = vunpack.c.l.b16 %v534
        %v1208 = vpack.c.b16 %v991, %v984
        %v1209 = vpack.c.b16 %v992, %v985
        %v1210 = vpack.c.b16 %v993, %v986
        %v1211 = vpack.c.b16 %v994, %v987
        %v1212 = vpack.c.b16 %v995, %v988
        %v1213 = vpack.c.b16 %v996, %v989
        %v1214 = vpack.c.b16 %v997, %v990
        %v1215 = vpack.c.b16 %v1005, %v998
        %v1216 = vpack.c.b16 %v1006, %v999
        %v1217 = vpack.c.b16 %v1007, %v1000
        %v1218 = vpack.c.b16 %v1008, %v1001
        %v1219 = vpack.c.b16 %v1009, %v1002
        %v1220 = vpack.c.b16 %v1010, %v1003
        %v1221 = vpack.c.b16 %v1011, %v1004
        %v1222 = vpack.c.b16 %v1019, %v1012
        %v1223 = vpack.c.b16 %v1020, %v1013
        %v1224 = vpack.c.b16 %v1021, %v1014
        %v1225 = vpack.c.b16 %v1022, %v1015
        %v1226 = vpack.c.b16 %v1023, %v1016
        %v1227 = vpack.c.b16 %v1024, %v1017
        %v1228 = vpack.c.b16 %v1025, %v1018
        %v1229 = vpack.c.b16 %v1033, %v1026
        %v1230 = vpack.c.b16 %v1034, %v1027
        %v1231 = vpack.c.b16 %v1035, %v1028
        %v1232 = vpack.c.b16 %v1036, %v1029
        %v1233 = vpack.c.b16 %v1037, %v1030
        %v1234 = vpack.c.b16 %v1038, %v1031
        %v1235 = vpack.c.b16 %v1039, %v1032
        %v1236 = vpack.c.b16 %v1047, %v1040
        %v1237 = vpack.c.b16 %v1048, %v1041
        %v1238 = vpack.c.b16 %v1049, %v1042
        %v1239 = vpack.c.b16 %v1050, %v1043
        %v1240 = vpack.c.b16 %v1051, %v1044
        %v1241 = vpack.c.b16 %v1052, %v1045
        %v1242 = vpack.c.b16 %v1053, %v1046
        %v1243 = vpack.c.b16 %v1061, %v1054
        %v1244 = vpack.c.b16 %v1062, %v1055
        %v1245 = vpack.c.b16 %v1063, %v1056
        %v1246 = vpack.c.b16 %v1064, %v1057
        %v1247 = vpack.c.b16 %v1065, %v1058
        %v1248 = vpack.c.b16 %v1066, %v1059
        %v1249 = vpack.c.b16 %v1067, %v1060
        %v1250 = vpack.c.b16 %v1075, %v1068
        %v1251 = vpack.c.b16 %v1076, %v1069
        %v1252 = vpack.c.b16 %v1077, %v1070
        %v1253 = vpack.c.b16 %v1078, %v1071
        %v1254 = vpack.c.b16 %v1079, %v1072
        %v1255 = vpack.c.b16 %v1080, %v1073
        %v1256 = vpack.c.b16 %v1081, %v1074
        %v1257 = vpack.c.b16 %v1089, %v1082
        %v1258 = vpack.c.b16 %v1090, %v1083
        %v1259 = vpack.c.b16 %v1091, %v1084
        %v1260 = vpack.c.b16 %v1092, %v1085
        %v1261 = vpack.c.b16 %v1093, %v1086
        %v1262 = vpack.c.b16 %v1094, %v1087
        %v1263 = vpack.c.b16 %v1095, %v1088
        %v1264 = vpack.c.b16 %v1103, %v1096
        %v1265 = vpack.c.b16 %v1104, %v1097
        %v1266 = vpack.c.b16 %v1105, %v1098
        %v1267 = vpack.c.b16 %v1106, %v1099
        %v1268 = vpack.c.b16 %v1107, %v1100
        %v1269 = vpack.c.b16 %v1108, %v1101
        %v1270 = vpack.c.b16 %v1109, %v1102
        %v1271 = vpack.c.b16 %v1117, %v1110
        %v1272 = vpack.c.b16 %v1118, %v1111
        %v1273 = vpack.c.b16 %v1119, %v1112
        %v1274 = vpack.c.b16 %v1120, %v1113
        %v1275 = vpack.c.b16 %v1121, %v1114
        %v1276 = vpack.c.b16 %v1122, %v1115
        %v1277 = vpack.c.b16 %v1123, %v1116
        %v1278 = vpack.c.b16 %v1131, %v1124
        %v1279 = vpack.c.b16 %v1132, %v1125
        %v1280 = vpack.c.b16 %v1133, %v1126
        %v1281 = vpack.c.b16 %v1134, %v1127
        %v1282 = vpack.c.b16 %v1135, %v1128
        %v1283 = vpack.c.b16 %v1136, %v1129
        %v1284 = vpack.c.b16 %v1137, %v1130
        %v1285 = vpack.c.b16 %v1145, %v1138
        %v1286 = vpack.c.b16 %v1146, %v1139
        %v1287 = vpack.c.b16 %v1147, %v1140
        %v1288 = vpack.c.b16 %v1148, %v1141
        %v1289 = vpack.c.b16 %v1149, %v1142
        %v1290 = vpack.c.b16 %v1150, %v1143
        %v1291 = vpack.c.b16 %v1151, %v1144
        %v1292 = vpack.c.b16 %v1159, %v1152
        %v1293 = vpack.c.b16 %v1160, %v1153
        %v1294 = vpack.c.b16 %v1161, %v1154
        %v1295 = vpack.c.b16 %v1162, %v1155
        %v1296 = vpack.c.b16 %v1163, %v1156
        %v1297 = vpack.c.b16 %v1164, %v1157
        %v1298 = vpack.c.b16 %v1165, %v1158
        %v1299 = vpack.c.b16 %v1173, %v1166
        %v1300 = vpack.c.b16 %v1174, %v1167
        %v1301 = vpack.c.b16 %v1175, %v1168
        %v1302 = vpack.c.b16 %v1176, %v1169
        %v1303 = vpack.c.b16 %v1177, %v1170
        %v1304 = vpack.c.b16 %v1178, %v1171
        %v1305 = vpack.c.b16 %v1179, %v1172
        %v1306 = vpack.c.b16 %v1187, %v1180
        %v1307 = vpack.c.b16 %v1188, %v1181
        %v1308 = vpack.c.b16 %v1189, %v1182
        %v1309 = vpack.c.b16 %v1190, %v1183
        %v1310 = vpack.c.b16 %v1191, %v1184
        %v1311 = vpack.c.b16 %v1192, %v1185
        %v1312 = vpack.c.b16 %v1193, %v1186
        %v1313 = vpack.c.b16 %v1201, %v1194
        %v1314 = vpack.c.b16 %v1202, %v1195
        %v1315 = vpack.c.b16 %v1203, %v1196
        %v1316 = vpack.c.b16 %v1204, %v1197
        %v1317 = vpack.c.b16 %v1205, %v1198
        %v1318 = vpack.c.b16 %v1206, %v1199
        %v1319 = vpack.c.b16 %v1207, %v1200
        %v1710 = vunpack.c.l.b16 %v535
        %v1711 = vunpack.c.h.b16 %v535
        %v1712 = vunpack.c.l.b16 %v536
        %v1713 = vunpack.c.h.b16 %v536
        %v1714 = vunpack.c.l.b16 %v537
        %v1715 = vunpack.c.l.b16 %v538
        %v1716 = vunpack.c.h.b16 %v538
        %v1717 = vunpack.c.l.b16 %v539
        %v1718 = vunpack.c.h.b16 %v539
        %v1719 = vunpack.c.l.b16 %v540
        %v1720 = vunpack.c.l.b16 %v541
        %v1721 = vunpack.c.h.b16 %v541
        %v1722 = vunpack.c.l.b16 %v542
        %v1723 = vunpack.c.h.b16 %v542
        %v1724 = vunpack.c.l.b16 %v543
        %v1725 = vunpack.c.l.b16 %v544
        %v1726 = vunpack.c.h.b16 %v544
        %v1727 = vunpack.c.l.b16 %v545
        %v1728 = vunpack.c.h.b16 %v545
        %v1729 = vunpack.c.l.b16 %v546
        %v1730 = vunpack.c.l.b16 %v547
        %v1731 = vunpack.c.h.b16 %v547
        %v1732 = vunpack.c.l.b16 %v548
        %v1733 = vunpack.c.h.b16 %v548
        %v1734 = vunpack.c.l.b16 %v549
        %v1735 = vunpack.c.l.b16 %v550
        %v1736 = vunpack.c.h.b16 %v550
        %v1737 = vunpack.c.l.b16 %v551
        %v1738 = vunpack.c.h.b16 %v551
        %v1739 = vunpack.c.l.b16 %v552
        %v1740 = vunpack.c.l.b16 %v553
        %v1741 = vunpack.c.h.b16 %v553
        %v1742 = vunpack.c.l.b16 %v554
        %v1743 = vunpack.c.h.b16 %v554
        %v1744 = vunpack.c.l.b16 %v555
        %v1745 = vunpack.c.l.b16 %v556
        %v1746 = vunpack.c.h.b16 %v556
        %v1747 = vunpack.c.l.b16 %v557
        %v1748 = vunpack.c.h.b16 %v557
        %v1749 = vunpack.c.l.b16 %v558
        %v1750 = vunpack.c.l.b16 %v559
        %v1751 = vunpack.c.h.b16 %v559
        %v1752 = vunpack.c.l.b16 %v560
        %v1753 = vunpack.c.h.b16 %v560
        %v1754 = vunpack.c.l.b16 %v561
        %v1755 = vunpack.c.l.b16 %v562
        %v1756 = vunpack.c.h.b16 %v562
        %v1757 = vunpack.c.l.b16 %v563
        %v1758 = vunpack.c.h.b16 %v563
        %v1759 = vunpack.c.l.b16 %v564
        %v1760 = vunpack.c.l.b16 %v565
        %v1761 = vunpack.c.h.b16 %v565
        %v1762 = vunpack.c.l.b16 %v566
        %v1763 = vunpack.c.h.b16 %v566
        %v1764 = vunpack.c.l.b16 %v567
        %v1765 = vunpack.c.l.b16 %v568
        %v1766 = vunpack.c.h.b16 %v568
        %v1767 = vunpack.c.l.b16 %v569
        %v1768 = vunpack.c.h.b16 %v569
        %v1769 = vunpack.c.l.b16 %v570
        %v1770 = vunpack.c.l.b16 %v571
        %v1771 = vunpack.c.h.b16 %v571
        %v1772 = vunpack.c.l.b16 %v572
        %v1773 = vunpack.c.h.b16 %v572
        %v1774 = vunpack.c.l.b16 %v573
        %v1775 = vunpack.c.l.b16 %v574
        %v1776 = vunpack.c.h.b16 %v574
        %v1777 = vunpack.c.l.b16 %v575
        %v1778 = vunpack.c.h.b16 %v575
        %v1779 = vunpack.c.l.b16 %v576
        %v1780 = vunpack.c.l.b16 %v577
        %v1781 = vunpack.c.h.b16 %v577
        %v1782 = vunpack.c.l.b16 %v578
        %v1783 = vunpack.c.h.b16 %v578
        %v1784 = vunpack.c.l.b16 %v579
        %v1785 = vunpack.c.l.b16 %v580
        %v1786 = vunpack.c.h.b16 %v580
        %v1787 = vunpack.c.l.b16 %v581
        %v1788 = vunpack.c.h.b16 %v581
        %v1789 = vunpack.c.l.b16 %v582
        %v1790 = vunpack.c.l.b16 %v583
        %v1791 = vunpack.c.h.b16 %v583
        %v1792 = vunpack.c.l.b16 %v584
        %v1793 = vunpack.c.h.b16 %v584
        %v1794 = vunpack.c.l.b16 %v585
        %v1795 = vunpack.c.l.b16 %v586
        %v1796 = vunpack.c.h.b16 %v586
        %v1797 = vunpack.c.l.b16 %v587
        %v1798 = vunpack.c.h.b16 %v587
        %v1799 = vunpack.c.l.b16 %v588
        %v1800 = vunpack.c.l.b16 %v589
        %v1801 = vunpack.c.h.b16 %v589
        %v1802 = vunpack.c.l.b16 %v590
        %v1803 = vunpack.c.h.b16 %v590
        %v1804 = vunpack.c.l.b16 %v591
        %v1805 = vunpack.c.l.b16 %v592
        %v1806 = vunpack.c.h.b16 %v592
        %v1807 = vunpack.c.l.b16 %v593
        %v1808 = vunpack.c.h.b16 %v593
        %v1809 = vunpack.c.l.b16 %v594
        %v1810 = vunpack.c.l.b16 %v595
        %v1811 = vunpack.c.h.b16 %v595
        %v1812 = vunpack.c.l.b16 %v596
        %v1813 = vunpack.c.h.b16 %v596
        %v1814 = vunpack.c.l.b16 %v597
        %v1815 = vunpack.c.l.b16 %v598
        %v1816 = vunpack.c.h.b16 %v598
        %v1817 = vunpack.c.l.b16 %v599
        %v1818 = vunpack.c.h.b16 %v599
        %v1819 = vunpack.c.l.b16 %v600
        %v1820 = vunpack.c.l.b16 %v601
        %v1821 = vunpack.c.h.b16 %v601
        %v1822 = vunpack.c.l.b16 %v602
        %v1823 = vunpack.c.h.b16 %v602
        %v1824 = vunpack.c.l.b16 %v603
        %v1825 = vunpack.c.l.b16 %v604
        %v1826 = vunpack.c.h.b16 %v604
        %v1827 = vunpack.c.l.b16 %v605
        %v1828 = vunpack.c.h.b16 %v605
        %v1829 = vunpack.c.l.b16 %v606
        %v1830 = vunpack.c.l.b16 %v607
        %v1831 = vunpack.c.h.b16 %v607
        %v1832 = vunpack.c.l.b16 %v608
        %v1833 = vunpack.c.h.b16 %v608
        %v1834 = vunpack.c.l.b16 %v609
        %v1835 = vunpack.c.l.b16 %v610
        %v1836 = vunpack.c.h.b16 %v610
        %v1837 = vunpack.c.l.b16 %v611
        %v1838 = vunpack.c.h.b16 %v611
        %v1839 = vunpack.c.l.b16 %v612
        %v1840 = vunpack.c.l.b16 %v613
        %v1841 = vunpack.c.h.b16 %v613
        %v1842 = vunpack.c.l.b16 %v614
        %v1843 = vunpack.c.h.b16 %v614
        %v1844 = vunpack.c.l.b16 %v615
        %v1845 = vunpack.c.l.b16 %v616
        %v1846 = vunpack.c.h.b16 %v616
        %v1847 = vunpack.c.l.b16 %v617
        %v1848 = vunpack.c.h.b16 %v617
        %v1849 = vunpack.c.l.b16 %v618
        %v1850 = vunpack.c.l.b16 %v619
        %v1851 = vunpack.c.h.b16 %v619
        %v1852 = vunpack.c.l.b16 %v620
        %v1853 = vunpack.c.h.b16 %v620
        %v1854 = vunpack.c.l.b16 %v621
        %v1855 = vunpack.c.l.b16 %v622
        %v1856 = vunpack.c.h.b16 %v622
        %v1857 = vunpack.c.l.b16 %v623
        %v1858 = vunpack.c.h.b16 %v623
        %v1859 = vunpack.c.l.b16 %v624
        %v1860 = vunpack.c.l.b16 %v625
        %v1861 = vunpack.c.h.b16 %v625
        %v1862 = vunpack.c.l.b16 %v626
        %v1863 = vunpack.c.h.b16 %v626
        %v1864 = vunpack.c.l.b16 %v627
        %v1865 = vunpack.c.l.b16 %v628
        %v1866 = vunpack.c.h.b16 %v628
        %v1867 = vunpack.c.l.b16 %v629
        %v1868 = vunpack.c.h.b16 %v629
        %v1869 = vunpack.c.l.b16 %v630
        %v1870 = vunpack.c.l.b16 %v631
        %v1871 = vunpack.c.h.b16 %v631
        %v1872 = vunpack.c.l.b16 %v632
        %v1873 = vunpack.c.h.b16 %v632
        %v1874 = vunpack.c.l.b16 %v633
        %v1875 = vunpack.c.l.b16 %v634
        %v1876 = vunpack.c.h.b16 %v634
        %v1877 = vunpack.c.l.b16 %v635
        %v1878 = vunpack.c.h.b16 %v635
        %v1879 = vunpack.c.l.b16 %v636
        %v1880 = vunpack.c.l.b16 %v637
        %v1881 = vunpack.c.h.b16 %v637
        %v1882 = vunpack.c.l.b16 %v638
        %v1883 = vunpack.c.h.b16 %v638
        %v1884 = vunpack.c.l.b16 %v639
        %v1885 = vunpack.c.l.b16 %v640
        %v1886 = vunpack.c.h.b16 %v640
        %v1887 = vunpack.c.l.b16 %v641
        %v1888 = vunpack.c.h.b16 %v641
        %v1889 = vunpack.c.l.b16 %v642
        %v1890 = vunpack.c.l.b16 %v643
        %v1891 = vunpack.c.h.b16 %v643
        %v1892 = vunpack.c.l.b16 %v644
        %v1893 = vunpack.c.h.b16 %v644
        %v1894 = vunpack.c.l.b16 %v645
        %v1895 = vunpack.c.l.b16 %v646
        %v1896 = vunpack.c.h.b16 %v646
        %v1897 = vunpack.c.l.b16 %v647
        %v1898 = vunpack.c.h.b16 %v647
        %v1899 = vunpack.c.l.b16 %v648
        %v1900 = vunpack.c.l.b16 %v649
        %v1901 = vunpack.c.h.b16 %v649
        %v1902 = vunpack.c.l.b16 %v650
        %v1903 = vunpack.c.h.b16 %v650
        %v1904 = vunpack.c.l.b16 %v651
        %v1905 = vunpack.c.l.b16 %v652
        %v1906 = vunpack.c.h.b16 %v652
        %v1907 = vunpack.c.l.b16 %v653
        %v1908 = vunpack.c.h.b16 %v653
        %v1909 = vunpack.c.l.b16 %v654
        %v1910 = vunpack.c.l.b16 %v655
        %v1911 = vunpack.c.h.b16 %v655
        %v1912 = vunpack.c.l.b16 %v656
        %v1913 = vunpack.c.h.b16 %v656
        %v1914 = vunpack.c.l.b16 %v657
        %v1915 = vunpack.c.l.b16 %v658
        %v1916 = vunpack.c.h.b16 %v658
        %v1917 = vunpack.c.l.b16 %v659
        %v1918 = vunpack.c.h.b16 %v659
        %v1919 = vunpack.c.l.b16 %v660
        %v1920 = vunpack.c.l.b16 %v661
        %v1921 = vunpack.c.h.b16 %v661
        %v1922 = vunpack.c.l.b16 %v662
        %v1923 = vunpack.c.h.b16 %v662
        %v1924 = vunpack.c.l.b16 %v663
        %v1925 = vunpack.c.l.b16 %v664
        %v1926 = vunpack.c.h.b16 %v664
        %v1927 = vunpack.c.l.b16 %v665
        %v1928 = vunpack.c.h.b16 %v665
        %v1929 = vunpack.c.l.b16 %v666
        %v1930 = vunpack.c.l.b16 %v667
        %v1931 = vunpack.c.h.b16 %v667
        %v1932 = vunpack.c.l.b16 %v668
        %v1933 = vunpack.c.h.b16 %v668
        %v1934 = vunpack.c.l.b16 %v669
        %v1935 = vunpack.c.l.b16 %v670
        %v1936 = vunpack.c.h.b16 %v670
        %v1937 = vunpack.c.l.b16 %v671
        %v1938 = vunpack.c.h.b16 %v671
        %v1939 = vunpack.c.l.b16 %v672
        %v1940 = vunpack.c.l.b16 %v673
        %v1941 = vunpack.c.h.b16 %v673
        %v1942 = vunpack.c.l.b16 %v674
        %v1943 = vunpack.c.h.b16 %v674
        %v1944 = vunpack.c.l.b16 %v675
        %v1945 = vunpack.c.l.b16 %v676
        %v1946 = vunpack.c.h.b16 %v676
        %v1947 = vunpack.c.l.b16 %v677
        %v1948 = vunpack.c.h.b16 %v677
        %v1949 = vunpack.c.l.b16 %v678
        %v1950 = vunpack.c.l.b16 %v679
        %v1951 = vunpack.c.h.b16 %v679
        %v1952 = vunpack.c.l.b16 %v680
        %v1953 = vunpack.c.h.b16 %v680
        %v1954 = vunpack.c.l.b16 %v681
        %v1955 = vunpack.c.l.b16 %v682
        %v1956 = vunpack.c.h.b16 %v682
        %v1957 = vunpack.c.l.b16 %v683
        %v1958 = vunpack.c.h.b16 %v683
        %v1959 = vunpack.c.l.b16 %v684
        %v1960 = vunpack.c.l.b16 %v685
        %v1961 = vunpack.c.h.b16 %v685
        %v1962 = vunpack.c.l.b16 %v686
        %v1963 = vunpack.c.h.b16 %v686
        %v1964 = vunpack.c.l.b16 %v687
        %v1965 = vunpack.c.l.b16 %v688
        %v1966 = vunpack.c.h.b16 %v688
        %v1967 = vunpack.c.l.b16 %v689
        %v1968 = vunpack.c.h.b16 %v689
        %v1969 = vunpack.c.l.b16 %v690
        %v1970 = vunpack.c.l.b16 %v691
        %v1971 = vunpack.c.h.b16 %v691
        %v1972 = vunpack.c.l.b16 %v692
        %v1973 = vunpack.c.h.b16 %v692
        %v1974 = vunpack.c.l.b16 %v693
        %v1975 = vunpack.c.l.b16 %v694
        %v1976 = vunpack.c.h.b16 %v694
        %v1977 = vunpack.c.l.b16 %v695
        %v1978 = vunpack.c.h.b16 %v695
        %v1979 = vunpack.c.l.b16 %v696
        %v1980 = vunpack.c.l.b16 %v697
        %v1981 = vunpack.c.h.b16 %v697
        %v1982 = vunpack.c.l.b16 %v698
        %v1983 = vunpack.c.h.b16 %v698
        %v1984 = vunpack.c.l.b16 %v699
        %v1985 = vunpack.c.l.b16 %v700
        %v1986 = vunpack.c.h.b16 %v700
        %v1987 = vunpack.c.l.b16 %v701
        %v1988 = vunpack.c.h.b16 %v701
        %v1989 = vunpack.c.l.b16 %v702
        %v1990 = vunpack.c.l.b16 %v703
        %v1991 = vunpack.c.h.b16 %v703
        %v1992 = vunpack.c.l.b16 %v704
        %v1993 = vunpack.c.h.b16 %v704
        %v1994 = vunpack.c.l.b16 %v705
        %v1995 = vunpack.c.l.b16 %v706
        %v1996 = vunpack.c.h.b16 %v706
        %v1997 = vunpack.c.l.b16 %v707
        %v1998 = vunpack.c.h.b16 %v707
        %v1999 = vunpack.c.l.b16 %v708
        %v2000 = vunpack.c.l.b16 %v709
        %v2001 = vunpack.c.h.b16 %v709
        %v2002 = vunpack.c.l.b16 %v710
        %v2003 = vunpack.c.h.b16 %v710
        %v2004 = vunpack.c.l.b16 %v711
        %v2005 = vunpack.c.l.b16 %v712
        %v2006 = vunpack.c.h.b16 %v712
        %v2007 = vunpack.c.l.b16 %v713
        %v2008 = vunpack.c.h.b16 %v713
        %v2009 = vunpack.c.l.b16 %v714
        %v2010 = vunpack.c.l.b16 %v715
        %v2011 = vunpack.c.h.b16 %v715
        %v2012 = vunpack.c.l.b16 %v716
        %v2013 = vunpack.c.h.b16 %v716
        %v2014 = vunpack.c.l.b16 %v717
        %v2015 = vunpack.c.l.b16 %v718
        %v2016 = vunpack.c.h.b16 %v718
        %v2017 = vunpack.c.l.b16 %v719
        %v2018 = vunpack.c.h.b16 %v719
        %v2019 = vunpack.c.l.b16 %v720
        %v2020 = vunpack.c.l.b16 %v721
        %v2021 = vunpack.c.h.b16 %v721
        %v2022 = vunpack.c.l.b16 %v722
        %v2023 = vunpack.c.h.b16 %v722
        %v2024 = vunpack.c.l.b16 %v723
        %v2025 = vunpack.c.l.b16 %v724
        %v2026 = vunpack.c.h.b16 %v724
        %v2027 = vunpack.c.l.b16 %v725
        %v2028 = vunpack.c.h.b16 %v725
        %v2029 = vunpack.c.l.b16 %v726
        %v2030 = vunpack.c.l.b16 %v727
        %v2031 = vunpack.c.h.b16 %v727
        %v2032 = vunpack.c.l.b16 %v728
        %v2033 = vunpack.c.h.b16 %v728
        %v2034 = vunpack.c.l.b16 %v729
        %v2035 = vunpack.c.l.b16 %v730
        %v2036 = vunpack.c.h.b16 %v730
        %v2037 = vunpack.c.l.b16 %v731
        %v2038 = vunpack.c.h.b16 %v731
        %v2039 = vunpack.c.l.b16 %v732
        %v2040 = vunpack.c.l.b16 %v733
        %v2041 = vunpack.c.h.b16 %v733
        %v2042 = vunpack.c.l.b16 %v734
        %v2043 = vunpack.c.h.b16 %v734
        %v2044 = vunpack.c.l.b16 %v735
        %v2045 = vunpack.c.l.b16 %v736
        %v2046 = vunpack.c.h.b16 %v736
        %v2047 = vunpack.c.l.b16 %v737
        %v2048 = vunpack.c.h.b16 %v737
        %v2049 = vunpack.c.l.b16 %v738
        %v2050 = vunpack.c.l.b16 %v739
        %v2051 = vunpack.c.h.b16 %v739
        %v2052 = vunpack.c.l.b16 %v740
        %v2053 = vunpack.c.h.b16 %v740
        %v2054 = vunpack.c.l.b16 %v741
        %v2055 = vunpack.c.l.b16 %v742
        %v2056 = vunpack.c.h.b16 %v742
        %v2057 = vunpack.c.l.b16 %v743
        %v2058 = vunpack.c.h.b16 %v743
        %v2059 = vunpack.c.l.b16 %v744
        %v2060 = vunpack.c.l.b16 %v745
        %v2061 = vunpack.c.h.b16 %v745
        %v2062 = vunpack.c.l.b16 %v746
        %v2063 = vunpack.c.h.b16 %v746
        %v2064 = vunpack.c.l.b16 %v747
        %v2065 = vunpack.c.l.b16 %v748
        %v2066 = vunpack.c.h.b16 %v748
        %v2067 = vunpack.c.l.b16 %v749
        %v2068 = vunpack.c.h.b16 %v749
        %v2069 = vunpack.c.l.b16 %v750
        %v2070 = vunpack.c.l.b16 %v751
        %v2071 = vunpack.c.h.b16 %v751
        %v2072 = vunpack.c.l.b16 %v752
        %v2073 = vunpack.c.h.b16 %v752
        %v2074 = vunpack.c.l.b16 %v753
        %v2075 = vunpack.c.l.b16 %v754
        %v2076 = vunpack.c.h.b16 %v754
        %v2077 = vunpack.c.l.b16 %v755
        %v2078 = vunpack.c.h.b16 %v755
        %v2079 = vunpack.c.l.b16 %v756
        %v2080 = vunpack.c.l.b16 %v757
        %v2081 = vunpack.c.h.b16 %v757
        %v2082 = vunpack.c.l.b16 %v758
        %v2083 = vunpack.c.h.b16 %v758
        %v2084 = vunpack.c.l.b16 %v759
        %v2085 = vunpack.c.l.b16 %v760
        %v2086 = vunpack.c.h.b16 %v760
        %v2087 = vunpack.c.l.b16 %v761
        %v2088 = vunpack.c.h.b16 %v761
        %v2089 = vunpack.c.l.b16 %v762
        %v2090 = vunpack.c.l.b16 %v763
        %v2091 = vunpack.c.h.b16 %v763
        %v2092 = vunpack.c.l.b16 %v764
        %v2093 = vunpack.c.h.b16 %v764
        %v2094 = vunpack.c.l.b16 %v765
        %v2095 = vunpack.c.l.b16 %v766
        %v2096 = vunpack.c.h.b16 %v766
        %v2097 = vunpack.c.l.b16 %v767
        %v2098 = vunpack.c.h.b16 %v767
        %v2099 = vunpack.c.l.b16 %v768
        %v2100 = vunpack.c.l.b16 %v769
        %v2101 = vunpack.c.h.b16 %v769
        %v2102 = vunpack.c.l.b16 %v770
        %v2103 = vunpack.c.h.b16 %v770
        %v2104 = vunpack.c.l.b16 %v771
        %v2105 = vunpack.c.l.b16 %v772
        %v2106 = vunpack.c.h.b16 %v772
        %v2107 = vunpack.c.l.b16 %v773
        %v2108 = vunpack.c.h.b16 %v773
        %v2109 = vunpack.c.l.b16 %v774
        %v2110 = vunpack.c.l.b16 %v775
        %v2111 = vunpack.c.h.b16 %v775
        %v2112 = vunpack.c.l.b16 %v776
        %v2113 = vunpack.c.h.b16 %v776
        %v2114 = vunpack.c.l.b16 %v777
        %v2115 = vunpack.c.l.b16 %v778
        %v2116 = vunpack.c.h.b16 %v778
        %v2117 = vunpack.c.l.b16 %v779
        %v2118 = vunpack.c.h.b16 %v779
        %v2119 = vunpack.c.l.b16 %v780
        %v2120 = vunpack.c.l.b16 %v781
        %v2121 = vunpack.c.h.b16 %v781
        %v2122 = vunpack.c.l.b16 %v782
        %v2123 = vunpack.c.h.b16 %v782
        %v2124 = vunpack.c.l.b16 %v783
        %v2125 = vunpack.c.l.b16 %v784
        %v2126 = vunpack.c.h.b16 %v784
        %v2127 = vunpack.c.l.b16 %v785
        %v2128 = vunpack.c.h.b16 %v785
        %v2129 = vunpack.c.l.b16 %v786
        %v2130 = vunpack.c.l.b16 %v787
        %v2131 = vunpack.c.h.b16 %v787
        %v2132 = vunpack.c.l.b16 %v788
        %v2133 = vunpack.c.h.b16 %v788
        %v2134 = vunpack.c.l.b16 %v789
        %v2135 = vunpack.c.l.b16 %v790
        %v2136 = vunpack.c.h.b16 %v790
        %v2137 = vunpack.c.l.b16 %v791
        %v2138 = vunpack.c.h.b16 %v791
        %v2139 = vunpack.c.l.b16 %v792
        %v2140 = vunpack.c.l.b16 %v793
        %v2141 = vunpack.c.h.b16 %v793
        %v2142 = vunpack.c.l.b16 %v794
        %v2143 = vunpack.c.h.b16 %v794
        %v2144 = vunpack.c.l.b16 %v795
        %v2145 = vunpack.c.l.b16 %v796
        %v2146 = vunpack.c.h.b16 %v796
        %v2147 = vunpack.c.l.b16 %v797
        %v2148 = vunpack.c.h.b16 %v797
        %v2149 = vunpack.c.l.b16 %v798
        %v2150 = vunpack.c.l.b16 %v799
        %v2151 = vunpack.c.h.b16 %v799
        %v2152 = vunpack.c.l.b16 %v800
        %v2153 = vunpack.c.h.b16 %v800
        %v2154 = vunpack.c.l.b16 %v801
        %v2155 = vunpack.c.l.b16 %v802
        %v2156 = vunpack.c.h.b16 %v802
        %v2157 = vunpack.c.l.b16 %v803
        %v2158 = vunpack.c.h.b16 %v803
        %v2159 = vunpack.c.l.b16 %v804
        %v2160 = vunpack.c.l.b16 %v805
        %v2161 = vunpack.c.h.b16 %v805
        %v2162 = vunpack.c.l.b16 %v806
        %v2163 = vunpack.c.h.b16 %v806
        %v2164 = vunpack.c.l.b16 %v807
        %v2165 = vunpack.c.l.b16 %v808
        %v2166 = vunpack.c.h.b16 %v808
        %v2167 = vunpack.c.l.b16 %v809
        %v2168 = vunpack.c.h.b16 %v809
        %v2169 = vunpack.c.l.b16 %v810
        %v2170 = vunpack.c.l.b16 %v811
        %v2171 = vunpack.c.h.b16 %v811
        %v2172 = vunpack.c.l.b16 %v812
        %v2173 = vunpack.c.h.b16 %v812
        %v2174 = vunpack.c.l.b16 %v813
        %v2175 = vunpack.c.l.b16 %v814
        %v2176 = vunpack.c.h.b16 %v814
        %v2177 = vunpack.c.l.b16 %v815
        %v2178 = vunpack.c.h.b16 %v815
        %v2179 = vunpack.c.l.b16 %v816
        %v2180 = vunpack.c.l.b16 %v817
        %v2181 = vunpack.c.h.b16 %v817
        %v2182 = vunpack.c.l.b16 %v818
        %v2183 = vunpack.c.h.b16 %v818
        %v2184 = vunpack.c.l.b16 %v819
        %v2185 = vunpack.c.l.b16 %v820
        %v2186 = vunpack.c.h.b16 %v820
        %v2187 = vunpack.c.l.b16 %v821
        %v2188 = vunpack.c.h.b16 %v821
        %v2189 = vunpack.c.l.b16 %v822
        %v2190 = vunpack.c.l.b16 %v823
        %v2191 = vunpack.c.h.b16 %v823
        %v2192 = vunpack.c.l.b16 %v824
        %v2193 = vunpack.c.h.b16 %v824
        %v2194 = vunpack.c.l.b16 %v825
        %v2195 = vunpack.c.l.b16 %v826
        %v2196 = vunpack.c.h.b16 %v826
        %v2197 = vunpack.c.l.b16 %v827
        %v2198 = vunpack.c.h.b16 %v827
        %v2199 = vunpack.c.l.b16 %v828
        %v2200 = vpack.c.b16 %v1715, %v1710
        %v2201 = vpack.c.b16 %v1716, %v1711
        %v2202 = vpack.c.b16 %v1717, %v1712
        %v2203 = vpack.c.b16 %v1718, %v1713
        %v2204 = vpack.c.b16 %v1719, %v1714
        %v2205 = vpack.c.b16 %v1725, %v1720
        %v2206 = vpack.c.b16 %v1726, %v1721
        %v2207 = vpack.c.b16 %v1727, %v1722
        %v2208 = vpack.c.b16 %v1728, %v1723
        %v2209 = vpack.c.b16 %v1729, %v1724
        %v2210 = vpack.c.b16 %v1735, %v1730
        %v2211 = vpack.c.b16 %v1736, %v1731
        %v2212 = vpack.c.b16 %v1737, %v1732
        %v2213 = vpack.c.b16 %v1738, %v1733
        %v2214 = vpack.c.b16 %v1739, %v1734
        %v2215 = vpack.c.b16 %v1745, %v1740
        %v2216 = vpack.c.b16 %v1746, %v1741
        %v2217 = vpack.c.b16 %v1747, %v1742
        %v2218 = vpack.c.b16 %v1748, %v1743
        %v2219 = vpack.c.b16 %v1749, %v1744
        %v2220 = vpack.c.b16 %v1755, %v1750
        %v2221 = vpack.c.b16 %v1756, %v1751
        %v2222 = vpack.c.b16 %v1757, %v1752
        %v2223 = vpack.c.b16 %v1758, %v1753
        %v2224 = vpack.c.b16 %v1759, %v1754
        %v2225 = vpack.c.b16 %v1765, %v1760
        %v2226 = vpack.c.b16 %v1766, %v1761
        %v2227 = vpack.c.b16 %v1767, %v1762
        %v2228 = vpack.c.b16 %v1768, %v1763
        %v2229 = vpack.c.b16 %v1769, %v1764
        %v2230 = vpack.c.b16 %v1775, %v1770
        %v2231 = vpack.c.b16 %v1776, %v1771
        %v2232 = vpack.c.b16 %v1777, %v1772
        %v2233 = vpack.c.b16 %v1778, %v1773
        %v2234 = vpack.c.b16 %v1779, %v1774
        %v2235 = vpack.c.b16 %v1785, %v1780
        %v2236 = vpack.c.b16 %v1786, %v1781
        %v2237 = vpack.c.b16 %v1787, %v1782
        %v2238 = vpack.c.b16 %v1788, %v1783
        %v2239 = vpack.c.b16 %v1789, %v1784
        %v2240 = vpack.c.b16 %v1795, %v1790
        %v2241 = vpack.c.b16 %v1796, %v1791
        %v2242 = vpack.c.b16 %v1797, %v1792
        %v2243 = vpack.c.b16 %v1798, %v1793
        %v2244 = vpack.c.b16 %v1799, %v1794
        %v2245 = vpack.c.b16 %v1805, %v1800
        %v2246 = vpack.c.b16 %v1806, %v1801
        %v2247 = vpack.c.b16 %v1807, %v1802
        %v2248 = vpack.c.b16 %v1808, %v1803
        %v2249 = vpack.c.b16 %v1809, %v1804
        %v2250 = vpack.c.b16 %v1815, %v1810
        %v2251 = vpack.c.b16 %v1816, %v1811
        %v2252 = vpack.c.b16 %v1817, %v1812
        %v2253 = vpack.c.b16 %v1818, %v1813
        %v2254 = vpack.c.b16 %v1819, %v1814
        %v2255 = vpack.c.b16 %v1825, %v1820
        %v2256 = vpack.c.b16 %v1826, %v1821
        %v2257 = vpack.c.b16 %v1827, %v1822
        %v2258 = vpack.c.b16 %v1828, %v1823
        %v2259 = vpack.c.b16 %v1829, %v1824
        %v2260 = vpack.c.b16 %v1835, %v1830
        %v2261 = vpack.c.b16 %v1836, %v1831
        %v2262 = vpack.c.b16 %v1837, %v1832
        %v2263 = vpack.c.b16 %v1838, %v1833
        %v2264 = vpack.c.b16 %v1839, %v1834
        %v2265 = vpack.c.b16 %v1845, %v1840
        %v2266 = vpack.c.b16 %v1846, %v1841
        %v2267 = vpack.c.b16 %v1847, %v1842
        %v2268 = vpack.c.b16 %v1848, %v1843
        %v2269 = vpack.c.b16 %v1849, %v1844
        %v2270 = vpack.c.b16 %v1855, %v1850
        %v2271 = vpack.c.b16 %v1856, %v1851
        %v2272 = vpack.c.b16 %v1857, %v1852
        %v2273 = vpack.c.b16 %v1858, %v1853
        %v2274 = vpack.c.b16 %v1859, %v1854
        %v2275 = vpack.c.b16 %v1865, %v1860
        %v2276 = vpack.c.b16 %v1866, %v1861
        %v2277 = vpack.c.b16 %v1867, %v1862
        %v2278 = vpack.c.b16 %v1868, %v1863
        %v2279 = vpack.c.b16 %v1869, %v1864
        %v2280 = vpack.c.b16 %v1875, %v1870
        %v2281 = vpack.c.b16 %v1876, %v1871
        %v2282 = vpack.c.b16 %v1877, %v1872
        %v2283 = vpack.c.b16 %v1878, %v1873
        %v2284 = vpack.c.b16 %v1879, %v1874
        %v2285 = vpack.c.b16 %v1885, %v1880
        %v2286 = vpack.c.b16 %v1886, %v1881
        %v2287 = vpack.c.b16 %v1887, %v1882
        %v2288 = vpack.c.b16 %v1888, %v1883
        %v2289 = vpack.c.b16 %v1889, %v1884
        %v2290 = vpack.c.b16 %v1895, %v1890
        %v2291 = vpack.c.b16 %v1896, %v1891
        %v2292 = vpack.c.b16 %v1897, %v1892
        %v2293 = vpack.c.b16 %v1898, %v1893
        %v2294 = vpack.c.b16 %v1899, %v1894
        %v2295 = vpack.c.b16 %v1905, %v1900
        %v2296 = vpack.c.b16 %v1906, %v1901
        %v2297 = vpack.c.b16 %v1907, %v1902
        %v2298 = vpack.c.b16 %v1908, %v1903
        %v2299 = vpack.c.b16 %v1909, %v1904
        %v2300 = vpack.c.b16 %v1915, %v1910
        %v2301 = vpack.c.b16 %v1916, %v1911
        %v2302 = vpack.c.b16 %v1917, %v1912
        %v2303 = vpack.c.b16 %v1918, %v1913
        %v2304 = vpack.c.b16 %v1919, %v1914
        %v2305 = vpack.c.b16 %v1925, %v1920
        %v2306 = vpack.c.b16 %v1926, %v1921
        %v2307 = vpack.c.b16 %v1927, %v1922
        %v2308 = vpack.c.b16 %v1928, %v1923
        %v2309 = vpack.c.b16 %v1929, %v1924
        %v2310 = vpack.c.b16 %v1935, %v1930
        %v2311 = vpack.c.b16 %v1936, %v1931
        %v2312 = vpack.c.b16 %v1937, %v1932
        %v2313 = vpack.c.b16 %v1938, %v1933
        %v2314 = vpack.c.b16 %v1939, %v1934
        %v2315 = vpack.c.b16 %v1945, %v1940
        %v2316 = vpack.c.b16 %v1946, %v1941
        %v2317 = vpack.c.b16 %v1947, %v1942
        %v2318 = vpack.c.b16 %v1948, %v1943
        %v2319 = vpack.c.b16 %v1949, %v1944
        %v2320 = vpack.c.b16 %v1955, %v1950
        %v2321 = vpack.c.b16 %v1956, %v1951
        %v2322 = vpack.c.b16 %v1957, %v1952
        %v2323 = vpack.c.b16 %v1958, %v1953
        %v2324 = vpack.c.b16 %v1959, %v1954
        %v2325 = vpack.c.b16 %v1965, %v1960
        %v2326 = vpack.c.b16 %v1966, %v1961
        %v2327 = vpack.c.b16 %v1967, %v1962
        %v2328 = vpack.c.b16 %v1968, %v1963
        %v2329 = vpack.c.b16 %v1969, %v1964
        %v2330 = vpack.c.b16 %v1975, %v1970
        %v2331 = vpack.c.b16 %v1976, %v1971
        %v2332 = vpack.c.b16 %v1977, %v1972
        %v2333 = vpack.c.b16 %v1978, %v1973
        %v2334 = vpack.c.b16 %v1979, %v1974
        %v2335 = vpack.c.b16 %v1985, %v1980
        %v2336 = vpack.c.b16 %v1986, %v1981
        %v2337 = vpack.c.b16 %v1987, %v1982
        %v2338 = vpack.c.b16 %v1988, %v1983
        %v2339 = vpack.c.b16 %v1989, %v1984
        %v2340 = vpack.c.b16 %v1995, %v1990
        %v2341 = vpack.c.b16 %v1996, %v1991
        %v2342 = vpack.c.b16 %v1997, %v1992
        %v2343 = vpack.c.b16 %v1998, %v1993
        %v2344 = vpack.c.b16 %v1999, %v1994
        %v2345 = vpack.c.b16 %v2005, %v2000
        %v2346 = vpack.c.b16 %v2006, %v2001
        %v2347 = vpack.c.b16 %v2007, %v2002
        %v2348 = vpack.c.b16 %v2008, %v2003
        %v2349 = vpack.c.b16 %v2009, %v2004
        %v2350 = vpack.c.b16 %v2015, %v2010
        %v2351 = vpack.c.b16 %v2016, %v2011
        %v2352 = vpack.c.b16 %v2017, %v2012
        %v2353 = vpack.c.b16 %v2018, %v2013
        %v2354 = vpack.c.b16 %v2019, %v2014
        %v2355 = vpack.c.b16 %v2025, %v2020
        %v2356 = vpack.c.b16 %v2026, %v2021
        %v2357 = vpack.c.b16 %v2027, %v2022
        %v2358 = vpack.c.b16 %v2028, %v2023
        %v2359 = vpack.c.b16 %v2029, %v2024
        %v2360 = vpack.c.b16 %v2035, %v2030
        %v2361 = vpack.c.b16 %v2036, %v2031
        %v2362 = vpack.c.b16 %v2037, %v2032
        %v2363 = vpack.c.b16 %v2038, %v2033
        %v2364 = vpack.c.b16 %v2039, %v2034
        %v2365 = vpack.c.b16 %v2045, %v2040
        %v2366 = vpack.c.b16 %v2046, %v2041
        %v2367 = vpack.c.b16 %v2047, %v2042
        %v2368 = vpack.c.b16 %v2048, %v2043
        %v2369 = vpack.c.b16 %v2049, %v2044
        %v2370 = vpack.c.b16 %v2055, %v2050
        %v2371 = vpack.c.b16 %v2056, %v2051
        %v2372 = vpack.c.b16 %v2057, %v2052
        %v2373 = vpack.c.b16 %v2058, %v2053
        %v2374 = vpack.c.b16 %v2059, %v2054
        %v2375 = vpack.c.b16 %v2065, %v2060
        %v2376 = vpack.c.b16 %v2066, %v2061
        %v2377 = vpack.c.b16 %v2067, %v2062
        %v2378 = vpack.c.b16 %v2068, %v2063
        %v2379 = vpack.c.b16 %v2069, %v2064
        %v2380 = vpack.c.b16 %v2075, %v2070
        %v2381 = vpack.c.b16 %v2076, %v2071
        %v2382 = vpack.c.b16 %v2077, %v2072
        %v2383 = vpack.c.b16 %v2078, %v2073
        %v2384 = vpack.c.b16 %v2079, %v2074
        %v2385 = vpack.c.b16 %v2085, %v2080
        %v2386 = vpack.c.b16 %v2086, %v2081
        %v2387 = vpack.c.b16 %v2087, %v2082
        %v2388 = vpack.c.b16 %v2088, %v2083
        %v2389 = vpack.c.b16 %v2089, %v2084
        %v2390 = vpack.c.b16 %v2095, %v2090
        %v2391 = vpack.c.b16 %v2096, %v2091
        %v2392 = vpack.c.b16 %v2097, %v2092
        %v2393 = vpack.c.b16 %v2098, %v2093
        %v2394 = vpack.c.b16 %v2099, %v2094
        %v2395 = vpack.c.b16 %v2105, %v2100
        %v2396 = vpack.c.b16 %v2106, %v2101
        %v2397 = vpack.c.b16 %v2107, %v2102
        %v2398 = vpack.c.b16 %v2108, %v2103
        %v2399 = vpack.c.b16 %v2109, %v2104
        %v2400 = vpack.c.b16 %v2115, %v2110
        %v2401 = vpack.c.b16 %v2116, %v2111
        %v2402 = vpack.c.b16 %v2117, %v2112
        %v2403 = vpack.c.b16 %v2118, %v2113
        %v2404 = vpack.c.b16 %v2119, %v2114
        %v2405 = vpack.c.b16 %v2125, %v2120
        %v2406 = vpack.c.b16 %v2126, %v2121
        %v2407 = vpack.c.b16 %v2127, %v2122
        %v2408 = vpack.c.b16 %v2128, %v2123
        %v2409 = vpack.c.b16 %v2129, %v2124
        %v2410 = vpack.c.b16 %v2135, %v2130
        %v2411 = vpack.c.b16 %v2136, %v2131
        %v2412 = vpack.c.b16 %v2137, %v2132
        %v2413 = vpack.c.b16 %v2138, %v2133
        %v2414 = vpack.c.b16 %v2139, %v2134
        %v2415 = vpack.c.b16 %v2145, %v2140
        %v2416 = vpack.c.b16 %v2146, %v2141
        %v2417 = vpack.c.b16 %v2147, %v2142
        %v2418 = vpack.c.b16 %v2148, %v2143
        %v2419 = vpack.c.b16 %v2149, %v2144
        %v2420 = vpack.c.b16 %v2155, %v2150
        %v2421 = vpack.c.b16 %v2156, %v2151
        %v2422 = vpack.c.b16 %v2157, %v2152
        %v2423 = vpack.c.b16 %v2158, %v2153
        %v2424 = vpack.c.b16 %v2159, %v2154
        %v2425 = vpack.c.b16 %v2165, %v2160
        %v2426 = vpack.c.b16 %v2166, %v2161
        %v2427 = vpack.c.b16 %v2167, %v2162
        %v2428 = vpack.c.b16 %v2168, %v2163
        %v2429 = vpack.c.b16 %v2169, %v2164
        %v2430 = vpack.c.b16 %v2175, %v2170
        %v2431 = vpack.c.b16 %v2176, %v2171
        %v2432 = vpack.c.b16 %v2177, %v2172
        %v2433 = vpack.c.b16 %v2178, %v2173
        %v2434 = vpack.c.b16 %v2179, %v2174
        %v2435 = vpack.c.b16 %v2185, %v2180
        %v2436 = vpack.c.b16 %v2186, %v2181
        %v2437 = vpack.c.b16 %v2187, %v2182
        %v2438 = vpack.c.b16 %v2188, %v2183
        %v2439 = vpack.c.b16 %v2189, %v2184
        %v2440 = vpack.c.b16 %v2195, %v2190
        %v2441 = vpack.c.b16 %v2196, %v2191
        %v2442 = vpack.c.b16 %v2197, %v2192
        %v2443 = vpack.c.b16 %v2198, %v2193
        %v2444 = vpack.c.b16 %v2199, %v2194
        %vm2690 = vcmask 130048
        %v2692 = vsel %vm2690, %v1214, 0
        %v2695 = vsel %vm2690, %v1221, 0
        %v2698 = vsel %vm2690, %v1228, 0
        %v2701 = vsel %vm2690, %v1235, 0
        %v2704 = vsel %vm2690, %v1242, 0
        %v2707 = vsel %vm2690, %v1249, 0
        %v2710 = vsel %vm2690, %v1256, 0
        %v2713 = vsel %vm2690, %v1263, 0
        %v2716 = vsel %vm2690, %v1270, 0
        %v2719 = vsel %vm2690, %v1277, 0
        %v2722 = vsel %vm2690, %v1284, 0
        %v2725 = vsel %vm2690, %v1291, 0
        %v2728 = vsel %vm2690, %v1298, 0
        %v2731 = vsel %vm2690, %v1305, 0
        %v2734 = vsel %vm2690, %v1312, 0
        %v2737 = vsel %vm2690, %v1319, 0
        %2739 = vmatprep.subr.bf16.mxu0 %v2201
        %2740 = vmatpush1.bf16.msra.mxu0 %v2200
        %2741 = vmatprep.subr.bf16.mxu0 %v2206
        %2742 = vmatpush1.bf16.msra.mxu0 %v2205
        %2743 = vmatprep.subr.bf16.mxu0 %v2211
        %2744 = vmatpush1.bf16.msra.mxu0 %v2210
        %2745 = vmatprep.subr.bf16.mxu0 %v2216
        %2746 = vmatpush1.bf16.msra.mxu0 %v2215
        %2747 = vmatprep.subr.bf16.mxu0 %v2221
        %2748 = vmatpush1.bf16.msra.mxu0 %v2220
        %2749 = vmatprep.subr.bf16.mxu0 %v2226
        %2750 = vmatpush1.bf16.msra.mxu0 %v2225
        %2751 = vmatprep.subr.bf16.mxu0 %v2231
        %2752 = vmatpush1.bf16.msra.mxu0 %v2230
        %2753 = vmatprep.subr.bf16.mxu0 %v2236
        %2754 = vmatpush1.bf16.msra.mxu0 %v2235
        %2755 = vmatprep.subr.bf16.mxu0 %v2241
        %2756 = vmatpush1.bf16.msra.mxu0 %v2240
        %2757 = vmatprep.subr.bf16.mxu0 %v2246
        %2758 = vmatpush1.bf16.msra.mxu0 %v2245
        %2759 = vmatprep.subr.bf16.mxu0 %v2251
        %2760 = vmatpush1.bf16.msra.mxu0 %v2250
        %2761 = vmatprep.subr.bf16.mxu0 %v2256
        %2762 = vmatpush1.bf16.msra.mxu0 %v2255
        %2763 = vmatprep.subr.bf16.mxu0 %v2261
        %2764 = vmatpush1.bf16.msra.mxu0 %v2260
        %2765 = vmatprep.subr.bf16.mxu0 %v2266
        %2766 = vmatpush1.bf16.msra.mxu0 %v2265
        %2767 = vmatprep.subr.bf16.mxu0 %v2271
        %2768 = vmatpush1.bf16.msra.mxu0 %v2270
        %2769 = vmatprep.subr.bf16.mxu0 %v2276
        %2770 = vmatpush1.bf16.msra.mxu0 %v2275
        %2771 = vmatprep.mubr.bf16.mxu0 %v1209
        %2772 = vmatmul.mubr.bf16.gmra.mrb[0].mxu0 %v1208
        %v2773 = vpop.f32.mrb[0].mxu0
        %v2774 = vadd.f32 %v834, %v2773
        %v2775 = vpop.f32.mrb[0].mxu0
        %v2776 = vadd.f32 %v838, %v2775
        %v2777 = vpop.f32.mrb[0].mxu0
        %v2778 = vadd.f32 %v834, %v2777
        %v2779 = vpop.f32.mrb[0].mxu0
        %v2780 = vadd.f32 %v838, %v2779
        %2781 = vmatprep.mubr.bf16.mxu0 %v1216
        %2782 = vmatmul.mubr.bf16.gmra.mrb[0].mxu0 %v1215
        %v2783 = vpop.f32.mrb[0].mxu0
        %v2784 = vadd.f32 %v834, %v2783
        %v2785 = vpop.f32.mrb[0].mxu0
        %v2786 = vadd.f32 %v838, %v2785
        %v2787 = vpop.f32.mrb[0].mxu0
        %v2788 = vadd.f32 %v834, %v2787
        %v2789 = vpop.f32.mrb[0].mxu0
        %v2790 = vadd.f32 %v838, %v2789
        %2791 = vmatprep.mubr.bf16.mxu0 %v1223
        %2792 = vmatmul.mubr.bf16.gmra.mrb[0].mxu0 %v1222
        %v2793 = vpop.f32.mrb[0].mxu0
        %v2794 = vadd.f32 %v834, %v2793
        %v2795 = vpop.f32.mrb[0].mxu0
        %v2796 = vadd.f32 %v838, %v2795
        %v2797 = vpop.f32.mrb[0].mxu0
        %v2798 = vadd.f32 %v834, %v2797
        %v2799 = vpop.f32.mrb[0].mxu0
        %v2800 = vadd.f32 %v838, %v2799
        %2801 = vmatprep.mubr.bf16.mxu0 %v1230
        %2802 = vmatmul.mubr.bf16.gmra.mrb[0].mxu0 %v1229
        %v2803 = vpop.f32.mrb[0].mxu0
        %v2804 = vadd.f32 %v834, %v2803
        %v2805 = vpop.f32.mrb[0].mxu0
        %v2806 = vadd.f32 %v838, %v2805
        %v2807 = vpop.f32.mrb[0].mxu0
        %v2808 = vadd.f32 %v834, %v2807
        %v2809 = vpop.f32.mrb[0].mxu0
        %v2810 = vadd.f32 %v838, %v2809
        %2811 = vmatprep.mubr.bf16.mxu0 %v1237
        %2812 = vmatmul.mubr.bf16.gmra.mrb[0].mxu0 %v1236
        %v2813 = vpop.f32.mrb[0].mxu0
        %v2814 = vadd.f32 %v834, %v2813
        %v2815 = vpop.f32.mrb[0].mxu0
        %v2816 = vadd.f32 %v838, %v2815
        %v2817 = vpop.f32.mrb[0].mxu0
        %v2818 = vadd.f32 %v834, %v2817
        %v2819 = vpop.f32.mrb[0].mxu0
        %v2820 = vadd.f32 %v838, %v2819
        %2821 = vmatprep.mubr.bf16.mxu0 %v1244
        %2822 = vmatmul.mubr.bf16.gmra.mrb[0].mxu0 %v1243
        %v2823 = vpop.f32.mrb[0].mxu0
        %v2824 = vadd.f32 %v834, %v2823
        %v2825 = vpop.f32.mrb[0].mxu0
        %v2826 = vadd.f32 %v838, %v2825
        %v2827 = vpop.f32.mrb[0].mxu0
        %v2828 = vadd.f32 %v834, %v2827
        %v2829 = vpop.f32.mrb[0].mxu0
        %v2830 = vadd.f32 %v838, %v2829
        %2831 = vmatprep.mubr.bf16.mxu0 %v1251
        %2832 = vmatmul.mubr.bf16.gmra.mrb[0].mxu0 %v1250
        %v2833 = vpop.f32.mrb[0].mxu0
        %v2834 = vadd.f32 %v834, %v2833
        %v2835 = vpop.f32.mrb[0].mxu0
        %v2836 = vadd.f32 %v838, %v2835
        %v2837 = vpop.f32.mrb[0].mxu0
        %v2838 = vadd.f32 %v834, %v2837
        %v2839 = vpop.f32.mrb[0].mxu0
        %v2840 = vadd.f32 %v838, %v2839
        %2841 = vmatprep.mubr.bf16.mxu0 %v1258
        %2842 = vmatmul.mubr.bf16.gmra.mrb[0].mxu0 %v1257
        %v2843 = vpop.f32.mrb[0].mxu0
        %v2844 = vadd.f32 %v834, %v2843
        %v2845 = vpop.f32.mrb[0].mxu0
        %v2846 = vadd.f32 %v838, %v2845
        %v2847 = vpop.f32.mrb[0].mxu0
        %v2848 = vadd.f32 %v834, %v2847
        %v2849 = vpop.f32.mrb[0].mxu0
        %v2850 = vadd.f32 %v838, %v2849
        %2851 = vmatprep.mubr.bf16.mxu0 %v1265
        %2852 = vmatmul.mubr.bf16.gmra.mrb[0].mxu0 %v1264
        %v2853 = vpop.f32.mrb[0].mxu0
        %v2854 = vadd.f32 %v834, %v2853
        %v2855 = vpop.f32.mrb[0].mxu0
        %v2856 = vadd.f32 %v838, %v2855
        %v2857 = vpop.f32.mrb[0].mxu0
        %v2858 = vadd.f32 %v834, %v2857
        %v2859 = vpop.f32.mrb[0].mxu0
        %v2860 = vadd.f32 %v838, %v2859
        %2861 = vmatprep.mubr.bf16.mxu0 %v1272
        %2862 = vmatmul.mubr.bf16.gmra.mrb[0].mxu0 %v1271
        %v2863 = vpop.f32.mrb[0].mxu0
        %v2864 = vadd.f32 %v834, %v2863
        %v2865 = vpop.f32.mrb[0].mxu0
        %v2866 = vadd.f32 %v838, %v2865
        %v2867 = vpop.f32.mrb[0].mxu0
        %v2868 = vadd.f32 %v834, %v2867
        %v2869 = vpop.f32.mrb[0].mxu0
        %v2870 = vadd.f32 %v838, %v2869
        %2871 = vmatprep.mubr.bf16.mxu0 %v1279
        %2872 = vmatmul.mubr.bf16.gmra.mrb[0].mxu0 %v1278
        %v2873 = vpop.f32.mrb[0].mxu0
        %v2874 = vadd.f32 %v834, %v2873
        %v2875 = vpop.f32.mrb[0].mxu0
        %v2876 = vadd.f32 %v838, %v2875
        %v2877 = vpop.f32.mrb[0].mxu0
        %v2878 = vadd.f32 %v834, %v2877
        %v2879 = vpop.f32.mrb[0].mxu0
        %v2880 = vadd.f32 %v838, %v2879
        %2881 = vmatprep.mubr.bf16.mxu0 %v1286
        %2882 = vmatmul.mubr.bf16.gmra.mrb[0].mxu0 %v1285
        %v2883 = vpop.f32.mrb[0].mxu0
        %v2884 = vadd.f32 %v834, %v2883
        %v2885 = vpop.f32.mrb[0].mxu0
        %v2886 = vadd.f32 %v838, %v2885
        %v2887 = vpop.f32.mrb[0].mxu0
        %v2888 = vadd.f32 %v834, %v2887
        %v2889 = vpop.f32.mrb[0].mxu0
        %v2890 = vadd.f32 %v838, %v2889
        %2891 = vmatprep.mubr.bf16.mxu0 %v1293
        %2892 = vmatmul.mubr.bf16.gmra.mrb[0].mxu0 %v1292
        %v2893 = vpop.f32.mrb[0].mxu0
        %v2894 = vadd.f32 %v834, %v2893
        %v2895 = vpop.f32.mrb[0].mxu0
        %v2896 = vadd.f32 %v838, %v2895
        %v2897 = vpop.f32.mrb[0].mxu0
        %v2898 = vadd.f32 %v834, %v2897
        %v2899 = vpop.f32.mrb[0].mxu0
        %v2900 = vadd.f32 %v838, %v2899
        %2901 = vmatprep.mubr.bf16.mxu0 %v1300
        %2902 = vmatmul.mubr.bf16.gmra.mrb[0].mxu0 %v1299
        %v2903 = vpop.f32.mrb[0].mxu0
        %v2904 = vadd.f32 %v834, %v2903
        %v2905 = vpop.f32.mrb[0].mxu0
        %v2906 = vadd.f32 %v838, %v2905
        %v2907 = vpop.f32.mrb[0].mxu0
        %v2908 = vadd.f32 %v834, %v2907
        %v2909 = vpop.f32.mrb[0].mxu0
        %v2910 = vadd.f32 %v838, %v2909
        %2911 = vmatprep.mubr.bf16.mxu0 %v1307
        %2912 = vmatmul.mubr.bf16.gmra.mrb[0].mxu0 %v1306
        %v2913 = vpop.f32.mrb[0].mxu0
        %v2914 = vadd.f32 %v834, %v2913
        %v2915 = vpop.f32.mrb[0].mxu0
        %v2916 = vadd.f32 %v838, %v2915
        %v2917 = vpop.f32.mrb[0].mxu0
        %v2918 = vadd.f32 %v834, %v2917
        %v2919 = vpop.f32.mrb[0].mxu0
        %v2920 = vadd.f32 %v838, %v2919
        %2921 = vmatprep.mubr.bf16.mxu0 %v1314
        %2922 = vmatmul.mubr.bf16.gmra.mrb[0].mxu0 %v1313
        %v2923 = vpop.f32.mrb[0].mxu0
        %v2924 = vadd.f32 %v834, %v2923
        %v2925 = vpop.f32.mrb[0].mxu0
        %v2926 = vadd.f32 %v838, %v2925
        %v2927 = vpop.f32.mrb[0].mxu0
        %v2928 = vadd.f32 %v834, %v2927
        %v2929 = vpop.f32.mrb[0].mxu0
        %v2930 = vadd.f32 %v838, %v2929
        %2931 = vdwg.mxu0
        %2932 = vmatprep.subr.bf16.mxu0 %v2281
        %2933 = vmatpush1.bf16.msra.mxu0 %v2280
        %2934 = vmatprep.subr.bf16.mxu0 %v2286
        %2935 = vmatpush1.bf16.msra.mxu0 %v2285
        %2936 = vmatprep.subr.bf16.mxu0 %v2291
        %2937 = vmatpush1.bf16.msra.mxu0 %v2290
        %2938 = vmatprep.subr.bf16.mxu0 %v2296
        %2939 = vmatpush1.bf16.msra.mxu0 %v2295
        %2940 = vmatprep.subr.bf16.mxu0 %v2301
        %2941 = vmatpush1.bf16.msra.mxu0 %v2300
        %2942 = vmatprep.subr.bf16.mxu0 %v2306
        %2943 = vmatpush1.bf16.msra.mxu0 %v2305
        %2944 = vmatprep.subr.bf16.mxu0 %v2311
        %2945 = vmatpush1.bf16.msra.mxu0 %v2310
        %2946 = vmatprep.subr.bf16.mxu0 %v2316
        %2947 = vmatpush1.bf16.msra.mxu0 %v2315
        %2948 = vmatprep.subr.bf16.mxu0 %v2321
        %2949 = vmatpush1.bf16.msra.mxu0 %v2320
        %2950 = vmatprep.subr.bf16.mxu0 %v2326
        %2951 = vmatpush1.bf16.msra.mxu0 %v2325
        %2952 = vmatprep.subr.bf16.mxu0 %v2331
        %2953 = vmatpush1.bf16.msra.mxu0 %v2330
        %2954 = vmatprep.subr.bf16.mxu0 %v2336
        %2955 = vmatpush1.bf16.msra.mxu0 %v2335
        %2956 = vmatprep.subr.bf16.mxu0 %v2341
        %2957 = vmatpush1.bf16.msra.mxu0 %v2340
        %2958 = vmatprep.subr.bf16.mxu0 %v2346
        %2959 = vmatpush1.bf16.msra.mxu0 %v2345
        %2960 = vmatprep.subr.bf16.mxu0 %v2351
        %2961 = vmatpush1.bf16.msra.mxu0 %v2350
        %2962 = vmatprep.subr.bf16.mxu0 %v2356
        %2963 = vmatpush1.bf16.msra.mxu0 %v2355
        %2964 = vmatprep.mubr.bf16.mxu0 %v1211
        %2965 = vmatmul.mubr.bf16.gmra.mrb[0].mxu0 %v1210
        %v2966 = vpop.f32.mrb[0].mxu0
        %v2967 = vadd.f32 %v2774, %v2966
        %v2968 = vpop.f32.mrb[0].mxu0
        %v2969 = vadd.f32 %v2776, %v2968
        %v2970 = vpop.f32.mrb[0].mxu0
        %v2971 = vadd.f32 %v2778, %v2970
        %v2972 = vpop.f32.mrb[0].mxu0
        %v2973 = vadd.f32 %v2780, %v2972
        %2974 = vmatprep.mubr.bf16.mxu0 %v1218
        %2975 = vmatmul.mubr.bf16.gmra.mrb[0].mxu0 %v1217
        %v2976 = vpop.f32.mrb[0].mxu0
        %v2977 = vadd.f32 %v2784, %v2976
        %v2978 = vpop.f32.mrb[0].mxu0
        %v2979 = vadd.f32 %v2786, %v2978
        %v2980 = vpop.f32.mrb[0].mxu0
        %v2981 = vadd.f32 %v2788, %v2980
        %v2982 = vpop.f32.mrb[0].mxu0
        %v2983 = vadd.f32 %v2790, %v2982
        %2984 = vmatprep.mubr.bf16.mxu0 %v1225
        %2985 = vmatmul.mubr.bf16.gmra.mrb[0].mxu0 %v1224
        %v2986 = vpop.f32.mrb[0].mxu0
        %v2987 = vadd.f32 %v2794, %v2986
        %v2988 = vpop.f32.mrb[0].mxu0
        %v2989 = vadd.f32 %v2796, %v2988
        %v2990 = vpop.f32.mrb[0].mxu0
        %v2991 = vadd.f32 %v2798, %v2990
        %v2992 = vpop.f32.mrb[0].mxu0
        %v2993 = vadd.f32 %v2800, %v2992
        %2994 = vmatprep.mubr.bf16.mxu0 %v1232
        %2995 = vmatmul.mubr.bf16.gmra.mrb[0].mxu0 %v1231
        %v2996 = vpop.f32.mrb[0].mxu0
        %v2997 = vadd.f32 %v2804, %v2996
        %v2998 = vpop.f32.mrb[0].mxu0
        %v2999 = vadd.f32 %v2806, %v2998
        %v3000 = vpop.f32.mrb[0].mxu0
        %v3001 = vadd.f32 %v2808, %v3000
        %v3002 = vpop.f32.mrb[0].mxu0
        %v3003 = vadd.f32 %v2810, %v3002
        %3004 = vmatprep.mubr.bf16.mxu0 %v1239
        %3005 = vmatmul.mubr.bf16.gmra.mrb[0].mxu0 %v1238
        %v3006 = vpop.f32.mrb[0].mxu0
        %v3007 = vadd.f32 %v2814, %v3006
        %v3008 = vpop.f32.mrb[0].mxu0
        %v3009 = vadd.f32 %v2816, %v3008
        %v3010 = vpop.f32.mrb[0].mxu0
        %v3011 = vadd.f32 %v2818, %v3010
        %v3012 = vpop.f32.mrb[0].mxu0
        %v3013 = vadd.f32 %v2820, %v3012
        %3014 = vmatprep.mubr.bf16.mxu0 %v1246
        %3015 = vmatmul.mubr.bf16.gmra.mrb[0].mxu0 %v1245
        %v3016 = vpop.f32.mrb[0].mxu0
        %v3017 = vadd.f32 %v2824, %v3016
        %v3018 = vpop.f32.mrb[0].mxu0
        %v3019 = vadd.f32 %v2826, %v3018
        %v3020 = vpop.f32.mrb[0].mxu0
        %v3021 = vadd.f32 %v2828, %v3020
        %v3022 = vpop.f32.mrb[0].mxu0
        %v3023 = vadd.f32 %v2830, %v3022
        %3024 = vmatprep.mubr.bf16.mxu0 %v1253
        %3025 = vmatmul.mubr.bf16.gmra.mrb[0].mxu0 %v1252
        %v3026 = vpop.f32.mrb[0].mxu0
        %v3027 = vadd.f32 %v2834, %v3026
        %v3028 = vpop.f32.mrb[0].mxu0
        %v3029 = vadd.f32 %v2836, %v3028
        %v3030 = vpop.f32.mrb[0].mxu0
        %v3031 = vadd.f32 %v2838, %v3030
        %v3032 = vpop.f32.mrb[0].mxu0
        %v3033 = vadd.f32 %v2840, %v3032
        %3034 = vmatprep.mubr.bf16.mxu0 %v1260
        %3035 = vmatmul.mubr.bf16.gmra.mrb[0].mxu0 %v1259
        %v3036 = vpop.f32.mrb[0].mxu0
        %v3037 = vadd.f32 %v2844, %v3036
        %v3038 = vpop.f32.mrb[0].mxu0
        %v3039 = vadd.f32 %v2846, %v3038
        %v3040 = vpop.f32.mrb[0].mxu0
        %v3041 = vadd.f32 %v2848, %v3040
        %v3042 = vpop.f32.mrb[0].mxu0
        %v3043 = vadd.f32 %v2850, %v3042
        %3044 = vmatprep.mubr.bf16.mxu0 %v1267
        %3045 = vmatmul.mubr.bf16.gmra.mrb[0].mxu0 %v1266
        %v3046 = vpop.f32.mrb[0].mxu0
        %v3047 = vadd.f32 %v2854, %v3046
        %v3048 = vpop.f32.mrb[0].mxu0
        %v3049 = vadd.f32 %v2856, %v3048
        %v3050 = vpop.f32.mrb[0].mxu0
        %v3051 = vadd.f32 %v2858, %v3050
        %v3052 = vpop.f32.mrb[0].mxu0
        %v3053 = vadd.f32 %v2860, %v3052
        %3054 = vmatprep.mubr.bf16.mxu0 %v1274
        %3055 = vmatmul.mubr.bf16.gmra.mrb[0].mxu0 %v1273
        %v3056 = vpop.f32.mrb[0].mxu0
        %v3057 = vadd.f32 %v2864, %v3056
        %v3058 = vpop.f32.mrb[0].mxu0
        %v3059 = vadd.f32 %v2866, %v3058
        %v3060 = vpop.f32.mrb[0].mxu0
        %v3061 = vadd.f32 %v2868, %v3060
        %v3062 = vpop.f32.mrb[0].mxu0
        %v3063 = vadd.f32 %v2870, %v3062
        %3064 = vmatprep.mubr.bf16.mxu0 %v1281
        %3065 = vmatmul.mubr.bf16.gmra.mrb[0].mxu0 %v1280
        %v3066 = vpop.f32.mrb[0].mxu0
        %v3067 = vadd.f32 %v2874, %v3066
        %v3068 = vpop.f32.mrb[0].mxu0
        %v3069 = vadd.f32 %v2876, %v3068
        %v3070 = vpop.f32.mrb[0].mxu0
        %v3071 = vadd.f32 %v2878, %v3070
        %v3072 = vpop.f32.mrb[0].mxu0
        %v3073 = vadd.f32 %v2880, %v3072
        %3074 = vmatprep.mubr.bf16.mxu0 %v1288
        %3075 = vmatmul.mubr.bf16.gmra.mrb[0].mxu0 %v1287
        %v3076 = vpop.f32.mrb[0].mxu0
        %v3077 = vadd.f32 %v2884, %v3076
        %v3078 = vpop.f32.mrb[0].mxu0
        %v3079 = vadd.f32 %v2886, %v3078
        %v3080 = vpop.f32.mrb[0].mxu0
        %v3081 = vadd.f32 %v2888, %v3080
        %v3082 = vpop.f32.mrb[0].mxu0
        %v3083 = vadd.f32 %v2890, %v3082
        %3084 = vmatprep.mubr.bf16.mxu0 %v1295
        %3085 = vmatmul.mubr.bf16.gmra.mrb[0].mxu0 %v1294
        %v3086 = vpop.f32.mrb[0].mxu0
        %v3087 = vadd.f32 %v2894, %v3086
        %v3088 = vpop.f32.mrb[0].mxu0
        %v3089 = vadd.f32 %v2896, %v3088
        %v3090 = vpop.f32.mrb[0].mxu0
        %v3091 = vadd.f32 %v2898, %v3090
        %v3092 = vpop.f32.mrb[0].mxu0
        %v3093 = vadd.f32 %v2900, %v3092
        %3094 = vmatprep.mubr.bf16.mxu0 %v1302
        %3095 = vmatmul.mubr.bf16.gmra.mrb[0].mxu0 %v1301
        %v3096 = vpop.f32.mrb[0].mxu0
        %v3097 = vadd.f32 %v2904, %v3096
        %v3098 = vpop.f32.mrb[0].mxu0
        %v3099 = vadd.f32 %v2906, %v3098
        %v3100 = vpop.f32.mrb[0].mxu0
        %v3101 = vadd.f32 %v2908, %v3100
        %v3102 = vpop.f32.mrb[0].mxu0
        %v3103 = vadd.f32 %v2910, %v3102
        %3104 = vmatprep.mubr.bf16.mxu0 %v1309
        %3105 = vmatmul.mubr.bf16.gmra.mrb[0].mxu0 %v1308
        %v3106 = vpop.f32.mrb[0].mxu0
        %v3107 = vadd.f32 %v2914, %v3106
        %v3108 = vpop.f32.mrb[0].mxu0
        %v3109 = vadd.f32 %v2916, %v3108
        %v3110 = vpop.f32.mrb[0].mxu0
        %v3111 = vadd.f32 %v2918, %v3110
        %v3112 = vpop.f32.mrb[0].mxu0
        %v3113 = vadd.f32 %v2920, %v3112
        %3114 = vmatprep.mubr.bf16.mxu0 %v1316
        %3115 = vmatmul.mubr.bf16.gmra.mrb[0].mxu0 %v1315
        %v3116 = vpop.f32.mrb[0].mxu0
        %v3117 = vadd.f32 %v2924, %v3116
        %v3118 = vpop.f32.mrb[0].mxu0
        %v3119 = vadd.f32 %v2926, %v3118
        %v3120 = vpop.f32.mrb[0].mxu0
        %v3121 = vadd.f32 %v2928, %v3120
        %v3122 = vpop.f32.mrb[0].mxu0
        %v3123 = vadd.f32 %v2930, %v3122
        %3124 = vdwg.mxu0
        %3125 = vmatprep.subr.bf16.mxu0 %v2361
        %3126 = vmatpush1.bf16.msra.mxu0 %v2360
        %3127 = vmatprep.subr.bf16.mxu0 %v2366
        %3128 = vmatpush1.bf16.msra.mxu0 %v2365
        %3129 = vmatprep.subr.bf16.mxu0 %v2371
        %3130 = vmatpush1.bf16.msra.mxu0 %v2370
        %3131 = vmatprep.subr.bf16.mxu0 %v2376
        %3132 = vmatpush1.bf16.msra.mxu0 %v2375
        %3133 = vmatprep.subr.bf16.mxu0 %v2381
        %3134 = vmatpush1.bf16.msra.mxu0 %v2380
        %3135 = vmatprep.subr.bf16.mxu0 %v2386
        %3136 = vmatpush1.bf16.msra.mxu0 %v2385
        %3137 = vmatprep.subr.bf16.mxu0 %v2391
        %3138 = vmatpush1.bf16.msra.mxu0 %v2390
        %3139 = vmatprep.subr.bf16.mxu0 %v2396
        %3140 = vmatpush1.bf16.msra.mxu0 %v2395
        %3141 = vmatprep.subr.bf16.mxu0 %v2401
        %3142 = vmatpush1.bf16.msra.mxu0 %v2400
        %3143 = vmatprep.subr.bf16.mxu0 %v2406
        %3144 = vmatpush1.bf16.msra.mxu0 %v2405
        %3145 = vmatprep.subr.bf16.mxu0 %v2411
        %3146 = vmatpush1.bf16.msra.mxu0 %v2410
        %3147 = vmatprep.subr.bf16.mxu0 %v2416
        %3148 = vmatpush1.bf16.msra.mxu0 %v2415
        %3149 = vmatprep.subr.bf16.mxu0 %v2421
        %3150 = vmatpush1.bf16.msra.mxu0 %v2420
        %3151 = vmatprep.subr.bf16.mxu0 %v2426
        %3152 = vmatpush1.bf16.msra.mxu0 %v2425
        %3153 = vmatprep.subr.bf16.mxu0 %v2431
        %3154 = vmatpush1.bf16.msra.mxu0 %v2430
        %3155 = vmatprep.subr.bf16.mxu0 %v2436
        %3156 = vmatpush1.bf16.msra.mxu0 %v2435
        %3157 = vmatprep.mubr.bf16.mxu0 %v1213
        %3158 = vmatmul.mubr.bf16.gmra.mrb[0].mxu0 %v1212
        %v3159 = vpop.f32.mrb[0].mxu0
        %v3160 = vadd.f32 %v2967, %v3159
        %v3161 = vpop.f32.mrb[0].mxu0
        %v3162 = vadd.f32 %v2969, %v3161
        %v3163 = vpop.f32.mrb[0].mxu0
        %v3164 = vadd.f32 %v2971, %v3163
        %v3165 = vpop.f32.mrb[0].mxu0
        %v3166 = vadd.f32 %v2973, %v3165
        %3167 = vmatprep.mubr.bf16.mxu0 %v1220
        %3168 = vmatmul.mubr.bf16.gmra.mrb[0].mxu0 %v1219
        %v3169 = vpop.f32.mrb[0].mxu0
        %v3170 = vadd.f32 %v2977, %v3169
        %v3171 = vpop.f32.mrb[0].mxu0
        %v3172 = vadd.f32 %v2979, %v3171
        %v3173 = vpop.f32.mrb[0].mxu0
        %v3174 = vadd.f32 %v2981, %v3173
        %v3175 = vpop.f32.mrb[0].mxu0
        %v3176 = vadd.f32 %v2983, %v3175
        %3177 = vmatprep.mubr.bf16.mxu0 %v1227
        %3178 = vmatmul.mubr.bf16.gmra.mrb[0].mxu0 %v1226
        %v3179 = vpop.f32.mrb[0].mxu0
        %v3180 = vadd.f32 %v2987, %v3179
        %v3181 = vpop.f32.mrb[0].mxu0
        %v3182 = vadd.f32 %v2989, %v3181
        %v3183 = vpop.f32.mrb[0].mxu0
        %v3184 = vadd.f32 %v2991, %v3183
        %v3185 = vpop.f32.mrb[0].mxu0
        %v3186 = vadd.f32 %v2993, %v3185
        %3187 = vmatprep.mubr.bf16.mxu0 %v1234
        %3188 = vmatmul.mubr.bf16.gmra.mrb[0].mxu0 %v1233
        %v3189 = vpop.f32.mrb[0].mxu0
        %v3190 = vadd.f32 %v2997, %v3189
        %v3191 = vpop.f32.mrb[0].mxu0
        %v3192 = vadd.f32 %v2999, %v3191
        %v3193 = vpop.f32.mrb[0].mxu0
        %v3194 = vadd.f32 %v3001, %v3193
        %v3195 = vpop.f32.mrb[0].mxu0
        %v3196 = vadd.f32 %v3003, %v3195
        %3197 = vmatprep.mubr.bf16.mxu0 %v1241
        %3198 = vmatmul.mubr.bf16.gmra.mrb[0].mxu0 %v1240
        %v3199 = vpop.f32.mrb[0].mxu0
        %v3200 = vadd.f32 %v3007, %v3199
        %v3201 = vpop.f32.mrb[0].mxu0
        %v3202 = vadd.f32 %v3009, %v3201
        %v3203 = vpop.f32.mrb[0].mxu0
        %v3204 = vadd.f32 %v3011, %v3203
        %v3205 = vpop.f32.mrb[0].mxu0
        %v3206 = vadd.f32 %v3013, %v3205
        %3207 = vmatprep.mubr.bf16.mxu0 %v1248
        %3208 = vmatmul.mubr.bf16.gmra.mrb[0].mxu0 %v1247
        %v3209 = vpop.f32.mrb[0].mxu0
        %v3210 = vadd.f32 %v3017, %v3209
        %v3211 = vpop.f32.mrb[0].mxu0
        %v3212 = vadd.f32 %v3019, %v3211
        %v3213 = vpop.f32.mrb[0].mxu0
        %v3214 = vadd.f32 %v3021, %v3213
        %v3215 = vpop.f32.mrb[0].mxu0
        %v3216 = vadd.f32 %v3023, %v3215
        %3217 = vmatprep.mubr.bf16.mxu0 %v1255
        %3218 = vmatmul.mubr.bf16.gmra.mrb[0].mxu0 %v1254
        %v3219 = vpop.f32.mrb[0].mxu0
        %v3220 = vadd.f32 %v3027, %v3219
        %v3221 = vpop.f32.mrb[0].mxu0
        %v3222 = vadd.f32 %v3029, %v3221
        %v3223 = vpop.f32.mrb[0].mxu0
        %v3224 = vadd.f32 %v3031, %v3223
        %v3225 = vpop.f32.mrb[0].mxu0
        %v3226 = vadd.f32 %v3033, %v3225
        %3227 = vmatprep.mubr.bf16.mxu0 %v1262
        %3228 = vmatmul.mubr.bf16.gmra.mrb[0].mxu0 %v1261
        %v3229 = vpop.f32.mrb[0].mxu0
        %v3230 = vadd.f32 %v3037, %v3229
        %v3231 = vpop.f32.mrb[0].mxu0
        %v3232 = vadd.f32 %v3039, %v3231
        %v3233 = vpop.f32.mrb[0].mxu0
        %v3234 = vadd.f32 %v3041, %v3233
        %v3235 = vpop.f32.mrb[0].mxu0
        %v3236 = vadd.f32 %v3043, %v3235
        %3237 = vmatprep.mubr.bf16.mxu0 %v1269
        %3238 = vmatmul.mubr.bf16.gmra.mrb[0].mxu0 %v1268
        %v3239 = vpop.f32.mrb[0].mxu0
        %v3240 = vadd.f32 %v3047, %v3239
        %v3241 = vpop.f32.mrb[0].mxu0
        %v3242 = vadd.f32 %v3049, %v3241
        %v3243 = vpop.f32.mrb[0].mxu0
        %v3244 = vadd.f32 %v3051, %v3243
        %v3245 = vpop.f32.mrb[0].mxu0
        %v3246 = vadd.f32 %v3053, %v3245
        %3247 = vmatprep.mubr.bf16.mxu0 %v1276
        %3248 = vmatmul.mubr.bf16.gmra.mrb[0].mxu0 %v1275
        %v3249 = vpop.f32.mrb[0].mxu0
        %v3250 = vadd.f32 %v3057, %v3249
        %v3251 = vpop.f32.mrb[0].mxu0
        %v3252 = vadd.f32 %v3059, %v3251
        %v3253 = vpop.f32.mrb[0].mxu0
        %v3254 = vadd.f32 %v3061, %v3253
        %v3255 = vpop.f32.mrb[0].mxu0
        %v3256 = vadd.f32 %v3063, %v3255
        %3257 = vmatprep.mubr.bf16.mxu0 %v1283
        %3258 = vmatmul.mubr.bf16.gmra.mrb[0].mxu0 %v1282
        %v3259 = vpop.f32.mrb[0].mxu0
        %v3260 = vadd.f32 %v3067, %v3259
        %v3261 = vpop.f32.mrb[0].mxu0
        %v3262 = vadd.f32 %v3069, %v3261
        %v3263 = vpop.f32.mrb[0].mxu0
        %v3264 = vadd.f32 %v3071, %v3263
        %v3265 = vpop.f32.mrb[0].mxu0
        %v3266 = vadd.f32 %v3073, %v3265
        %3267 = vmatprep.mubr.bf16.mxu0 %v1290
        %3268 = vmatmul.mubr.bf16.gmra.mrb[0].mxu0 %v1289
        %v3269 = vpop.f32.mrb[0].mxu0
        %v3270 = vadd.f32 %v3077, %v3269
        %v3271 = vpop.f32.mrb[0].mxu0
        %v3272 = vadd.f32 %v3079, %v3271
        %v3273 = vpop.f32.mrb[0].mxu0
        %v3274 = vadd.f32 %v3081, %v3273
        %v3275 = vpop.f32.mrb[0].mxu0
        %v3276 = vadd.f32 %v3083, %v3275
        %3277 = vmatprep.mubr.bf16.mxu0 %v1297
        %3278 = vmatmul.mubr.bf16.gmra.mrb[0].mxu0 %v1296
        %v3279 = vpop.f32.mrb[0].mxu0
        %v3280 = vadd.f32 %v3087, %v3279
        %v3281 = vpop.f32.mrb[0].mxu0
        %v3282 = vadd.f32 %v3089, %v3281
        %v3283 = vpop.f32.mrb[0].mxu0
        %v3284 = vadd.f32 %v3091, %v3283
        %v3285 = vpop.f32.mrb[0].mxu0
        %v3286 = vadd.f32 %v3093, %v3285
        %3287 = vmatprep.mubr.bf16.mxu0 %v1304
        %3288 = vmatmul.mubr.bf16.gmra.mrb[0].mxu0 %v1303
        %v3289 = vpop.f32.mrb[0].mxu0
        %v3290 = vadd.f32 %v3097, %v3289
        %v3291 = vpop.f32.mrb[0].mxu0
        %v3292 = vadd.f32 %v3099, %v3291
        %v3293 = vpop.f32.mrb[0].mxu0
        %v3294 = vadd.f32 %v3101, %v3293
        %v3295 = vpop.f32.mrb[0].mxu0
        %v3296 = vadd.f32 %v3103, %v3295
        %3297 = vmatprep.mubr.bf16.mxu0 %v1311
        %3298 = vmatmul.mubr.bf16.gmra.mrb[0].mxu0 %v1310
        %v3299 = vpop.f32.mrb[0].mxu0
        %v3300 = vadd.f32 %v3107, %v3299
        %v3301 = vpop.f32.mrb[0].mxu0
        %v3302 = vadd.f32 %v3109, %v3301
        %v3303 = vpop.f32.mrb[0].mxu0
        %v3304 = vadd.f32 %v3111, %v3303
        %v3305 = vpop.f32.mrb[0].mxu0
        %v3306 = vadd.f32 %v3113, %v3305
        %3307 = vmatprep.mubr.bf16.mxu0 %v1318
        %3308 = vmatmul.mubr.bf16.gmra.mrb[0].mxu0 %v1317
        %v3309 = vpop.f32.mrb[0].mxu0
        %v3310 = vadd.f32 %v3117, %v3309
        %v3311 = vpop.f32.mrb[0].mxu0
        %v3312 = vadd.f32 %v3119, %v3311
        %v3313 = vpop.f32.mrb[0].mxu0
        %v3314 = vadd.f32 %v3121, %v3313
        %v3315 = vpop.f32.mrb[0].mxu0
        %v3316 = vadd.f32 %v3123, %v3315
        %3317 = vdwg.mxu0
        %3318 = vmatprep.subr.bf16.mxu0 %v2441
        %3319 = vmatpush1.bf16.msra.mxu0 %v2440
        %3320 = vmatprep.subr.bf16.mxu0 0
        %3321 = vmatpush1.bf16.msra.mxu0 0
        %3322 = vmatprep.subr.bf16.mxu0 0
        %3323 = vmatpush1.bf16.msra.mxu0 0
        %3324 = vmatprep.subr.bf16.mxu0 0
        %3325 = vmatpush1.bf16.msra.mxu0 0
        %3326 = vmatprep.subr.bf16.mxu0 0
        %3327 = vmatpush1.bf16.msra.mxu0 0
        %3328 = vmatprep.subr.bf16.mxu0 0
        %3329 = vmatpush1.bf16.msra.mxu0 0
        %3330 = vmatprep.subr.bf16.mxu0 0
        %3331 = vmatpush1.bf16.msra.mxu0 0
        %3332 = vmatprep.subr.bf16.mxu0 0
        %3333 = vmatpush1.bf16.msra.mxu0 0
        %3334 = vmatprep.subr.bf16.mxu0 0
        %3335 = vmatpush1.bf16.msra.mxu0 0
        %3336 = vmatprep.subr.bf16.mxu0 0
        %3337 = vmatpush1.bf16.msra.mxu0 0
        %3338 = vmatprep.subr.bf16.mxu0 0
        %3339 = vmatpush1.bf16.msra.mxu0 0
        %3340 = vmatprep.subr.bf16.mxu0 0
        %3341 = vmatpush1.bf16.msra.mxu0 0
        %3342 = vmatprep.subr.bf16.mxu0 0
        %3343 = vmatpush1.bf16.msra.mxu0 0
        %3344 = vmatprep.subr.bf16.mxu0 0
        %3345 = vmatpush1.bf16.msra.mxu0 0
        %3346 = vmatprep.subr.bf16.mxu0 0
        %3347 = vmatpush1.bf16.msra.mxu0 0
        %3348 = vmatprep.subr.bf16.mxu0 0
        %3349 = vmatpush1.bf16.msra.mxu0 0
        %3350 = vmatprep.mubr.bf16.mxu0 0
        %3351 = vmatmul.mubr.bf16.gmra.mrb[0].mxu0 %v2692
        %v3352 = vpop.f32.mrb[0].mxu0
        %v3353 = vadd.f32 %v3160, %v3352
        %v3354 = vpop.f32.mrb[0].mxu0
        %v3355 = vadd.f32 %v3162, %v3354
        %v3356 = vpop.f32.mrb[0].mxu0
        %v3357 = vadd.f32 %v3164, %v3356
        %v3358 = vpop.f32.mrb[0].mxu0
        %v3359 = vadd.f32 %v3166, %v3358
        %3360 = vmatprep.mubr.bf16.mxu0 0
        %3361 = vmatmul.mubr.bf16.gmra.mrb[0].mxu0 %v2695
        %v3362 = vpop.f32.mrb[0].mxu0
        %v3363 = vadd.f32 %v3170, %v3362
        %v3364 = vpop.f32.mrb[0].mxu0
        %v3365 = vadd.f32 %v3172, %v3364
        %v3366 = vpop.f32.mrb[0].mxu0
        %v3367 = vadd.f32 %v3174, %v3366
        %v3368 = vpop.f32.mrb[0].mxu0
        %v3369 = vadd.f32 %v3176, %v3368
        %3370 = vmatprep.mubr.bf16.mxu0 0
        %3371 = vmatmul.mubr.bf16.gmra.mrb[0].mxu0 %v2698
        %v3372 = vpop.f32.mrb[0].mxu0
        %v3373 = vadd.f32 %v3180, %v3372
        %v3374 = vpop.f32.mrb[0].mxu0
        %v3375 = vadd.f32 %v3182, %v3374
        %v3376 = vpop.f32.mrb[0].mxu0
        %v3377 = vadd.f32 %v3184, %v3376
        %v3378 = vpop.f32.mrb[0].mxu0
        %v3379 = vadd.f32 %v3186, %v3378
        %3380 = vmatprep.mubr.bf16.mxu0 0
        %3381 = vmatmul.mubr.bf16.gmra.mrb[0].mxu0 %v2701
        %v3382 = vpop.f32.mrb[0].mxu0
        %v3383 = vadd.f32 %v3190, %v3382
        %v3384 = vpop.f32.mrb[0].mxu0
        %v3385 = vadd.f32 %v3192, %v3384
        %v3386 = vpop.f32.mrb[0].mxu0
        %v3387 = vadd.f32 %v3194, %v3386
        %v3388 = vpop.f32.mrb[0].mxu0
        %v3389 = vadd.f32 %v3196, %v3388
        %3390 = vmatprep.mubr.bf16.mxu0 0
        %3391 = vmatmul.mubr.bf16.gmra.mrb[0].mxu0 %v2704
        %v3392 = vpop.f32.mrb[0].mxu0
        %v3393 = vadd.f32 %v3200, %v3392
        %v3394 = vpop.f32.mrb[0].mxu0
        %v3395 = vadd.f32 %v3202, %v3394
        %v3396 = vpop.f32.mrb[0].mxu0
        %v3397 = vadd.f32 %v3204, %v3396
        %v3398 = vpop.f32.mrb[0].mxu0
        %v3399 = vadd.f32 %v3206, %v3398
        %3400 = vmatprep.mubr.bf16.mxu0 0
        %3401 = vmatmul.mubr.bf16.gmra.mrb[0].mxu0 %v2707
        %v3402 = vpop.f32.mrb[0].mxu0
        %v3403 = vadd.f32 %v3210, %v3402
        %v3404 = vpop.f32.mrb[0].mxu0
        %v3405 = vadd.f32 %v3212, %v3404
        %v3406 = vpop.f32.mrb[0].mxu0
        %v3407 = vadd.f32 %v3214, %v3406
        %v3408 = vpop.f32.mrb[0].mxu0
        %v3409 = vadd.f32 %v3216, %v3408
        %3410 = vmatprep.mubr.bf16.mxu0 0
        %3411 = vmatmul.mubr.bf16.gmra.mrb[0].mxu0 %v2710
        %v3412 = vpop.f32.mrb[0].mxu0
        %v3413 = vadd.f32 %v3220, %v3412
        %v3414 = vpop.f32.mrb[0].mxu0
        %v3415 = vadd.f32 %v3222, %v3414
        %v3416 = vpop.f32.mrb[0].mxu0
        %v3417 = vadd.f32 %v3224, %v3416
        %v3418 = vpop.f32.mrb[0].mxu0
        %v3419 = vadd.f32 %v3226, %v3418
        %3420 = vmatprep.mubr.bf16.mxu0 0
        %3421 = vmatmul.mubr.bf16.gmra.mrb[0].mxu0 %v2713
        %v3422 = vpop.f32.mrb[0].mxu0
        %v3423 = vadd.f32 %v3230, %v3422
        %v3424 = vpop.f32.mrb[0].mxu0
        %v3425 = vadd.f32 %v3232, %v3424
        %v3426 = vpop.f32.mrb[0].mxu0
        %v3427 = vadd.f32 %v3234, %v3426
        %v3428 = vpop.f32.mrb[0].mxu0
        %v3429 = vadd.f32 %v3236, %v3428
        %3430 = vmatprep.mubr.bf16.mxu0 0
        %3431 = vmatmul.mubr.bf16.gmra.mrb[0].mxu0 %v2716
        %v3432 = vpop.f32.mrb[0].mxu0
        %v3433 = vadd.f32 %v3240, %v3432
        %v3434 = vpop.f32.mrb[0].mxu0
        %v3435 = vadd.f32 %v3242, %v3434
        %v3436 = vpop.f32.mrb[0].mxu0
        %v3437 = vadd.f32 %v3244, %v3436
        %v3438 = vpop.f32.mrb[0].mxu0
        %v3439 = vadd.f32 %v3246, %v3438
        %3440 = vmatprep.mubr.bf16.mxu0 0
        %3441 = vmatmul.mubr.bf16.gmra.mrb[0].mxu0 %v2719
        %v3442 = vpop.f32.mrb[0].mxu0
        %v3443 = vadd.f32 %v3250, %v3442
        %v3444 = vpop.f32.mrb[0].mxu0
        %v3445 = vadd.f32 %v3252, %v3444
        %v3446 = vpop.f32.mrb[0].mxu0
        %v3447 = vadd.f32 %v3254, %v3446
        %v3448 = vpop.f32.mrb[0].mxu0
        %v3449 = vadd.f32 %v3256, %v3448
        %3450 = vmatprep.mubr.bf16.mxu0 0
        %3451 = vmatmul.mubr.bf16.gmra.mrb[0].mxu0 %v2722
        %v3452 = vpop.f32.mrb[0].mxu0
        %v3453 = vadd.f32 %v3260, %v3452
        %v3454 = vpop.f32.mrb[0].mxu0
        %v3455 = vadd.f32 %v3262, %v3454
        %v3456 = vpop.f32.mrb[0].mxu0
        %v3457 = vadd.f32 %v3264, %v3456
        %v3458 = vpop.f32.mrb[0].mxu0
        %v3459 = vadd.f32 %v3266, %v3458
        %3460 = vmatprep.mubr.bf16.mxu0 0
        %3461 = vmatmul.mubr.bf16.gmra.mrb[0].mxu0 %v2725
        %v3462 = vpop.f32.mrb[0].mxu0
        %v3463 = vadd.f32 %v3270, %v3462
        %v3464 = vpop.f32.mrb[0].mxu0
        %v3465 = vadd.f32 %v3272, %v3464
        %v3466 = vpop.f32.mrb[0].mxu0
        %v3467 = vadd.f32 %v3274, %v3466
        %v3468 = vpop.f32.mrb[0].mxu0
        %v3469 = vadd.f32 %v3276, %v3468
        %3470 = vmatprep.mubr.bf16.mxu0 0
        %3471 = vmatmul.mubr.bf16.gmra.mrb[0].mxu0 %v2728
        %v3472 = vpop.f32.mrb[0].mxu0
        %v3473 = vadd.f32 %v3280, %v3472
        %v3474 = vpop.f32.mrb[0].mxu0
        %v3475 = vadd.f32 %v3282, %v3474
        %v3476 = vpop.f32.mrb[0].mxu0
        %v3477 = vadd.f32 %v3284, %v3476
        %v3478 = vpop.f32.mrb[0].mxu0
        %v3479 = vadd.f32 %v3286, %v3478
        %3480 = vmatprep.mubr.bf16.mxu0 0
        %3481 = vmatmul.mubr.bf16.gmra.mrb[0].mxu0 %v2731
        %v3482 = vpop.f32.mrb[0].mxu0
        %v3483 = vadd.f32 %v3290, %v3482
        %v3484 = vpop.f32.mrb[0].mxu0
        %v3485 = vadd.f32 %v3292, %v3484
        %v3486 = vpop.f32.mrb[0].mxu0
        %v3487 = vadd.f32 %v3294, %v3486
        %v3488 = vpop.f32.mrb[0].mxu0
        %v3489 = vadd.f32 %v3296, %v3488
        %3490 = vmatprep.mubr.bf16.mxu0 0
        %3491 = vmatmul.mubr.bf16.gmra.mrb[0].mxu0 %v2734
        %v3492 = vpop.f32.mrb[0].mxu0
        %v3493 = vadd.f32 %v3300, %v3492
        %v3494 = vpop.f32.mrb[0].mxu0
        %v3495 = vadd.f32 %v3302, %v3494
        %v3496 = vpop.f32.mrb[0].mxu0
        %v3497 = vadd.f32 %v3304, %v3496
        %v3498 = vpop.f32.mrb[0].mxu0
        %v3499 = vadd.f32 %v3306, %v3498
        %3500 = vmatprep.mubr.bf16.mxu0 0
        %3501 = vmatmul.mubr.bf16.gmra.mrb[0].mxu0 %v2737
        %v3502 = vpop.f32.mrb[0].mxu0
        %v3503 = vadd.f32 %v3310, %v3502
        %v3504 = vpop.f32.mrb[0].mxu0
        %v3505 = vadd.f32 %v3312, %v3504
        %v3506 = vpop.f32.mrb[0].mxu0
        %v3507 = vadd.f32 %v3314, %v3506
        %v3508 = vpop.f32.mrb[0].mxu0
        %v3509 = vadd.f32 %v3316, %v3508
        %3510 = vdwg.mxu0
        %3511 = vmatprep.subr.bf16.mxu0 %v2203
        %3512 = vmatpush1.bf16.msra.mxu0 %v2202
        %3513 = vmatprep.subr.bf16.mxu0 %v2208
        %3514 = vmatpush1.bf16.msra.mxu0 %v2207
        %3515 = vmatprep.subr.bf16.mxu0 %v2213
        %3516 = vmatpush1.bf16.msra.mxu0 %v2212
        %3517 = vmatprep.subr.bf16.mxu0 %v2218
        %3518 = vmatpush1.bf16.msra.mxu0 %v2217
        %3519 = vmatprep.subr.bf16.mxu0 %v2223
        %3520 = vmatpush1.bf16.msra.mxu0 %v2222
        %3521 = vmatprep.subr.bf16.mxu0 %v2228
        %3522 = vmatpush1.bf16.msra.mxu0 %v2227
        %3523 = vmatprep.subr.bf16.mxu0 %v2233
        %3524 = vmatpush1.bf16.msra.mxu0 %v2232
        %3525 = vmatprep.subr.bf16.mxu0 %v2238
        %3526 = vmatpush1.bf16.msra.mxu0 %v2237
        %3527 = vmatprep.subr.bf16.mxu0 %v2243
        %3528 = vmatpush1.bf16.msra.mxu0 %v2242
        %3529 = vmatprep.subr.bf16.mxu0 %v2248
        %3530 = vmatpush1.bf16.msra.mxu0 %v2247
        %3531 = vmatprep.subr.bf16.mxu0 %v2253
        %3532 = vmatpush1.bf16.msra.mxu0 %v2252
        %3533 = vmatprep.subr.bf16.mxu0 %v2258
        %3534 = vmatpush1.bf16.msra.mxu0 %v2257
        %3535 = vmatprep.subr.bf16.mxu0 %v2263
        %3536 = vmatpush1.bf16.msra.mxu0 %v2262
        %3537 = vmatprep.subr.bf16.mxu0 %v2268
        %3538 = vmatpush1.bf16.msra.mxu0 %v2267
        %3539 = vmatprep.subr.bf16.mxu0 %v2273
        %3540 = vmatpush1.bf16.msra.mxu0 %v2272
        %3541 = vmatprep.subr.bf16.mxu0 %v2278
        %3542 = vmatpush1.bf16.msra.mxu0 %v2277
        %3543 = vmatprep.mubr.bf16.mxu0 %v1209
        %3544 = vmatmul.mubr.bf16.gmra.mrb[0].mxu0 %v1208
        %v3545 = vpop.f32.mrb[0].mxu0
        %v3546 = vadd.f32 %v842, %v3545
        %v3547 = vpop.f32.mrb[0].mxu0
        %v3548 = vadd.f32 %v846, %v3547
        %v3549 = vpop.f32.mrb[0].mxu0
        %v3550 = vadd.f32 %v842, %v3549
        %v3551 = vpop.f32.mrb[0].mxu0
        %v3552 = vadd.f32 %v846, %v3551
        %3553 = vmatprep.mubr.bf16.mxu0 %v1216
        %3554 = vmatmul.mubr.bf16.gmra.mrb[0].mxu0 %v1215
        %v3555 = vpop.f32.mrb[0].mxu0
        %v3556 = vadd.f32 %v842, %v3555
        %v3557 = vpop.f32.mrb[0].mxu0
        %v3558 = vadd.f32 %v846, %v3557
        %v3559 = vpop.f32.mrb[0].mxu0
        %v3560 = vadd.f32 %v842, %v3559
        %v3561 = vpop.f32.mrb[0].mxu0
        %v3562 = vadd.f32 %v846, %v3561
        %3563 = vmatprep.mubr.bf16.mxu0 %v1223
        %3564 = vmatmul.mubr.bf16.gmra.mrb[0].mxu0 %v1222
        %v3565 = vpop.f32.mrb[0].mxu0
        %v3566 = vadd.f32 %v842, %v3565
        %v3567 = vpop.f32.mrb[0].mxu0
        %v3568 = vadd.f32 %v846, %v3567
        %v3569 = vpop.f32.mrb[0].mxu0
        %v3570 = vadd.f32 %v842, %v3569
        %v3571 = vpop.f32.mrb[0].mxu0
        %v3572 = vadd.f32 %v846, %v3571
        %3573 = vmatprep.mubr.bf16.mxu0 %v1230
        %3574 = vmatmul.mubr.bf16.gmra.mrb[0].mxu0 %v1229
        %v3575 = vpop.f32.mrb[0].mxu0
        %v3576 = vadd.f32 %v842, %v3575
        %v3577 = vpop.f32.mrb[0].mxu0
        %v3578 = vadd.f32 %v846, %v3577
        %v3579 = vpop.f32.mrb[0].mxu0
        %v3580 = vadd.f32 %v842, %v3579
        %v3581 = vpop.f32.mrb[0].mxu0
        %v3582 = vadd.f32 %v846, %v3581
        %3583 = vmatprep.mubr.bf16.mxu0 %v1237
        %3584 = vmatmul.mubr.bf16.gmra.mrb[0].mxu0 %v1236
        %v3585 = vpop.f32.mrb[0].mxu0
        %v3586 = vadd.f32 %v842, %v3585
        %v3587 = vpop.f32.mrb[0].mxu0
        %v3588 = vadd.f32 %v846, %v3587
        %v3589 = vpop.f32.mrb[0].mxu0
        %v3590 = vadd.f32 %v842, %v3589
        %v3591 = vpop.f32.mrb[0].mxu0
        %v3592 = vadd.f32 %v846, %v3591
        %3593 = vmatprep.mubr.bf16.mxu0 %v1244
        %3594 = vmatmul.mubr.bf16.gmra.mrb[0].mxu0 %v1243
        %v3595 = vpop.f32.mrb[0].mxu0
        %v3596 = vadd.f32 %v842, %v3595
        %v3597 = vpop.f32.mrb[0].mxu0
        %v3598 = vadd.f32 %v846, %v3597
        %v3599 = vpop.f32.mrb[0].mxu0
        %v3600 = vadd.f32 %v842, %v3599
        %v3601 = vpop.f32.mrb[0].mxu0
        %v3602 = vadd.f32 %v846, %v3601
        %3603 = vmatprep.mubr.bf16.mxu0 %v1251
        %3604 = vmatmul.mubr.bf16.gmra.mrb[0].mxu0 %v1250
        %v3605 = vpop.f32.mrb[0].mxu0
        %v3606 = vadd.f32 %v842, %v3605
        %v3607 = vpop.f32.mrb[0].mxu0
        %v3608 = vadd.f32 %v846, %v3607
        %v3609 = vpop.f32.mrb[0].mxu0
        %v3610 = vadd.f32 %v842, %v3609
        %v3611 = vpop.f32.mrb[0].mxu0
        %v3612 = vadd.f32 %v846, %v3611
        %3613 = vmatprep.mubr.bf16.mxu0 %v1258
        %3614 = vmatmul.mubr.bf16.gmra.mrb[0].mxu0 %v1257
        %v3615 = vpop.f32.mrb[0].mxu0
        %v3616 = vadd.f32 %v842, %v3615
        %v3617 = vpop.f32.mrb[0].mxu0
        %v3618 = vadd.f32 %v846, %v3617
        %v3619 = vpop.f32.mrb[0].mxu0
        %v3620 = vadd.f32 %v842, %v3619
        %v3621 = vpop.f32.mrb[0].mxu0
        %v3622 = vadd.f32 %v846, %v3621
        %3623 = vmatprep.mubr.bf16.mxu0 %v1265
        %3624 = vmatmul.mubr.bf16.gmra.mrb[0].mxu0 %v1264
        %v3625 = vpop.f32.mrb[0].mxu0
        %v3626 = vadd.f32 %v842, %v3625
        %v3627 = vpop.f32.mrb[0].mxu0
        %v3628 = vadd.f32 %v846, %v3627
        %v3629 = vpop.f32.mrb[0].mxu0
        %v3630 = vadd.f32 %v842, %v3629
        %v3631 = vpop.f32.mrb[0].mxu0
        %v3632 = vadd.f32 %v846, %v3631
        %3633 = vmatprep.mubr.bf16.mxu0 %v1272
        %3634 = vmatmul.mubr.bf16.gmra.mrb[0].mxu0 %v1271
        %v3635 = vpop.f32.mrb[0].mxu0
        %v3636 = vadd.f32 %v842, %v3635
        %v3637 = vpop.f32.mrb[0].mxu0
        %v3638 = vadd.f32 %v846, %v3637
        %v3639 = vpop.f32.mrb[0].mxu0
        %v3640 = vadd.f32 %v842, %v3639
        %v3641 = vpop.f32.mrb[0].mxu0
        %v3642 = vadd.f32 %v846, %v3641
        %3643 = vmatprep.mubr.bf16.mxu0 %v1279
        %3644 = vmatmul.mubr.bf16.gmra.mrb[0].mxu0 %v1278
        %v3645 = vpop.f32.mrb[0].mxu0
        %v3646 = vadd.f32 %v842, %v3645
        %v3647 = vpop.f32.mrb[0].mxu0
        %v3648 = vadd.f32 %v846, %v3647
        %v3649 = vpop.f32.mrb[0].mxu0
        %v3650 = vadd.f32 %v842, %v3649
        %v3651 = vpop.f32.mrb[0].mxu0
        %v3652 = vadd.f32 %v846, %v3651
        %3653 = vmatprep.mubr.bf16.mxu0 %v1286
        %3654 = vmatmul.mubr.bf16.gmra.mrb[0].mxu0 %v1285
        %v3655 = vpop.f32.mrb[0].mxu0
        %v3656 = vadd.f32 %v842, %v3655
        %v3657 = vpop.f32.mrb[0].mxu0
        %v3658 = vadd.f32 %v846, %v3657
        %v3659 = vpop.f32.mrb[0].mxu0
        %v3660 = vadd.f32 %v842, %v3659
        %v3661 = vpop.f32.mrb[0].mxu0
        %v3662 = vadd.f32 %v846, %v3661
        %3663 = vmatprep.mubr.bf16.mxu0 %v1293
        %3664 = vmatmul.mubr.bf16.gmra.mrb[0].mxu0 %v1292
        %v3665 = vpop.f32.mrb[0].mxu0
        %v3666 = vadd.f32 %v842, %v3665
        %v3667 = vpop.f32.mrb[0].mxu0
        %v3668 = vadd.f32 %v846, %v3667
        %v3669 = vpop.f32.mrb[0].mxu0
        %v3670 = vadd.f32 %v842, %v3669
        %v3671 = vpop.f32.mrb[0].mxu0
        %v3672 = vadd.f32 %v846, %v3671
        %3673 = vmatprep.mubr.bf16.mxu0 %v1300
        %3674 = vmatmul.mubr.bf16.gmra.mrb[0].mxu0 %v1299
        %v3675 = vpop.f32.mrb[0].mxu0
        %v3676 = vadd.f32 %v842, %v3675
        %v3677 = vpop.f32.mrb[0].mxu0
        %v3678 = vadd.f32 %v846, %v3677
        %v3679 = vpop.f32.mrb[0].mxu0
        %v3680 = vadd.f32 %v842, %v3679
        %v3681 = vpop.f32.mrb[0].mxu0
        %v3682 = vadd.f32 %v846, %v3681
        %3683 = vmatprep.mubr.bf16.mxu0 %v1307
        %3684 = vmatmul.mubr.bf16.gmra.mrb[0].mxu0 %v1306
        %v3685 = vpop.f32.mrb[0].mxu0
        %v3686 = vadd.f32 %v842, %v3685
        %v3687 = vpop.f32.mrb[0].mxu0
        %v3688 = vadd.f32 %v846, %v3687
        %v3689 = vpop.f32.mrb[0].mxu0
        %v3690 = vadd.f32 %v842, %v3689
        %v3691 = vpop.f32.mrb[0].mxu0
        %v3692 = vadd.f32 %v846, %v3691
        %3693 = vmatprep.mubr.bf16.mxu0 %v1314
        %3694 = vmatmul.mubr.bf16.gmra.mrb[0].mxu0 %v1313
        %v3695 = vpop.f32.mrb[0].mxu0
        %v3696 = vadd.f32 %v842, %v3695
        %v3697 = vpop.f32.mrb[0].mxu0
        %v3698 = vadd.f32 %v846, %v3697
        %v3699 = vpop.f32.mrb[0].mxu0
        %v3700 = vadd.f32 %v842, %v3699
        %v3701 = vpop.f32.mrb[0].mxu0
        %v3702 = vadd.f32 %v846, %v3701
        %3703 = vdwg.mxu0
        %3704 = vmatprep.subr.bf16.mxu0 %v2283
        %3705 = vmatpush1.bf16.msra.mxu0 %v2282
        %3706 = vmatprep.subr.bf16.mxu0 %v2288
        %3707 = vmatpush1.bf16.msra.mxu0 %v2287
        %3708 = vmatprep.subr.bf16.mxu0 %v2293
        %3709 = vmatpush1.bf16.msra.mxu0 %v2292
        %3710 = vmatprep.subr.bf16.mxu0 %v2298
        %3711 = vmatpush1.bf16.msra.mxu0 %v2297
        %3712 = vmatprep.subr.bf16.mxu0 %v2303
        %3713 = vmatpush1.bf16.msra.mxu0 %v2302
        %3714 = vmatprep.subr.bf16.mxu0 %v2308
        %3715 = vmatpush1.bf16.msra.mxu0 %v2307
        %3716 = vmatprep.subr.bf16.mxu0 %v2313
        %3717 = vmatpush1.bf16.msra.mxu0 %v2312
        %3718 = vmatprep.subr.bf16.mxu0 %v2318
        %3719 = vmatpush1.bf16.msra.mxu0 %v2317
        %3720 = vmatprep.subr.bf16.mxu0 %v2323
        %3721 = vmatpush1.bf16.msra.mxu0 %v2322
        %3722 = vmatprep.subr.bf16.mxu0 %v2328
        %3723 = vmatpush1.bf16.msra.mxu0 %v2327
        %3724 = vmatprep.subr.bf16.mxu0 %v2333
        %3725 = vmatpush1.bf16.msra.mxu0 %v2332
        %3726 = vmatprep.subr.bf16.mxu0 %v2338
        %3727 = vmatpush1.bf16.msra.mxu0 %v2337
        %3728 = vmatprep.subr.bf16.mxu0 %v2343
        %3729 = vmatpush1.bf16.msra.mxu0 %v2342
        %3730 = vmatprep.subr.bf16.mxu0 %v2348
        %3731 = vmatpush1.bf16.msra.mxu0 %v2347
        %3732 = vmatprep.subr.bf16.mxu0 %v2353
        %3733 = vmatpush1.bf16.msra.mxu0 %v2352
        %3734 = vmatprep.subr.bf16.mxu0 %v2358
        %3735 = vmatpush1.bf16.msra.mxu0 %v2357
        %3736 = vmatprep.mubr.bf16.mxu0 %v1211
        %3737 = vmatmul.mubr.bf16.gmra.mrb[0].mxu0 %v1210
        %v3738 = vpop.f32.mrb[0].mxu0
        %v3739 = vadd.f32 %v3546, %v3738
        %v3740 = vpop.f32.mrb[0].mxu0
        %v3741 = vadd.f32 %v3548, %v3740
        %v3742 = vpop.f32.mrb[0].mxu0
        %v3743 = vadd.f32 %v3550, %v3742
        %v3744 = vpop.f32.mrb[0].mxu0
        %v3745 = vadd.f32 %v3552, %v3744
        %3746 = vmatprep.mubr.bf16.mxu0 %v1218
        %3747 = vmatmul.mubr.bf16.gmra.mrb[0].mxu0 %v1217
        %v3748 = vpop.f32.mrb[0].mxu0
        %v3749 = vadd.f32 %v3556, %v3748
        %v3750 = vpop.f32.mrb[0].mxu0
        %v3751 = vadd.f32 %v3558, %v3750
        %v3752 = vpop.f32.mrb[0].mxu0
        %v3753 = vadd.f32 %v3560, %v3752
        %v3754 = vpop.f32.mrb[0].mxu0
        %v3755 = vadd.f32 %v3562, %v3754
        %3756 = vmatprep.mubr.bf16.mxu0 %v1225
        %3757 = vmatmul.mubr.bf16.gmra.mrb[0].mxu0 %v1224
        %v3758 = vpop.f32.mrb[0].mxu0
        %v3759 = vadd.f32 %v3566, %v3758
        %v3760 = vpop.f32.mrb[0].mxu0
        %v3761 = vadd.f32 %v3568, %v3760
        %v3762 = vpop.f32.mrb[0].mxu0
        %v3763 = vadd.f32 %v3570, %v3762
        %v3764 = vpop.f32.mrb[0].mxu0
        %v3765 = vadd.f32 %v3572, %v3764
        %3766 = vmatprep.mubr.bf16.mxu0 %v1232
        %3767 = vmatmul.mubr.bf16.gmra.mrb[0].mxu0 %v1231
        %v3768 = vpop.f32.mrb[0].mxu0
        %v3769 = vadd.f32 %v3576, %v3768
        %v3770 = vpop.f32.mrb[0].mxu0
        %v3771 = vadd.f32 %v3578, %v3770
        %v3772 = vpop.f32.mrb[0].mxu0
        %v3773 = vadd.f32 %v3580, %v3772
        %v3774 = vpop.f32.mrb[0].mxu0
        %v3775 = vadd.f32 %v3582, %v3774
        %3776 = vmatprep.mubr.bf16.mxu0 %v1239
        %3777 = vmatmul.mubr.bf16.gmra.mrb[0].mxu0 %v1238
        %v3778 = vpop.f32.mrb[0].mxu0
        %v3779 = vadd.f32 %v3586, %v3778
        %v3780 = vpop.f32.mrb[0].mxu0
        %v3781 = vadd.f32 %v3588, %v3780
        %v3782 = vpop.f32.mrb[0].mxu0
        %v3783 = vadd.f32 %v3590, %v3782
        %v3784 = vpop.f32.mrb[0].mxu0
        %v3785 = vadd.f32 %v3592, %v3784
        %3786 = vmatprep.mubr.bf16.mxu0 %v1246
        %3787 = vmatmul.mubr.bf16.gmra.mrb[0].mxu0 %v1245
        %v3788 = vpop.f32.mrb[0].mxu0
        %v3789 = vadd.f32 %v3596, %v3788
        %v3790 = vpop.f32.mrb[0].mxu0
        %v3791 = vadd.f32 %v3598, %v3790
        %v3792 = vpop.f32.mrb[0].mxu0
        %v3793 = vadd.f32 %v3600, %v3792
        %v3794 = vpop.f32.mrb[0].mxu0
        %v3795 = vadd.f32 %v3602, %v3794
        %3796 = vmatprep.mubr.bf16.mxu0 %v1253
        %3797 = vmatmul.mubr.bf16.gmra.mrb[0].mxu0 %v1252
        %v3798 = vpop.f32.mrb[0].mxu0
        %v3799 = vadd.f32 %v3606, %v3798
        %v3800 = vpop.f32.mrb[0].mxu0
        %v3801 = vadd.f32 %v3608, %v3800
        %v3802 = vpop.f32.mrb[0].mxu0
        %v3803 = vadd.f32 %v3610, %v3802
        %v3804 = vpop.f32.mrb[0].mxu0
        %v3805 = vadd.f32 %v3612, %v3804
        %3806 = vmatprep.mubr.bf16.mxu0 %v1260
        %3807 = vmatmul.mubr.bf16.gmra.mrb[0].mxu0 %v1259
        %v3808 = vpop.f32.mrb[0].mxu0
        %v3809 = vadd.f32 %v3616, %v3808
        %v3810 = vpop.f32.mrb[0].mxu0
        %v3811 = vadd.f32 %v3618, %v3810
        %v3812 = vpop.f32.mrb[0].mxu0
        %v3813 = vadd.f32 %v3620, %v3812
        %v3814 = vpop.f32.mrb[0].mxu0
        %v3815 = vadd.f32 %v3622, %v3814
        %3816 = vmatprep.mubr.bf16.mxu0 %v1267
        %3817 = vmatmul.mubr.bf16.gmra.mrb[0].mxu0 %v1266
        %v3818 = vpop.f32.mrb[0].mxu0
        %v3819 = vadd.f32 %v3626, %v3818
        %v3820 = vpop.f32.mrb[0].mxu0
        %v3821 = vadd.f32 %v3628, %v3820
        %v3822 = vpop.f32.mrb[0].mxu0
        %v3823 = vadd.f32 %v3630, %v3822
        %v3824 = vpop.f32.mrb[0].mxu0
        %v3825 = vadd.f32 %v3632, %v3824
        %3826 = vmatprep.mubr.bf16.mxu0 %v1274
        %3827 = vmatmul.mubr.bf16.gmra.mrb[0].mxu0 %v1273
        %v3828 = vpop.f32.mrb[0].mxu0
        %v3829 = vadd.f32 %v3636, %v3828
        %v3830 = vpop.f32.mrb[0].mxu0
        %v3831 = vadd.f32 %v3638, %v3830
        %v3832 = vpop.f32.mrb[0].mxu0
        %v3833 = vadd.f32 %v3640, %v3832
        %v3834 = vpop.f32.mrb[0].mxu0
        %v3835 = vadd.f32 %v3642, %v3834
        %3836 = vmatprep.mubr.bf16.mxu0 %v1281
        %3837 = vmatmul.mubr.bf16.gmra.mrb[0].mxu0 %v1280
        %v3838 = vpop.f32.mrb[0].mxu0
        %v3839 = vadd.f32 %v3646, %v3838
        %v3840 = vpop.f32.mrb[0].mxu0
        %v3841 = vadd.f32 %v3648, %v3840
        %v3842 = vpop.f32.mrb[0].mxu0
        %v3843 = vadd.f32 %v3650, %v3842
        %v3844 = vpop.f32.mrb[0].mxu0
        %v3845 = vadd.f32 %v3652, %v3844
        %3846 = vmatprep.mubr.bf16.mxu0 %v1288
        %3847 = vmatmul.mubr.bf16.gmra.mrb[0].mxu0 %v1287
        %v3848 = vpop.f32.mrb[0].mxu0
        %v3849 = vadd.f32 %v3656, %v3848
        %v3850 = vpop.f32.mrb[0].mxu0
        %v3851 = vadd.f32 %v3658, %v3850
        %v3852 = vpop.f32.mrb[0].mxu0
        %v3853 = vadd.f32 %v3660, %v3852
        %v3854 = vpop.f32.mrb[0].mxu0
        %v3855 = vadd.f32 %v3662, %v3854
        %3856 = vmatprep.mubr.bf16.mxu0 %v1295
        %3857 = vmatmul.mubr.bf16.gmra.mrb[0].mxu0 %v1294
        %v3858 = vpop.f32.mrb[0].mxu0
        %v3859 = vadd.f32 %v3666, %v3858
        %v3860 = vpop.f32.mrb[0].mxu0
        %v3861 = vadd.f32 %v3668, %v3860
        %v3862 = vpop.f32.mrb[0].mxu0
        %v3863 = vadd.f32 %v3670, %v3862
        %v3864 = vpop.f32.mrb[0].mxu0
        %v3865 = vadd.f32 %v3672, %v3864
        %3866 = vmatprep.mubr.bf16.mxu0 %v1302
        %3867 = vmatmul.mubr.bf16.gmra.mrb[0].mxu0 %v1301
        %v3868 = vpop.f32.mrb[0].mxu0
        %v3869 = vadd.f32 %v3676, %v3868
        %v3870 = vpop.f32.mrb[0].mxu0
        %v3871 = vadd.f32 %v3678, %v3870
        %v3872 = vpop.f32.mrb[0].mxu0
        %v3873 = vadd.f32 %v3680, %v3872
        %v3874 = vpop.f32.mrb[0].mxu0
        %v3875 = vadd.f32 %v3682, %v3874
        %3876 = vmatprep.mubr.bf16.mxu0 %v1309
        %3877 = vmatmul.mubr.bf16.gmra.mrb[0].mxu0 %v1308
        %v3878 = vpop.f32.mrb[0].mxu0
        %v3879 = vadd.f32 %v3686, %v3878
        %v3880 = vpop.f32.mrb[0].mxu0
        %v3881 = vadd.f32 %v3688, %v3880
        %v3882 = vpop.f32.mrb[0].mxu0
        %v3883 = vadd.f32 %v3690, %v3882
        %v3884 = vpop.f32.mrb[0].mxu0
        %v3885 = vadd.f32 %v3692, %v3884
        %3886 = vmatprep.mubr.bf16.mxu0 %v1316
        %3887 = vmatmul.mubr.bf16.gmra.mrb[0].mxu0 %v1315
        %v3888 = vpop.f32.mrb[0].mxu0
        %v3889 = vadd.f32 %v3696, %v3888
        %v3890 = vpop.f32.mrb[0].mxu0
        %v3891 = vadd.f32 %v3698, %v3890
        %v3892 = vpop.f32.mrb[0].mxu0
        %v3893 = vadd.f32 %v3700, %v3892
        %v3894 = vpop.f32.mrb[0].mxu0
        %v3895 = vadd.f32 %v3702, %v3894
        %3896 = vdwg.mxu0
        %3897 = vmatprep.subr.bf16.mxu0 %v2363
        %3898 = vmatpush1.bf16.msra.mxu0 %v2362
        %3899 = vmatprep.subr.bf16.mxu0 %v2368
        %3900 = vmatpush1.bf16.msra.mxu0 %v2367
        %3901 = vmatprep.subr.bf16.mxu0 %v2373
        %3902 = vmatpush1.bf16.msra.mxu0 %v2372
        %3903 = vmatprep.subr.bf16.mxu0 %v2378
        %3904 = vmatpush1.bf16.msra.mxu0 %v2377
        %3905 = vmatprep.subr.bf16.mxu0 %v2383
        %3906 = vmatpush1.bf16.msra.mxu0 %v2382
        %3907 = vmatprep.subr.bf16.mxu0 %v2388
        %3908 = vmatpush1.bf16.msra.mxu0 %v2387
        %3909 = vmatprep.subr.bf16.mxu0 %v2393
        %3910 = vmatpush1.bf16.msra.mxu0 %v2392
        %3911 = vmatprep.subr.bf16.mxu0 %v2398
        %3912 = vmatpush1.bf16.msra.mxu0 %v2397
        %3913 = vmatprep.subr.bf16.mxu0 %v2403
        %3914 = vmatpush1.bf16.msra.mxu0 %v2402
        %3915 = vmatprep.subr.bf16.mxu0 %v2408
        %3916 = vmatpush1.bf16.msra.mxu0 %v2407
        %3917 = vmatprep.subr.bf16.mxu0 %v2413
        %3918 = vmatpush1.bf16.msra.mxu0 %v2412
        %3919 = vmatprep.subr.bf16.mxu0 %v2418
        %3920 = vmatpush1.bf16.msra.mxu0 %v2417
        %3921 = vmatprep.subr.bf16.mxu0 %v2423
        %3922 = vmatpush1.bf16.msra.mxu0 %v2422
        %3923 = vmatprep.subr.bf16.mxu0 %v2428
        %3924 = vmatpush1.bf16.msra.mxu0 %v2427
        %3925 = vmatprep.subr.bf16.mxu0 %v2433
        %3926 = vmatpush1.bf16.msra.mxu0 %v2432
        %3927 = vmatprep.subr.bf16.mxu0 %v2438
        %3928 = vmatpush1.bf16.msra.mxu0 %v2437
        %3929 = vmatprep.mubr.bf16.mxu0 %v1213
        %3930 = vmatmul.mubr.bf16.gmra.mrb[0].mxu0 %v1212
        %v3931 = vpop.f32.mrb[0].mxu0
        %v3932 = vadd.f32 %v3739, %v3931
        %v3933 = vpop.f32.mrb[0].mxu0
        %v3934 = vadd.f32 %v3741, %v3933
        %v3935 = vpop.f32.mrb[0].mxu0
        %v3936 = vadd.f32 %v3743, %v3935
        %v3937 = vpop.f32.mrb[0].mxu0
        %v3938 = vadd.f32 %v3745, %v3937
        %3939 = vmatprep.mubr.bf16.mxu0 %v1220
        %3940 = vmatmul.mubr.bf16.gmra.mrb[0].mxu0 %v1219
        %v3941 = vpop.f32.mrb[0].mxu0
        %v3942 = vadd.f32 %v3749, %v3941
        %v3943 = vpop.f32.mrb[0].mxu0
        %v3944 = vadd.f32 %v3751, %v3943
        %v3945 = vpop.f32.mrb[0].mxu0
        %v3946 = vadd.f32 %v3753, %v3945
        %v3947 = vpop.f32.mrb[0].mxu0
        %v3948 = vadd.f32 %v3755, %v3947
        %3949 = vmatprep.mubr.bf16.mxu0 %v1227
        %3950 = vmatmul.mubr.bf16.gmra.mrb[0].mxu0 %v1226
        %v3951 = vpop.f32.mrb[0].mxu0
        %v3952 = vadd.f32 %v3759, %v3951
        %v3953 = vpop.f32.mrb[0].mxu0
        %v3954 = vadd.f32 %v3761, %v3953
        %v3955 = vpop.f32.mrb[0].mxu0
        %v3956 = vadd.f32 %v3763, %v3955
        %v3957 = vpop.f32.mrb[0].mxu0
        %v3958 = vadd.f32 %v3765, %v3957
        %3959 = vmatprep.mubr.bf16.mxu0 %v1234
        %3960 = vmatmul.mubr.bf16.gmra.mrb[0].mxu0 %v1233
        %v3961 = vpop.f32.mrb[0].mxu0
        %v3962 = vadd.f32 %v3769, %v3961
        %v3963 = vpop.f32.mrb[0].mxu0
        %v3964 = vadd.f32 %v3771, %v3963
        %v3965 = vpop.f32.mrb[0].mxu0
        %v3966 = vadd.f32 %v3773, %v3965
        %v3967 = vpop.f32.mrb[0].mxu0
        %v3968 = vadd.f32 %v3775, %v3967
        %3969 = vmatprep.mubr.bf16.mxu0 %v1241
        %3970 = vmatmul.mubr.bf16.gmra.mrb[0].mxu0 %v1240
        %v3971 = vpop.f32.mrb[0].mxu0
        %v3972 = vadd.f32 %v3779, %v3971
        %v3973 = vpop.f32.mrb[0].mxu0
        %v3974 = vadd.f32 %v3781, %v3973
        %v3975 = vpop.f32.mrb[0].mxu0
        %v3976 = vadd.f32 %v3783, %v3975
        %v3977 = vpop.f32.mrb[0].mxu0
        %v3978 = vadd.f32 %v3785, %v3977
        %3979 = vmatprep.mubr.bf16.mxu0 %v1248
        %3980 = vmatmul.mubr.bf16.gmra.mrb[0].mxu0 %v1247
        %v3981 = vpop.f32.mrb[0].mxu0
        %v3982 = vadd.f32 %v3789, %v3981
        %v3983 = vpop.f32.mrb[0].mxu0
        %v3984 = vadd.f32 %v3791, %v3983
        %v3985 = vpop.f32.mrb[0].mxu0
        %v3986 = vadd.f32 %v3793, %v3985
        %v3987 = vpop.f32.mrb[0].mxu0
        %v3988 = vadd.f32 %v3795, %v3987
        %3989 = vmatprep.mubr.bf16.mxu0 %v1255
        %3990 = vmatmul.mubr.bf16.gmra.mrb[0].mxu0 %v1254
        %v3991 = vpop.f32.mrb[0].mxu0
        %v3992 = vadd.f32 %v3799, %v3991
        %v3993 = vpop.f32.mrb[0].mxu0
        %v3994 = vadd.f32 %v3801, %v3993
        %v3995 = vpop.f32.mrb[0].mxu0
        %v3996 = vadd.f32 %v3803, %v3995
        %v3997 = vpop.f32.mrb[0].mxu0
        %v3998 = vadd.f32 %v3805, %v3997
        %3999 = vmatprep.mubr.bf16.mxu0 %v1262
        %4000 = vmatmul.mubr.bf16.gmra.mrb[0].mxu0 %v1261
        %v4001 = vpop.f32.mrb[0].mxu0
        %v4002 = vadd.f32 %v3809, %v4001
        %v4003 = vpop.f32.mrb[0].mxu0
        %v4004 = vadd.f32 %v3811, %v4003
        %v4005 = vpop.f32.mrb[0].mxu0
        %v4006 = vadd.f32 %v3813, %v4005
        %v4007 = vpop.f32.mrb[0].mxu0
        %v4008 = vadd.f32 %v3815, %v4007
        %4009 = vmatprep.mubr.bf16.mxu0 %v1269
        %4010 = vmatmul.mubr.bf16.gmra.mrb[0].mxu0 %v1268
        %v4011 = vpop.f32.mrb[0].mxu0
        %v4012 = vadd.f32 %v3819, %v4011
        %v4013 = vpop.f32.mrb[0].mxu0
        %v4014 = vadd.f32 %v3821, %v4013
        %v4015 = vpop.f32.mrb[0].mxu0
        %v4016 = vadd.f32 %v3823, %v4015
        %v4017 = vpop.f32.mrb[0].mxu0
        %v4018 = vadd.f32 %v3825, %v4017
        %4019 = vmatprep.mubr.bf16.mxu0 %v1276
        %4020 = vmatmul.mubr.bf16.gmra.mrb[0].mxu0 %v1275
        %v4021 = vpop.f32.mrb[0].mxu0
        %v4022 = vadd.f32 %v3829, %v4021
        %v4023 = vpop.f32.mrb[0].mxu0
        %v4024 = vadd.f32 %v3831, %v4023
        %v4025 = vpop.f32.mrb[0].mxu0
        %v4026 = vadd.f32 %v3833, %v4025
        %v4027 = vpop.f32.mrb[0].mxu0
        %v4028 = vadd.f32 %v3835, %v4027
        %4029 = vmatprep.mubr.bf16.mxu0 %v1283
        %4030 = vmatmul.mubr.bf16.gmra.mrb[0].mxu0 %v1282
        %v4031 = vpop.f32.mrb[0].mxu0
        %v4032 = vadd.f32 %v3839, %v4031
        %v4033 = vpop.f32.mrb[0].mxu0
        %v4034 = vadd.f32 %v3841, %v4033
        %v4035 = vpop.f32.mrb[0].mxu0
        %v4036 = vadd.f32 %v3843, %v4035
        %v4037 = vpop.f32.mrb[0].mxu0
        %v4038 = vadd.f32 %v3845, %v4037
        %4039 = vmatprep.mubr.bf16.mxu0 %v1290
        %4040 = vmatmul.mubr.bf16.gmra.mrb[0].mxu0 %v1289
        %v4041 = vpop.f32.mrb[0].mxu0
        %v4042 = vadd.f32 %v3849, %v4041
        %v4043 = vpop.f32.mrb[0].mxu0
        %v4044 = vadd.f32 %v3851, %v4043
        %v4045 = vpop.f32.mrb[0].mxu0
        %v4046 = vadd.f32 %v3853, %v4045
        %v4047 = vpop.f32.mrb[0].mxu0
        %v4048 = vadd.f32 %v3855, %v4047
        %4049 = vmatprep.mubr.bf16.mxu0 %v1297
        %4050 = vmatmul.mubr.bf16.gmra.mrb[0].mxu0 %v1296
        %v4051 = vpop.f32.mrb[0].mxu0
        %v4052 = vadd.f32 %v3859, %v4051
        %v4053 = vpop.f32.mrb[0].mxu0
        %v4054 = vadd.f32 %v3861, %v4053
        %v4055 = vpop.f32.mrb[0].mxu0
        %v4056 = vadd.f32 %v3863, %v4055
        %v4057 = vpop.f32.mrb[0].mxu0
        %v4058 = vadd.f32 %v3865, %v4057
        %4059 = vmatprep.mubr.bf16.mxu0 %v1304
        %4060 = vmatmul.mubr.bf16.gmra.mrb[0].mxu0 %v1303
        %v4061 = vpop.f32.mrb[0].mxu0
        %v4062 = vadd.f32 %v3869, %v4061
        %v4063 = vpop.f32.mrb[0].mxu0
        %v4064 = vadd.f32 %v3871, %v4063
        %v4065 = vpop.f32.mrb[0].mxu0
        %v4066 = vadd.f32 %v3873, %v4065
        %v4067 = vpop.f32.mrb[0].mxu0
        %v4068 = vadd.f32 %v3875, %v4067
        %4069 = vmatprep.mubr.bf16.mxu0 %v1311
        %4070 = vmatmul.mubr.bf16.gmra.mrb[0].mxu0 %v1310
        %v4071 = vpop.f32.mrb[0].mxu0
        %v4072 = vadd.f32 %v3879, %v4071
        %v4073 = vpop.f32.mrb[0].mxu0
        %v4074 = vadd.f32 %v3881, %v4073
        %v4075 = vpop.f32.mrb[0].mxu0
        %v4076 = vadd.f32 %v3883, %v4075
        %v4077 = vpop.f32.mrb[0].mxu0
        %v4078 = vadd.f32 %v3885, %v4077
        %4079 = vmatprep.mubr.bf16.mxu0 %v1318
        %4080 = vmatmul.mubr.bf16.gmra.mrb[0].mxu0 %v1317
        %v4081 = vpop.f32.mrb[0].mxu0
        %v4082 = vadd.f32 %v3889, %v4081
        %v4083 = vpop.f32.mrb[0].mxu0
        %v4084 = vadd.f32 %v3891, %v4083
        %v4085 = vpop.f32.mrb[0].mxu0
        %v4086 = vadd.f32 %v3893, %v4085
        %v4087 = vpop.f32.mrb[0].mxu0
        %v4088 = vadd.f32 %v3895, %v4087
        %4089 = vdwg.mxu0
        %4090 = vmatprep.subr.bf16.mxu0 %v2443
        %4091 = vmatpush1.bf16.msra.mxu0 %v2442
        %4092 = vmatprep.subr.bf16.mxu0 0
        %4093 = vmatpush1.bf16.msra.mxu0 0
        %4094 = vmatprep.subr.bf16.mxu0 0
        %4095 = vmatpush1.bf16.msra.mxu0 0
        %4096 = vmatprep.subr.bf16.mxu0 0
        %4097 = vmatpush1.bf16.msra.mxu0 0
        %4098 = vmatprep.subr.bf16.mxu0 0
        %4099 = vmatpush1.bf16.msra.mxu0 0
        %4100 = vmatprep.subr.bf16.mxu0 0
        %4101 = vmatpush1.bf16.msra.mxu0 0
        %4102 = vmatprep.subr.bf16.mxu0 0
        %4103 = vmatpush1.bf16.msra.mxu0 0
        %4104 = vmatprep.subr.bf16.mxu0 0
        %4105 = vmatpush1.bf16.msra.mxu0 0
        %4106 = vmatprep.subr.bf16.mxu0 0
        %4107 = vmatpush1.bf16.msra.mxu0 0
        %4108 = vmatprep.subr.bf16.mxu0 0
        %4109 = vmatpush1.bf16.msra.mxu0 0
        %4110 = vmatprep.subr.bf16.mxu0 0
        %4111 = vmatpush1.bf16.msra.mxu0 0
        %4112 = vmatprep.subr.bf16.mxu0 0
        %4113 = vmatpush1.bf16.msra.mxu0 0
        %4114 = vmatprep.subr.bf16.mxu0 0
        %4115 = vmatpush1.bf16.msra.mxu0 0
        %4116 = vmatprep.subr.bf16.mxu0 0
        %4117 = vmatpush1.bf16.msra.mxu0 0
        %4118 = vmatprep.subr.bf16.mxu0 0
        %4119 = vmatpush1.bf16.msra.mxu0 0
        %4120 = vmatprep.subr.bf16.mxu0 0
        %4121 = vmatpush1.bf16.msra.mxu0 0
        %4122 = vmatprep.mubr.bf16.mxu0 0
        %4123 = vmatmul.mubr.bf16.gmra.mrb[0].mxu0 %v2692
        %v4124 = vpop.f32.mrb[0].mxu0
        %v4125 = vadd.f32 %v3932, %v4124
        %v4126 = vpop.f32.mrb[0].mxu0
        %v4127 = vadd.f32 %v3934, %v4126
        %v4128 = vpop.f32.mrb[0].mxu0
        %v4129 = vadd.f32 %v3936, %v4128
        %v4130 = vpop.f32.mrb[0].mxu0
        %v4131 = vadd.f32 %v3938, %v4130
        %4132 = vmatprep.mubr.bf16.mxu0 0
        %4133 = vmatmul.mubr.bf16.gmra.mrb[0].mxu0 %v2695
        %v4134 = vpop.f32.mrb[0].mxu0
        %v4135 = vadd.f32 %v3942, %v4134
        %v4136 = vpop.f32.mrb[0].mxu0
        %v4137 = vadd.f32 %v3944, %v4136
        %v4138 = vpop.f32.mrb[0].mxu0
        %v4139 = vadd.f32 %v3946, %v4138
        %v4140 = vpop.f32.mrb[0].mxu0
        %v4141 = vadd.f32 %v3948, %v4140
        %4142 = vmatprep.mubr.bf16.mxu0 0
        %4143 = vmatmul.mubr.bf16.gmra.mrb[0].mxu0 %v2698
        %v4144 = vpop.f32.mrb[0].mxu0
        %v4145 = vadd.f32 %v3952, %v4144
        %v4146 = vpop.f32.mrb[0].mxu0
        %v4147 = vadd.f32 %v3954, %v4146
        %v4148 = vpop.f32.mrb[0].mxu0
        %v4149 = vadd.f32 %v3956, %v4148
        %v4150 = vpop.f32.mrb[0].mxu0
        %v4151 = vadd.f32 %v3958, %v4150
        %4152 = vmatprep.mubr.bf16.mxu0 0
        %4153 = vmatmul.mubr.bf16.gmra.mrb[0].mxu0 %v2701
        %v4154 = vpop.f32.mrb[0].mxu0
        %v4155 = vadd.f32 %v3962, %v4154
        %v4156 = vpop.f32.mrb[0].mxu0
        %v4157 = vadd.f32 %v3964, %v4156
        %v4158 = vpop.f32.mrb[0].mxu0
        %v4159 = vadd.f32 %v3966, %v4158
        %v4160 = vpop.f32.mrb[0].mxu0
        %v4161 = vadd.f32 %v3968, %v4160
        %4162 = vmatprep.mubr.bf16.mxu0 0
        %4163 = vmatmul.mubr.bf16.gmra.mrb[0].mxu0 %v2704
        %v4164 = vpop.f32.mrb[0].mxu0
        %v4165 = vadd.f32 %v3972, %v4164
        %v4166 = vpop.f32.mrb[0].mxu0
        %v4167 = vadd.f32 %v3974, %v4166
        %v4168 = vpop.f32.mrb[0].mxu0
        %v4169 = vadd.f32 %v3976, %v4168
        %v4170 = vpop.f32.mrb[0].mxu0
        %v4171 = vadd.f32 %v3978, %v4170
        %4172 = vmatprep.mubr.bf16.mxu0 0
        %4173 = vmatmul.mubr.bf16.gmra.mrb[0].mxu0 %v2707
        %v4174 = vpop.f32.mrb[0].mxu0
        %v4175 = vadd.f32 %v3982, %v4174
        %v4176 = vpop.f32.mrb[0].mxu0
        %v4177 = vadd.f32 %v3984, %v4176
        %v4178 = vpop.f32.mrb[0].mxu0
        %v4179 = vadd.f32 %v3986, %v4178
        %v4180 = vpop.f32.mrb[0].mxu0
        %v4181 = vadd.f32 %v3988, %v4180
        %4182 = vmatprep.mubr.bf16.mxu0 0
        %4183 = vmatmul.mubr.bf16.gmra.mrb[0].mxu0 %v2710
        %v4184 = vpop.f32.mrb[0].mxu0
        %v4185 = vadd.f32 %v3992, %v4184
        %v4186 = vpop.f32.mrb[0].mxu0
        %v4187 = vadd.f32 %v3994, %v4186
        %v4188 = vpop.f32.mrb[0].mxu0
        %v4189 = vadd.f32 %v3996, %v4188
        %v4190 = vpop.f32.mrb[0].mxu0
        %v4191 = vadd.f32 %v3998, %v4190
        %4192 = vmatprep.mubr.bf16.mxu0 0
        %4193 = vmatmul.mubr.bf16.gmra.mrb[0].mxu0 %v2713
        %v4194 = vpop.f32.mrb[0].mxu0
        %v4195 = vadd.f32 %v4002, %v4194
        %v4196 = vpop.f32.mrb[0].mxu0
        %v4197 = vadd.f32 %v4004, %v4196
        %v4198 = vpop.f32.mrb[0].mxu0
        %v4199 = vadd.f32 %v4006, %v4198
        %v4200 = vpop.f32.mrb[0].mxu0
        %v4201 = vadd.f32 %v4008, %v4200
        %4202 = vmatprep.mubr.bf16.mxu0 0
        %4203 = vmatmul.mubr.bf16.gmra.mrb[0].mxu0 %v2716
        %v4204 = vpop.f32.mrb[0].mxu0
        %v4205 = vadd.f32 %v4012, %v4204
        %v4206 = vpop.f32.mrb[0].mxu0
        %v4207 = vadd.f32 %v4014, %v4206
        %v4208 = vpop.f32.mrb[0].mxu0
        %v4209 = vadd.f32 %v4016, %v4208
        %v4210 = vpop.f32.mrb[0].mxu0
        %v4211 = vadd.f32 %v4018, %v4210
        %4212 = vmatprep.mubr.bf16.mxu0 0
        %4213 = vmatmul.mubr.bf16.gmra.mrb[0].mxu0 %v2719
        %v4214 = vpop.f32.mrb[0].mxu0
        %v4215 = vadd.f32 %v4022, %v4214
        %v4216 = vpop.f32.mrb[0].mxu0
        %v4217 = vadd.f32 %v4024, %v4216
        %v4218 = vpop.f32.mrb[0].mxu0
        %v4219 = vadd.f32 %v4026, %v4218
        %v4220 = vpop.f32.mrb[0].mxu0
        %v4221 = vadd.f32 %v4028, %v4220
        %4222 = vmatprep.mubr.bf16.mxu0 0
        %4223 = vmatmul.mubr.bf16.gmra.mrb[0].mxu0 %v2722
        %v4224 = vpop.f32.mrb[0].mxu0
        %v4225 = vadd.f32 %v4032, %v4224
        %v4226 = vpop.f32.mrb[0].mxu0
        %v4227 = vadd.f32 %v4034, %v4226
        %v4228 = vpop.f32.mrb[0].mxu0
        %v4229 = vadd.f32 %v4036, %v4228
        %v4230 = vpop.f32.mrb[0].mxu0
        %v4231 = vadd.f32 %v4038, %v4230
        %4232 = vmatprep.mubr.bf16.mxu0 0
        %4233 = vmatmul.mubr.bf16.gmra.mrb[0].mxu0 %v2725
        %v4234 = vpop.f32.mrb[0].mxu0
        %v4235 = vadd.f32 %v4042, %v4234
        %v4236 = vpop.f32.mrb[0].mxu0
        %v4237 = vadd.f32 %v4044, %v4236
        %v4238 = vpop.f32.mrb[0].mxu0
        %v4239 = vadd.f32 %v4046, %v4238
        %v4240 = vpop.f32.mrb[0].mxu0
        %v4241 = vadd.f32 %v4048, %v4240
        %4242 = vmatprep.mubr.bf16.mxu0 0
        %4243 = vmatmul.mubr.bf16.gmra.mrb[0].mxu0 %v2728
        %v4244 = vpop.f32.mrb[0].mxu0
        %v4245 = vadd.f32 %v4052, %v4244
        %v4246 = vpop.f32.mrb[0].mxu0
        %v4247 = vadd.f32 %v4054, %v4246
        %v4248 = vpop.f32.mrb[0].mxu0
        %v4249 = vadd.f32 %v4056, %v4248
        %v4250 = vpop.f32.mrb[0].mxu0
        %v4251 = vadd.f32 %v4058, %v4250
        %4252 = vmatprep.mubr.bf16.mxu0 0
        %4253 = vmatmul.mubr.bf16.gmra.mrb[0].mxu0 %v2731
        %v4254 = vpop.f32.mrb[0].mxu0
        %v4255 = vadd.f32 %v4062, %v4254
        %v4256 = vpop.f32.mrb[0].mxu0
        %v4257 = vadd.f32 %v4064, %v4256
        %v4258 = vpop.f32.mrb[0].mxu0
        %v4259 = vadd.f32 %v4066, %v4258
        %v4260 = vpop.f32.mrb[0].mxu0
        %v4261 = vadd.f32 %v4068, %v4260
        %4262 = vmatprep.mubr.bf16.mxu0 0
        %4263 = vmatmul.mubr.bf16.gmra.mrb[0].mxu0 %v2734
        %v4264 = vpop.f32.mrb[0].mxu0
        %v4265 = vadd.f32 %v4072, %v4264
        %v4266 = vpop.f32.mrb[0].mxu0
        %v4267 = vadd.f32 %v4074, %v4266
        %v4268 = vpop.f32.mrb[0].mxu0
        %v4269 = vadd.f32 %v4076, %v4268
        %v4270 = vpop.f32.mrb[0].mxu0
        %v4271 = vadd.f32 %v4078, %v4270
        %4272 = vmatprep.mubr.bf16.mxu0 0
        %4273 = vmatmul.mubr.bf16.gmra.mrb[0].mxu0 %v2737
        %v4274 = vpop.f32.mrb[0].mxu0
        %v4275 = vadd.f32 %v4082, %v4274
        %v4276 = vpop.f32.mrb[0].mxu0
        %v4277 = vadd.f32 %v4084, %v4276
        %v4278 = vpop.f32.mrb[0].mxu0
        %v4279 = vadd.f32 %v4086, %v4278
        %v4280 = vpop.f32.mrb[0].mxu0
        %v4281 = vadd.f32 %v4088, %v4280
        %4282 = vdwg.mxu0
        %4283 = vmatprep.subr.bf16.mxu0 0
        %4284 = vmatpush1.bf16.msra.mxu0 %v2204
        %4285 = vmatprep.subr.bf16.mxu0 0
        %4286 = vmatpush1.bf16.msra.mxu0 %v2209
        %4287 = vmatprep.subr.bf16.mxu0 0
        %4288 = vmatpush1.bf16.msra.mxu0 %v2214
        %4289 = vmatprep.subr.bf16.mxu0 0
        %4290 = vmatpush1.bf16.msra.mxu0 %v2219
        %4291 = vmatprep.subr.bf16.mxu0 0
        %4292 = vmatpush1.bf16.msra.mxu0 %v2224
        %4293 = vmatprep.subr.bf16.mxu0 0
        %4294 = vmatpush1.bf16.msra.mxu0 %v2229
        %4295 = vmatprep.subr.bf16.mxu0 0
        %4296 = vmatpush1.bf16.msra.mxu0 %v2234
        %4297 = vmatprep.subr.bf16.mxu0 0
        %4298 = vmatpush1.bf16.msra.mxu0 %v2239
        %4299 = vmatprep.subr.bf16.mxu0 0
        %4300 = vmatpush1.bf16.msra.mxu0 %v2244
        %4301 = vmatprep.subr.bf16.mxu0 0
        %4302 = vmatpush1.bf16.msra.mxu0 %v2249
        %4303 = vmatprep.subr.bf16.mxu0 0
        %4304 = vmatpush1.bf16.msra.mxu0 %v2254
        %4305 = vmatprep.subr.bf16.mxu0 0
        %4306 = vmatpush1.bf16.msra.mxu0 %v2259
        %4307 = vmatprep.subr.bf16.mxu0 0
        %4308 = vmatpush1.bf16.msra.mxu0 %v2264
        %4309 = vmatprep.subr.bf16.mxu0 0
        %4310 = vmatpush1.bf16.msra.mxu0 %v2269
        %4311 = vmatprep.subr.bf16.mxu0 0
        %4312 = vmatpush1.bf16.msra.mxu0 %v2274
        %4313 = vmatprep.subr.bf16.mxu0 0
        %4314 = vmatpush1.bf16.msra.mxu0 %v2279
        %4315 = vmatprep.mubr.bf16.mxu0 %v1209
        %4316 = vmatmul.mubr.bf16.gmra.mrb[0].mxu0 %v1208
        %v4317 = vpop.f32.mrb[0].mxu0
        %v4318 = vadd.f32 %v850, %v4317
        %v4319 = vpop.f32.mrb[0].mxu0
        %v4320 = vpop.f32.mrb[0].mxu0
        %v4321 = vadd.f32 %v850, %v4320
        %v4322 = vpop.f32.mrb[0].mxu0
        %4323 = vmatprep.mubr.bf16.mxu0 %v1216
        %4324 = vmatmul.mubr.bf16.gmra.mrb[0].mxu0 %v1215
        %v4325 = vpop.f32.mrb[0].mxu0
        %v4326 = vadd.f32 %v850, %v4325
        %v4327 = vpop.f32.mrb[0].mxu0
        %v4328 = vpop.f32.mrb[0].mxu0
        %v4329 = vadd.f32 %v850, %v4328
        %v4330 = vpop.f32.mrb[0].mxu0
        %4331 = vmatprep.mubr.bf16.mxu0 %v1223
        %4332 = vmatmul.mubr.bf16.gmra.mrb[0].mxu0 %v1222
        %v4333 = vpop.f32.mrb[0].mxu0
        %v4334 = vadd.f32 %v850, %v4333
        %v4335 = vpop.f32.mrb[0].mxu0
        %v4336 = vpop.f32.mrb[0].mxu0
        %v4337 = vadd.f32 %v850, %v4336
        %v4338 = vpop.f32.mrb[0].mxu0
        %4339 = vmatprep.mubr.bf16.mxu0 %v1230
        %4340 = vmatmul.mubr.bf16.gmra.mrb[0].mxu0 %v1229
        %v4341 = vpop.f32.mrb[0].mxu0
        %v4342 = vadd.f32 %v850, %v4341
        %v4343 = vpop.f32.mrb[0].mxu0
        %v4344 = vpop.f32.mrb[0].mxu0
        %v4345 = vadd.f32 %v850, %v4344
        %v4346 = vpop.f32.mrb[0].mxu0
        %4347 = vmatprep.mubr.bf16.mxu0 %v1237
        %4348 = vmatmul.mubr.bf16.gmra.mrb[0].mxu0 %v1236
        %v4349 = vpop.f32.mrb[0].mxu0
        %v4350 = vadd.f32 %v850, %v4349
        %v4351 = vpop.f32.mrb[0].mxu0
        %v4352 = vpop.f32.mrb[0].mxu0
        %v4353 = vadd.f32 %v850, %v4352
        %v4354 = vpop.f32.mrb[0].mxu0
        %4355 = vmatprep.mubr.bf16.mxu0 %v1244
        %4356 = vmatmul.mubr.bf16.gmra.mrb[0].mxu0 %v1243
        %v4357 = vpop.f32.mrb[0].mxu0
        %v4358 = vadd.f32 %v850, %v4357
        %v4359 = vpop.f32.mrb[0].mxu0
        %v4360 = vpop.f32.mrb[0].mxu0
        %v4361 = vadd.f32 %v850, %v4360
        %v4362 = vpop.f32.mrb[0].mxu0
        %4363 = vmatprep.mubr.bf16.mxu0 %v1251
        %4364 = vmatmul.mubr.bf16.gmra.mrb[0].mxu0 %v1250
        %v4365 = vpop.f32.mrb[0].mxu0
        %v4366 = vadd.f32 %v850, %v4365
        %v4367 = vpop.f32.mrb[0].mxu0
        %v4368 = vpop.f32.mrb[0].mxu0
        %v4369 = vadd.f32 %v850, %v4368
        %v4370 = vpop.f32.mrb[0].mxu0
        %4371 = vmatprep.mubr.bf16.mxu0 %v1258
        %4372 = vmatmul.mubr.bf16.gmra.mrb[0].mxu0 %v1257
        %v4373 = vpop.f32.mrb[0].mxu0
        %v4374 = vadd.f32 %v850, %v4373
        %v4375 = vpop.f32.mrb[0].mxu0
        %v4376 = vpop.f32.mrb[0].mxu0
        %v4377 = vadd.f32 %v850, %v4376
        %v4378 = vpop.f32.mrb[0].mxu0
        %4379 = vmatprep.mubr.bf16.mxu0 %v1265
        %4380 = vmatmul.mubr.bf16.gmra.mrb[0].mxu0 %v1264
        %v4381 = vpop.f32.mrb[0].mxu0
        %v4382 = vadd.f32 %v850, %v4381
        %v4383 = vpop.f32.mrb[0].mxu0
        %v4384 = vpop.f32.mrb[0].mxu0
        %v4385 = vadd.f32 %v850, %v4384
        %v4386 = vpop.f32.mrb[0].mxu0
        %4387 = vmatprep.mubr.bf16.mxu0 %v1272
        %4388 = vmatmul.mubr.bf16.gmra.mrb[0].mxu0 %v1271
        %v4389 = vpop.f32.mrb[0].mxu0
        %v4390 = vadd.f32 %v850, %v4389
        %v4391 = vpop.f32.mrb[0].mxu0
        %v4392 = vpop.f32.mrb[0].mxu0
        %v4393 = vadd.f32 %v850, %v4392
        %v4394 = vpop.f32.mrb[0].mxu0
        %4395 = vmatprep.mubr.bf16.mxu0 %v1279
        %4396 = vmatmul.mubr.bf16.gmra.mrb[0].mxu0 %v1278
        %v4397 = vpop.f32.mrb[0].mxu0
        %v4398 = vadd.f32 %v850, %v4397
        %v4399 = vpop.f32.mrb[0].mxu0
        %v4400 = vpop.f32.mrb[0].mxu0
        %v4401 = vadd.f32 %v850, %v4400
        %v4402 = vpop.f32.mrb[0].mxu0
        %4403 = vmatprep.mubr.bf16.mxu0 %v1286
        %4404 = vmatmul.mubr.bf16.gmra.mrb[0].mxu0 %v1285
        %v4405 = vpop.f32.mrb[0].mxu0
        %v4406 = vadd.f32 %v850, %v4405
        %v4407 = vpop.f32.mrb[0].mxu0
        %v4408 = vpop.f32.mrb[0].mxu0
        %v4409 = vadd.f32 %v850, %v4408
        %v4410 = vpop.f32.mrb[0].mxu0
        %4411 = vmatprep.mubr.bf16.mxu0 %v1293
        %4412 = vmatmul.mubr.bf16.gmra.mrb[0].mxu0 %v1292
        %v4413 = vpop.f32.mrb[0].mxu0
        %v4414 = vadd.f32 %v850, %v4413
        %v4415 = vpop.f32.mrb[0].mxu0
        %v4416 = vpop.f32.mrb[0].mxu0
        %v4417 = vadd.f32 %v850, %v4416
        %v4418 = vpop.f32.mrb[0].mxu0
        %4419 = vmatprep.mubr.bf16.mxu0 %v1300
        %4420 = vmatmul.mubr.bf16.gmra.mrb[0].mxu0 %v1299
        %v4421 = vpop.f32.mrb[0].mxu0
        %v4422 = vadd.f32 %v850, %v4421
        %v4423 = vpop.f32.mrb[0].mxu0
        %v4424 = vpop.f32.mrb[0].mxu0
        %v4425 = vadd.f32 %v850, %v4424
        %v4426 = vpop.f32.mrb[0].mxu0
        %4427 = vmatprep.mubr.bf16.mxu0 %v1307
        %4428 = vmatmul.mubr.bf16.gmra.mrb[0].mxu0 %v1306
        %v4429 = vpop.f32.mrb[0].mxu0
        %v4430 = vadd.f32 %v850, %v4429
        %v4431 = vpop.f32.mrb[0].mxu0
        %v4432 = vpop.f32.mrb[0].mxu0
        %v4433 = vadd.f32 %v850, %v4432
        %v4434 = vpop.f32.mrb[0].mxu0
        %4435 = vmatprep.mubr.bf16.mxu0 %v1314
        %4436 = vmatmul.mubr.bf16.gmra.mrb[0].mxu0 %v1313
        %v4437 = vpop.f32.mrb[0].mxu0
        %v4438 = vadd.f32 %v850, %v4437
        %v4439 = vpop.f32.mrb[0].mxu0
        %v4440 = vpop.f32.mrb[0].mxu0
        %v4441 = vadd.f32 %v850, %v4440
        %v4442 = vpop.f32.mrb[0].mxu0
        %4443 = vdwg.mxu0
        %4444 = vmatprep.subr.bf16.mxu0 0
        %4445 = vmatpush1.bf16.msra.mxu0 %v2284
        %4446 = vmatprep.subr.bf16.mxu0 0
        %4447 = vmatpush1.bf16.msra.mxu0 %v2289
        %4448 = vmatprep.subr.bf16.mxu0 0
        %4449 = vmatpush1.bf16.msra.mxu0 %v2294
        %4450 = vmatprep.subr.bf16.mxu0 0
        %4451 = vmatpush1.bf16.msra.mxu0 %v2299
        %4452 = vmatprep.subr.bf16.mxu0 0
        %4453 = vmatpush1.bf16.msra.mxu0 %v2304
        %4454 = vmatprep.subr.bf16.mxu0 0
        %4455 = vmatpush1.bf16.msra.mxu0 %v2309
        %4456 = vmatprep.subr.bf16.mxu0 0
        %4457 = vmatpush1.bf16.msra.mxu0 %v2314
        %4458 = vmatprep.subr.bf16.mxu0 0
        %4459 = vmatpush1.bf16.msra.mxu0 %v2319
        %4460 = vmatprep.subr.bf16.mxu0 0
        %4461 = vmatpush1.bf16.msra.mxu0 %v2324
        %4462 = vmatprep.subr.bf16.mxu0 0
        %4463 = vmatpush1.bf16.msra.mxu0 %v2329
        %4464 = vmatprep.subr.bf16.mxu0 0
        %4465 = vmatpush1.bf16.msra.mxu0 %v2334
        %4466 = vmatprep.subr.bf16.mxu0 0
        %4467 = vmatpush1.bf16.msra.mxu0 %v2339
        %4468 = vmatprep.subr.bf16.mxu0 0
        %4469 = vmatpush1.bf16.msra.mxu0 %v2344
        %4470 = vmatprep.subr.bf16.mxu0 0
        %4471 = vmatpush1.bf16.msra.mxu0 %v2349
        %4472 = vmatprep.subr.bf16.mxu0 0
        %4473 = vmatpush1.bf16.msra.mxu0 %v2354
        %4474 = vmatprep.subr.bf16.mxu0 0
        %4475 = vmatpush1.bf16.msra.mxu0 %v2359
        %4476 = vmatprep.mubr.bf16.mxu0 %v1211
        %4477 = vmatmul.mubr.bf16.gmra.mrb[0].mxu0 %v1210
        %v4478 = vpop.f32.mrb[0].mxu0
        %v4479 = vadd.f32 %v4318, %v4478
        %v4480 = vpop.f32.mrb[0].mxu0
        %v4481 = vpop.f32.mrb[0].mxu0
        %v4482 = vadd.f32 %v4321, %v4481
        %v4483 = vpop.f32.mrb[0].mxu0
        %4484 = vmatprep.mubr.bf16.mxu0 %v1218
        %4485 = vmatmul.mubr.bf16.gmra.mrb[0].mxu0 %v1217
        %v4486 = vpop.f32.mrb[0].mxu0
        %v4487 = vadd.f32 %v4326, %v4486
        %v4488 = vpop.f32.mrb[0].mxu0
        %v4489 = vpop.f32.mrb[0].mxu0
        %v4490 = vadd.f32 %v4329, %v4489
        %v4491 = vpop.f32.mrb[0].mxu0
        %4492 = vmatprep.mubr.bf16.mxu0 %v1225
        %4493 = vmatmul.mubr.bf16.gmra.mrb[0].mxu0 %v1224
        %v4494 = vpop.f32.mrb[0].mxu0
        %v4495 = vadd.f32 %v4334, %v4494
        %v4496 = vpop.f32.mrb[0].mxu0
        %v4497 = vpop.f32.mrb[0].mxu0
        %v4498 = vadd.f32 %v4337, %v4497
        %v4499 = vpop.f32.mrb[0].mxu0
        %4500 = vmatprep.mubr.bf16.mxu0 %v1232
        %4501 = vmatmul.mubr.bf16.gmra.mrb[0].mxu0 %v1231
        %v4502 = vpop.f32.mrb[0].mxu0
        %v4503 = vadd.f32 %v4342, %v4502
        %v4504 = vpop.f32.mrb[0].mxu0
        %v4505 = vpop.f32.mrb[0].mxu0
        %v4506 = vadd.f32 %v4345, %v4505
        %v4507 = vpop.f32.mrb[0].mxu0
        %4508 = vmatprep.mubr.bf16.mxu0 %v1239
        %4509 = vmatmul.mubr.bf16.gmra.mrb[0].mxu0 %v1238
        %v4510 = vpop.f32.mrb[0].mxu0
        %v4511 = vadd.f32 %v4350, %v4510
        %v4512 = vpop.f32.mrb[0].mxu0
        %v4513 = vpop.f32.mrb[0].mxu0
        %v4514 = vadd.f32 %v4353, %v4513
        %v4515 = vpop.f32.mrb[0].mxu0
        %4516 = vmatprep.mubr.bf16.mxu0 %v1246
        %4517 = vmatmul.mubr.bf16.gmra.mrb[0].mxu0 %v1245
        %v4518 = vpop.f32.mrb[0].mxu0
        %v4519 = vadd.f32 %v4358, %v4518
        %v4520 = vpop.f32.mrb[0].mxu0
        %v4521 = vpop.f32.mrb[0].mxu0
        %v4522 = vadd.f32 %v4361, %v4521
        %v4523 = vpop.f32.mrb[0].mxu0
        %4524 = vmatprep.mubr.bf16.mxu0 %v1253
        %4525 = vmatmul.mubr.bf16.gmra.mrb[0].mxu0 %v1252
        %v4526 = vpop.f32.mrb[0].mxu0
        %v4527 = vadd.f32 %v4366, %v4526
        %v4528 = vpop.f32.mrb[0].mxu0
        %v4529 = vpop.f32.mrb[0].mxu0
        %v4530 = vadd.f32 %v4369, %v4529
        %v4531 = vpop.f32.mrb[0].mxu0
        %4532 = vmatprep.mubr.bf16.mxu0 %v1260
        %4533 = vmatmul.mubr.bf16.gmra.mrb[0].mxu0 %v1259
        %v4534 = vpop.f32.mrb[0].mxu0
        %v4535 = vadd.f32 %v4374, %v4534
        %v4536 = vpop.f32.mrb[0].mxu0
        %v4537 = vpop.f32.mrb[0].mxu0
        %v4538 = vadd.f32 %v4377, %v4537
        %v4539 = vpop.f32.mrb[0].mxu0
        %4540 = vmatprep.mubr.bf16.mxu0 %v1267
        %4541 = vmatmul.mubr.bf16.gmra.mrb[0].mxu0 %v1266
        %v4542 = vpop.f32.mrb[0].mxu0
        %v4543 = vadd.f32 %v4382, %v4542
        %v4544 = vpop.f32.mrb[0].mxu0
        %v4545 = vpop.f32.mrb[0].mxu0
        %v4546 = vadd.f32 %v4385, %v4545
        %v4547 = vpop.f32.mrb[0].mxu0
        %4548 = vmatprep.mubr.bf16.mxu0 %v1274
        %4549 = vmatmul.mubr.bf16.gmra.mrb[0].mxu0 %v1273
        %v4550 = vpop.f32.mrb[0].mxu0
        %v4551 = vadd.f32 %v4390, %v4550
        %v4552 = vpop.f32.mrb[0].mxu0
        %v4553 = vpop.f32.mrb[0].mxu0
        %v4554 = vadd.f32 %v4393, %v4553
        %v4555 = vpop.f32.mrb[0].mxu0
        %4556 = vmatprep.mubr.bf16.mxu0 %v1281
        %4557 = vmatmul.mubr.bf16.gmra.mrb[0].mxu0 %v1280
        %v4558 = vpop.f32.mrb[0].mxu0
        %v4559 = vadd.f32 %v4398, %v4558
        %v4560 = vpop.f32.mrb[0].mxu0
        %v4561 = vpop.f32.mrb[0].mxu0
        %v4562 = vadd.f32 %v4401, %v4561
        %v4563 = vpop.f32.mrb[0].mxu0
        %4564 = vmatprep.mubr.bf16.mxu0 %v1288
        %4565 = vmatmul.mubr.bf16.gmra.mrb[0].mxu0 %v1287
        %v4566 = vpop.f32.mrb[0].mxu0
        %v4567 = vadd.f32 %v4406, %v4566
        %v4568 = vpop.f32.mrb[0].mxu0
        %v4569 = vpop.f32.mrb[0].mxu0
        %v4570 = vadd.f32 %v4409, %v4569
        %v4571 = vpop.f32.mrb[0].mxu0
        %4572 = vmatprep.mubr.bf16.mxu0 %v1295
        %4573 = vmatmul.mubr.bf16.gmra.mrb[0].mxu0 %v1294
        %v4574 = vpop.f32.mrb[0].mxu0
        %v4575 = vadd.f32 %v4414, %v4574
        %v4576 = vpop.f32.mrb[0].mxu0
        %v4577 = vpop.f32.mrb[0].mxu0
        %v4578 = vadd.f32 %v4417, %v4577
        %v4579 = vpop.f32.mrb[0].mxu0
        %4580 = vmatprep.mubr.bf16.mxu0 %v1302
        %4581 = vmatmul.mubr.bf16.gmra.mrb[0].mxu0 %v1301
        %v4582 = vpop.f32.mrb[0].mxu0
        %v4583 = vadd.f32 %v4422, %v4582
        %v4584 = vpop.f32.mrb[0].mxu0
        %v4585 = vpop.f32.mrb[0].mxu0
        %v4586 = vadd.f32 %v4425, %v4585
        %v4587 = vpop.f32.mrb[0].mxu0
        %4588 = vmatprep.mubr.bf16.mxu0 %v1309
        %4589 = vmatmul.mubr.bf16.gmra.mrb[0].mxu0 %v1308
        %v4590 = vpop.f32.mrb[0].mxu0
        %v4591 = vadd.f32 %v4430, %v4590
        %v4592 = vpop.f32.mrb[0].mxu0
        %v4593 = vpop.f32.mrb[0].mxu0
        %v4594 = vadd.f32 %v4433, %v4593
        %v4595 = vpop.f32.mrb[0].mxu0
        %4596 = vmatprep.mubr.bf16.mxu0 %v1316
        %4597 = vmatmul.mubr.bf16.gmra.mrb[0].mxu0 %v1315
        %v4598 = vpop.f32.mrb[0].mxu0
        %v4599 = vadd.f32 %v4438, %v4598
        %v4600 = vpop.f32.mrb[0].mxu0
        %v4601 = vpop.f32.mrb[0].mxu0
        %v4602 = vadd.f32 %v4441, %v4601
        %v4603 = vpop.f32.mrb[0].mxu0
        %4604 = vdwg.mxu0
        %4605 = vmatprep.subr.bf16.mxu0 0
        %4606 = vmatpush1.bf16.msra.mxu0 %v2364
        %4607 = vmatprep.subr.bf16.mxu0 0
        %4608 = vmatpush1.bf16.msra.mxu0 %v2369
        %4609 = vmatprep.subr.bf16.mxu0 0
        %4610 = vmatpush1.bf16.msra.mxu0 %v2374
        %4611 = vmatprep.subr.bf16.mxu0 0
        %4612 = vmatpush1.bf16.msra.mxu0 %v2379
        %4613 = vmatprep.subr.bf16.mxu0 0
        %4614 = vmatpush1.bf16.msra.mxu0 %v2384
        %4615 = vmatprep.subr.bf16.mxu0 0
        %4616 = vmatpush1.bf16.msra.mxu0 %v2389
        %4617 = vmatprep.subr.bf16.mxu0 0
        %4618 = vmatpush1.bf16.msra.mxu0 %v2394
        %4619 = vmatprep.subr.bf16.mxu0 0
        %4620 = vmatpush1.bf16.msra.mxu0 %v2399
        %4621 = vmatprep.subr.bf16.mxu0 0
        %4622 = vmatpush1.bf16.msra.mxu0 %v2404
        %4623 = vmatprep.subr.bf16.mxu0 0
        %4624 = vmatpush1.bf16.msra.mxu0 %v2409
        %4625 = vmatprep.subr.bf16.mxu0 0
        %4626 = vmatpush1.bf16.msra.mxu0 %v2414
        %4627 = vmatprep.subr.bf16.mxu0 0
        %4628 = vmatpush1.bf16.msra.mxu0 %v2419
        %4629 = vmatprep.subr.bf16.mxu0 0
        %4630 = vmatpush1.bf16.msra.mxu0 %v2424
        %4631 = vmatprep.subr.bf16.mxu0 0
        %4632 = vmatpush1.bf16.msra.mxu0 %v2429
        %4633 = vmatprep.subr.bf16.mxu0 0
        %4634 = vmatpush1.bf16.msra.mxu0 %v2434
        %4635 = vmatprep.subr.bf16.mxu0 0
        %4636 = vmatpush1.bf16.msra.mxu0 %v2439
        %4637 = vmatprep.mubr.bf16.mxu0 %v1213
        %4638 = vmatmul.mubr.bf16.gmra.mrb[0].mxu0 %v1212
        %v4639 = vpop.f32.mrb[0].mxu0
        %v4640 = vadd.f32 %v4479, %v4639
        %v4641 = vpop.f32.mrb[0].mxu0
        %v4642 = vpop.f32.mrb[0].mxu0
        %v4643 = vadd.f32 %v4482, %v4642
        %v4644 = vpop.f32.mrb[0].mxu0
        %4645 = vmatprep.mubr.bf16.mxu0 %v1220
        %4646 = vmatmul.mubr.bf16.gmra.mrb[0].mxu0 %v1219
        %v4647 = vpop.f32.mrb[0].mxu0
        %v4648 = vadd.f32 %v4487, %v4647
        %v4649 = vpop.f32.mrb[0].mxu0
        %v4650 = vpop.f32.mrb[0].mxu0
        %v4651 = vadd.f32 %v4490, %v4650
        %v4652 = vpop.f32.mrb[0].mxu0
        %4653 = vmatprep.mubr.bf16.mxu0 %v1227
        %4654 = vmatmul.mubr.bf16.gmra.mrb[0].mxu0 %v1226
        %v4655 = vpop.f32.mrb[0].mxu0
        %v4656 = vadd.f32 %v4495, %v4655
        %v4657 = vpop.f32.mrb[0].mxu0
        %v4658 = vpop.f32.mrb[0].mxu0
        %v4659 = vadd.f32 %v4498, %v4658
        %v4660 = vpop.f32.mrb[0].mxu0
        %4661 = vmatprep.mubr.bf16.mxu0 %v1234
        %4662 = vmatmul.mubr.bf16.gmra.mrb[0].mxu0 %v1233
        %v4663 = vpop.f32.mrb[0].mxu0
        %v4664 = vadd.f32 %v4503, %v4663
        %v4665 = vpop.f32.mrb[0].mxu0
        %v4666 = vpop.f32.mrb[0].mxu0
        %v4667 = vadd.f32 %v4506, %v4666
        %v4668 = vpop.f32.mrb[0].mxu0
        %4669 = vmatprep.mubr.bf16.mxu0 %v1241
        %4670 = vmatmul.mubr.bf16.gmra.mrb[0].mxu0 %v1240
        %v4671 = vpop.f32.mrb[0].mxu0
        %v4672 = vadd.f32 %v4511, %v4671
        %v4673 = vpop.f32.mrb[0].mxu0
        %v4674 = vpop.f32.mrb[0].mxu0
        %v4675 = vadd.f32 %v4514, %v4674
        %v4676 = vpop.f32.mrb[0].mxu0
        %4677 = vmatprep.mubr.bf16.mxu0 %v1248
        %4678 = vmatmul.mubr.bf16.gmra.mrb[0].mxu0 %v1247
        %v4679 = vpop.f32.mrb[0].mxu0
        %v4680 = vadd.f32 %v4519, %v4679
        %v4681 = vpop.f32.mrb[0].mxu0
        %v4682 = vpop.f32.mrb[0].mxu0
        %v4683 = vadd.f32 %v4522, %v4682
        %v4684 = vpop.f32.mrb[0].mxu0
        %4685 = vmatprep.mubr.bf16.mxu0 %v1255
        %4686 = vmatmul.mubr.bf16.gmra.mrb[0].mxu0 %v1254
        %v4687 = vpop.f32.mrb[0].mxu0
        %v4688 = vadd.f32 %v4527, %v4687
        %v4689 = vpop.f32.mrb[0].mxu0
        %v4690 = vpop.f32.mrb[0].mxu0
        %v4691 = vadd.f32 %v4530, %v4690
        %v4692 = vpop.f32.mrb[0].mxu0
        %4693 = vmatprep.mubr.bf16.mxu0 %v1262
        %4694 = vmatmul.mubr.bf16.gmra.mrb[0].mxu0 %v1261
        %v4695 = vpop.f32.mrb[0].mxu0
        %v4696 = vadd.f32 %v4535, %v4695
        %v4697 = vpop.f32.mrb[0].mxu0
        %v4698 = vpop.f32.mrb[0].mxu0
        %v4699 = vadd.f32 %v4538, %v4698
        %v4700 = vpop.f32.mrb[0].mxu0
        %4701 = vmatprep.mubr.bf16.mxu0 %v1269
        %4702 = vmatmul.mubr.bf16.gmra.mrb[0].mxu0 %v1268
        %v4703 = vpop.f32.mrb[0].mxu0
        %v4704 = vadd.f32 %v4543, %v4703
        %v4705 = vpop.f32.mrb[0].mxu0
        %v4706 = vpop.f32.mrb[0].mxu0
        %v4707 = vadd.f32 %v4546, %v4706
        %v4708 = vpop.f32.mrb[0].mxu0
        %4709 = vmatprep.mubr.bf16.mxu0 %v1276
        %4710 = vmatmul.mubr.bf16.gmra.mrb[0].mxu0 %v1275
        %v4711 = vpop.f32.mrb[0].mxu0
        %v4712 = vadd.f32 %v4551, %v4711
        %v4713 = vpop.f32.mrb[0].mxu0
        %v4714 = vpop.f32.mrb[0].mxu0
        %v4715 = vadd.f32 %v4554, %v4714
        %v4716 = vpop.f32.mrb[0].mxu0
        %4717 = vmatprep.mubr.bf16.mxu0 %v1283
        %4718 = vmatmul.mubr.bf16.gmra.mrb[0].mxu0 %v1282
        %v4719 = vpop.f32.mrb[0].mxu0
        %v4720 = vadd.f32 %v4559, %v4719
        %v4721 = vpop.f32.mrb[0].mxu0
        %v4722 = vpop.f32.mrb[0].mxu0
        %v4723 = vadd.f32 %v4562, %v4722
        %v4724 = vpop.f32.mrb[0].mxu0
        %4725 = vmatprep.mubr.bf16.mxu0 %v1290
        %4726 = vmatmul.mubr.bf16.gmra.mrb[0].mxu0 %v1289
        %v4727 = vpop.f32.mrb[0].mxu0
        %v4728 = vadd.f32 %v4567, %v4727
        %v4729 = vpop.f32.mrb[0].mxu0
        %v4730 = vpop.f32.mrb[0].mxu0
        %v4731 = vadd.f32 %v4570, %v4730
        %v4732 = vpop.f32.mrb[0].mxu0
        %4733 = vmatprep.mubr.bf16.mxu0 %v1297
        %4734 = vmatmul.mubr.bf16.gmra.mrb[0].mxu0 %v1296
        %v4735 = vpop.f32.mrb[0].mxu0
        %v4736 = vadd.f32 %v4575, %v4735
        %v4737 = vpop.f32.mrb[0].mxu0
        %v4738 = vpop.f32.mrb[0].mxu0
        %v4739 = vadd.f32 %v4578, %v4738
        %v4740 = vpop.f32.mrb[0].mxu0
        %4741 = vmatprep.mubr.bf16.mxu0 %v1304
        %4742 = vmatmul.mubr.bf16.gmra.mrb[0].mxu0 %v1303
        %v4743 = vpop.f32.mrb[0].mxu0
        %v4744 = vadd.f32 %v4583, %v4743
        %v4745 = vpop.f32.mrb[0].mxu0
        %v4746 = vpop.f32.mrb[0].mxu0
        %v4747 = vadd.f32 %v4586, %v4746
        %v4748 = vpop.f32.mrb[0].mxu0
        %4749 = vmatprep.mubr.bf16.mxu0 %v1311
        %4750 = vmatmul.mubr.bf16.gmra.mrb[0].mxu0 %v1310
        %v4751 = vpop.f32.mrb[0].mxu0
        %v4752 = vadd.f32 %v4591, %v4751
        %v4753 = vpop.f32.mrb[0].mxu0
        %v4754 = vpop.f32.mrb[0].mxu0
        %v4755 = vadd.f32 %v4594, %v4754
        %v4756 = vpop.f32.mrb[0].mxu0
        %4757 = vmatprep.mubr.bf16.mxu0 %v1318
        %4758 = vmatmul.mubr.bf16.gmra.mrb[0].mxu0 %v1317
        %v4759 = vpop.f32.mrb[0].mxu0
        %v4760 = vadd.f32 %v4599, %v4759
        %v4761 = vpop.f32.mrb[0].mxu0
        %v4762 = vpop.f32.mrb[0].mxu0
        %v4763 = vadd.f32 %v4602, %v4762
        %v4764 = vpop.f32.mrb[0].mxu0
        %4765 = vdwg.mxu0
        %4766 = vmatprep.subr.bf16.mxu0 0
        %4767 = vmatpush1.bf16.msra.mxu0 %v2444
        %4768 = vmatprep.subr.bf16.mxu0 0
        %4769 = vmatpush1.bf16.msra.mxu0 0
        %4770 = vmatprep.subr.bf16.mxu0 0
        %4771 = vmatpush1.bf16.msra.mxu0 0
        %4772 = vmatprep.subr.bf16.mxu0 0
        %4773 = vmatpush1.bf16.msra.mxu0 0
        %4774 = vmatprep.subr.bf16.mxu0 0
        %4775 = vmatpush1.bf16.msra.mxu0 0
        %4776 = vmatprep.subr.bf16.mxu0 0
        %4777 = vmatpush1.bf16.msra.mxu0 0
        %4778 = vmatprep.subr.bf16.mxu0 0
        %4779 = vmatpush1.bf16.msra.mxu0 0
        %4780 = vmatprep.subr.bf16.mxu0 0
        %4781 = vmatpush1.bf16.msra.mxu0 0
        %4782 = vmatprep.subr.bf16.mxu0 0
        %4783 = vmatpush1.bf16.msra.mxu0 0
        %4784 = vmatprep.subr.bf16.mxu0 0
        %4785 = vmatpush1.bf16.msra.mxu0 0
        %4786 = vmatprep.subr.bf16.mxu0 0
        %4787 = vmatpush1.bf16.msra.mxu0 0
        %4788 = vmatprep.subr.bf16.mxu0 0
        %4789 = vmatpush1.bf16.msra.mxu0 0
        %4790 = vmatprep.subr.bf16.mxu0 0
        %4791 = vmatpush1.bf16.msra.mxu0 0
        %4792 = vmatprep.subr.bf16.mxu0 0
        %4793 = vmatpush1.bf16.msra.mxu0 0
        %4794 = vmatprep.subr.bf16.mxu0 0
        %4795 = vmatpush1.bf16.msra.mxu0 0
        %4796 = vmatprep.subr.bf16.mxu0 0
        %4797 = vmatpush1.bf16.msra.mxu0 0
        %4798 = vmatprep.mubr.bf16.mxu0 0
        %4799 = vmatmul.mubr.bf16.gmra.mrb[0].mxu0 %v2692
        %v4800 = vpop.f32.mrb[0].mxu0
        %v4801 = vadd.f32 %v4640, %v4800
        %v4802 = vpop.f32.mrb[0].mxu0
        %v4803 = vpop.f32.mrb[0].mxu0
        %v4804 = vadd.f32 %v4643, %v4803
        %v4805 = vpop.f32.mrb[0].mxu0
        %4806 = vmatprep.mubr.bf16.mxu0 0
        %4807 = vmatmul.mubr.bf16.gmra.mrb[0].mxu0 %v2695
        %v4808 = vpop.f32.mrb[0].mxu0
        %v4809 = vadd.f32 %v4648, %v4808
        %v4810 = vpop.f32.mrb[0].mxu0
        %v4811 = vpop.f32.mrb[0].mxu0
        %v4812 = vadd.f32 %v4651, %v4811
        %v4813 = vpop.f32.mrb[0].mxu0
        %4814 = vmatprep.mubr.bf16.mxu0 0
        %4815 = vmatmul.mubr.bf16.gmra.mrb[0].mxu0 %v2698
        %v4816 = vpop.f32.mrb[0].mxu0
        %v4817 = vadd.f32 %v4656, %v4816
        %v4818 = vpop.f32.mrb[0].mxu0
        %v4819 = vpop.f32.mrb[0].mxu0
        %v4820 = vadd.f32 %v4659, %v4819
        %v4821 = vpop.f32.mrb[0].mxu0
        %4822 = vmatprep.mubr.bf16.mxu0 0
        %4823 = vmatmul.mubr.bf16.gmra.mrb[0].mxu0 %v2701
        %v4824 = vpop.f32.mrb[0].mxu0
        %v4825 = vadd.f32 %v4664, %v4824
        %v4826 = vpop.f32.mrb[0].mxu0
        %v4827 = vpop.f32.mrb[0].mxu0
        %v4828 = vadd.f32 %v4667, %v4827
        %v4829 = vpop.f32.mrb[0].mxu0
        %4830 = vmatprep.mubr.bf16.mxu0 0
        %4831 = vmatmul.mubr.bf16.gmra.mrb[0].mxu0 %v2704
        %v4832 = vpop.f32.mrb[0].mxu0
        %v4833 = vadd.f32 %v4672, %v4832
        %v4834 = vpop.f32.mrb[0].mxu0
        %v4835 = vpop.f32.mrb[0].mxu0
        %v4836 = vadd.f32 %v4675, %v4835
        %v4837 = vpop.f32.mrb[0].mxu0
        %4838 = vmatprep.mubr.bf16.mxu0 0
        %4839 = vmatmul.mubr.bf16.gmra.mrb[0].mxu0 %v2707
        %v4840 = vpop.f32.mrb[0].mxu0
        %v4841 = vadd.f32 %v4680, %v4840
        %v4842 = vpop.f32.mrb[0].mxu0
        %v4843 = vpop.f32.mrb[0].mxu0
        %v4844 = vadd.f32 %v4683, %v4843
        %v4845 = vpop.f32.mrb[0].mxu0
        %4846 = vmatprep.mubr.bf16.mxu0 0
        %4847 = vmatmul.mubr.bf16.gmra.mrb[0].mxu0 %v2710
        %v4848 = vpop.f32.mrb[0].mxu0
        %v4849 = vadd.f32 %v4688, %v4848
        %v4850 = vpop.f32.mrb[0].mxu0
        %v4851 = vpop.f32.mrb[0].mxu0
        %v4852 = vadd.f32 %v4691, %v4851
        %v4853 = vpop.f32.mrb[0].mxu0
        %4854 = vmatprep.mubr.bf16.mxu0 0
        %4855 = vmatmul.mubr.bf16.gmra.mrb[0].mxu0 %v2713
        %v4856 = vpop.f32.mrb[0].mxu0
        %v4857 = vadd.f32 %v4696, %v4856
        %v4858 = vpop.f32.mrb[0].mxu0
        %v4859 = vpop.f32.mrb[0].mxu0
        %v4860 = vadd.f32 %v4699, %v4859
        %v4861 = vpop.f32.mrb[0].mxu0
        %4862 = vmatprep.mubr.bf16.mxu0 0
        %4863 = vmatmul.mubr.bf16.gmra.mrb[0].mxu0 %v2716
        %v4864 = vpop.f32.mrb[0].mxu0
        %v4865 = vadd.f32 %v4704, %v4864
        %v4866 = vpop.f32.mrb[0].mxu0
        %v4867 = vpop.f32.mrb[0].mxu0
        %v4868 = vadd.f32 %v4707, %v4867
        %v4869 = vpop.f32.mrb[0].mxu0
        %4870 = vmatprep.mubr.bf16.mxu0 0
        %4871 = vmatmul.mubr.bf16.gmra.mrb[0].mxu0 %v2719
        %v4872 = vpop.f32.mrb[0].mxu0
        %v4873 = vadd.f32 %v4712, %v4872
        %v4874 = vpop.f32.mrb[0].mxu0
        %v4875 = vpop.f32.mrb[0].mxu0
        %v4876 = vadd.f32 %v4715, %v4875
        %v4877 = vpop.f32.mrb[0].mxu0
        %4878 = vmatprep.mubr.bf16.mxu0 0
        %4879 = vmatmul.mubr.bf16.gmra.mrb[0].mxu0 %v2722
        %v4880 = vpop.f32.mrb[0].mxu0
        %v4881 = vadd.f32 %v4720, %v4880
        %v4882 = vpop.f32.mrb[0].mxu0
        %v4883 = vpop.f32.mrb[0].mxu0
        %v4884 = vadd.f32 %v4723, %v4883
        %v4885 = vpop.f32.mrb[0].mxu0
        %4886 = vmatprep.mubr.bf16.mxu0 0
        %4887 = vmatmul.mubr.bf16.gmra.mrb[0].mxu0 %v2725
        %v4888 = vpop.f32.mrb[0].mxu0
        %v4889 = vadd.f32 %v4728, %v4888
        %v4890 = vpop.f32.mrb[0].mxu0
        %v4891 = vpop.f32.mrb[0].mxu0
        %v4892 = vadd.f32 %v4731, %v4891
        %v4893 = vpop.f32.mrb[0].mxu0
        %4894 = vmatprep.mubr.bf16.mxu0 0
        %4895 = vmatmul.mubr.bf16.gmra.mrb[0].mxu0 %v2728
        %v4896 = vpop.f32.mrb[0].mxu0
        %v4897 = vadd.f32 %v4736, %v4896
        %v4898 = vpop.f32.mrb[0].mxu0
        %v4899 = vpop.f32.mrb[0].mxu0
        %v4900 = vadd.f32 %v4739, %v4899
        %v4901 = vpop.f32.mrb[0].mxu0
        %4902 = vmatprep.mubr.bf16.mxu0 0
        %4903 = vmatmul.mubr.bf16.gmra.mrb[0].mxu0 %v2731
        %v4904 = vpop.f32.mrb[0].mxu0
        %v4905 = vadd.f32 %v4744, %v4904
        %v4906 = vpop.f32.mrb[0].mxu0
        %v4907 = vpop.f32.mrb[0].mxu0
        %v4908 = vadd.f32 %v4747, %v4907
        %v4909 = vpop.f32.mrb[0].mxu0
        %4910 = vmatprep.mubr.bf16.mxu0 0
        %4911 = vmatmul.mubr.bf16.gmra.mrb[0].mxu0 %v2734
        %v4912 = vpop.f32.mrb[0].mxu0
        %v4913 = vadd.f32 %v4752, %v4912
        %v4914 = vpop.f32.mrb[0].mxu0
        %v4915 = vpop.f32.mrb[0].mxu0
        %v4916 = vadd.f32 %v4755, %v4915
        %v4917 = vpop.f32.mrb[0].mxu0
        %4918 = vmatprep.mubr.bf16.mxu0 0
        %4919 = vmatmul.mubr.bf16.gmra.mrb[0].mxu0 %v2737
        %v4920 = vpop.f32.mrb[0].mxu0
        %v4921 = vadd.f32 %v4760, %v4920
        %v4922 = vpop.f32.mrb[0].mxu0
        %v4923 = vpop.f32.mrb[0].mxu0
        %v4924 = vadd.f32 %v4763, %v4923
        %v4925 = vpop.f32.mrb[0].mxu0
        %4926 = vdwg.mxu0
        %v4927 = vmax.f32 %v3353, 0.0
        %v4928 = vmax.f32 %v3355, 0.0
        %v4929 = vmax.f32 %v4125, 0.0
        %v4930 = vmax.f32 %v4127, 0.0
        %v4931 = vmax.f32 %v4801, 0.0
        %v4932 = vmax.f32 %v3357, 0.0
        %v4933 = vmax.f32 %v3359, 0.0
        %v4934 = vmax.f32 %v4129, 0.0
        %v4935 = vmax.f32 %v4131, 0.0
        %v4936 = vmax.f32 %v4804, 0.0
        %v4937 = vmax.f32 %v3363, 0.0
        %v4938 = vmax.f32 %v3365, 0.0
        %v4939 = vmax.f32 %v4135, 0.0
        %v4940 = vmax.f32 %v4137, 0.0
        %v4941 = vmax.f32 %v4809, 0.0
        %v4942 = vmax.f32 %v3367, 0.0
        %v4943 = vmax.f32 %v3369, 0.0
        %v4944 = vmax.f32 %v4139, 0.0
        %v4945 = vmax.f32 %v4141, 0.0
        %v4946 = vmax.f32 %v4812, 0.0
        %v4947 = vmax.f32 %v3373, 0.0
        %v4948 = vmax.f32 %v3375, 0.0
        %v4949 = vmax.f32 %v4145, 0.0
        %v4950 = vmax.f32 %v4147, 0.0
        %v4951 = vmax.f32 %v4817, 0.0
        %v4952 = vmax.f32 %v3377, 0.0
        %v4953 = vmax.f32 %v3379, 0.0
        %v4954 = vmax.f32 %v4149, 0.0
        %v4955 = vmax.f32 %v4151, 0.0
        %v4956 = vmax.f32 %v4820, 0.0
        %v4957 = vmax.f32 %v3383, 0.0
        %v4958 = vmax.f32 %v3385, 0.0
        %v4959 = vmax.f32 %v4155, 0.0
        %v4960 = vmax.f32 %v4157, 0.0
        %v4961 = vmax.f32 %v4825, 0.0
        %v4962 = vmax.f32 %v3387, 0.0
        %v4963 = vmax.f32 %v3389, 0.0
        %v4964 = vmax.f32 %v4159, 0.0
        %v4965 = vmax.f32 %v4161, 0.0
        %v4966 = vmax.f32 %v4828, 0.0
        %v4967 = vmax.f32 %v3393, 0.0
        %v4968 = vmax.f32 %v3395, 0.0
        %v4969 = vmax.f32 %v4165, 0.0
        %v4970 = vmax.f32 %v4167, 0.0
        %v4971 = vmax.f32 %v4833, 0.0
        %v4972 = vmax.f32 %v3397, 0.0
        %v4973 = vmax.f32 %v3399, 0.0
        %v4974 = vmax.f32 %v4169, 0.0
        %v4975 = vmax.f32 %v4171, 0.0
        %v4976 = vmax.f32 %v4836, 0.0
        %v4977 = vmax.f32 %v3403, 0.0
        %v4978 = vmax.f32 %v3405, 0.0
        %v4979 = vmax.f32 %v4175, 0.0
        %v4980 = vmax.f32 %v4177, 0.0
        %v4981 = vmax.f32 %v4841, 0.0
        %v4982 = vmax.f32 %v3407, 0.0
        %v4983 = vmax.f32 %v3409, 0.0
        %v4984 = vmax.f32 %v4179, 0.0
        %v4985 = vmax.f32 %v4181, 0.0
        %v4986 = vmax.f32 %v4844, 0.0
        %v4987 = vmax.f32 %v3413, 0.0
        %v4988 = vmax.f32 %v3415, 0.0
        %v4989 = vmax.f32 %v4185, 0.0
        %v4990 = vmax.f32 %v4187, 0.0
        %v4991 = vmax.f32 %v4849, 0.0
        %v4992 = vmax.f32 %v3417, 0.0
        %v4993 = vmax.f32 %v3419, 0.0
        %v4994 = vmax.f32 %v4189, 0.0
        %v4995 = vmax.f32 %v4191, 0.0
        %v4996 = vmax.f32 %v4852, 0.0
        %v4997 = vmax.f32 %v3423, 0.0
        %v4998 = vmax.f32 %v3425, 0.0
        %v4999 = vmax.f32 %v4195, 0.0
        %v5000 = vmax.f32 %v4197, 0.0
        %v5001 = vmax.f32 %v4857, 0.0
        %v5002 = vmax.f32 %v3427, 0.0
        %v5003 = vmax.f32 %v3429, 0.0
        %v5004 = vmax.f32 %v4199, 0.0
        %v5005 = vmax.f32 %v4201, 0.0
        %v5006 = vmax.f32 %v4860, 0.0
        %v5007 = vmax.f32 %v3433, 0.0
        %v5008 = vmax.f32 %v3435, 0.0
        %v5009 = vmax.f32 %v4205, 0.0
        %v5010 = vmax.f32 %v4207, 0.0
        %v5011 = vmax.f32 %v4865, 0.0
        %v5012 = vmax.f32 %v3437, 0.0
        %v5013 = vmax.f32 %v3439, 0.0
        %v5014 = vmax.f32 %v4209, 0.0
        %v5015 = vmax.f32 %v4211, 0.0
        %v5016 = vmax.f32 %v4868, 0.0
        %v5017 = vmax.f32 %v3443, 0.0
        %v5018 = vmax.f32 %v3445, 0.0
        %v5019 = vmax.f32 %v4215, 0.0
        %v5020 = vmax.f32 %v4217, 0.0
        %v5021 = vmax.f32 %v4873, 0.0
        %v5022 = vmax.f32 %v3447, 0.0
        %v5023 = vmax.f32 %v3449, 0.0
        %v5024 = vmax.f32 %v4219, 0.0
        %v5025 = vmax.f32 %v4221, 0.0
        %v5026 = vmax.f32 %v4876, 0.0
        %v5027 = vmax.f32 %v3453, 0.0
        %v5028 = vmax.f32 %v3455, 0.0
        %v5029 = vmax.f32 %v4225, 0.0
        %v5030 = vmax.f32 %v4227, 0.0
        %v5031 = vmax.f32 %v4881, 0.0
        %v5032 = vmax.f32 %v3457, 0.0
        %v5033 = vmax.f32 %v3459, 0.0
        %v5034 = vmax.f32 %v4229, 0.0
        %v5035 = vmax.f32 %v4231, 0.0
        %v5036 = vmax.f32 %v4884, 0.0
        %v5037 = vmax.f32 %v3463, 0.0
        %v5038 = vmax.f32 %v3465, 0.0
        %v5039 = vmax.f32 %v4235, 0.0
        %v5040 = vmax.f32 %v4237, 0.0
        %v5041 = vmax.f32 %v4889, 0.0
        %v5042 = vmax.f32 %v3467, 0.0
        %v5043 = vmax.f32 %v3469, 0.0
        %v5044 = vmax.f32 %v4239, 0.0
        %v5045 = vmax.f32 %v4241, 0.0
        %v5046 = vmax.f32 %v4892, 0.0
        %v5047 = vmax.f32 %v3473, 0.0
        %v5048 = vmax.f32 %v3475, 0.0
        %v5049 = vmax.f32 %v4245, 0.0
        %v5050 = vmax.f32 %v4247, 0.0
        %v5051 = vmax.f32 %v4897, 0.0
        %v5052 = vmax.f32 %v3477, 0.0
        %v5053 = vmax.f32 %v3479, 0.0
        %v5054 = vmax.f32 %v4249, 0.0
        %v5055 = vmax.f32 %v4251, 0.0
        %v5056 = vmax.f32 %v4900, 0.0
        %v5057 = vmax.f32 %v3483, 0.0
        %v5058 = vmax.f32 %v3485, 0.0
        %v5059 = vmax.f32 %v4255, 0.0
        %v5060 = vmax.f32 %v4257, 0.0
        %v5061 = vmax.f32 %v4905, 0.0
        %v5062 = vmax.f32 %v3487, 0.0
        %v5063 = vmax.f32 %v3489, 0.0
        %v5064 = vmax.f32 %v4259, 0.0
        %v5065 = vmax.f32 %v4261, 0.0
        %v5066 = vmax.f32 %v4908, 0.0
        %v5067 = vmax.f32 %v3493, 0.0
        %v5068 = vmax.f32 %v3495, 0.0
        %v5069 = vmax.f32 %v4265, 0.0
        %v5070 = vmax.f32 %v4267, 0.0
        %v5071 = vmax.f32 %v4913, 0.0
        %v5072 = vmax.f32 %v3497, 0.0
        %v5073 = vmax.f32 %v3499, 0.0
        %v5074 = vmax.f32 %v4269, 0.0
        %v5075 = vmax.f32 %v4271, 0.0
        %v5076 = vmax.f32 %v4916, 0.0
        %v5077 = vmax.f32 %v3503, 0.0
        %v5078 = vmax.f32 %v3505, 0.0
        %v5079 = vmax.f32 %v4275, 0.0
        %v5080 = vmax.f32 %v4277, 0.0
        %v5081 = vmax.f32 %v4921, 0.0
        %v5082 = vmax.f32 %v3507, 0.0
        %v5083 = vmax.f32 %v3509, 0.0
        %v5084 = vmax.f32 %v4279, 0.0
        %v5085 = vmax.f32 %v4281, 0.0
        %v5086 = vmax.f32 %v4924, 0.0
        %v5087 = vpack.c.bf16 %v4932, %v4927
        %v5088 = vpack.c.bf16 %v4933, %v4928
        %v5089 = vpack.c.bf16 %v4934, %v4929
        %v5090 = vpack.c.bf16 %v4935, %v4930
        %v5091 = vpack.c.bf16 %v4936, %v4931
        %v5092 = vpack.c.bf16 %v4942, %v4937
        %v5093 = vpack.c.bf16 %v4943, %v4938
        %v5094 = vpack.c.bf16 %v4944, %v4939
        %v5095 = vpack.c.bf16 %v4945, %v4940
        %v5096 = vpack.c.bf16 %v4946, %v4941
        %v5097 = vpack.c.bf16 %v4952, %v4947
        %v5098 = vpack.c.bf16 %v4953, %v4948
        %v5099 = vpack.c.bf16 %v4954, %v4949
        %v5100 = vpack.c.bf16 %v4955, %v4950
        %v5101 = vpack.c.bf16 %v4956, %v4951
        %v5102 = vpack.c.bf16 %v4962, %v4957
        %v5103 = vpack.c.bf16 %v4963, %v4958
        %v5104 = vpack.c.bf16 %v4964, %v4959
        %v5105 = vpack.c.bf16 %v4965, %v4960
        %v5106 = vpack.c.bf16 %v4966, %v4961
        %v5107 = vpack.c.bf16 %v4972, %v4967
        %v5108 = vpack.c.bf16 %v4973, %v4968
        %v5109 = vpack.c.bf16 %v4974, %v4969
        %v5110 = vpack.c.bf16 %v4975, %v4970
        %v5111 = vpack.c.bf16 %v4976, %v4971
        %v5112 = vpack.c.bf16 %v4982, %v4977
        %v5113 = vpack.c.bf16 %v4983, %v4978
        %v5114 = vpack.c.bf16 %v4984, %v4979
        %v5115 = vpack.c.bf16 %v4985, %v4980
        %v5116 = vpack.c.bf16 %v4986, %v4981
        %v5117 = vpack.c.bf16 %v4992, %v4987
        %v5118 = vpack.c.bf16 %v4993, %v4988
        %v5119 = vpack.c.bf16 %v4994, %v4989
        %v5120 = vpack.c.bf16 %v4995, %v4990
        %v5121 = vpack.c.bf16 %v4996, %v4991
        %v5122 = vpack.c.bf16 %v5002, %v4997
        %v5123 = vpack.c.bf16 %v5003, %v4998
        %v5124 = vpack.c.bf16 %v5004, %v4999
        %v5125 = vpack.c.bf16 %v5005, %v5000
        %v5126 = vpack.c.bf16 %v5006, %v5001
        %v5127 = vpack.c.bf16 %v5012, %v5007
        %v5128 = vpack.c.bf16 %v5013, %v5008
        %v5129 = vpack.c.bf16 %v5014, %v5009
        %v5130 = vpack.c.bf16 %v5015, %v5010
        %v5131 = vpack.c.bf16 %v5016, %v5011
        %v5132 = vpack.c.bf16 %v5022, %v5017
        %v5133 = vpack.c.bf16 %v5023, %v5018
        %v5134 = vpack.c.bf16 %v5024, %v5019
        %v5135 = vpack.c.bf16 %v5025, %v5020
        %v5136 = vpack.c.bf16 %v5026, %v5021
        %v5137 = vpack.c.bf16 %v5032, %v5027
        %v5138 = vpack.c.bf16 %v5033, %v5028
        %v5139 = vpack.c.bf16 %v5034, %v5029
        %v5140 = vpack.c.bf16 %v5035, %v5030
        %v5141 = vpack.c.bf16 %v5036, %v5031
        %v5142 = vpack.c.bf16 %v5042, %v5037
        %v5143 = vpack.c.bf16 %v5043, %v5038
        %v5144 = vpack.c.bf16 %v5044, %v5039
        %v5145 = vpack.c.bf16 %v5045, %v5040
        %v5146 = vpack.c.bf16 %v5046, %v5041
        %v5147 = vpack.c.bf16 %v5052, %v5047
        %v5148 = vpack.c.bf16 %v5053, %v5048
        %v5149 = vpack.c.bf16 %v5054, %v5049
        %v5150 = vpack.c.bf16 %v5055, %v5050
        %v5151 = vpack.c.bf16 %v5056, %v5051
        %v5152 = vpack.c.bf16 %v5062, %v5057
        %v5153 = vpack.c.bf16 %v5063, %v5058
        %v5154 = vpack.c.bf16 %v5064, %v5059
        %v5155 = vpack.c.bf16 %v5065, %v5060
        %v5156 = vpack.c.bf16 %v5066, %v5061
        %v5157 = vpack.c.bf16 %v5072, %v5067
        %v5158 = vpack.c.bf16 %v5073, %v5068
        %v5159 = vpack.c.bf16 %v5074, %v5069
        %v5160 = vpack.c.bf16 %v5075, %v5070
        %v5161 = vpack.c.bf16 %v5076, %v5071
        %v5162 = vpack.c.bf16 %v5082, %v5077
        %v5163 = vpack.c.bf16 %v5083, %v5078
        %v5164 = vpack.c.bf16 %v5084, %v5079
        %v5165 = vpack.c.bf16 %v5085, %v5080
        %v5166 = vpack.c.bf16 %v5086, %v5081
        %v5167 = vld [vmem:[%s3] sm:$0xff]
        %v5168 = vld [vmem:[%s3 + $0x8] sm:$0xf]
        %v5169 = vld [vmem:[%s3 + $0xc] sm:$0xff]
        %v5170 = vld [vmem:[%s3 + $0x14] sm:$0xf]
        %v5171 = vld [vmem:[%s3 + $0x18] sm:$0xff]
        %v5172 = vld [vmem:[%s3 + $0x20] sm:$0xf]
        %v5173 = vld [vmem:[%s3 + $0x24] sm:$0xff]
        %v5174 = vld [vmem:[%s3 + $0x2c] sm:$0xf]
        %v5175 = vld [vmem:[%s3 + $0x30] sm:$0xff]
        %v5176 = vld [vmem:[%s3 + $0x38] sm:$0xf]
        %v5177 = vld [vmem:[%s3 + $0x3c] sm:$0xff]
        %v5178 = vld [vmem:[%s3 + $0x44] sm:$0xf]
        %v5179 = vld [vmem:[%s3 + $0x48] sm:$0xff]
        %v5180 = vld [vmem:[%s3 + $0x50] sm:$0xf]
        %v5181 = vld [vmem:[%s3 + $0x54] sm:$0xff]
        %v5182 = vld [vmem:[%s3 + $0x5c] sm:$0xf]
        %v5183 = vld [vmem:[%s3 + $0x60] sm:$0xff]
        %v5184 = vld [vmem:[%s3 + $0x68] sm:$0xf]
        %v5185 = vld [vmem:[%s3 + $0x6c] sm:$0xff]
        %v5186 = vld [vmem:[%s3 + $0x74] sm:$0xf]
        %v5187 = vld [vmem:[%s3 + $0x78] sm:$0xff]
        %v5188 = vld [vmem:[%s3 + $0x80] sm:$0xf]
        %v5189 = vld [vmem:[%s3 + $0x84] sm:$0xff]
        %v5190 = vld [vmem:[%s3 + $0x8c] sm:$0xf]
        %v5191 = vld [vmem:[%s3 + $0x90] sm:$0xff]
        %v5192 = vld [vmem:[%s3 + $0x98] sm:$0xf]
        %v5193 = vld [vmem:[%s3 + $0x9c] sm:$0xff]
        %v5194 = vld [vmem:[%s3 + $0xa4] sm:$0xf]
        %v5195 = vld [vmem:[%s3 + $0xa8] sm:$0xff]
        %v5196 = vld [vmem:[%s3 + $0xb0] sm:$0xf]
        %v5197 = vld [vmem:[%s3 + $0xb4] sm:$0xff]
        %v5198 = vld [vmem:[%s3 + $0xbc] sm:$0xf]
        %v5199 = vld [vmem:[%s3 + $0xc0] sm:$0xff]
        %v5200 = vld [vmem:[%s3 + $0xc8] sm:$0xf]
        %v5201 = vld [vmem:[%s3 + $0xcc] sm:$0xff]
        %v5202 = vld [vmem:[%s3 + $0xd4] sm:$0xf]
        %v5203 = vld [vmem:[%s3 + $0xd8] sm:$0xff]
        %v5204 = vld [vmem:[%s3 + $0xe0] sm:$0xf]
        %v5205 = vld [vmem:[%s3 + $0xe4] sm:$0xff]
        %v5206 = vld [vmem:[%s3 + $0xec] sm:$0xf]
        %v5207 = vld [vmem:[%s3 + $0xf0] sm:$0xff]
        %v5208 = vld [vmem:[%s3 + $0xf8] sm:$0xf]
        %v5209 = vld [vmem:[%s3 + $0xfc] sm:$0xff]
        %v5210 = vld [vmem:[%s3 + $0x104] sm:$0xf]
        %v5211 = vld [vmem:[%s3 + $0x108] sm:$0xff]
        %v5212 = vld [vmem:[%s3 + $0x110] sm:$0xf]
        %v5213 = vld [vmem:[%s3 + $0x114] sm:$0xff]
        %v5214 = vld [vmem:[%s3 + $0x11c] sm:$0xf]
        %v5215 = vld [vmem:[%s3 + $0x120] sm:$0xff]
        %v5216 = vld [vmem:[%s3 + $0x128] sm:$0xf]
        %v5217 = vld [vmem:[%s3 + $0x12c] sm:$0xff]
        %v5218 = vld [vmem:[%s3 + $0x134] sm:$0xf]
        %v5219 = vld [vmem:[%s3 + $0x138] sm:$0xff]
        %v5220 = vld [vmem:[%s3 + $0x140] sm:$0xf]
        %v5221 = vld [vmem:[%s3 + $0x144] sm:$0xff]
        %v5222 = vld [vmem:[%s3 + $0x14c] sm:$0xf]
        %v5223 = vld [vmem:[%s3 + $0x150] sm:$0xff]
        %v5224 = vld [vmem:[%s3 + $0x158] sm:$0xf]
        %v5225 = vld [vmem:[%s3 + $0x15c] sm:$0xff]
        %v5226 = vld [vmem:[%s3 + $0x164] sm:$0xf]
        %v5227 = vld [vmem:[%s3 + $0x168] sm:$0xff]
        %v5228 = vld [vmem:[%s3 + $0x170] sm:$0xf]
        %v5229 = vld [vmem:[%s3 + $0x174] sm:$0xff]
        %v5230 = vld [vmem:[%s3 + $0x17c] sm:$0xf]
        %v5231 = vld [vmem:[%s3 + $0x180] sm:$0xff]
        %v5232 = vld [vmem:[%s3 + $0x188] sm:$0xf]
        %v5233 = vld [vmem:[%s3 + $0x18c] sm:$0xff]
        %v5234 = vld [vmem:[%s3 + $0x194] sm:$0xf]
        %v5235 = vld [vmem:[%s3 + $0x198] sm:$0xff]
        %v5236 = vld [vmem:[%s3 + $0x1a0] sm:$0xf]
        %v5237 = vld [vmem:[%s3 + $0x1a4] sm:$0xff]
        %v5238 = vld [vmem:[%s3 + $0x1ac] sm:$0xf]
        %v5239 = vld [vmem:[%s3 + $0x1b0] sm:$0xff]
        %v5240 = vld [vmem:[%s3 + $0x1b8] sm:$0xf]
        %v5241 = vld [vmem:[%s3 + $0x1bc] sm:$0xff]
        %v5242 = vld [vmem:[%s3 + $0x1c4] sm:$0xf]
        %v5243 = vld [vmem:[%s3 + $0x1c8] sm:$0xff]
        %v5244 = vld [vmem:[%s3 + $0x1d0] sm:$0xf]
        %v5245 = vld [vmem:[%s3 + $0x1d4] sm:$0xff]
        %v5246 = vld [vmem:[%s3 + $0x1dc] sm:$0xf]
        %v5247 = vld [vmem:[%s3 + $0x1e0] sm:$0xff]
        %v5248 = vld [vmem:[%s3 + $0x1e8] sm:$0xf]
        %v5249 = vld [vmem:[%s3 + $0x1ec] sm:$0xff]
        %v5250 = vld [vmem:[%s3 + $0x1f4] sm:$0xf]
        %v5251 = vld [vmem:[%s3 + $0x1f8] sm:$0xff]
        %v5252 = vld [vmem:[%s3 + $0x200] sm:$0xf]
        %v5253 = vld [vmem:[%s3 + $0x204] sm:$0xff]
        %v5254 = vld [vmem:[%s3 + $0x20c] sm:$0xf]
        %v5255 = vld [vmem:[%s3 + $0x210] sm:$0xff]
        %v5256 = vld [vmem:[%s3 + $0x218] sm:$0xf]
        %v5257 = vld [vmem:[%s3 + $0x21c] sm:$0xff]
        %v5258 = vld [vmem:[%s3 + $0x224] sm:$0xf]
        %v5259 = vld [vmem:[%s3 + $0x228] sm:$0xff]
        %v5260 = vld [vmem:[%s3 + $0x230] sm:$0xf]
        %v5261 = vld [vmem:[%s3 + $0x234] sm:$0xff]
        %v5262 = vld [vmem:[%s3 + $0x23c] sm:$0xf]
        %v5263 = vld [vmem:[%s3 + $0x240] sm:$0xff]
        %v5264 = vld [vmem:[%s3 + $0x248] sm:$0xf]
        %v5265 = vld [vmem:[%s3 + $0x24c] sm:$0xff]
        %v5266 = vld [vmem:[%s3 + $0x254] sm:$0xf]
        %v5267 = vld [vmem:[%s3 + $0x258] sm:$0xff]
        %v5268 = vld [vmem:[%s3 + $0x260] sm:$0xf]
        %v5269 = vld [vmem:[%s3 + $0x264] sm:$0xff]
        %v5270 = vld [vmem:[%s3 + $0x26c] sm:$0xf]
        %v5271 = vld [vmem:[%s3 + $0x270] sm:$0xff]
        %v5272 = vld [vmem:[%s3 + $0x278] sm:$0xf]
        %v5273 = vld [vmem:[%s3 + $0x27c] sm:$0xff]
        %v5274 = vld [vmem:[%s3 + $0x284] sm:$0xf]
        %v5275 = vld [vmem:[%s3 + $0x288] sm:$0xff]
        %v5276 = vld [vmem:[%s3 + $0x290] sm:$0xf]
        %v5277 = vld [vmem:[%s3 + $0x294] sm:$0xff]
        %v5278 = vld [vmem:[%s3 + $0x29c] sm:$0xf]
        %v5279 = vld [vmem:[%s3 + $0x2a0] sm:$0xff]
        %v5280 = vld [vmem:[%s3 + $0x2a8] sm:$0xf]
        %v5281 = vld [vmem:[%s3 + $0x2ac] sm:$0xff]
        %v5282 = vld [vmem:[%s3 + $0x2b4] sm:$0xf]
        %v5283 = vld [vmem:[%s3 + $0x2b8] sm:$0xff]
        %v5284 = vld [vmem:[%s3 + $0x2c0] sm:$0xf]
        %v5285 = vld [vmem:[%s3 + $0x2c4] sm:$0xff]
        %v5286 = vld [vmem:[%s3 + $0x2cc] sm:$0xf]
        %v5287 = vld [vmem:[%s3 + $0x2d0] sm:$0xff]
        %v5288 = vld [vmem:[%s3 + $0x2d8] sm:$0xf]
        %v5289 = vld [vmem:[%s3 + $0x2dc] sm:$0xff]
        %v5290 = vld [vmem:[%s3 + $0x2e4] sm:$0xf]
        %v5291 = vld [vmem:[%s3 + $0x2e8] sm:$0xff]
        %v5292 = vld [vmem:[%s3 + $0x2f0] sm:$0xf]
        %v5293 = vld [vmem:[%s3 + $0x2f4] sm:$0xff]
        %v5294 = vld [vmem:[%s3 + $0x2fc] sm:$0xf]
        %v5295 = vld [vmem:[%s3 + $0x300] sm:$0xff]
        %v5296 = vld [vmem:[%s3 + $0x308] sm:$0xf]
        %v5297 = vld [vmem:[%s3 + $0x30c] sm:$0xff]
        %v5298 = vld [vmem:[%s3 + $0x314] sm:$0xf]
        %v5299 = vld [vmem:[%s3 + $0x318] sm:$0xff]
        %v5300 = vld [vmem:[%s3 + $0x320] sm:$0xf]
        %v5301 = vld [vmem:[%s3 + $0x324] sm:$0xff]
        %v5302 = vld [vmem:[%s3 + $0x32c] sm:$0xf]
        %v5303 = vld [vmem:[%s3 + $0x330] sm:$0xff]
        %v5304 = vld [vmem:[%s3 + $0x338] sm:$0xf]
        %v5305 = vld [vmem:[%s3 + $0x33c] sm:$0xff]
        %v5306 = vld [vmem:[%s3 + $0x344] sm:$0xf]
        %v5307 = vld [vmem:[%s3 + $0x348] sm:$0xff]
        %v5308 = vld [vmem:[%s3 + $0x350] sm:$0xf]
        %v5309 = vld [vmem:[%s3 + $0x354] sm:$0xff]
        %v5310 = vld [vmem:[%s3 + $0x35c] sm:$0xf]
        %v5311 = vld [vmem:[%s3 + $0x360] sm:$0xff]
        %v5312 = vld [vmem:[%s3 + $0x368] sm:$0xf]
        %v5313 = vld [vmem:[%s3 + $0x36c] sm:$0xff]
        %v5314 = vld [vmem:[%s3 + $0x374] sm:$0xf]
        %v5315 = vld [vmem:[%s3 + $0x378] sm:$0xff]
        %v5316 = vld [vmem:[%s3 + $0x380] sm:$0xf]
        %v5317 = vld [vmem:[%s3 + $0x384] sm:$0xff]
        %v5318 = vld [vmem:[%s3 + $0x38c] sm:$0xf]
        %v5319 = vld [vmem:[%s3 + $0x390] sm:$0xff]
        %v5320 = vld [vmem:[%s3 + $0x398] sm:$0xf]
        %v5321 = vld [vmem:[%s3 + $0x39c] sm:$0xff]
        %v5322 = vld [vmem:[%s3 + $0x3a4] sm:$0xf]
        %v5323 = vld [vmem:[%s3 + $0x3a8] sm:$0xff]
        %v5324 = vld [vmem:[%s3 + $0x3b0] sm:$0xf]
        %v5325 = vld [vmem:[%s3 + $0x3b4] sm:$0xff]
        %v5326 = vld [vmem:[%s3 + $0x3bc] sm:$0xf]
        %v5327 = vld [vmem:[%s4] sm:$0x7]
        %v5329 = vlaneseq
        %v5330 = vshrl.u32 %v5329, 7
        %v5331 = vsub.s32 0, %v5330
        %v5332 = vrot.slane %v5327, %v5331
        %v5333 = vlaneseq
        %v5334 = vshrl.u32 %v5333, 7
        %v5335 = vsub.s32 1, %v5334
        %v5336 = vrot.slane %v5327, %v5335
        %v5337 = vlaneseq
        %v5338 = vshrl.u32 %v5337, 7
        %v5339 = vsub.s32 2, %v5338
        %v5340 = vrot.slane %v5327, %v5339
        %v5504 = vunpack.c.l.b16 %v5167
        %v5505 = vunpack.c.h.b16 %v5167
        %v5506 = vunpack.c.l.b16 %v5168
        %v5507 = vunpack.c.l.b16 %v5169
        %v5508 = vunpack.c.h.b16 %v5169
        %v5509 = vunpack.c.l.b16 %v5170
        %v5510 = vunpack.c.l.b16 %v5171
        %v5511 = vunpack.c.h.b16 %v5171
        %v5512 = vunpack.c.l.b16 %v5172
        %v5513 = vunpack.c.l.b16 %v5173
        %v5514 = vunpack.c.h.b16 %v5173
        %v5515 = vunpack.c.l.b16 %v5174
        %v5516 = vunpack.c.l.b16 %v5175
        %v5517 = vunpack.c.h.b16 %v5175
        %v5518 = vunpack.c.l.b16 %v5176
        %v5519 = vunpack.c.l.b16 %v5177
        %v5520 = vunpack.c.h.b16 %v5177
        %v5521 = vunpack.c.l.b16 %v5178
        %v5522 = vunpack.c.l.b16 %v5179
        %v5523 = vunpack.c.h.b16 %v5179
        %v5524 = vunpack.c.l.b16 %v5180
        %v5525 = vunpack.c.l.b16 %v5181
        %v5526 = vunpack.c.h.b16 %v5181
        %v5527 = vunpack.c.l.b16 %v5182
        %v5528 = vunpack.c.l.b16 %v5183
        %v5529 = vunpack.c.h.b16 %v5183
        %v5530 = vunpack.c.l.b16 %v5184
        %v5531 = vunpack.c.l.b16 %v5185
        %v5532 = vunpack.c.h.b16 %v5185
        %v5533 = vunpack.c.l.b16 %v5186
        %v5534 = vunpack.c.l.b16 %v5187
        %v5535 = vunpack.c.h.b16 %v5187
        %v5536 = vunpack.c.l.b16 %v5188
        %v5537 = vunpack.c.l.b16 %v5189
        %v5538 = vunpack.c.h.b16 %v5189
        %v5539 = vunpack.c.l.b16 %v5190
        %v5540 = vunpack.c.l.b16 %v5191
        %v5541 = vunpack.c.h.b16 %v5191
        %v5542 = vunpack.c.l.b16 %v5192
        %v5543 = vunpack.c.l.b16 %v5193
        %v5544 = vunpack.c.h.b16 %v5193
        %v5545 = vunpack.c.l.b16 %v5194
        %v5546 = vunpack.c.l.b16 %v5195
        %v5547 = vunpack.c.h.b16 %v5195
        %v5548 = vunpack.c.l.b16 %v5196
        %v5549 = vunpack.c.l.b16 %v5197
        %v5550 = vunpack.c.h.b16 %v5197
        %v5551 = vunpack.c.l.b16 %v5198
        %v5552 = vunpack.c.l.b16 %v5199
        %v5553 = vunpack.c.h.b16 %v5199
        %v5554 = vunpack.c.l.b16 %v5200
        %v5555 = vunpack.c.l.b16 %v5201
        %v5556 = vunpack.c.h.b16 %v5201
        %v5557 = vunpack.c.l.b16 %v5202
        %v5558 = vunpack.c.l.b16 %v5203
        %v5559 = vunpack.c.h.b16 %v5203
        %v5560 = vunpack.c.l.b16 %v5204
        %v5561 = vunpack.c.l.b16 %v5205
        %v5562 = vunpack.c.h.b16 %v5205
        %v5563 = vunpack.c.l.b16 %v5206
        %v5564 = vunpack.c.l.b16 %v5207
        %v5565 = vunpack.c.h.b16 %v5207
        %v5566 = vunpack.c.l.b16 %v5208
        %v5567 = vunpack.c.l.b16 %v5209
        %v5568 = vunpack.c.h.b16 %v5209
        %v5569 = vunpack.c.l.b16 %v5210
        %v5570 = vunpack.c.l.b16 %v5211
        %v5571 = vunpack.c.h.b16 %v5211
        %v5572 = vunpack.c.l.b16 %v5212
        %v5573 = vunpack.c.l.b16 %v5213
        %v5574 = vunpack.c.h.b16 %v5213
        %v5575 = vunpack.c.l.b16 %v5214
        %v5576 = vunpack.c.l.b16 %v5215
        %v5577 = vunpack.c.h.b16 %v5215
        %v5578 = vunpack.c.l.b16 %v5216
        %v5579 = vunpack.c.l.b16 %v5217
        %v5580 = vunpack.c.h.b16 %v5217
        %v5581 = vunpack.c.l.b16 %v5218
        %v5582 = vunpack.c.l.b16 %v5219
        %v5583 = vunpack.c.h.b16 %v5219
        %v5584 = vunpack.c.l.b16 %v5220
        %v5585 = vunpack.c.l.b16 %v5221
        %v5586 = vunpack.c.h.b16 %v5221
        %v5587 = vunpack.c.l.b16 %v5222
        %v5588 = vunpack.c.l.b16 %v5223
        %v5589 = vunpack.c.h.b16 %v5223
        %v5590 = vunpack.c.l.b16 %v5224
        %v5591 = vunpack.c.l.b16 %v5225
        %v5592 = vunpack.c.h.b16 %v5225
        %v5593 = vunpack.c.l.b16 %v5226
        %v5594 = vunpack.c.l.b16 %v5227
        %v5595 = vunpack.c.h.b16 %v5227
        %v5596 = vunpack.c.l.b16 %v5228
        %v5597 = vunpack.c.l.b16 %v5229
        %v5598 = vunpack.c.h.b16 %v5229
        %v5599 = vunpack.c.l.b16 %v5230
        %v5600 = vunpack.c.l.b16 %v5231
        %v5601 = vunpack.c.h.b16 %v5231
        %v5602 = vunpack.c.l.b16 %v5232
        %v5603 = vunpack.c.l.b16 %v5233
        %v5604 = vunpack.c.h.b16 %v5233
        %v5605 = vunpack.c.l.b16 %v5234
        %v5606 = vunpack.c.l.b16 %v5235
        %v5607 = vunpack.c.h.b16 %v5235
        %v5608 = vunpack.c.l.b16 %v5236
        %v5609 = vunpack.c.l.b16 %v5237
        %v5610 = vunpack.c.h.b16 %v5237
        %v5611 = vunpack.c.l.b16 %v5238
        %v5612 = vunpack.c.l.b16 %v5239
        %v5613 = vunpack.c.h.b16 %v5239
        %v5614 = vunpack.c.l.b16 %v5240
        %v5615 = vunpack.c.l.b16 %v5241
        %v5616 = vunpack.c.h.b16 %v5241
        %v5617 = vunpack.c.l.b16 %v5242
        %v5618 = vunpack.c.l.b16 %v5243
        %v5619 = vunpack.c.h.b16 %v5243
        %v5620 = vunpack.c.l.b16 %v5244
        %v5621 = vunpack.c.l.b16 %v5245
        %v5622 = vunpack.c.h.b16 %v5245
        %v5623 = vunpack.c.l.b16 %v5246
        %v5624 = vunpack.c.l.b16 %v5247
        %v5625 = vunpack.c.h.b16 %v5247
        %v5626 = vunpack.c.l.b16 %v5248
        %v5627 = vunpack.c.l.b16 %v5249
        %v5628 = vunpack.c.h.b16 %v5249
        %v5629 = vunpack.c.l.b16 %v5250
        %v5630 = vunpack.c.l.b16 %v5251
        %v5631 = vunpack.c.h.b16 %v5251
        %v5632 = vunpack.c.l.b16 %v5252
        %v5633 = vunpack.c.l.b16 %v5253
        %v5634 = vunpack.c.h.b16 %v5253
        %v5635 = vunpack.c.l.b16 %v5254
        %v5636 = vunpack.c.l.b16 %v5255
        %v5637 = vunpack.c.h.b16 %v5255
        %v5638 = vunpack.c.l.b16 %v5256
        %v5639 = vunpack.c.l.b16 %v5257
        %v5640 = vunpack.c.h.b16 %v5257
        %v5641 = vunpack.c.l.b16 %v5258
        %v5642 = vunpack.c.l.b16 %v5259
        %v5643 = vunpack.c.h.b16 %v5259
        %v5644 = vunpack.c.l.b16 %v5260
        %v5645 = vunpack.c.l.b16 %v5261
        %v5646 = vunpack.c.h.b16 %v5261
        %v5647 = vunpack.c.l.b16 %v5262
        %v5648 = vunpack.c.l.b16 %v5263
        %v5649 = vunpack.c.h.b16 %v5263
        %v5650 = vunpack.c.l.b16 %v5264
        %v5651 = vunpack.c.l.b16 %v5265
        %v5652 = vunpack.c.h.b16 %v5265
        %v5653 = vunpack.c.l.b16 %v5266
        %v5654 = vunpack.c.l.b16 %v5267
        %v5655 = vunpack.c.h.b16 %v5267
        %v5656 = vunpack.c.l.b16 %v5268
        %v5657 = vunpack.c.l.b16 %v5269
        %v5658 = vunpack.c.h.b16 %v5269
        %v5659 = vunpack.c.l.b16 %v5270
        %v5660 = vunpack.c.l.b16 %v5271
        %v5661 = vunpack.c.h.b16 %v5271
        %v5662 = vunpack.c.l.b16 %v5272
        %v5663 = vunpack.c.l.b16 %v5273
        %v5664 = vunpack.c.h.b16 %v5273
        %v5665 = vunpack.c.l.b16 %v5274
        %v5666 = vunpack.c.l.b16 %v5275
        %v5667 = vunpack.c.h.b16 %v5275
        %v5668 = vunpack.c.l.b16 %v5276
        %v5669 = vunpack.c.l.b16 %v5277
        %v5670 = vunpack.c.h.b16 %v5277
        %v5671 = vunpack.c.l.b16 %v5278
        %v5672 = vunpack.c.l.b16 %v5279
        %v5673 = vunpack.c.h.b16 %v5279
        %v5674 = vunpack.c.l.b16 %v5280
        %v5675 = vunpack.c.l.b16 %v5281
        %v5676 = vunpack.c.h.b16 %v5281
        %v5677 = vunpack.c.l.b16 %v5282
        %v5678 = vunpack.c.l.b16 %v5283
        %v5679 = vunpack.c.h.b16 %v5283
        %v5680 = vunpack.c.l.b16 %v5284
        %v5681 = vunpack.c.l.b16 %v5285
        %v5682 = vunpack.c.h.b16 %v5285
        %v5683 = vunpack.c.l.b16 %v5286
        %v5684 = vunpack.c.l.b16 %v5287
        %v5685 = vunpack.c.h.b16 %v5287
        %v5686 = vunpack.c.l.b16 %v5288
        %v5687 = vunpack.c.l.b16 %v5289
        %v5688 = vunpack.c.h.b16 %v5289
        %v5689 = vunpack.c.l.b16 %v5290
        %v5690 = vunpack.c.l.b16 %v5291
        %v5691 = vunpack.c.h.b16 %v5291
        %v5692 = vunpack.c.l.b16 %v5292
        %v5693 = vunpack.c.l.b16 %v5293
        %v5694 = vunpack.c.h.b16 %v5293
        %v5695 = vunpack.c.l.b16 %v5294
        %v5696 = vunpack.c.l.b16 %v5295
        %v5697 = vunpack.c.h.b16 %v5295
        %v5698 = vunpack.c.l.b16 %v5296
        %v5699 = vunpack.c.l.b16 %v5297
        %v5700 = vunpack.c.h.b16 %v5297
        %v5701 = vunpack.c.l.b16 %v5298
        %v5702 = vunpack.c.l.b16 %v5299
        %v5703 = vunpack.c.h.b16 %v5299
        %v5704 = vunpack.c.l.b16 %v5300
        %v5705 = vunpack.c.l.b16 %v5301
        %v5706 = vunpack.c.h.b16 %v5301
        %v5707 = vunpack.c.l.b16 %v5302
        %v5708 = vunpack.c.l.b16 %v5303
        %v5709 = vunpack.c.h.b16 %v5303
        %v5710 = vunpack.c.l.b16 %v5304
        %v5711 = vunpack.c.l.b16 %v5305
        %v5712 = vunpack.c.h.b16 %v5305
        %v5713 = vunpack.c.l.b16 %v5306
        %v5714 = vunpack.c.l.b16 %v5307
        %v5715 = vunpack.c.h.b16 %v5307
        %v5716 = vunpack.c.l.b16 %v5308
        %v5717 = vunpack.c.l.b16 %v5309
        %v5718 = vunpack.c.h.b16 %v5309
        %v5719 = vunpack.c.l.b16 %v5310
        %v5720 = vunpack.c.l.b16 %v5311
        %v5721 = vunpack.c.h.b16 %v5311
        %v5722 = vunpack.c.l.b16 %v5312
        %v5723 = vunpack.c.l.b16 %v5313
        %v5724 = vunpack.c.h.b16 %v5313
        %v5725 = vunpack.c.l.b16 %v5314
        %v5726 = vunpack.c.l.b16 %v5315
        %v5727 = vunpack.c.h.b16 %v5315
        %v5728 = vunpack.c.l.b16 %v5316
        %v5729 = vunpack.c.l.b16 %v5317
        %v5730 = vunpack.c.h.b16 %v5317
        %v5731 = vunpack.c.l.b16 %v5318
        %v5732 = vunpack.c.l.b16 %v5319
        %v5733 = vunpack.c.h.b16 %v5319
        %v5734 = vunpack.c.l.b16 %v5320
        %v5735 = vunpack.c.l.b16 %v5321
        %v5736 = vunpack.c.h.b16 %v5321
        %v5737 = vunpack.c.l.b16 %v5322
        %v5738 = vunpack.c.l.b16 %v5323
        %v5739 = vunpack.c.h.b16 %v5323
        %v5740 = vunpack.c.l.b16 %v5324
        %v5741 = vunpack.c.l.b16 %v5325
        %v5742 = vunpack.c.h.b16 %v5325
        %v5743 = vunpack.c.l.b16 %v5326
        %v5744 = vpack.c.b16 %v5507, %v5504
        %v5745 = vpack.c.b16 %v5508, %v5505
        %v5746 = vpack.c.b16 %v5509, %v5506
        %v5747 = vpack.c.b16 %v5513, %v5510
        %v5748 = vpack.c.b16 %v5514, %v5511
        %v5749 = vpack.c.b16 %v5515, %v5512
        %v5750 = vpack.c.b16 %v5519, %v5516
        %v5751 = vpack.c.b16 %v5520, %v5517
        %v5752 = vpack.c.b16 %v5521, %v5518
        %v5753 = vpack.c.b16 %v5525, %v5522
        %v5754 = vpack.c.b16 %v5526, %v5523
        %v5755 = vpack.c.b16 %v5527, %v5524
        %v5756 = vpack.c.b16 %v5531, %v5528
        %v5757 = vpack.c.b16 %v5532, %v5529
        %v5758 = vpack.c.b16 %v5533, %v5530
        %v5759 = vpack.c.b16 %v5537, %v5534
        %v5760 = vpack.c.b16 %v5538, %v5535
        %v5761 = vpack.c.b16 %v5539, %v5536
        %v5762 = vpack.c.b16 %v5543, %v5540
        %v5763 = vpack.c.b16 %v5544, %v5541
        %v5764 = vpack.c.b16 %v5545, %v5542
        %v5765 = vpack.c.b16 %v5549, %v5546
        %v5766 = vpack.c.b16 %v5550, %v5547
        %v5767 = vpack.c.b16 %v5551, %v5548
        %v5768 = vpack.c.b16 %v5555, %v5552
        %v5769 = vpack.c.b16 %v5556, %v5553
        %v5770 = vpack.c.b16 %v5557, %v5554
        %v5771 = vpack.c.b16 %v5561, %v5558
        %v5772 = vpack.c.b16 %v5562, %v5559
        %v5773 = vpack.c.b16 %v5563, %v5560
        %v5774 = vpack.c.b16 %v5567, %v5564
        %v5775 = vpack.c.b16 %v5568, %v5565
        %v5776 = vpack.c.b16 %v5569, %v5566
        %v5777 = vpack.c.b16 %v5573, %v5570
        %v5778 = vpack.c.b16 %v5574, %v5571
        %v5779 = vpack.c.b16 %v5575, %v5572
        %v5780 = vpack.c.b16 %v5579, %v5576
        %v5781 = vpack.c.b16 %v5580, %v5577
        %v5782 = vpack.c.b16 %v5581, %v5578
        %v5783 = vpack.c.b16 %v5585, %v5582
        %v5784 = vpack.c.b16 %v5586, %v5583
        %v5785 = vpack.c.b16 %v5587, %v5584
        %v5786 = vpack.c.b16 %v5591, %v5588
        %v5787 = vpack.c.b16 %v5592, %v5589
        %v5788 = vpack.c.b16 %v5593, %v5590
        %v5789 = vpack.c.b16 %v5597, %v5594
        %v5790 = vpack.c.b16 %v5598, %v5595
        %v5791 = vpack.c.b16 %v5599, %v5596
        %v5792 = vpack.c.b16 %v5603, %v5600
        %v5793 = vpack.c.b16 %v5604, %v5601
        %v5794 = vpack.c.b16 %v5605, %v5602
        %v5795 = vpack.c.b16 %v5609, %v5606
        %v5796 = vpack.c.b16 %v5610, %v5607
        %v5797 = vpack.c.b16 %v5611, %v5608
        %v5798 = vpack.c.b16 %v5615, %v5612
        %v5799 = vpack.c.b16 %v5616, %v5613
        %v5800 = vpack.c.b16 %v5617, %v5614
        %v5801 = vpack.c.b16 %v5621, %v5618
        %v5802 = vpack.c.b16 %v5622, %v5619
        %v5803 = vpack.c.b16 %v5623, %v5620
        %v5804 = vpack.c.b16 %v5627, %v5624
        %v5805 = vpack.c.b16 %v5628, %v5625
        %v5806 = vpack.c.b16 %v5629, %v5626
        %v5807 = vpack.c.b16 %v5633, %v5630
        %v5808 = vpack.c.b16 %v5634, %v5631
        %v5809 = vpack.c.b16 %v5635, %v5632
        %v5810 = vpack.c.b16 %v5639, %v5636
        %v5811 = vpack.c.b16 %v5640, %v5637
        %v5812 = vpack.c.b16 %v5641, %v5638
        %v5813 = vpack.c.b16 %v5645, %v5642
        %v5814 = vpack.c.b16 %v5646, %v5643
        %v5815 = vpack.c.b16 %v5647, %v5644
        %v5816 = vpack.c.b16 %v5651, %v5648
        %v5817 = vpack.c.b16 %v5652, %v5649
        %v5818 = vpack.c.b16 %v5653, %v5650
        %v5819 = vpack.c.b16 %v5657, %v5654
        %v5820 = vpack.c.b16 %v5658, %v5655
        %v5821 = vpack.c.b16 %v5659, %v5656
        %v5822 = vpack.c.b16 %v5663, %v5660
        %v5823 = vpack.c.b16 %v5664, %v5661
        %v5824 = vpack.c.b16 %v5665, %v5662
        %v5825 = vpack.c.b16 %v5669, %v5666
        %v5826 = vpack.c.b16 %v5670, %v5667
        %v5827 = vpack.c.b16 %v5671, %v5668
        %v5828 = vpack.c.b16 %v5675, %v5672
        %v5829 = vpack.c.b16 %v5676, %v5673
        %v5830 = vpack.c.b16 %v5677, %v5674
        %v5831 = vpack.c.b16 %v5681, %v5678
        %v5832 = vpack.c.b16 %v5682, %v5679
        %v5833 = vpack.c.b16 %v5683, %v5680
        %v5834 = vpack.c.b16 %v5687, %v5684
        %v5835 = vpack.c.b16 %v5688, %v5685
        %v5836 = vpack.c.b16 %v5689, %v5686
        %v5837 = vpack.c.b16 %v5693, %v5690
        %v5838 = vpack.c.b16 %v5694, %v5691
        %v5839 = vpack.c.b16 %v5695, %v5692
        %v5840 = vpack.c.b16 %v5699, %v5696
        %v5841 = vpack.c.b16 %v5700, %v5697
        %v5842 = vpack.c.b16 %v5701, %v5698
        %v5843 = vpack.c.b16 %v5705, %v5702
        %v5844 = vpack.c.b16 %v5706, %v5703
        %v5845 = vpack.c.b16 %v5707, %v5704
        %v5846 = vpack.c.b16 %v5711, %v5708
        %v5847 = vpack.c.b16 %v5712, %v5709
        %v5848 = vpack.c.b16 %v5713, %v5710
        %v5849 = vpack.c.b16 %v5717, %v5714
        %v5850 = vpack.c.b16 %v5718, %v5715
        %v5851 = vpack.c.b16 %v5719, %v5716
        %v5852 = vpack.c.b16 %v5723, %v5720
        %v5853 = vpack.c.b16 %v5724, %v5721
        %v5854 = vpack.c.b16 %v5725, %v5722
        %v5855 = vpack.c.b16 %v5729, %v5726
        %v5856 = vpack.c.b16 %v5730, %v5727
        %v5857 = vpack.c.b16 %v5731, %v5728
        %v5858 = vpack.c.b16 %v5735, %v5732
        %v5859 = vpack.c.b16 %v5736, %v5733
        %v5860 = vpack.c.b16 %v5737, %v5734
        %v5861 = vpack.c.b16 %v5741, %v5738
        %v5862 = vpack.c.b16 %v5742, %v5739
        %v5863 = vpack.c.b16 %v5743, %v5740
        %5984 = vmatprep.subr.bf16.mxu0 %v5745
        %5985 = vmatpush1.bf16.msra.mxu0 %v5744
        %5986 = vmatprep.subr.bf16.mxu0 %v5748
        %5987 = vmatpush1.bf16.msra.mxu0 %v5747
        %5988 = vmatprep.subr.bf16.mxu0 %v5751
        %5989 = vmatpush1.bf16.msra.mxu0 %v5750
        %5990 = vmatprep.subr.bf16.mxu0 %v5754
        %5991 = vmatpush1.bf16.msra.mxu0 %v5753
        %5992 = vmatprep.subr.bf16.mxu0 %v5757
        %5993 = vmatpush1.bf16.msra.mxu0 %v5756
        %5994 = vmatprep.subr.bf16.mxu0 %v5760
        %5995 = vmatpush1.bf16.msra.mxu0 %v5759
        %5996 = vmatprep.subr.bf16.mxu0 %v5763
        %5997 = vmatpush1.bf16.msra.mxu0 %v5762
        %5998 = vmatprep.subr.bf16.mxu0 %v5766
        %5999 = vmatpush1.bf16.msra.mxu0 %v5765
        %6000 = vmatprep.subr.bf16.mxu0 %v5769
        %6001 = vmatpush1.bf16.msra.mxu0 %v5768
        %6002 = vmatprep.subr.bf16.mxu0 %v5772
        %6003 = vmatpush1.bf16.msra.mxu0 %v5771
        %6004 = vmatprep.subr.bf16.mxu0 %v5775
        %6005 = vmatpush1.bf16.msra.mxu0 %v5774
        %6006 = vmatprep.subr.bf16.mxu0 %v5778
        %6007 = vmatpush1.bf16.msra.mxu0 %v5777
        %6008 = vmatprep.subr.bf16.mxu0 %v5781
        %6009 = vmatpush1.bf16.msra.mxu0 %v5780
        %6010 = vmatprep.subr.bf16.mxu0 %v5784
        %6011 = vmatpush1.bf16.msra.mxu0 %v5783
        %6012 = vmatprep.subr.bf16.mxu0 %v5787
        %6013 = vmatpush1.bf16.msra.mxu0 %v5786
        %6014 = vmatprep.subr.bf16.mxu0 %v5790
        %6015 = vmatpush1.bf16.msra.mxu0 %v5789
        %6016 = vmatprep.mubr.bf16.mxu0 %v5088
        %6017 = vmatmul.mubr.bf16.gmra.mrb[0].mxu0 %v5087
        %v6018 = vpop.f32.mrb[0].mxu0
        %v6019 = vadd.f32 %v5332, %v6018
        %v6020 = vpop.f32.mrb[0].mxu0
        %v6021 = vadd.f32 %v5336, %v6020
        %v6022 = vpop.f32.mrb[0].mxu0
        %v6023 = vadd.f32 %v5332, %v6022
        %v6024 = vpop.f32.mrb[0].mxu0
        %v6025 = vadd.f32 %v5336, %v6024
        %6026 = vmatprep.mubr.bf16.mxu0 %v5093
        %6027 = vmatmul.mubr.bf16.gmra.mrb[0].mxu0 %v5092
        %v6028 = vpop.f32.mrb[0].mxu0
        %v6029 = vadd.f32 %v5332, %v6028
        %v6030 = vpop.f32.mrb[0].mxu0
        %v6031 = vadd.f32 %v5336, %v6030
        %v6032 = vpop.f32.mrb[0].mxu0
        %v6033 = vadd.f32 %v5332, %v6032
        %v6034 = vpop.f32.mrb[0].mxu0
        %v6035 = vadd.f32 %v5336, %v6034
        %6036 = vmatprep.mubr.bf16.mxu0 %v5098
        %6037 = vmatmul.mubr.bf16.gmra.mrb[0].mxu0 %v5097
        %v6038 = vpop.f32.mrb[0].mxu0
        %v6039 = vadd.f32 %v5332, %v6038
        %v6040 = vpop.f32.mrb[0].mxu0
        %v6041 = vadd.f32 %v5336, %v6040
        %v6042 = vpop.f32.mrb[0].mxu0
        %v6043 = vadd.f32 %v5332, %v6042
        %v6044 = vpop.f32.mrb[0].mxu0
        %v6045 = vadd.f32 %v5336, %v6044
        %6046 = vmatprep.mubr.bf16.mxu0 %v5103
        %6047 = vmatmul.mubr.bf16.gmra.mrb[0].mxu0 %v5102
        %v6048 = vpop.f32.mrb[0].mxu0
        %v6049 = vadd.f32 %v5332, %v6048
        %v6050 = vpop.f32.mrb[0].mxu0
        %v6051 = vadd.f32 %v5336, %v6050
        %v6052 = vpop.f32.mrb[0].mxu0
        %v6053 = vadd.f32 %v5332, %v6052
        %v6054 = vpop.f32.mrb[0].mxu0
        %v6055 = vadd.f32 %v5336, %v6054
        %6056 = vmatprep.mubr.bf16.mxu0 %v5108
        %6057 = vmatmul.mubr.bf16.gmra.mrb[0].mxu0 %v5107
        %v6058 = vpop.f32.mrb[0].mxu0
        %v6059 = vadd.f32 %v5332, %v6058
        %v6060 = vpop.f32.mrb[0].mxu0
        %v6061 = vadd.f32 %v5336, %v6060
        %v6062 = vpop.f32.mrb[0].mxu0
        %v6063 = vadd.f32 %v5332, %v6062
        %v6064 = vpop.f32.mrb[0].mxu0
        %v6065 = vadd.f32 %v5336, %v6064
        %6066 = vmatprep.mubr.bf16.mxu0 %v5113
        %6067 = vmatmul.mubr.bf16.gmra.mrb[0].mxu0 %v5112
        %v6068 = vpop.f32.mrb[0].mxu0
        %v6069 = vadd.f32 %v5332, %v6068
        %v6070 = vpop.f32.mrb[0].mxu0
        %v6071 = vadd.f32 %v5336, %v6070
        %v6072 = vpop.f32.mrb[0].mxu0
        %v6073 = vadd.f32 %v5332, %v6072
        %v6074 = vpop.f32.mrb[0].mxu0
        %v6075 = vadd.f32 %v5336, %v6074
        %6076 = vmatprep.mubr.bf16.mxu0 %v5118
        %6077 = vmatmul.mubr.bf16.gmra.mrb[0].mxu0 %v5117
        %v6078 = vpop.f32.mrb[0].mxu0
        %v6079 = vadd.f32 %v5332, %v6078
        %v6080 = vpop.f32.mrb[0].mxu0
        %v6081 = vadd.f32 %v5336, %v6080
        %v6082 = vpop.f32.mrb[0].mxu0
        %v6083 = vadd.f32 %v5332, %v6082
        %v6084 = vpop.f32.mrb[0].mxu0
        %v6085 = vadd.f32 %v5336, %v6084
        %6086 = vmatprep.mubr.bf16.mxu0 %v5123
        %6087 = vmatmul.mubr.bf16.gmra.mrb[0].mxu0 %v5122
        %v6088 = vpop.f32.mrb[0].mxu0
        %v6089 = vadd.f32 %v5332, %v6088
        %v6090 = vpop.f32.mrb[0].mxu0
        %v6091 = vadd.f32 %v5336, %v6090
        %v6092 = vpop.f32.mrb[0].mxu0
        %v6093 = vadd.f32 %v5332, %v6092
        %v6094 = vpop.f32.mrb[0].mxu0
        %v6095 = vadd.f32 %v5336, %v6094
        %6096 = vmatprep.mubr.bf16.mxu0 %v5128
        %6097 = vmatmul.mubr.bf16.gmra.mrb[0].mxu0 %v5127
        %v6098 = vpop.f32.mrb[0].mxu0
        %v6099 = vadd.f32 %v5332, %v6098
        %v6100 = vpop.f32.mrb[0].mxu0
        %v6101 = vadd.f32 %v5336, %v6100
        %v6102 = vpop.f32.mrb[0].mxu0
        %v6103 = vadd.f32 %v5332, %v6102
        %v6104 = vpop.f32.mrb[0].mxu0
        %v6105 = vadd.f32 %v5336, %v6104
        %6106 = vmatprep.mubr.bf16.mxu0 %v5133
        %6107 = vmatmul.mubr.bf16.gmra.mrb[0].mxu0 %v5132
        %v6108 = vpop.f32.mrb[0].mxu0
        %v6109 = vadd.f32 %v5332, %v6108
        %v6110 = vpop.f32.mrb[0].mxu0
        %v6111 = vadd.f32 %v5336, %v6110
        %v6112 = vpop.f32.mrb[0].mxu0
        %v6113 = vadd.f32 %v5332, %v6112
        %v6114 = vpop.f32.mrb[0].mxu0
        %v6115 = vadd.f32 %v5336, %v6114
        %6116 = vmatprep.mubr.bf16.mxu0 %v5138
        %6117 = vmatmul.mubr.bf16.gmra.mrb[0].mxu0 %v5137
        %v6118 = vpop.f32.mrb[0].mxu0
        %v6119 = vadd.f32 %v5332, %v6118
        %v6120 = vpop.f32.mrb[0].mxu0
        %v6121 = vadd.f32 %v5336, %v6120
        %v6122 = vpop.f32.mrb[0].mxu0
        %v6123 = vadd.f32 %v5332, %v6122
        %v6124 = vpop.f32.mrb[0].mxu0
        %v6125 = vadd.f32 %v5336, %v6124
        %6126 = vmatprep.mubr.bf16.mxu0 %v5143
        %6127 = vmatmul.mubr.bf16.gmra.mrb[0].mxu0 %v5142
        %v6128 = vpop.f32.mrb[0].mxu0
        %v6129 = vadd.f32 %v5332, %v6128
        %v6130 = vpop.f32.mrb[0].mxu0
        %v6131 = vadd.f32 %v5336, %v6130
        %v6132 = vpop.f32.mrb[0].mxu0
        %v6133 = vadd.f32 %v5332, %v6132
        %v6134 = vpop.f32.mrb[0].mxu0
        %v6135 = vadd.f32 %v5336, %v6134
        %6136 = vmatprep.mubr.bf16.mxu0 %v5148
        %6137 = vmatmul.mubr.bf16.gmra.mrb[0].mxu0 %v5147
        %v6138 = vpop.f32.mrb[0].mxu0
        %v6139 = vadd.f32 %v5332, %v6138
        %v6140 = vpop.f32.mrb[0].mxu0
        %v6141 = vadd.f32 %v5336, %v6140
        %v6142 = vpop.f32.mrb[0].mxu0
        %v6143 = vadd.f32 %v5332, %v6142
        %v6144 = vpop.f32.mrb[0].mxu0
        %v6145 = vadd.f32 %v5336, %v6144
        %6146 = vmatprep.mubr.bf16.mxu0 %v5153
        %6147 = vmatmul.mubr.bf16.gmra.mrb[0].mxu0 %v5152
        %v6148 = vpop.f32.mrb[0].mxu0
        %v6149 = vadd.f32 %v5332, %v6148
        %v6150 = vpop.f32.mrb[0].mxu0
        %v6151 = vadd.f32 %v5336, %v6150
        %v6152 = vpop.f32.mrb[0].mxu0
        %v6153 = vadd.f32 %v5332, %v6152
        %v6154 = vpop.f32.mrb[0].mxu0
        %v6155 = vadd.f32 %v5336, %v6154
        %6156 = vmatprep.mubr.bf16.mxu0 %v5158
        %6157 = vmatmul.mubr.bf16.gmra.mrb[0].mxu0 %v5157
        %v6158 = vpop.f32.mrb[0].mxu0
        %v6159 = vadd.f32 %v5332, %v6158
        %v6160 = vpop.f32.mrb[0].mxu0
        %v6161 = vadd.f32 %v5336, %v6160
        %v6162 = vpop.f32.mrb[0].mxu0
        %v6163 = vadd.f32 %v5332, %v6162
        %v6164 = vpop.f32.mrb[0].mxu0
        %v6165 = vadd.f32 %v5336, %v6164
        %6166 = vmatprep.mubr.bf16.mxu0 %v5163
        %6167 = vmatmul.mubr.bf16.gmra.mrb[0].mxu0 %v5162
        %v6168 = vpop.f32.mrb[0].mxu0
        %v6169 = vadd.f32 %v5332, %v6168
        %v6170 = vpop.f32.mrb[0].mxu0
        %v6171 = vadd.f32 %v5336, %v6170
        %v6172 = vpop.f32.mrb[0].mxu0
        %v6173 = vadd.f32 %v5332, %v6172
        %v6174 = vpop.f32.mrb[0].mxu0
        %v6175 = vadd.f32 %v5336, %v6174
        %6176 = vdwg.mxu0
        %6177 = vmatprep.subr.bf16.mxu0 %v5793
        %6178 = vmatpush1.bf16.msra.mxu0 %v5792
        %6179 = vmatprep.subr.bf16.mxu0 %v5796
        %6180 = vmatpush1.bf16.msra.mxu0 %v5795
        %6181 = vmatprep.subr.bf16.mxu0 %v5799
        %6182 = vmatpush1.bf16.msra.mxu0 %v5798
        %6183 = vmatprep.subr.bf16.mxu0 %v5802
        %6184 = vmatpush1.bf16.msra.mxu0 %v5801
        %6185 = vmatprep.subr.bf16.mxu0 %v5805
        %6186 = vmatpush1.bf16.msra.mxu0 %v5804
        %6187 = vmatprep.subr.bf16.mxu0 %v5808
        %6188 = vmatpush1.bf16.msra.mxu0 %v5807
        %6189 = vmatprep.subr.bf16.mxu0 %v5811
        %6190 = vmatpush1.bf16.msra.mxu0 %v5810
        %6191 = vmatprep.subr.bf16.mxu0 %v5814
        %6192 = vmatpush1.bf16.msra.mxu0 %v5813
        %6193 = vmatprep.subr.bf16.mxu0 %v5817
        %6194 = vmatpush1.bf16.msra.mxu0 %v5816
        %6195 = vmatprep.subr.bf16.mxu0 %v5820
        %6196 = vmatpush1.bf16.msra.mxu0 %v5819
        %6197 = vmatprep.subr.bf16.mxu0 %v5823
        %6198 = vmatpush1.bf16.msra.mxu0 %v5822
        %6199 = vmatprep.subr.bf16.mxu0 %v5826
        %6200 = vmatpush1.bf16.msra.mxu0 %v5825
        %6201 = vmatprep.subr.bf16.mxu0 %v5829
        %6202 = vmatpush1.bf16.msra.mxu0 %v5828
        %6203 = vmatprep.subr.bf16.mxu0 %v5832
        %6204 = vmatpush1.bf16.msra.mxu0 %v5831
        %6205 = vmatprep.subr.bf16.mxu0 %v5835
        %6206 = vmatpush1.bf16.msra.mxu0 %v5834
        %6207 = vmatprep.subr.bf16.mxu0 %v5838
        %6208 = vmatpush1.bf16.msra.mxu0 %v5837
        %6209 = vmatprep.mubr.bf16.mxu0 %v5090
        %6210 = vmatmul.mubr.bf16.gmra.mrb[0].mxu0 %v5089
        %v6211 = vpop.f32.mrb[0].mxu0
        %v6212 = vadd.f32 %v6019, %v6211
        %v6213 = vpop.f32.mrb[0].mxu0
        %v6214 = vadd.f32 %v6021, %v6213
        %v6215 = vpop.f32.mrb[0].mxu0
        %v6216 = vadd.f32 %v6023, %v6215
        %v6217 = vpop.f32.mrb[0].mxu0
        %v6218 = vadd.f32 %v6025, %v6217
        %6219 = vmatprep.mubr.bf16.mxu0 %v5095
        %6220 = vmatmul.mubr.bf16.gmra.mrb[0].mxu0 %v5094
        %v6221 = vpop.f32.mrb[0].mxu0
        %v6222 = vadd.f32 %v6029, %v6221
        %v6223 = vpop.f32.mrb[0].mxu0
        %v6224 = vadd.f32 %v6031, %v6223
        %v6225 = vpop.f32.mrb[0].mxu0
        %v6226 = vadd.f32 %v6033, %v6225
        %v6227 = vpop.f32.mrb[0].mxu0
        %v6228 = vadd.f32 %v6035, %v6227
        %6229 = vmatprep.mubr.bf16.mxu0 %v5100
        %6230 = vmatmul.mubr.bf16.gmra.mrb[0].mxu0 %v5099
        %v6231 = vpop.f32.mrb[0].mxu0
        %v6232 = vadd.f32 %v6039, %v6231
        %v6233 = vpop.f32.mrb[0].mxu0
        %v6234 = vadd.f32 %v6041, %v6233
        %v6235 = vpop.f32.mrb[0].mxu0
        %v6236 = vadd.f32 %v6043, %v6235
        %v6237 = vpop.f32.mrb[0].mxu0
        %v6238 = vadd.f32 %v6045, %v6237
        %6239 = vmatprep.mubr.bf16.mxu0 %v5105
        %6240 = vmatmul.mubr.bf16.gmra.mrb[0].mxu0 %v5104
        %v6241 = vpop.f32.mrb[0].mxu0
        %v6242 = vadd.f32 %v6049, %v6241
        %v6243 = vpop.f32.mrb[0].mxu0
        %v6244 = vadd.f32 %v6051, %v6243
        %v6245 = vpop.f32.mrb[0].mxu0
        %v6246 = vadd.f32 %v6053, %v6245
        %v6247 = vpop.f32.mrb[0].mxu0
        %v6248 = vadd.f32 %v6055, %v6247
        %6249 = vmatprep.mubr.bf16.mxu0 %v5110
        %6250 = vmatmul.mubr.bf16.gmra.mrb[0].mxu0 %v5109
        %v6251 = vpop.f32.mrb[0].mxu0
        %v6252 = vadd.f32 %v6059, %v6251
        %v6253 = vpop.f32.mrb[0].mxu0
        %v6254 = vadd.f32 %v6061, %v6253
        %v6255 = vpop.f32.mrb[0].mxu0
        %v6256 = vadd.f32 %v6063, %v6255
        %v6257 = vpop.f32.mrb[0].mxu0
        %v6258 = vadd.f32 %v6065, %v6257
        %6259 = vmatprep.mubr.bf16.mxu0 %v5115
        %6260 = vmatmul.mubr.bf16.gmra.mrb[0].mxu0 %v5114
        %v6261 = vpop.f32.mrb[0].mxu0
        %v6262 = vadd.f32 %v6069, %v6261
        %v6263 = vpop.f32.mrb[0].mxu0
        %v6264 = vadd.f32 %v6071, %v6263
        %v6265 = vpop.f32.mrb[0].mxu0
        %v6266 = vadd.f32 %v6073, %v6265
        %v6267 = vpop.f32.mrb[0].mxu0
        %v6268 = vadd.f32 %v6075, %v6267
        %6269 = vmatprep.mubr.bf16.mxu0 %v5120
        %6270 = vmatmul.mubr.bf16.gmra.mrb[0].mxu0 %v5119
        %v6271 = vpop.f32.mrb[0].mxu0
        %v6272 = vadd.f32 %v6079, %v6271
        %v6273 = vpop.f32.mrb[0].mxu0
        %v6274 = vadd.f32 %v6081, %v6273
        %v6275 = vpop.f32.mrb[0].mxu0
        %v6276 = vadd.f32 %v6083, %v6275
        %v6277 = vpop.f32.mrb[0].mxu0
        %v6278 = vadd.f32 %v6085, %v6277
        %6279 = vmatprep.mubr.bf16.mxu0 %v5125
        %6280 = vmatmul.mubr.bf16.gmra.mrb[0].mxu0 %v5124
        %v6281 = vpop.f32.mrb[0].mxu0
        %v6282 = vadd.f32 %v6089, %v6281
        %v6283 = vpop.f32.mrb[0].mxu0
        %v6284 = vadd.f32 %v6091, %v6283
        %v6285 = vpop.f32.mrb[0].mxu0
        %v6286 = vadd.f32 %v6093, %v6285
        %v6287 = vpop.f32.mrb[0].mxu0
        %v6288 = vadd.f32 %v6095, %v6287
        %6289 = vmatprep.mubr.bf16.mxu0 %v5130
        %6290 = vmatmul.mubr.bf16.gmra.mrb[0].mxu0 %v5129
        %v6291 = vpop.f32.mrb[0].mxu0
        %v6292 = vadd.f32 %v6099, %v6291
        %v6293 = vpop.f32.mrb[0].mxu0
        %v6294 = vadd.f32 %v6101, %v6293
        %v6295 = vpop.f32.mrb[0].mxu0
        %v6296 = vadd.f32 %v6103, %v6295
        %v6297 = vpop.f32.mrb[0].mxu0
        %v6298 = vadd.f32 %v6105, %v6297
        %6299 = vmatprep.mubr.bf16.mxu0 %v5135
        %6300 = vmatmul.mubr.bf16.gmra.mrb[0].mxu0 %v5134
        %v6301 = vpop.f32.mrb[0].mxu0
        %v6302 = vadd.f32 %v6109, %v6301
        %v6303 = vpop.f32.mrb[0].mxu0
        %v6304 = vadd.f32 %v6111, %v6303
        %v6305 = vpop.f32.mrb[0].mxu0
        %v6306 = vadd.f32 %v6113, %v6305
        %v6307 = vpop.f32.mrb[0].mxu0
        %v6308 = vadd.f32 %v6115, %v6307
        %6309 = vmatprep.mubr.bf16.mxu0 %v5140
        %6310 = vmatmul.mubr.bf16.gmra.mrb[0].mxu0 %v5139
        %v6311 = vpop.f32.mrb[0].mxu0
        %v6312 = vadd.f32 %v6119, %v6311
        %v6313 = vpop.f32.mrb[0].mxu0
        %v6314 = vadd.f32 %v6121, %v6313
        %v6315 = vpop.f32.mrb[0].mxu0
        %v6316 = vadd.f32 %v6123, %v6315
        %v6317 = vpop.f32.mrb[0].mxu0
        %v6318 = vadd.f32 %v6125, %v6317
        %6319 = vmatprep.mubr.bf16.mxu0 %v5145
        %6320 = vmatmul.mubr.bf16.gmra.mrb[0].mxu0 %v5144
        %v6321 = vpop.f32.mrb[0].mxu0
        %v6322 = vadd.f32 %v6129, %v6321
        %v6323 = vpop.f32.mrb[0].mxu0
        %v6324 = vadd.f32 %v6131, %v6323
        %v6325 = vpop.f32.mrb[0].mxu0
        %v6326 = vadd.f32 %v6133, %v6325
        %v6327 = vpop.f32.mrb[0].mxu0
        %v6328 = vadd.f32 %v6135, %v6327
        %6329 = vmatprep.mubr.bf16.mxu0 %v5150
        %6330 = vmatmul.mubr.bf16.gmra.mrb[0].mxu0 %v5149
        %v6331 = vpop.f32.mrb[0].mxu0
        %v6332 = vadd.f32 %v6139, %v6331
        %v6333 = vpop.f32.mrb[0].mxu0
        %v6334 = vadd.f32 %v6141, %v6333
        %v6335 = vpop.f32.mrb[0].mxu0
        %v6336 = vadd.f32 %v6143, %v6335
        %v6337 = vpop.f32.mrb[0].mxu0
        %v6338 = vadd.f32 %v6145, %v6337
        %6339 = vmatprep.mubr.bf16.mxu0 %v5155
        %6340 = vmatmul.mubr.bf16.gmra.mrb[0].mxu0 %v5154
        %v6341 = vpop.f32.mrb[0].mxu0
        %v6342 = vadd.f32 %v6149, %v6341
        %v6343 = vpop.f32.mrb[0].mxu0
        %v6344 = vadd.f32 %v6151, %v6343
        %v6345 = vpop.f32.mrb[0].mxu0
        %v6346 = vadd.f32 %v6153, %v6345
        %v6347 = vpop.f32.mrb[0].mxu0
        %v6348 = vadd.f32 %v6155, %v6347
        %6349 = vmatprep.mubr.bf16.mxu0 %v5160
        %6350 = vmatmul.mubr.bf16.gmra.mrb[0].mxu0 %v5159
        %v6351 = vpop.f32.mrb[0].mxu0
        %v6352 = vadd.f32 %v6159, %v6351
        %v6353 = vpop.f32.mrb[0].mxu0
        %v6354 = vadd.f32 %v6161, %v6353
        %v6355 = vpop.f32.mrb[0].mxu0
        %v6356 = vadd.f32 %v6163, %v6355
        %v6357 = vpop.f32.mrb[0].mxu0
        %v6358 = vadd.f32 %v6165, %v6357
        %6359 = vmatprep.mubr.bf16.mxu0 %v5165
        %6360 = vmatmul.mubr.bf16.gmra.mrb[0].mxu0 %v5164
        %v6361 = vpop.f32.mrb[0].mxu0
        %v6362 = vadd.f32 %v6169, %v6361
        %v6363 = vpop.f32.mrb[0].mxu0
        %v6364 = vadd.f32 %v6171, %v6363
        %v6365 = vpop.f32.mrb[0].mxu0
        %v6366 = vadd.f32 %v6173, %v6365
        %v6367 = vpop.f32.mrb[0].mxu0
        %v6368 = vadd.f32 %v6175, %v6367
        %6369 = vdwg.mxu0
        %6370 = vmatprep.subr.bf16.mxu0 %v5841
        %6371 = vmatpush1.bf16.msra.mxu0 %v5840
        %6372 = vmatprep.subr.bf16.mxu0 %v5844
        %6373 = vmatpush1.bf16.msra.mxu0 %v5843
        %6374 = vmatprep.subr.bf16.mxu0 %v5847
        %6375 = vmatpush1.bf16.msra.mxu0 %v5846
        %6376 = vmatprep.subr.bf16.mxu0 %v5850
        %6377 = vmatpush1.bf16.msra.mxu0 %v5849
        %6378 = vmatprep.subr.bf16.mxu0 %v5853
        %6379 = vmatpush1.bf16.msra.mxu0 %v5852
        %6380 = vmatprep.subr.bf16.mxu0 %v5856
        %6381 = vmatpush1.bf16.msra.mxu0 %v5855
        %6382 = vmatprep.subr.bf16.mxu0 %v5859
        %6383 = vmatpush1.bf16.msra.mxu0 %v5858
        %6384 = vmatprep.subr.bf16.mxu0 %v5862
        %6385 = vmatpush1.bf16.msra.mxu0 %v5861
        %6386 = vmatprep.subr.bf16.mxu0 0
        %6387 = vmatpush1.bf16.msra.mxu0 0
        %6388 = vmatprep.subr.bf16.mxu0 0
        %6389 = vmatpush1.bf16.msra.mxu0 0
        %6390 = vmatprep.subr.bf16.mxu0 0
        %6391 = vmatpush1.bf16.msra.mxu0 0
        %6392 = vmatprep.subr.bf16.mxu0 0
        %6393 = vmatpush1.bf16.msra.mxu0 0
        %6394 = vmatprep.subr.bf16.mxu0 0
        %6395 = vmatpush1.bf16.msra.mxu0 0
        %6396 = vmatprep.subr.bf16.mxu0 0
        %6397 = vmatpush1.bf16.msra.mxu0 0
        %6398 = vmatprep.subr.bf16.mxu0 0
        %6399 = vmatpush1.bf16.msra.mxu0 0
        %6400 = vmatprep.subr.bf16.mxu0 0
        %6401 = vmatpush1.bf16.msra.mxu0 0
        %6402 = vmatprep.mubr.bf16.mxu0 0
        %6403 = vmatmul.mubr.bf16.gmra.mrb[0].mxu0 %v5091
        %v6404 = vpop.f32.mrb[0].mxu0
        %v6405 = vadd.f32 %v6212, %v6404
        %v6406 = vpop.f32.mrb[0].mxu0
        %v6407 = vadd.f32 %v6214, %v6406
        %v6408 = vpop.f32.mrb[0].mxu0
        %v6409 = vadd.f32 %v6216, %v6408
        %v6410 = vpop.f32.mrb[0].mxu0
        %v6411 = vadd.f32 %v6218, %v6410
        %6412 = vmatprep.mubr.bf16.mxu0 0
        %6413 = vmatmul.mubr.bf16.gmra.mrb[0].mxu0 %v5096
        %v6414 = vpop.f32.mrb[0].mxu0
        %v6415 = vadd.f32 %v6222, %v6414
        %v6416 = vpop.f32.mrb[0].mxu0
        %v6417 = vadd.f32 %v6224, %v6416
        %v6418 = vpop.f32.mrb[0].mxu0
        %v6419 = vadd.f32 %v6226, %v6418
        %v6420 = vpop.f32.mrb[0].mxu0
        %v6421 = vadd.f32 %v6228, %v6420
        %6422 = vmatprep.mubr.bf16.mxu0 0
        %6423 = vmatmul.mubr.bf16.gmra.mrb[0].mxu0 %v5101
        %v6424 = vpop.f32.mrb[0].mxu0
        %v6425 = vadd.f32 %v6232, %v6424
        %v6426 = vpop.f32.mrb[0].mxu0
        %v6427 = vadd.f32 %v6234, %v6426
        %v6428 = vpop.f32.mrb[0].mxu0
        %v6429 = vadd.f32 %v6236, %v6428
        %v6430 = vpop.f32.mrb[0].mxu0
        %v6431 = vadd.f32 %v6238, %v6430
        %6432 = vmatprep.mubr.bf16.mxu0 0
        %6433 = vmatmul.mubr.bf16.gmra.mrb[0].mxu0 %v5106
        %v6434 = vpop.f32.mrb[0].mxu0
        %v6435 = vadd.f32 %v6242, %v6434
        %v6436 = vpop.f32.mrb[0].mxu0
        %v6437 = vadd.f32 %v6244, %v6436
        %v6438 = vpop.f32.mrb[0].mxu0
        %v6439 = vadd.f32 %v6246, %v6438
        %v6440 = vpop.f32.mrb[0].mxu0
        %v6441 = vadd.f32 %v6248, %v6440
        %6442 = vmatprep.mubr.bf16.mxu0 0
        %6443 = vmatmul.mubr.bf16.gmra.mrb[0].mxu0 %v5111
        %v6444 = vpop.f32.mrb[0].mxu0
        %v6445 = vadd.f32 %v6252, %v6444
        %v6446 = vpop.f32.mrb[0].mxu0
        %v6447 = vadd.f32 %v6254, %v6446
        %v6448 = vpop.f32.mrb[0].mxu0
        %v6449 = vadd.f32 %v6256, %v6448
        %v6450 = vpop.f32.mrb[0].mxu0
        %v6451 = vadd.f32 %v6258, %v6450
        %6452 = vmatprep.mubr.bf16.mxu0 0
        %6453 = vmatmul.mubr.bf16.gmra.mrb[0].mxu0 %v5116
        %v6454 = vpop.f32.mrb[0].mxu0
        %v6455 = vadd.f32 %v6262, %v6454
        %v6456 = vpop.f32.mrb[0].mxu0
        %v6457 = vadd.f32 %v6264, %v6456
        %v6458 = vpop.f32.mrb[0].mxu0
        %v6459 = vadd.f32 %v6266, %v6458
        %v6460 = vpop.f32.mrb[0].mxu0
        %v6461 = vadd.f32 %v6268, %v6460
        %6462 = vmatprep.mubr.bf16.mxu0 0
        %6463 = vmatmul.mubr.bf16.gmra.mrb[0].mxu0 %v5121
        %v6464 = vpop.f32.mrb[0].mxu0
        %v6465 = vadd.f32 %v6272, %v6464
        %v6466 = vpop.f32.mrb[0].mxu0
        %v6467 = vadd.f32 %v6274, %v6466
        %v6468 = vpop.f32.mrb[0].mxu0
        %v6469 = vadd.f32 %v6276, %v6468
        %v6470 = vpop.f32.mrb[0].mxu0
        %v6471 = vadd.f32 %v6278, %v6470
        %6472 = vmatprep.mubr.bf16.mxu0 0
        %6473 = vmatmul.mubr.bf16.gmra.mrb[0].mxu0 %v5126
        %v6474 = vpop.f32.mrb[0].mxu0
        %v6475 = vadd.f32 %v6282, %v6474
        %v6476 = vpop.f32.mrb[0].mxu0
        %v6477 = vadd.f32 %v6284, %v6476
        %v6478 = vpop.f32.mrb[0].mxu0
        %v6479 = vadd.f32 %v6286, %v6478
        %v6480 = vpop.f32.mrb[0].mxu0
        %v6481 = vadd.f32 %v6288, %v6480
        %6482 = vmatprep.mubr.bf16.mxu0 0
        %6483 = vmatmul.mubr.bf16.gmra.mrb[0].mxu0 %v5131
        %v6484 = vpop.f32.mrb[0].mxu0
        %v6485 = vadd.f32 %v6292, %v6484
        %v6486 = vpop.f32.mrb[0].mxu0
        %v6487 = vadd.f32 %v6294, %v6486
        %v6488 = vpop.f32.mrb[0].mxu0
        %v6489 = vadd.f32 %v6296, %v6488
        %v6490 = vpop.f32.mrb[0].mxu0
        %v6491 = vadd.f32 %v6298, %v6490
        %6492 = vmatprep.mubr.bf16.mxu0 0
        %6493 = vmatmul.mubr.bf16.gmra.mrb[0].mxu0 %v5136
        %v6494 = vpop.f32.mrb[0].mxu0
        %v6495 = vadd.f32 %v6302, %v6494
        %v6496 = vpop.f32.mrb[0].mxu0
        %v6497 = vadd.f32 %v6304, %v6496
        %v6498 = vpop.f32.mrb[0].mxu0
        %v6499 = vadd.f32 %v6306, %v6498
        %v6500 = vpop.f32.mrb[0].mxu0
        %v6501 = vadd.f32 %v6308, %v6500
        %6502 = vmatprep.mubr.bf16.mxu0 0
        %6503 = vmatmul.mubr.bf16.gmra.mrb[0].mxu0 %v5141
        %v6504 = vpop.f32.mrb[0].mxu0
        %v6505 = vadd.f32 %v6312, %v6504
        %v6506 = vpop.f32.mrb[0].mxu0
        %v6507 = vadd.f32 %v6314, %v6506
        %v6508 = vpop.f32.mrb[0].mxu0
        %v6509 = vadd.f32 %v6316, %v6508
        %v6510 = vpop.f32.mrb[0].mxu0
        %v6511 = vadd.f32 %v6318, %v6510
        %6512 = vmatprep.mubr.bf16.mxu0 0
        %6513 = vmatmul.mubr.bf16.gmra.mrb[0].mxu0 %v5146
        %v6514 = vpop.f32.mrb[0].mxu0
        %v6515 = vadd.f32 %v6322, %v6514
        %v6516 = vpop.f32.mrb[0].mxu0
        %v6517 = vadd.f32 %v6324, %v6516
        %v6518 = vpop.f32.mrb[0].mxu0
        %v6519 = vadd.f32 %v6326, %v6518
        %v6520 = vpop.f32.mrb[0].mxu0
        %v6521 = vadd.f32 %v6328, %v6520
        %6522 = vmatprep.mubr.bf16.mxu0 0
        %6523 = vmatmul.mubr.bf16.gmra.mrb[0].mxu0 %v5151
        %v6524 = vpop.f32.mrb[0].mxu0
        %v6525 = vadd.f32 %v6332, %v6524
        %v6526 = vpop.f32.mrb[0].mxu0
        %v6527 = vadd.f32 %v6334, %v6526
        %v6528 = vpop.f32.mrb[0].mxu0
        %v6529 = vadd.f32 %v6336, %v6528
        %v6530 = vpop.f32.mrb[0].mxu0
        %v6531 = vadd.f32 %v6338, %v6530
        %6532 = vmatprep.mubr.bf16.mxu0 0
        %6533 = vmatmul.mubr.bf16.gmra.mrb[0].mxu0 %v5156
        %v6534 = vpop.f32.mrb[0].mxu0
        %v6535 = vadd.f32 %v6342, %v6534
        %v6536 = vpop.f32.mrb[0].mxu0
        %v6537 = vadd.f32 %v6344, %v6536
        %v6538 = vpop.f32.mrb[0].mxu0
        %v6539 = vadd.f32 %v6346, %v6538
        %v6540 = vpop.f32.mrb[0].mxu0
        %v6541 = vadd.f32 %v6348, %v6540
        %6542 = vmatprep.mubr.bf16.mxu0 0
        %6543 = vmatmul.mubr.bf16.gmra.mrb[0].mxu0 %v5161
        %v6544 = vpop.f32.mrb[0].mxu0
        %v6545 = vadd.f32 %v6352, %v6544
        %v6546 = vpop.f32.mrb[0].mxu0
        %v6547 = vadd.f32 %v6354, %v6546
        %v6548 = vpop.f32.mrb[0].mxu0
        %v6549 = vadd.f32 %v6356, %v6548
        %v6550 = vpop.f32.mrb[0].mxu0
        %v6551 = vadd.f32 %v6358, %v6550
        %6552 = vmatprep.mubr.bf16.mxu0 0
        %6553 = vmatmul.mubr.bf16.gmra.mrb[0].mxu0 %v5166
        %v6554 = vpop.f32.mrb[0].mxu0
        %v6555 = vadd.f32 %v6362, %v6554
        %v6556 = vpop.f32.mrb[0].mxu0
        %v6557 = vadd.f32 %v6364, %v6556
        %v6558 = vpop.f32.mrb[0].mxu0
        %v6559 = vadd.f32 %v6366, %v6558
        %v6560 = vpop.f32.mrb[0].mxu0
        %v6561 = vadd.f32 %v6368, %v6560
        %6562 = vdwg.mxu0
        %6563 = vmatprep.subr.bf16.mxu0 0
        %6564 = vmatpush1.bf16.msra.mxu0 %v5746
        %6565 = vmatprep.subr.bf16.mxu0 0
        %6566 = vmatpush1.bf16.msra.mxu0 %v5749
        %6567 = vmatprep.subr.bf16.mxu0 0
        %6568 = vmatpush1.bf16.msra.mxu0 %v5752
        %6569 = vmatprep.subr.bf16.mxu0 0
        %6570 = vmatpush1.bf16.msra.mxu0 %v5755
        %6571 = vmatprep.subr.bf16.mxu0 0
        %6572 = vmatpush1.bf16.msra.mxu0 %v5758
        %6573 = vmatprep.subr.bf16.mxu0 0
        %6574 = vmatpush1.bf16.msra.mxu0 %v5761
        %6575 = vmatprep.subr.bf16.mxu0 0
        %6576 = vmatpush1.bf16.msra.mxu0 %v5764
        %6577 = vmatprep.subr.bf16.mxu0 0
        %6578 = vmatpush1.bf16.msra.mxu0 %v5767
        %6579 = vmatprep.subr.bf16.mxu0 0
        %6580 = vmatpush1.bf16.msra.mxu0 %v5770
        %6581 = vmatprep.subr.bf16.mxu0 0
        %6582 = vmatpush1.bf16.msra.mxu0 %v5773
        %6583 = vmatprep.subr.bf16.mxu0 0
        %6584 = vmatpush1.bf16.msra.mxu0 %v5776
        %6585 = vmatprep.subr.bf16.mxu0 0
        %6586 = vmatpush1.bf16.msra.mxu0 %v5779
        %6587 = vmatprep.subr.bf16.mxu0 0
        %6588 = vmatpush1.bf16.msra.mxu0 %v5782
        %6589 = vmatprep.subr.bf16.mxu0 0
        %6590 = vmatpush1.bf16.msra.mxu0 %v5785
        %6591 = vmatprep.subr.bf16.mxu0 0
        %6592 = vmatpush1.bf16.msra.mxu0 %v5788
        %6593 = vmatprep.subr.bf16.mxu0 0
        %6594 = vmatpush1.bf16.msra.mxu0 %v5791
        %6595 = vmatprep.mubr.bf16.mxu0 %v5088
        %6596 = vmatmul.mubr.bf16.gmra.mrb[0].mxu0 %v5087
        %v6597 = vpop.f32.mrb[0].mxu0
        %v6598 = vadd.f32 %v5340, %v6597
        %v6599 = vpop.f32.mrb[0].mxu0
        %v6600 = vpop.f32.mrb[0].mxu0
        %v6601 = vadd.f32 %v5340, %v6600
        %v6602 = vpop.f32.mrb[0].mxu0
        %6603 = vmatprep.mubr.bf16.mxu0 %v5093
        %6604 = vmatmul.mubr.bf16.gmra.mrb[0].mxu0 %v5092
        %v6605 = vpop.f32.mrb[0].mxu0
        %v6606 = vadd.f32 %v5340, %v6605
        %v6607 = vpop.f32.mrb[0].mxu0
        %v6608 = vpop.f32.mrb[0].mxu0
        %v6609 = vadd.f32 %v5340, %v6608
        %v6610 = vpop.f32.mrb[0].mxu0
        %6611 = vmatprep.mubr.bf16.mxu0 %v5098
        %6612 = vmatmul.mubr.bf16.gmra.mrb[0].mxu0 %v5097
        %v6613 = vpop.f32.mrb[0].mxu0
        %v6614 = vadd.f32 %v5340, %v6613
        %v6615 = vpop.f32.mrb[0].mxu0
        %v6616 = vpop.f32.mrb[0].mxu0
        %v6617 = vadd.f32 %v5340, %v6616
        %v6618 = vpop.f32.mrb[0].mxu0
        %6619 = vmatprep.mubr.bf16.mxu0 %v5103
        %6620 = vmatmul.mubr.bf16.gmra.mrb[0].mxu0 %v5102
        %v6621 = vpop.f32.mrb[0].mxu0
        %v6622 = vadd.f32 %v5340, %v6621
        %v6623 = vpop.f32.mrb[0].mxu0
        %v6624 = vpop.f32.mrb[0].mxu0
        %v6625 = vadd.f32 %v5340, %v6624
        %v6626 = vpop.f32.mrb[0].mxu0
        %6627 = vmatprep.mubr.bf16.mxu0 %v5108
        %6628 = vmatmul.mubr.bf16.gmra.mrb[0].mxu0 %v5107
        %v6629 = vpop.f32.mrb[0].mxu0
        %v6630 = vadd.f32 %v5340, %v6629
        %v6631 = vpop.f32.mrb[0].mxu0
        %v6632 = vpop.f32.mrb[0].mxu0
        %v6633 = vadd.f32 %v5340, %v6632
        %v6634 = vpop.f32.mrb[0].mxu0
        %6635 = vmatprep.mubr.bf16.mxu0 %v5113
        %6636 = vmatmul.mubr.bf16.gmra.mrb[0].mxu0 %v5112
        %v6637 = vpop.f32.mrb[0].mxu0
        %v6638 = vadd.f32 %v5340, %v6637
        %v6639 = vpop.f32.mrb[0].mxu0
        %v6640 = vpop.f32.mrb[0].mxu0
        %v6641 = vadd.f32 %v5340, %v6640
        %v6642 = vpop.f32.mrb[0].mxu0
        %6643 = vmatprep.mubr.bf16.mxu0 %v5118
        %6644 = vmatmul.mubr.bf16.gmra.mrb[0].mxu0 %v5117
        %v6645 = vpop.f32.mrb[0].mxu0
        %v6646 = vadd.f32 %v5340, %v6645
        %v6647 = vpop.f32.mrb[0].mxu0
        %v6648 = vpop.f32.mrb[0].mxu0
        %v6649 = vadd.f32 %v5340, %v6648
        %v6650 = vpop.f32.mrb[0].mxu0
        %6651 = vmatprep.mubr.bf16.mxu0 %v5123
        %6652 = vmatmul.mubr.bf16.gmra.mrb[0].mxu0 %v5122
        %v6653 = vpop.f32.mrb[0].mxu0
        %v6654 = vadd.f32 %v5340, %v6653
        %v6655 = vpop.f32.mrb[0].mxu0
        %v6656 = vpop.f32.mrb[0].mxu0
        %v6657 = vadd.f32 %v5340, %v6656
        %v6658 = vpop.f32.mrb[0].mxu0
        %6659 = vmatprep.mubr.bf16.mxu0 %v5128
        %6660 = vmatmul.mubr.bf16.gmra.mrb[0].mxu0 %v5127
        %v6661 = vpop.f32.mrb[0].mxu0
        %v6662 = vadd.f32 %v5340, %v6661
        %v6663 = vpop.f32.mrb[0].mxu0
        %v6664 = vpop.f32.mrb[0].mxu0
        %v6665 = vadd.f32 %v5340, %v6664
        %v6666 = vpop.f32.mrb[0].mxu0
        %6667 = vmatprep.mubr.bf16.mxu0 %v5133
        %6668 = vmatmul.mubr.bf16.gmra.mrb[0].mxu0 %v5132
        %v6669 = vpop.f32.mrb[0].mxu0
        %v6670 = vadd.f32 %v5340, %v6669
        %v6671 = vpop.f32.mrb[0].mxu0
        %v6672 = vpop.f32.mrb[0].mxu0
        %v6673 = vadd.f32 %v5340, %v6672
        %v6674 = vpop.f32.mrb[0].mxu0
        %6675 = vmatprep.mubr.bf16.mxu0 %v5138
        %6676 = vmatmul.mubr.bf16.gmra.mrb[0].mxu0 %v5137
        %v6677 = vpop.f32.mrb[0].mxu0
        %v6678 = vadd.f32 %v5340, %v6677
        %v6679 = vpop.f32.mrb[0].mxu0
        %v6680 = vpop.f32.mrb[0].mxu0
        %v6681 = vadd.f32 %v5340, %v6680
        %v6682 = vpop.f32.mrb[0].mxu0
        %6683 = vmatprep.mubr.bf16.mxu0 %v5143
        %6684 = vmatmul.mubr.bf16.gmra.mrb[0].mxu0 %v5142
        %v6685 = vpop.f32.mrb[0].mxu0
        %v6686 = vadd.f32 %v5340, %v6685
        %v6687 = vpop.f32.mrb[0].mxu0
        %v6688 = vpop.f32.mrb[0].mxu0
        %v6689 = vadd.f32 %v5340, %v6688
        %v6690 = vpop.f32.mrb[0].mxu0
        %6691 = vmatprep.mubr.bf16.mxu0 %v5148
        %6692 = vmatmul.mubr.bf16.gmra.mrb[0].mxu0 %v5147
        %v6693 = vpop.f32.mrb[0].mxu0
        %v6694 = vadd.f32 %v5340, %v6693
        %v6695 = vpop.f32.mrb[0].mxu0
        %v6696 = vpop.f32.mrb[0].mxu0
        %v6697 = vadd.f32 %v5340, %v6696
        %v6698 = vpop.f32.mrb[0].mxu0
        %6699 = vmatprep.mubr.bf16.mxu0 %v5153
        %6700 = vmatmul.mubr.bf16.gmra.mrb[0].mxu0 %v5152
        %v6701 = vpop.f32.mrb[0].mxu0
        %v6702 = vadd.f32 %v5340, %v6701
        %v6703 = vpop.f32.mrb[0].mxu0
        %v6704 = vpop.f32.mrb[0].mxu0
        %v6705 = vadd.f32 %v5340, %v6704
        %v6706 = vpop.f32.mrb[0].mxu0
        %6707 = vmatprep.mubr.bf16.mxu0 %v5158
        %6708 = vmatmul.mubr.bf16.gmra.mrb[0].mxu0 %v5157
        %v6709 = vpop.f32.mrb[0].mxu0
        %v6710 = vadd.f32 %v5340, %v6709
        %v6711 = vpop.f32.mrb[0].mxu0
        %v6712 = vpop.f32.mrb[0].mxu0
        %v6713 = vadd.f32 %v5340, %v6712
        %v6714 = vpop.f32.mrb[0].mxu0
        %6715 = vmatprep.mubr.bf16.mxu0 %v5163
        %6716 = vmatmul.mubr.bf16.gmra.mrb[0].mxu0 %v5162
        %v6717 = vpop.f32.mrb[0].mxu0
        %v6718 = vadd.f32 %v5340, %v6717
        %v6719 = vpop.f32.mrb[0].mxu0
        %v6720 = vpop.f32.mrb[0].mxu0
        %v6721 = vadd.f32 %v5340, %v6720
        %v6722 = vpop.f32.mrb[0].mxu0
        %6723 = vdwg.mxu0
        %6724 = vmatprep.subr.bf16.mxu0 0
        %6725 = vmatpush1.bf16.msra.mxu0 %v5794
        %6726 = vmatprep.subr.bf16.mxu0 0
        %6727 = vmatpush1.bf16.msra.mxu0 %v5797
        %6728 = vmatprep.subr.bf16.mxu0 0
        %6729 = vmatpush1.bf16.msra.mxu0 %v5800
        %6730 = vmatprep.subr.bf16.mxu0 0
        %6731 = vmatpush1.bf16.msra.mxu0 %v5803
        %6732 = vmatprep.subr.bf16.mxu0 0
        %6733 = vmatpush1.bf16.msra.mxu0 %v5806
        %6734 = vmatprep.subr.bf16.mxu0 0
        %6735 = vmatpush1.bf16.msra.mxu0 %v5809
        %6736 = vmatprep.subr.bf16.mxu0 0
        %6737 = vmatpush1.bf16.msra.mxu0 %v5812
        %6738 = vmatprep.subr.bf16.mxu0 0
        %6739 = vmatpush1.bf16.msra.mxu0 %v5815
        %6740 = vmatprep.subr.bf16.mxu0 0
        %6741 = vmatpush1.bf16.msra.mxu0 %v5818
        %6742 = vmatprep.subr.bf16.mxu0 0
        %6743 = vmatpush1.bf16.msra.mxu0 %v5821
        %6744 = vmatprep.subr.bf16.mxu0 0
        %6745 = vmatpush1.bf16.msra.mxu0 %v5824
        %6746 = vmatprep.subr.bf16.mxu0 0
        %6747 = vmatpush1.bf16.msra.mxu0 %v5827
        %6748 = vmatprep.subr.bf16.mxu0 0
        %6749 = vmatpush1.bf16.msra.mxu0 %v5830
        %6750 = vmatprep.subr.bf16.mxu0 0
        %6751 = vmatpush1.bf16.msra.mxu0 %v5833
        %6752 = vmatprep.subr.bf16.mxu0 0
        %6753 = vmatpush1.bf16.msra.mxu0 %v5836
        %6754 = vmatprep.subr.bf16.mxu0 0
        %6755 = vmatpush1.bf16.msra.mxu0 %v5839
        %6756 = vmatprep.mubr.bf16.mxu0 %v5090
        %6757 = vmatmul.mubr.bf16.gmra.mrb[0].mxu0 %v5089
        %v6758 = vpop.f32.mrb[0].mxu0
        %v6759 = vadd.f32 %v6598, %v6758
        %v6760 = vpop.f32.mrb[0].mxu0
        %v6761 = vpop.f32.mrb[0].mxu0
        %v6762 = vadd.f32 %v6601, %v6761
        %v6763 = vpop.f32.mrb[0].mxu0
        %6764 = vmatprep.mubr.bf16.mxu0 %v5095
        %6765 = vmatmul.mubr.bf16.gmra.mrb[0].mxu0 %v5094
        %v6766 = vpop.f32.mrb[0].mxu0
        %v6767 = vadd.f32 %v6606, %v6766
        %v6768 = vpop.f32.mrb[0].mxu0
        %v6769 = vpop.f32.mrb[0].mxu0
        %v6770 = vadd.f32 %v6609, %v6769
        %v6771 = vpop.f32.mrb[0].mxu0
        %6772 = vmatprep.mubr.bf16.mxu0 %v5100
        %6773 = vmatmul.mubr.bf16.gmra.mrb[0].mxu0 %v5099
        %v6774 = vpop.f32.mrb[0].mxu0
        %v6775 = vadd.f32 %v6614, %v6774
        %v6776 = vpop.f32.mrb[0].mxu0
        %v6777 = vpop.f32.mrb[0].mxu0
        %v6778 = vadd.f32 %v6617, %v6777
        %v6779 = vpop.f32.mrb[0].mxu0
        %6780 = vmatprep.mubr.bf16.mxu0 %v5105
        %6781 = vmatmul.mubr.bf16.gmra.mrb[0].mxu0 %v5104
        %v6782 = vpop.f32.mrb[0].mxu0
        %v6783 = vadd.f32 %v6622, %v6782
        %v6784 = vpop.f32.mrb[0].mxu0
        %v6785 = vpop.f32.mrb[0].mxu0
        %v6786 = vadd.f32 %v6625, %v6785
        %v6787 = vpop.f32.mrb[0].mxu0
        %6788 = vmatprep.mubr.bf16.mxu0 %v5110
        %6789 = vmatmul.mubr.bf16.gmra.mrb[0].mxu0 %v5109
        %v6790 = vpop.f32.mrb[0].mxu0
        %v6791 = vadd.f32 %v6630, %v6790
        %v6792 = vpop.f32.mrb[0].mxu0
        %v6793 = vpop.f32.mrb[0].mxu0
        %v6794 = vadd.f32 %v6633, %v6793
        %v6795 = vpop.f32.mrb[0].mxu0
        %6796 = vmatprep.mubr.bf16.mxu0 %v5115
        %6797 = vmatmul.mubr.bf16.gmra.mrb[0].mxu0 %v5114
        %v6798 = vpop.f32.mrb[0].mxu0
        %v6799 = vadd.f32 %v6638, %v6798
        %v6800 = vpop.f32.mrb[0].mxu0
        %v6801 = vpop.f32.mrb[0].mxu0
        %v6802 = vadd.f32 %v6641, %v6801
        %v6803 = vpop.f32.mrb[0].mxu0
        %6804 = vmatprep.mubr.bf16.mxu0 %v5120
        %6805 = vmatmul.mubr.bf16.gmra.mrb[0].mxu0 %v5119
        %v6806 = vpop.f32.mrb[0].mxu0
        %v6807 = vadd.f32 %v6646, %v6806
        %v6808 = vpop.f32.mrb[0].mxu0
        %v6809 = vpop.f32.mrb[0].mxu0
        %v6810 = vadd.f32 %v6649, %v6809
        %v6811 = vpop.f32.mrb[0].mxu0
        %6812 = vmatprep.mubr.bf16.mxu0 %v5125
        %6813 = vmatmul.mubr.bf16.gmra.mrb[0].mxu0 %v5124
        %v6814 = vpop.f32.mrb[0].mxu0
        %v6815 = vadd.f32 %v6654, %v6814
        %v6816 = vpop.f32.mrb[0].mxu0
        %v6817 = vpop.f32.mrb[0].mxu0
        %v6818 = vadd.f32 %v6657, %v6817
        %v6819 = vpop.f32.mrb[0].mxu0
        %6820 = vmatprep.mubr.bf16.mxu0 %v5130
        %6821 = vmatmul.mubr.bf16.gmra.mrb[0].mxu0 %v5129
        %v6822 = vpop.f32.mrb[0].mxu0
        %v6823 = vadd.f32 %v6662, %v6822
        %v6824 = vpop.f32.mrb[0].mxu0
        %v6825 = vpop.f32.mrb[0].mxu0
        %v6826 = vadd.f32 %v6665, %v6825
        %v6827 = vpop.f32.mrb[0].mxu0
        %6828 = vmatprep.mubr.bf16.mxu0 %v5135
        %6829 = vmatmul.mubr.bf16.gmra.mrb[0].mxu0 %v5134
        %v6830 = vpop.f32.mrb[0].mxu0
        %v6831 = vadd.f32 %v6670, %v6830
        %v6832 = vpop.f32.mrb[0].mxu0
        %v6833 = vpop.f32.mrb[0].mxu0
        %v6834 = vadd.f32 %v6673, %v6833
        %v6835 = vpop.f32.mrb[0].mxu0
        %6836 = vmatprep.mubr.bf16.mxu0 %v5140
        %6837 = vmatmul.mubr.bf16.gmra.mrb[0].mxu0 %v5139
        %v6838 = vpop.f32.mrb[0].mxu0
        %v6839 = vadd.f32 %v6678, %v6838
        %v6840 = vpop.f32.mrb[0].mxu0
        %v6841 = vpop.f32.mrb[0].mxu0
        %v6842 = vadd.f32 %v6681, %v6841
        %v6843 = vpop.f32.mrb[0].mxu0
        %6844 = vmatprep.mubr.bf16.mxu0 %v5145
        %6845 = vmatmul.mubr.bf16.gmra.mrb[0].mxu0 %v5144
        %v6846 = vpop.f32.mrb[0].mxu0
        %v6847 = vadd.f32 %v6686, %v6846
        %v6848 = vpop.f32.mrb[0].mxu0
        %v6849 = vpop.f32.mrb[0].mxu0
        %v6850 = vadd.f32 %v6689, %v6849
        %v6851 = vpop.f32.mrb[0].mxu0
        %6852 = vmatprep.mubr.bf16.mxu0 %v5150
        %6853 = vmatmul.mubr.bf16.gmra.mrb[0].mxu0 %v5149
        %v6854 = vpop.f32.mrb[0].mxu0
        %v6855 = vadd.f32 %v6694, %v6854
        %v6856 = vpop.f32.mrb[0].mxu0
        %v6857 = vpop.f32.mrb[0].mxu0
        %v6858 = vadd.f32 %v6697, %v6857
        %v6859 = vpop.f32.mrb[0].mxu0
        %6860 = vmatprep.mubr.bf16.mxu0 %v5155
        %6861 = vmatmul.mubr.bf16.gmra.mrb[0].mxu0 %v5154
        %v6862 = vpop.f32.mrb[0].mxu0
        %v6863 = vadd.f32 %v6702, %v6862
        %v6864 = vpop.f32.mrb[0].mxu0
        %v6865 = vpop.f32.mrb[0].mxu0
        %v6866 = vadd.f32 %v6705, %v6865
        %v6867 = vpop.f32.mrb[0].mxu0
        %6868 = vmatprep.mubr.bf16.mxu0 %v5160
        %6869 = vmatmul.mubr.bf16.gmra.mrb[0].mxu0 %v5159
        %v6870 = vpop.f32.mrb[0].mxu0
        %v6871 = vadd.f32 %v6710, %v6870
        %v6872 = vpop.f32.mrb[0].mxu0
        %v6873 = vpop.f32.mrb[0].mxu0
        %v6874 = vadd.f32 %v6713, %v6873
        %v6875 = vpop.f32.mrb[0].mxu0
        %6876 = vmatprep.mubr.bf16.mxu0 %v5165
        %6877 = vmatmul.mubr.bf16.gmra.mrb[0].mxu0 %v5164
        %v6878 = vpop.f32.mrb[0].mxu0
        %v6879 = vadd.f32 %v6718, %v6878
        %v6880 = vpop.f32.mrb[0].mxu0
        %v6881 = vpop.f32.mrb[0].mxu0
        %v6882 = vadd.f32 %v6721, %v6881
        %v6883 = vpop.f32.mrb[0].mxu0
        %6884 = vdwg.mxu0
        %6885 = vmatprep.subr.bf16.mxu0 0
        %6886 = vmatpush1.bf16.msra.mxu0 %v5842
        %6887 = vmatprep.subr.bf16.mxu0 0
        %6888 = vmatpush1.bf16.msra.mxu0 %v5845
        %6889 = vmatprep.subr.bf16.mxu0 0
        %6890 = vmatpush1.bf16.msra.mxu0 %v5848
        %6891 = vmatprep.subr.bf16.mxu0 0
        %6892 = vmatpush1.bf16.msra.mxu0 %v5851
        %6893 = vmatprep.subr.bf16.mxu0 0
        %6894 = vmatpush1.bf16.msra.mxu0 %v5854
        %6895 = vmatprep.subr.bf16.mxu0 0
        %6896 = vmatpush1.bf16.msra.mxu0 %v5857
        %6897 = vmatprep.subr.bf16.mxu0 0
        %6898 = vmatpush1.bf16.msra.mxu0 %v5860
        %6899 = vmatprep.subr.bf16.mxu0 0
        %6900 = vmatpush1.bf16.msra.mxu0 %v5863
        %6901 = vmatprep.subr.bf16.mxu0 0
        %6902 = vmatpush1.bf16.msra.mxu0 0
        %6903 = vmatprep.subr.bf16.mxu0 0
        %6904 = vmatpush1.bf16.msra.mxu0 0
        %6905 = vmatprep.subr.bf16.mxu0 0
        %6906 = vmatpush1.bf16.msra.mxu0 0
        %6907 = vmatprep.subr.bf16.mxu0 0
        %6908 = vmatpush1.bf16.msra.mxu0 0
        %6909 = vmatprep.subr.bf16.mxu0 0
        %6910 = vmatpush1.bf16.msra.mxu0 0
        %6911 = vmatprep.subr.bf16.mxu0 0
        %6912 = vmatpush1.bf16.msra.mxu0 0
        %6913 = vmatprep.subr.bf16.mxu0 0
        %6914 = vmatpush1.bf16.msra.mxu0 0
        %6915 = vmatprep.subr.bf16.mxu0 0
        %6916 = vmatpush1.bf16.msra.mxu0 0
        %6917 = vmatprep.mubr.bf16.mxu0 0
        %6918 = vmatmul.mubr.bf16.gmra.mrb[0].mxu0 %v5091
        %v6919 = vpop.f32.mrb[0].mxu0
        %v6920 = vadd.f32 %v6759, %v6919
        %v6921 = vpop.f32.mrb[0].mxu0
        %v6922 = vpop.f32.mrb[0].mxu0
        %v6923 = vadd.f32 %v6762, %v6922
        %v6924 = vpop.f32.mrb[0].mxu0
        %6925 = vmatprep.mubr.bf16.mxu0 0
        %6926 = vmatmul.mubr.bf16.gmra.mrb[0].mxu0 %v5096
        %v6927 = vpop.f32.mrb[0].mxu0
        %v6928 = vadd.f32 %v6767, %v6927
        %v6929 = vpop.f32.mrb[0].mxu0
        %v6930 = vpop.f32.mrb[0].mxu0
        %v6931 = vadd.f32 %v6770, %v6930
        %v6932 = vpop.f32.mrb[0].mxu0
        %6933 = vmatprep.mubr.bf16.mxu0 0
        %6934 = vmatmul.mubr.bf16.gmra.mrb[0].mxu0 %v5101
        %v6935 = vpop.f32.mrb[0].mxu0
        %v6936 = vadd.f32 %v6775, %v6935
        %v6937 = vpop.f32.mrb[0].mxu0
        %v6938 = vpop.f32.mrb[0].mxu0
        %v6939 = vadd.f32 %v6778, %v6938
        %v6940 = vpop.f32.mrb[0].mxu0
        %6941 = vmatprep.mubr.bf16.mxu0 0
        %6942 = vmatmul.mubr.bf16.gmra.mrb[0].mxu0 %v5106
        %v6943 = vpop.f32.mrb[0].mxu0
        %v6944 = vadd.f32 %v6783, %v6943
        %v6945 = vpop.f32.mrb[0].mxu0
        %v6946 = vpop.f32.mrb[0].mxu0
        %v6947 = vadd.f32 %v6786, %v6946
        %v6948 = vpop.f32.mrb[0].mxu0
        %6949 = vmatprep.mubr.bf16.mxu0 0
        %6950 = vmatmul.mubr.bf16.gmra.mrb[0].mxu0 %v5111
        %v6951 = vpop.f32.mrb[0].mxu0
        %v6952 = vadd.f32 %v6791, %v6951
        %v6953 = vpop.f32.mrb[0].mxu0
        %v6954 = vpop.f32.mrb[0].mxu0
        %v6955 = vadd.f32 %v6794, %v6954
        %v6956 = vpop.f32.mrb[0].mxu0
        %6957 = vmatprep.mubr.bf16.mxu0 0
        %6958 = vmatmul.mubr.bf16.gmra.mrb[0].mxu0 %v5116
        %v6959 = vpop.f32.mrb[0].mxu0
        %v6960 = vadd.f32 %v6799, %v6959
        %v6961 = vpop.f32.mrb[0].mxu0
        %v6962 = vpop.f32.mrb[0].mxu0
        %v6963 = vadd.f32 %v6802, %v6962
        %v6964 = vpop.f32.mrb[0].mxu0
        %6965 = vmatprep.mubr.bf16.mxu0 0
        %6966 = vmatmul.mubr.bf16.gmra.mrb[0].mxu0 %v5121
        %v6967 = vpop.f32.mrb[0].mxu0
        %v6968 = vadd.f32 %v6807, %v6967
        %v6969 = vpop.f32.mrb[0].mxu0
        %v6970 = vpop.f32.mrb[0].mxu0
        %v6971 = vadd.f32 %v6810, %v6970
        %v6972 = vpop.f32.mrb[0].mxu0
        %6973 = vmatprep.mubr.bf16.mxu0 0
        %6974 = vmatmul.mubr.bf16.gmra.mrb[0].mxu0 %v5126
        %v6975 = vpop.f32.mrb[0].mxu0
        %v6976 = vadd.f32 %v6815, %v6975
        %v6977 = vpop.f32.mrb[0].mxu0
        %v6978 = vpop.f32.mrb[0].mxu0
        %v6979 = vadd.f32 %v6818, %v6978
        %v6980 = vpop.f32.mrb[0].mxu0
        %6981 = vmatprep.mubr.bf16.mxu0 0
        %6982 = vmatmul.mubr.bf16.gmra.mrb[0].mxu0 %v5131
        %v6983 = vpop.f32.mrb[0].mxu0
        %v6984 = vadd.f32 %v6823, %v6983
        %v6985 = vpop.f32.mrb[0].mxu0
        %v6986 = vpop.f32.mrb[0].mxu0
        %v6987 = vadd.f32 %v6826, %v6986
        %v6988 = vpop.f32.mrb[0].mxu0
        %6989 = vmatprep.mubr.bf16.mxu0 0
        %6990 = vmatmul.mubr.bf16.gmra.mrb[0].mxu0 %v5136
        %v6991 = vpop.f32.mrb[0].mxu0
        %v6992 = vadd.f32 %v6831, %v6991
        %v6993 = vpop.f32.mrb[0].mxu0
        %v6994 = vpop.f32.mrb[0].mxu0
        %v6995 = vadd.f32 %v6834, %v6994
        %v6996 = vpop.f32.mrb[0].mxu0
        %6997 = vmatprep.mubr.bf16.mxu0 0
        %6998 = vmatmul.mubr.bf16.gmra.mrb[0].mxu0 %v5141
        %v6999 = vpop.f32.mrb[0].mxu0
        %v7000 = vadd.f32 %v6839, %v6999
        %v7001 = vpop.f32.mrb[0].mxu0
        %v7002 = vpop.f32.mrb[0].mxu0
        %v7003 = vadd.f32 %v6842, %v7002
        %v7004 = vpop.f32.mrb[0].mxu0
        %7005 = vmatprep.mubr.bf16.mxu0 0
        %7006 = vmatmul.mubr.bf16.gmra.mrb[0].mxu0 %v5146
        %v7007 = vpop.f32.mrb[0].mxu0
        %v7008 = vadd.f32 %v6847, %v7007
        %v7009 = vpop.f32.mrb[0].mxu0
        %v7010 = vpop.f32.mrb[0].mxu0
        %v7011 = vadd.f32 %v6850, %v7010
        %v7012 = vpop.f32.mrb[0].mxu0
        %7013 = vmatprep.mubr.bf16.mxu0 0
        %7014 = vmatmul.mubr.bf16.gmra.mrb[0].mxu0 %v5151
        %v7015 = vpop.f32.mrb[0].mxu0
        %v7016 = vadd.f32 %v6855, %v7015
        %v7017 = vpop.f32.mrb[0].mxu0
        %v7018 = vpop.f32.mrb[0].mxu0
        %v7019 = vadd.f32 %v6858, %v7018
        %v7020 = vpop.f32.mrb[0].mxu0
        %7021 = vmatprep.mubr.bf16.mxu0 0
        %7022 = vmatmul.mubr.bf16.gmra.mrb[0].mxu0 %v5156
        %v7023 = vpop.f32.mrb[0].mxu0
        %v7024 = vadd.f32 %v6863, %v7023
        %v7025 = vpop.f32.mrb[0].mxu0
        %v7026 = vpop.f32.mrb[0].mxu0
        %v7027 = vadd.f32 %v6866, %v7026
        %v7028 = vpop.f32.mrb[0].mxu0
        %7029 = vmatprep.mubr.bf16.mxu0 0
        %7030 = vmatmul.mubr.bf16.gmra.mrb[0].mxu0 %v5161
        %v7031 = vpop.f32.mrb[0].mxu0
        %v7032 = vadd.f32 %v6871, %v7031
        %v7033 = vpop.f32.mrb[0].mxu0
        %v7034 = vpop.f32.mrb[0].mxu0
        %v7035 = vadd.f32 %v6874, %v7034
        %v7036 = vpop.f32.mrb[0].mxu0
        %7037 = vmatprep.mubr.bf16.mxu0 0
        %7038 = vmatmul.mubr.bf16.gmra.mrb[0].mxu0 %v5166
        %v7039 = vpop.f32.mrb[0].mxu0
        %v7040 = vadd.f32 %v6879, %v7039
        %v7041 = vpop.f32.mrb[0].mxu0
        %v7042 = vpop.f32.mrb[0].mxu0
        %v7043 = vadd.f32 %v6882, %v7042
        %v7044 = vpop.f32.mrb[0].mxu0
        %7045 = vdwg.mxu0
        %v7046 = vmax.f32 %v6405, 0.0
        %v7047 = vmax.f32 %v6407, 0.0
        %v7048 = vmax.f32 %v6920, 0.0
        %v7049 = vmax.f32 %v6409, 0.0
        %v7050 = vmax.f32 %v6411, 0.0
        %v7051 = vmax.f32 %v6923, 0.0
        %v7052 = vmax.f32 %v6415, 0.0
        %v7053 = vmax.f32 %v6417, 0.0
        %v7054 = vmax.f32 %v6928, 0.0
        %v7055 = vmax.f32 %v6419, 0.0
        %v7056 = vmax.f32 %v6421, 0.0
        %v7057 = vmax.f32 %v6931, 0.0
        %v7058 = vmax.f32 %v6425, 0.0
        %v7059 = vmax.f32 %v6427, 0.0
        %v7060 = vmax.f32 %v6936, 0.0
        %v7061 = vmax.f32 %v6429, 0.0
        %v7062 = vmax.f32 %v6431, 0.0
        %v7063 = vmax.f32 %v6939, 0.0
        %v7064 = vmax.f32 %v6435, 0.0
        %v7065 = vmax.f32 %v6437, 0.0
        %v7066 = vmax.f32 %v6944, 0.0
        %v7067 = vmax.f32 %v6439, 0.0
        %v7068 = vmax.f32 %v6441, 0.0
        %v7069 = vmax.f32 %v6947, 0.0
        %v7070 = vmax.f32 %v6445, 0.0
        %v7071 = vmax.f32 %v6447, 0.0
        %v7072 = vmax.f32 %v6952, 0.0
        %v7073 = vmax.f32 %v6449, 0.0
        %v7074 = vmax.f32 %v6451, 0.0
        %v7075 = vmax.f32 %v6955, 0.0
        %v7076 = vmax.f32 %v6455, 0.0
        %v7077 = vmax.f32 %v6457, 0.0
        %v7078 = vmax.f32 %v6960, 0.0
        %v7079 = vmax.f32 %v6459, 0.0
        %v7080 = vmax.f32 %v6461, 0.0
        %v7081 = vmax.f32 %v6963, 0.0
        %v7082 = vmax.f32 %v6465, 0.0
        %v7083 = vmax.f32 %v6467, 0.0
        %v7084 = vmax.f32 %v6968, 0.0
        %v7085 = vmax.f32 %v6469, 0.0
        %v7086 = vmax.f32 %v6471, 0.0
        %v7087 = vmax.f32 %v6971, 0.0
        %v7088 = vmax.f32 %v6475, 0.0
        %v7089 = vmax.f32 %v6477, 0.0
        %v7090 = vmax.f32 %v6976, 0.0
        %v7091 = vmax.f32 %v6479, 0.0
        %v7092 = vmax.f32 %v6481, 0.0
        %v7093 = vmax.f32 %v6979, 0.0
        %v7094 = vmax.f32 %v6485, 0.0
        %v7095 = vmax.f32 %v6487, 0.0
        %v7096 = vmax.f32 %v6984, 0.0
        %v7097 = vmax.f32 %v6489, 0.0
        %v7098 = vmax.f32 %v6491, 0.0
        %v7099 = vmax.f32 %v6987, 0.0
        %v7100 = vmax.f32 %v6495, 0.0
        %v7101 = vmax.f32 %v6497, 0.0
        %v7102 = vmax.f32 %v6992, 0.0
        %v7103 = vmax.f32 %v6499, 0.0
        %v7104 = vmax.f32 %v6501, 0.0
        %v7105 = vmax.f32 %v6995, 0.0
        %v7106 = vmax.f32 %v6505, 0.0
        %v7107 = vmax.f32 %v6507, 0.0
        %v7108 = vmax.f32 %v7000, 0.0
        %v7109 = vmax.f32 %v6509, 0.0
        %v7110 = vmax.f32 %v6511, 0.0
        %v7111 = vmax.f32 %v7003, 0.0
        %v7112 = vmax.f32 %v6515, 0.0
        %v7113 = vmax.f32 %v6517, 0.0
        %v7114 = vmax.f32 %v7008, 0.0
        %v7115 = vmax.f32 %v6519, 0.0
        %v7116 = vmax.f32 %v6521, 0.0
        %v7117 = vmax.f32 %v7011, 0.0
        %v7118 = vmax.f32 %v6525, 0.0
        %v7119 = vmax.f32 %v6527, 0.0
        %v7120 = vmax.f32 %v7016, 0.0
        %v7121 = vmax.f32 %v6529, 0.0
        %v7122 = vmax.f32 %v6531, 0.0
        %v7123 = vmax.f32 %v7019, 0.0
        %v7124 = vmax.f32 %v6535, 0.0
        %v7125 = vmax.f32 %v6537, 0.0
        %v7126 = vmax.f32 %v7024, 0.0
        %v7127 = vmax.f32 %v6539, 0.0
        %v7128 = vmax.f32 %v6541, 0.0
        %v7129 = vmax.f32 %v7027, 0.0
        %v7130 = vmax.f32 %v6545, 0.0
        %v7131 = vmax.f32 %v6547, 0.0
        %v7132 = vmax.f32 %v7032, 0.0
        %v7133 = vmax.f32 %v6549, 0.0
        %v7134 = vmax.f32 %v6551, 0.0
        %v7135 = vmax.f32 %v7035, 0.0
        %v7136 = vmax.f32 %v6555, 0.0
        %v7137 = vmax.f32 %v6557, 0.0
        %v7138 = vmax.f32 %v7040, 0.0
        %v7139 = vmax.f32 %v6559, 0.0
        %v7140 = vmax.f32 %v6561, 0.0
        %v7141 = vmax.f32 %v7043, 0.0
        %v7142 = vpack.c.bf16 %v7049, %v7046
        %v7143 = vpack.c.bf16 %v7050, %v7047
        %v7144 = vpack.c.bf16 %v7051, %v7048
        %v7145 = vpack.c.bf16 %v7055, %v7052
        %v7146 = vpack.c.bf16 %v7056, %v7053
        %v7147 = vpack.c.bf16 %v7057, %v7054
        %v7148 = vpack.c.bf16 %v7061, %v7058
        %v7149 = vpack.c.bf16 %v7062, %v7059
        %v7150 = vpack.c.bf16 %v7063, %v7060
        %v7151 = vpack.c.bf16 %v7067, %v7064
        %v7152 = vpack.c.bf16 %v7068, %v7065
        %v7153 = vpack.c.bf16 %v7069, %v7066
        %v7154 = vpack.c.bf16 %v7073, %v7070
        %v7155 = vpack.c.bf16 %v7074, %v7071
        %v7156 = vpack.c.bf16 %v7075, %v7072
        %v7157 = vpack.c.bf16 %v7079, %v7076
        %v7158 = vpack.c.bf16 %v7080, %v7077
        %v7159 = vpack.c.bf16 %v7081, %v7078
        %v7160 = vpack.c.bf16 %v7085, %v7082
        %v7161 = vpack.c.bf16 %v7086, %v7083
        %v7162 = vpack.c.bf16 %v7087, %v7084
        %v7163 = vpack.c.bf16 %v7091, %v7088
        %v7164 = vpack.c.bf16 %v7092, %v7089
        %v7165 = vpack.c.bf16 %v7093, %v7090
        %v7166 = vpack.c.bf16 %v7097, %v7094
        %v7167 = vpack.c.bf16 %v7098, %v7095
        %v7168 = vpack.c.bf16 %v7099, %v7096
        %v7169 = vpack.c.bf16 %v7103, %v7100
        %v7170 = vpack.c.bf16 %v7104, %v7101
        %v7171 = vpack.c.bf16 %v7105, %v7102
        %v7172 = vpack.c.bf16 %v7109, %v7106
        %v7173 = vpack.c.bf16 %v7110, %v7107
        %v7174 = vpack.c.bf16 %v7111, %v7108
        %v7175 = vpack.c.bf16 %v7115, %v7112
        %v7176 = vpack.c.bf16 %v7116, %v7113
        %v7177 = vpack.c.bf16 %v7117, %v7114
        %v7178 = vpack.c.bf16 %v7121, %v7118
        %v7179 = vpack.c.bf16 %v7122, %v7119
        %v7180 = vpack.c.bf16 %v7123, %v7120
        %v7181 = vpack.c.bf16 %v7127, %v7124
        %v7182 = vpack.c.bf16 %v7128, %v7125
        %v7183 = vpack.c.bf16 %v7129, %v7126
        %v7184 = vpack.c.bf16 %v7133, %v7130
        %v7185 = vpack.c.bf16 %v7134, %v7131
        %v7186 = vpack.c.bf16 %v7135, %v7132
        %v7187 = vpack.c.bf16 %v7139, %v7136
        %v7188 = vpack.c.bf16 %v7140, %v7137
        %v7189 = vpack.c.bf16 %v7141, %v7138
        %v7190 = vld [vmem:[%s5] sm:$0xff]
        %v7191 = vld [vmem:[%s5 + $0x8] sm:$0xff]
        %v7192 = vld [vmem:[%s5 + $0x10] sm:$0xff]
        %v7193 = vld [vmem:[%s5 + $0x18] sm:$0xff]
        %v7194 = vld [vmem:[%s5 + $0x20] sm:$0xff]
        %v7195 = vld [vmem:[%s5 + $0x28] sm:$0xff]
        %v7196 = vld [vmem:[%s5 + $0x30] sm:$0xff]
        %v7197 = vld [vmem:[%s5 + $0x38] sm:$0xff]
        %v7198 = vld [vmem:[%s5 + $0x40] sm:$0xff]
        %v7199 = vld [vmem:[%s5 + $0x48] sm:$0xff]
        %v7200 = vld [vmem:[%s5 + $0x50] sm:$0xff]
        %v7201 = vld [vmem:[%s5 + $0x58] sm:$0xff]
        %v7202 = vld [vmem:[%s5 + $0x60] sm:$0xff]
        %v7203 = vld [vmem:[%s5 + $0x68] sm:$0xff]
        %v7204 = vld [vmem:[%s5 + $0x70] sm:$0xff]
        %v7205 = vld [vmem:[%s5 + $0x78] sm:$0xff]
        %v7206 = vld [vmem:[%s5 + $0x80] sm:$0xff]
        %v7207 = vld [vmem:[%s5 + $0x88] sm:$0xff]
        %v7208 = vld [vmem:[%s5 + $0x90] sm:$0xff]
        %v7209 = vld [vmem:[%s5 + $0x98] sm:$0xff]
        %v7210 = vld [vmem:[%s5 + $0xa0] sm:$0xff]
        %v7211 = vld [vmem:[%s5 + $0xa8] sm:$0xff]
        %v7212 = vld [vmem:[%s5 + $0xb0] sm:$0xff]
        %v7213 = vld [vmem:[%s5 + $0xb8] sm:$0xff]
        %v7214 = vld [vmem:[%s5 + $0xc0] sm:$0xff]
        %v7215 = vld [vmem:[%s5 + $0xc8] sm:$0xff]
        %v7216 = vld [vmem:[%s5 + $0xd0] sm:$0xff]
        %v7217 = vld [vmem:[%s5 + $0xd8] sm:$0xff]
        %v7218 = vld [vmem:[%s5 + $0xe0] sm:$0xff]
        %v7219 = vld [vmem:[%s5 + $0xe8] sm:$0xff]
        %v7220 = vld [vmem:[%s5 + $0xf0] sm:$0xff]
        %v7221 = vld [vmem:[%s5 + $0xf8] sm:$0xff]
        %v7222 = vld [vmem:[%s5 + $0x100] sm:$0xff]
        %v7223 = vld [vmem:[%s5 + $0x108] sm:$0xff]
        %v7224 = vld [vmem:[%s5 + $0x110] sm:$0xff]
        %v7225 = vld [vmem:[%s5 + $0x118] sm:$0xff]
        %v7226 = vld [vmem:[%s5 + $0x120] sm:$0xff]
        %v7227 = vld [vmem:[%s5 + $0x128] sm:$0xff]
        %v7228 = vld [vmem:[%s5 + $0x130] sm:$0xff]
        %v7229 = vld [vmem:[%s5 + $0x138] sm:$0xff]
        %v7230 = vld [vmem:[%s5 + $0x140] sm:$0xff]
        %v7231 = vld [vmem:[%s5 + $0x148] sm:$0xff]
        %v7232 = vld [vmem:[%s5 + $0x150] sm:$0xff]
        %v7233 = vld [vmem:[%s5 + $0x158] sm:$0xff]
        %v7234 = vld [vmem:[%s5 + $0x160] sm:$0xff]
        %v7235 = vld [vmem:[%s5 + $0x168] sm:$0xff]
        %v7236 = vld [vmem:[%s5 + $0x170] sm:$0xff]
        %v7237 = vld [vmem:[%s5 + $0x178] sm:$0xff]
        %v7238 = vld [vmem:[%s6] sm:$0x3]
        %v7240 = vlaneseq
        %v7241 = vshrl.u32 %v7240, 7
        %v7242 = vsub.s32 0, %v7241
        %v7243 = vrot.slane %v7238, %v7242
        %v7244 = vlaneseq
        %v7245 = vshrl.u32 %v7244, 7
        %v7246 = vsub.s32 1, %v7245
        %v7247 = vrot.slane %v7238, %v7246
        %v7298 = vunpack.c.l.b16 %v7190
        %v7299 = vunpack.c.h.b16 %v7190
        %v7300 = vunpack.c.l.b16 %v7191
        %v7301 = vunpack.c.h.b16 %v7191
        %v7302 = vunpack.c.l.b16 %v7192
        %v7303 = vunpack.c.h.b16 %v7192
        %v7304 = vunpack.c.l.b16 %v7193
        %v7305 = vunpack.c.h.b16 %v7193
        %v7306 = vunpack.c.l.b16 %v7194
        %v7307 = vunpack.c.h.b16 %v7194
        %v7308 = vunpack.c.l.b16 %v7195
        %v7309 = vunpack.c.h.b16 %v7195
        %v7310 = vunpack.c.l.b16 %v7196
        %v7311 = vunpack.c.h.b16 %v7196
        %v7312 = vunpack.c.l.b16 %v7197
        %v7313 = vunpack.c.h.b16 %v7197
        %v7314 = vunpack.c.l.b16 %v7198
        %v7315 = vunpack.c.h.b16 %v7198
        %v7316 = vunpack.c.l.b16 %v7199
        %v7317 = vunpack.c.h.b16 %v7199
        %v7318 = vunpack.c.l.b16 %v7200
        %v7319 = vunpack.c.h.b16 %v7200
        %v7320 = vunpack.c.l.b16 %v7201
        %v7321 = vunpack.c.h.b16 %v7201
        %v7322 = vunpack.c.l.b16 %v7202
        %v7323 = vunpack.c.h.b16 %v7202
        %v7324 = vunpack.c.l.b16 %v7203
        %v7325 = vunpack.c.h.b16 %v7203
        %v7326 = vunpack.c.l.b16 %v7204
        %v7327 = vunpack.c.h.b16 %v7204
        %v7328 = vunpack.c.l.b16 %v7205
        %v7329 = vunpack.c.h.b16 %v7205
        %v7330 = vunpack.c.l.b16 %v7206
        %v7331 = vunpack.c.h.b16 %v7206
        %v7332 = vunpack.c.l.b16 %v7207
        %v7333 = vunpack.c.h.b16 %v7207
        %v7334 = vunpack.c.l.b16 %v7208
        %v7335 = vunpack.c.h.b16 %v7208
        %v7336 = vunpack.c.l.b16 %v7209
        %v7337 = vunpack.c.h.b16 %v7209
        %v7338 = vunpack.c.l.b16 %v7210
        %v7339 = vunpack.c.h.b16 %v7210
        %v7340 = vunpack.c.l.b16 %v7211
        %v7341 = vunpack.c.h.b16 %v7211
        %v7342 = vunpack.c.l.b16 %v7212
        %v7343 = vunpack.c.h.b16 %v7212
        %v7344 = vunpack.c.l.b16 %v7213
        %v7345 = vunpack.c.h.b16 %v7213
        %v7346 = vunpack.c.l.b16 %v7214
        %v7347 = vunpack.c.h.b16 %v7214
        %v7348 = vunpack.c.l.b16 %v7215
        %v7349 = vunpack.c.h.b16 %v7215
        %v7350 = vunpack.c.l.b16 %v7216
        %v7351 = vunpack.c.h.b16 %v7216
        %v7352 = vunpack.c.l.b16 %v7217
        %v7353 = vunpack.c.h.b16 %v7217
        %v7354 = vunpack.c.l.b16 %v7218
        %v7355 = vunpack.c.h.b16 %v7218
        %v7356 = vunpack.c.l.b16 %v7219
        %v7357 = vunpack.c.h.b16 %v7219
        %v7358 = vunpack.c.l.b16 %v7220
        %v7359 = vunpack.c.h.b16 %v7220
        %v7360 = vunpack.c.l.b16 %v7221
        %v7361 = vunpack.c.h.b16 %v7221
        %v7362 = vunpack.c.l.b16 %v7222
        %v7363 = vunpack.c.h.b16 %v7222
        %v7364 = vunpack.c.l.b16 %v7223
        %v7365 = vunpack.c.h.b16 %v7223
        %v7366 = vunpack.c.l.b16 %v7224
        %v7367 = vunpack.c.h.b16 %v7224
        %v7368 = vunpack.c.l.b16 %v7225
        %v7369 = vunpack.c.h.b16 %v7225
        %v7370 = vunpack.c.l.b16 %v7226
        %v7371 = vunpack.c.h.b16 %v7226
        %v7372 = vunpack.c.l.b16 %v7227
        %v7373 = vunpack.c.h.b16 %v7227
        %v7374 = vunpack.c.l.b16 %v7228
        %v7375 = vunpack.c.h.b16 %v7228
        %v7376 = vunpack.c.l.b16 %v7229
        %v7377 = vunpack.c.h.b16 %v7229
        %v7378 = vunpack.c.l.b16 %v7230
        %v7379 = vunpack.c.h.b16 %v7230
        %v7380 = vunpack.c.l.b16 %v7231
        %v7381 = vunpack.c.h.b16 %v7231
        %v7382 = vunpack.c.l.b16 %v7232
        %v7383 = vunpack.c.h.b16 %v7232
        %v7384 = vunpack.c.l.b16 %v7233
        %v7385 = vunpack.c.h.b16 %v7233
        %v7386 = vunpack.c.l.b16 %v7234
        %v7387 = vunpack.c.h.b16 %v7234
        %v7388 = vunpack.c.l.b16 %v7235
        %v7389 = vunpack.c.h.b16 %v7235
        %v7390 = vunpack.c.l.b16 %v7236
        %v7391 = vunpack.c.h.b16 %v7236
        %v7392 = vunpack.c.l.b16 %v7237
        %v7393 = vunpack.c.h.b16 %v7237
        %v7394 = vpack.c.b16 %v7300, %v7298
        %v7395 = vpack.c.b16 %v7301, %v7299
        %v7396 = vpack.c.b16 %v7304, %v7302
        %v7397 = vpack.c.b16 %v7305, %v7303
        %v7398 = vpack.c.b16 %v7308, %v7306
        %v7399 = vpack.c.b16 %v7309, %v7307
        %v7400 = vpack.c.b16 %v7312, %v7310
        %v7401 = vpack.c.b16 %v7313, %v7311
        %v7402 = vpack.c.b16 %v7316, %v7314
        %v7403 = vpack.c.b16 %v7317, %v7315
        %v7404 = vpack.c.b16 %v7320, %v7318
        %v7405 = vpack.c.b16 %v7321, %v7319
        %v7406 = vpack.c.b16 %v7324, %v7322
        %v7407 = vpack.c.b16 %v7325, %v7323
        %v7408 = vpack.c.b16 %v7328, %v7326
        %v7409 = vpack.c.b16 %v7329, %v7327
        %v7410 = vpack.c.b16 %v7332, %v7330
        %v7411 = vpack.c.b16 %v7333, %v7331
        %v7412 = vpack.c.b16 %v7336, %v7334
        %v7413 = vpack.c.b16 %v7337, %v7335
        %v7414 = vpack.c.b16 %v7340, %v7338
        %v7415 = vpack.c.b16 %v7341, %v7339
        %v7416 = vpack.c.b16 %v7344, %v7342
        %v7417 = vpack.c.b16 %v7345, %v7343
        %v7418 = vpack.c.b16 %v7348, %v7346
        %v7419 = vpack.c.b16 %v7349, %v7347
        %v7420 = vpack.c.b16 %v7352, %v7350
        %v7421 = vpack.c.b16 %v7353, %v7351
        %v7422 = vpack.c.b16 %v7356, %v7354
        %v7423 = vpack.c.b16 %v7357, %v7355
        %v7424 = vpack.c.b16 %v7360, %v7358
        %v7425 = vpack.c.b16 %v7361, %v7359
        %v7426 = vpack.c.b16 %v7364, %v7362
        %v7427 = vpack.c.b16 %v7365, %v7363
        %v7428 = vpack.c.b16 %v7368, %v7366
        %v7429 = vpack.c.b16 %v7369, %v7367
        %v7430 = vpack.c.b16 %v7372, %v7370
        %v7431 = vpack.c.b16 %v7373, %v7371
        %v7432 = vpack.c.b16 %v7376, %v7374
        %v7433 = vpack.c.b16 %v7377, %v7375
        %v7434 = vpack.c.b16 %v7380, %v7378
        %v7435 = vpack.c.b16 %v7381, %v7379
        %v7436 = vpack.c.b16 %v7384, %v7382
        %v7437 = vpack.c.b16 %v7385, %v7383
        %v7438 = vpack.c.b16 %v7388, %v7386
        %v7439 = vpack.c.b16 %v7389, %v7387
        %v7440 = vpack.c.b16 %v7392, %v7390
        %v7441 = vpack.c.b16 %v7393, %v7391
        %7490 = vmatprep.subr.bf16.mxu0 %v7395
        %7491 = vmatpush1.bf16.msra.mxu0 %v7394
        %7492 = vmatprep.subr.bf16.mxu0 %v7397
        %7493 = vmatpush1.bf16.msra.mxu0 %v7396
        %7494 = vmatprep.subr.bf16.mxu0 %v7399
        %7495 = vmatpush1.bf16.msra.mxu0 %v7398
        %7496 = vmatprep.subr.bf16.mxu0 %v7401
        %7497 = vmatpush1.bf16.msra.mxu0 %v7400
        %7498 = vmatprep.subr.bf16.mxu0 %v7403
        %7499 = vmatpush1.bf16.msra.mxu0 %v7402
        %7500 = vmatprep.subr.bf16.mxu0 %v7405
        %7501 = vmatpush1.bf16.msra.mxu0 %v7404
        %7502 = vmatprep.subr.bf16.mxu0 %v7407
        %7503 = vmatpush1.bf16.msra.mxu0 %v7406
        %7504 = vmatprep.subr.bf16.mxu0 %v7409
        %7505 = vmatpush1.bf16.msra.mxu0 %v7408
        %7506 = vmatprep.subr.bf16.mxu0 %v7411
        %7507 = vmatpush1.bf16.msra.mxu0 %v7410
        %7508 = vmatprep.subr.bf16.mxu0 %v7413
        %7509 = vmatpush1.bf16.msra.mxu0 %v7412
        %7510 = vmatprep.subr.bf16.mxu0 %v7415
        %7511 = vmatpush1.bf16.msra.mxu0 %v7414
        %7512 = vmatprep.subr.bf16.mxu0 %v7417
        %7513 = vmatpush1.bf16.msra.mxu0 %v7416
        %7514 = vmatprep.subr.bf16.mxu0 %v7419
        %7515 = vmatpush1.bf16.msra.mxu0 %v7418
        %7516 = vmatprep.subr.bf16.mxu0 %v7421
        %7517 = vmatpush1.bf16.msra.mxu0 %v7420
        %7518 = vmatprep.subr.bf16.mxu0 %v7423
        %7519 = vmatpush1.bf16.msra.mxu0 %v7422
        %7520 = vmatprep.subr.bf16.mxu0 %v7425
        %7521 = vmatpush1.bf16.msra.mxu0 %v7424
        %7522 = vmatprep.mubr.bf16.mxu0 %v7143
        %7523 = vmatmul.mubr.bf16.gmra.mrb[0].mxu0 %v7142
        %v7524 = vpop.f32.mrb[0].mxu0
        %v7525 = vadd.f32 %v7243, %v7524
        %v7526 = vpop.f32.mrb[0].mxu0
        %v7527 = vadd.f32 %v7247, %v7526
        %v7528 = vpop.f32.mrb[0].mxu0
        %v7529 = vadd.f32 %v7243, %v7528
        %v7530 = vpop.f32.mrb[0].mxu0
        %v7531 = vadd.f32 %v7247, %v7530
        %7532 = vmatprep.mubr.bf16.mxu0 %v7146
        %7533 = vmatmul.mubr.bf16.gmra.mrb[0].mxu0 %v7145
        %v7534 = vpop.f32.mrb[0].mxu0
        %v7535 = vadd.f32 %v7243, %v7534
        %v7536 = vpop.f32.mrb[0].mxu0
        %v7537 = vadd.f32 %v7247, %v7536
        %v7538 = vpop.f32.mrb[0].mxu0
        %v7539 = vadd.f32 %v7243, %v7538
        %v7540 = vpop.f32.mrb[0].mxu0
        %v7541 = vadd.f32 %v7247, %v7540
        %7542 = vmatprep.mubr.bf16.mxu0 %v7149
        %7543 = vmatmul.mubr.bf16.gmra.mrb[0].mxu0 %v7148
        %v7544 = vpop.f32.mrb[0].mxu0
        %v7545 = vadd.f32 %v7243, %v7544
        %v7546 = vpop.f32.mrb[0].mxu0
        %v7547 = vadd.f32 %v7247, %v7546
        %v7548 = vpop.f32.mrb[0].mxu0
        %v7549 = vadd.f32 %v7243, %v7548
        %v7550 = vpop.f32.mrb[0].mxu0
        %v7551 = vadd.f32 %v7247, %v7550
        %7552 = vmatprep.mubr.bf16.mxu0 %v7152
        %7553 = vmatmul.mubr.bf16.gmra.mrb[0].mxu0 %v7151
        %v7554 = vpop.f32.mrb[0].mxu0
        %v7555 = vadd.f32 %v7243, %v7554
        %v7556 = vpop.f32.mrb[0].mxu0
        %v7557 = vadd.f32 %v7247, %v7556
        %v7558 = vpop.f32.mrb[0].mxu0
        %v7559 = vadd.f32 %v7243, %v7558
        %v7560 = vpop.f32.mrb[0].mxu0
        %v7561 = vadd.f32 %v7247, %v7560
        %7562 = vmatprep.mubr.bf16.mxu0 %v7155
        %7563 = vmatmul.mubr.bf16.gmra.mrb[0].mxu0 %v7154
        %v7564 = vpop.f32.mrb[0].mxu0
        %v7565 = vadd.f32 %v7243, %v7564
        %v7566 = vpop.f32.mrb[0].mxu0
        %v7567 = vadd.f32 %v7247, %v7566
        %v7568 = vpop.f32.mrb[0].mxu0
        %v7569 = vadd.f32 %v7243, %v7568
        %v7570 = vpop.f32.mrb[0].mxu0
        %v7571 = vadd.f32 %v7247, %v7570
        %7572 = vmatprep.mubr.bf16.mxu0 %v7158
        %7573 = vmatmul.mubr.bf16.gmra.mrb[0].mxu0 %v7157
        %v7574 = vpop.f32.mrb[0].mxu0
        %v7575 = vadd.f32 %v7243, %v7574
        %v7576 = vpop.f32.mrb[0].mxu0
        %v7577 = vadd.f32 %v7247, %v7576
        %v7578 = vpop.f32.mrb[0].mxu0
        %v7579 = vadd.f32 %v7243, %v7578
        %v7580 = vpop.f32.mrb[0].mxu0
        %v7581 = vadd.f32 %v7247, %v7580
        %7582 = vmatprep.mubr.bf16.mxu0 %v7161
        %7583 = vmatmul.mubr.bf16.gmra.mrb[0].mxu0 %v7160
        %v7584 = vpop.f32.mrb[0].mxu0
        %v7585 = vadd.f32 %v7243, %v7584
        %v7586 = vpop.f32.mrb[0].mxu0
        %v7587 = vadd.f32 %v7247, %v7586
        %v7588 = vpop.f32.mrb[0].mxu0
        %v7589 = vadd.f32 %v7243, %v7588
        %v7590 = vpop.f32.mrb[0].mxu0
        %v7591 = vadd.f32 %v7247, %v7590
        %7592 = vmatprep.mubr.bf16.mxu0 %v7164
        %7593 = vmatmul.mubr.bf16.gmra.mrb[0].mxu0 %v7163
        %v7594 = vpop.f32.mrb[0].mxu0
        %v7595 = vadd.f32 %v7243, %v7594
        %v7596 = vpop.f32.mrb[0].mxu0
        %v7597 = vadd.f32 %v7247, %v7596
        %v7598 = vpop.f32.mrb[0].mxu0
        %v7599 = vadd.f32 %v7243, %v7598
        %v7600 = vpop.f32.mrb[0].mxu0
        %v7601 = vadd.f32 %v7247, %v7600
        %7602 = vmatprep.mubr.bf16.mxu0 %v7167
        %7603 = vmatmul.mubr.bf16.gmra.mrb[0].mxu0 %v7166
        %v7604 = vpop.f32.mrb[0].mxu0
        %v7605 = vadd.f32 %v7243, %v7604
        %v7606 = vpop.f32.mrb[0].mxu0
        %v7607 = vadd.f32 %v7247, %v7606
        %v7608 = vpop.f32.mrb[0].mxu0
        %v7609 = vadd.f32 %v7243, %v7608
        %v7610 = vpop.f32.mrb[0].mxu0
        %v7611 = vadd.f32 %v7247, %v7610
        %7612 = vmatprep.mubr.bf16.mxu0 %v7170
        %7613 = vmatmul.mubr.bf16.gmra.mrb[0].mxu0 %v7169
        %v7614 = vpop.f32.mrb[0].mxu0
        %v7615 = vadd.f32 %v7243, %v7614
        %v7616 = vpop.f32.mrb[0].mxu0
        %v7617 = vadd.f32 %v7247, %v7616
        %v7618 = vpop.f32.mrb[0].mxu0
        %v7619 = vadd.f32 %v7243, %v7618
        %v7620 = vpop.f32.mrb[0].mxu0
        %v7621 = vadd.f32 %v7247, %v7620
        %7622 = vmatprep.mubr.bf16.mxu0 %v7173
        %7623 = vmatmul.mubr.bf16.gmra.mrb[0].mxu0 %v7172
        %v7624 = vpop.f32.mrb[0].mxu0
        %v7625 = vadd.f32 %v7243, %v7624
        %v7626 = vpop.f32.mrb[0].mxu0
        %v7627 = vadd.f32 %v7247, %v7626
        %v7628 = vpop.f32.mrb[0].mxu0
        %v7629 = vadd.f32 %v7243, %v7628
        %v7630 = vpop.f32.mrb[0].mxu0
        %v7631 = vadd.f32 %v7247, %v7630
        %7632 = vmatprep.mubr.bf16.mxu0 %v7176
        %7633 = vmatmul.mubr.bf16.gmra.mrb[0].mxu0 %v7175
        %v7634 = vpop.f32.mrb[0].mxu0
        %v7635 = vadd.f32 %v7243, %v7634
        %v7636 = vpop.f32.mrb[0].mxu0
        %v7637 = vadd.f32 %v7247, %v7636
        %v7638 = vpop.f32.mrb[0].mxu0
        %v7639 = vadd.f32 %v7243, %v7638
        %v7640 = vpop.f32.mrb[0].mxu0
        %v7641 = vadd.f32 %v7247, %v7640
        %7642 = vmatprep.mubr.bf16.mxu0 %v7179
        %7643 = vmatmul.mubr.bf16.gmra.mrb[0].mxu0 %v7178
        %v7644 = vpop.f32.mrb[0].mxu0
        %v7645 = vadd.f32 %v7243, %v7644
        %v7646 = vpop.f32.mrb[0].mxu0
        %v7647 = vadd.f32 %v7247, %v7646
        %v7648 = vpop.f32.mrb[0].mxu0
        %v7649 = vadd.f32 %v7243, %v7648
        %v7650 = vpop.f32.mrb[0].mxu0
        %v7651 = vadd.f32 %v7247, %v7650
        %7652 = vmatprep.mubr.bf16.mxu0 %v7182
        %7653 = vmatmul.mubr.bf16.gmra.mrb[0].mxu0 %v7181
        %v7654 = vpop.f32.mrb[0].mxu0
        %v7655 = vadd.f32 %v7243, %v7654
        %v7656 = vpop.f32.mrb[0].mxu0
        %v7657 = vadd.f32 %v7247, %v7656
        %v7658 = vpop.f32.mrb[0].mxu0
        %v7659 = vadd.f32 %v7243, %v7658
        %v7660 = vpop.f32.mrb[0].mxu0
        %v7661 = vadd.f32 %v7247, %v7660
        %7662 = vmatprep.mubr.bf16.mxu0 %v7185
        %7663 = vmatmul.mubr.bf16.gmra.mrb[0].mxu0 %v7184
        %v7664 = vpop.f32.mrb[0].mxu0
        %v7665 = vadd.f32 %v7243, %v7664
        %v7666 = vpop.f32.mrb[0].mxu0
        %v7667 = vadd.f32 %v7247, %v7666
        %v7668 = vpop.f32.mrb[0].mxu0
        %v7669 = vadd.f32 %v7243, %v7668
        %v7670 = vpop.f32.mrb[0].mxu0
        %v7671 = vadd.f32 %v7247, %v7670
        %7672 = vmatprep.mubr.bf16.mxu0 %v7188
        %7673 = vmatmul.mubr.bf16.gmra.mrb[0].mxu0 %v7187
        %v7674 = vpop.f32.mrb[0].mxu0
        %v7675 = vadd.f32 %v7243, %v7674
        %v7676 = vpop.f32.mrb[0].mxu0
        %v7677 = vadd.f32 %v7247, %v7676
        %v7678 = vpop.f32.mrb[0].mxu0
        %v7679 = vadd.f32 %v7243, %v7678
        %v7680 = vpop.f32.mrb[0].mxu0
        %v7681 = vadd.f32 %v7247, %v7680
        %7682 = vdwg.mxu0
        %7683 = vmatprep.subr.bf16.mxu0 %v7427
        %7684 = vmatpush1.bf16.msra.mxu0 %v7426
        %7685 = vmatprep.subr.bf16.mxu0 %v7429
        %7686 = vmatpush1.bf16.msra.mxu0 %v7428
        %7687 = vmatprep.subr.bf16.mxu0 %v7431
        %7688 = vmatpush1.bf16.msra.mxu0 %v7430
        %7689 = vmatprep.subr.bf16.mxu0 %v7433
        %7690 = vmatpush1.bf16.msra.mxu0 %v7432
        %7691 = vmatprep.subr.bf16.mxu0 %v7435
        %7692 = vmatpush1.bf16.msra.mxu0 %v7434
        %7693 = vmatprep.subr.bf16.mxu0 %v7437
        %7694 = vmatpush1.bf16.msra.mxu0 %v7436
        %7695 = vmatprep.subr.bf16.mxu0 %v7439
        %7696 = vmatpush1.bf16.msra.mxu0 %v7438
        %7697 = vmatprep.subr.bf16.mxu0 %v7441
        %7698 = vmatpush1.bf16.msra.mxu0 %v7440
        %7699 = vmatprep.subr.bf16.mxu0 0
        %7700 = vmatpush1.bf16.msra.mxu0 0
        %7701 = vmatprep.subr.bf16.mxu0 0
        %7702 = vmatpush1.bf16.msra.mxu0 0
        %7703 = vmatprep.subr.bf16.mxu0 0
        %7704 = vmatpush1.bf16.msra.mxu0 0
        %7705 = vmatprep.subr.bf16.mxu0 0
        %7706 = vmatpush1.bf16.msra.mxu0 0
        %7707 = vmatprep.subr.bf16.mxu0 0
        %7708 = vmatpush1.bf16.msra.mxu0 0
        %7709 = vmatprep.subr.bf16.mxu0 0
        %7710 = vmatpush1.bf16.msra.mxu0 0
        %7711 = vmatprep.subr.bf16.mxu0 0
        %7712 = vmatpush1.bf16.msra.mxu0 0
        %7713 = vmatprep.subr.bf16.mxu0 0
        %7714 = vmatpush1.bf16.msra.mxu0 0
        %7715 = vmatprep.mubr.bf16.mxu0 0
        %7716 = vmatmul.mubr.bf16.gmra.mrb[0].mxu0 %v7144
        %v7717 = vpop.f32.mrb[0].mxu0
        %v7718 = vadd.f32 %v7525, %v7717
        %v7719 = vpop.f32.mrb[0].mxu0
        %v7720 = vadd.f32 %v7527, %v7719
        %v7721 = vpop.f32.mrb[0].mxu0
        %v7722 = vadd.f32 %v7529, %v7721
        %v7723 = vpop.f32.mrb[0].mxu0
        %v7724 = vadd.f32 %v7531, %v7723
        %7725 = vmatprep.mubr.bf16.mxu0 0
        %7726 = vmatmul.mubr.bf16.gmra.mrb[0].mxu0 %v7147
        %v7727 = vpop.f32.mrb[0].mxu0
        %v7728 = vadd.f32 %v7535, %v7727
        %v7729 = vpop.f32.mrb[0].mxu0
        %v7730 = vadd.f32 %v7537, %v7729
        %v7731 = vpop.f32.mrb[0].mxu0
        %v7732 = vadd.f32 %v7539, %v7731
        %v7733 = vpop.f32.mrb[0].mxu0
        %v7734 = vadd.f32 %v7541, %v7733
        %7735 = vmatprep.mubr.bf16.mxu0 0
        %7736 = vmatmul.mubr.bf16.gmra.mrb[0].mxu0 %v7150
        %v7737 = vpop.f32.mrb[0].mxu0
        %v7738 = vadd.f32 %v7545, %v7737
        %v7739 = vpop.f32.mrb[0].mxu0
        %v7740 = vadd.f32 %v7547, %v7739
        %v7741 = vpop.f32.mrb[0].mxu0
        %v7742 = vadd.f32 %v7549, %v7741
        %v7743 = vpop.f32.mrb[0].mxu0
        %v7744 = vadd.f32 %v7551, %v7743
        %7745 = vmatprep.mubr.bf16.mxu0 0
        %7746 = vmatmul.mubr.bf16.gmra.mrb[0].mxu0 %v7153
        %v7747 = vpop.f32.mrb[0].mxu0
        %v7748 = vadd.f32 %v7555, %v7747
        %v7749 = vpop.f32.mrb[0].mxu0
        %v7750 = vadd.f32 %v7557, %v7749
        %v7751 = vpop.f32.mrb[0].mxu0
        %v7752 = vadd.f32 %v7559, %v7751
        %v7753 = vpop.f32.mrb[0].mxu0
        %v7754 = vadd.f32 %v7561, %v7753
        %7755 = vmatprep.mubr.bf16.mxu0 0
        %7756 = vmatmul.mubr.bf16.gmra.mrb[0].mxu0 %v7156
        %v7757 = vpop.f32.mrb[0].mxu0
        %v7758 = vadd.f32 %v7565, %v7757
        %v7759 = vpop.f32.mrb[0].mxu0
        %v7760 = vadd.f32 %v7567, %v7759
        %v7761 = vpop.f32.mrb[0].mxu0
        %v7762 = vadd.f32 %v7569, %v7761
        %v7763 = vpop.f32.mrb[0].mxu0
        %v7764 = vadd.f32 %v7571, %v7763
        %7765 = vmatprep.mubr.bf16.mxu0 0
        %7766 = vmatmul.mubr.bf16.gmra.mrb[0].mxu0 %v7159
        %v7767 = vpop.f32.mrb[0].mxu0
        %v7768 = vadd.f32 %v7575, %v7767
        %v7769 = vpop.f32.mrb[0].mxu0
        %v7770 = vadd.f32 %v7577, %v7769
        %v7771 = vpop.f32.mrb[0].mxu0
        %v7772 = vadd.f32 %v7579, %v7771
        %v7773 = vpop.f32.mrb[0].mxu0
        %v7774 = vadd.f32 %v7581, %v7773
        %7775 = vmatprep.mubr.bf16.mxu0 0
        %7776 = vmatmul.mubr.bf16.gmra.mrb[0].mxu0 %v7162
        %v7777 = vpop.f32.mrb[0].mxu0
        %v7778 = vadd.f32 %v7585, %v7777
        %v7779 = vpop.f32.mrb[0].mxu0
        %v7780 = vadd.f32 %v7587, %v7779
        %v7781 = vpop.f32.mrb[0].mxu0
        %v7782 = vadd.f32 %v7589, %v7781
        %v7783 = vpop.f32.mrb[0].mxu0
        %v7784 = vadd.f32 %v7591, %v7783
        %7785 = vmatprep.mubr.bf16.mxu0 0
        %7786 = vmatmul.mubr.bf16.gmra.mrb[0].mxu0 %v7165
        %v7787 = vpop.f32.mrb[0].mxu0
        %v7788 = vadd.f32 %v7595, %v7787
        %v7789 = vpop.f32.mrb[0].mxu0
        %v7790 = vadd.f32 %v7597, %v7789
        %v7791 = vpop.f32.mrb[0].mxu0
        %v7792 = vadd.f32 %v7599, %v7791
        %v7793 = vpop.f32.mrb[0].mxu0
        %v7794 = vadd.f32 %v7601, %v7793
        %7795 = vmatprep.mubr.bf16.mxu0 0
        %7796 = vmatmul.mubr.bf16.gmra.mrb[0].mxu0 %v7168
        %v7797 = vpop.f32.mrb[0].mxu0
        %v7798 = vadd.f32 %v7605, %v7797
        %v7799 = vpop.f32.mrb[0].mxu0
        %v7800 = vadd.f32 %v7607, %v7799
        %v7801 = vpop.f32.mrb[0].mxu0
        %v7802 = vadd.f32 %v7609, %v7801
        %v7803 = vpop.f32.mrb[0].mxu0
        %v7804 = vadd.f32 %v7611, %v7803
        %7805 = vmatprep.mubr.bf16.mxu0 0
        %7806 = vmatmul.mubr.bf16.gmra.mrb[0].mxu0 %v7171
        %v7807 = vpop.f32.mrb[0].mxu0
        %v7808 = vadd.f32 %v7615, %v7807
        %v7809 = vpop.f32.mrb[0].mxu0
        %v7810 = vadd.f32 %v7617, %v7809
        %v7811 = vpop.f32.mrb[0].mxu0
        %v7812 = vadd.f32 %v7619, %v7811
        %v7813 = vpop.f32.mrb[0].mxu0
        %v7814 = vadd.f32 %v7621, %v7813
        %7815 = vmatprep.mubr.bf16.mxu0 0
        %7816 = vmatmul.mubr.bf16.gmra.mrb[0].mxu0 %v7174
        %v7817 = vpop.f32.mrb[0].mxu0
        %v7818 = vadd.f32 %v7625, %v7817
        %v7819 = vpop.f32.mrb[0].mxu0
        %v7820 = vadd.f32 %v7627, %v7819
        %v7821 = vpop.f32.mrb[0].mxu0
        %v7822 = vadd.f32 %v7629, %v7821
        %v7823 = vpop.f32.mrb[0].mxu0
        %v7824 = vadd.f32 %v7631, %v7823
        %7825 = vmatprep.mubr.bf16.mxu0 0
        %7826 = vmatmul.mubr.bf16.gmra.mrb[0].mxu0 %v7177
        %v7827 = vpop.f32.mrb[0].mxu0
        %v7828 = vadd.f32 %v7635, %v7827
        %v7829 = vpop.f32.mrb[0].mxu0
        %v7830 = vadd.f32 %v7637, %v7829
        %v7831 = vpop.f32.mrb[0].mxu0
        %v7832 = vadd.f32 %v7639, %v7831
        %v7833 = vpop.f32.mrb[0].mxu0
        %v7834 = vadd.f32 %v7641, %v7833
        %7835 = vmatprep.mubr.bf16.mxu0 0
        %7836 = vmatmul.mubr.bf16.gmra.mrb[0].mxu0 %v7180
        %v7837 = vpop.f32.mrb[0].mxu0
        %v7838 = vadd.f32 %v7645, %v7837
        %v7839 = vpop.f32.mrb[0].mxu0
        %v7840 = vadd.f32 %v7647, %v7839
        %v7841 = vpop.f32.mrb[0].mxu0
        %v7842 = vadd.f32 %v7649, %v7841
        %v7843 = vpop.f32.mrb[0].mxu0
        %v7844 = vadd.f32 %v7651, %v7843
        %7845 = vmatprep.mubr.bf16.mxu0 0
        %7846 = vmatmul.mubr.bf16.gmra.mrb[0].mxu0 %v7183
        %v7847 = vpop.f32.mrb[0].mxu0
        %v7848 = vadd.f32 %v7655, %v7847
        %v7849 = vpop.f32.mrb[0].mxu0
        %v7850 = vadd.f32 %v7657, %v7849
        %v7851 = vpop.f32.mrb[0].mxu0
        %v7852 = vadd.f32 %v7659, %v7851
        %v7853 = vpop.f32.mrb[0].mxu0
        %v7854 = vadd.f32 %v7661, %v7853
        %7855 = vmatprep.mubr.bf16.mxu0 0
        %7856 = vmatmul.mubr.bf16.gmra.mrb[0].mxu0 %v7186
        %v7857 = vpop.f32.mrb[0].mxu0
        %v7858 = vadd.f32 %v7665, %v7857
        %v7859 = vpop.f32.mrb[0].mxu0
        %v7860 = vadd.f32 %v7667, %v7859
        %v7861 = vpop.f32.mrb[0].mxu0
        %v7862 = vadd.f32 %v7669, %v7861
        %v7863 = vpop.f32.mrb[0].mxu0
        %v7864 = vadd.f32 %v7671, %v7863
        %7865 = vmatprep.mubr.bf16.mxu0 0
        %7866 = vmatmul.mubr.bf16.gmra.mrb[0].mxu0 %v7189
        %v7867 = vpop.f32.mrb[0].mxu0
        %v7868 = vadd.f32 %v7675, %v7867
        %v7869 = vpop.f32.mrb[0].mxu0
        %v7870 = vadd.f32 %v7677, %v7869
        %v7871 = vpop.f32.mrb[0].mxu0
        %v7872 = vadd.f32 %v7679, %v7871
        %v7873 = vpop.f32.mrb[0].mxu0
        %v7874 = vadd.f32 %v7681, %v7873
        %7875 = vdwg.mxu0
        %v7876 = vmax.f32 %v7718, 0.0
        %v7877 = vmax.f32 %v7720, 0.0
        %v7878 = vmax.f32 %v7722, 0.0
        %v7879 = vmax.f32 %v7724, 0.0
        %v7880 = vmax.f32 %v7728, 0.0
        %v7881 = vmax.f32 %v7730, 0.0
        %v7882 = vmax.f32 %v7732, 0.0
        %v7883 = vmax.f32 %v7734, 0.0
        %v7884 = vmax.f32 %v7738, 0.0
        %v7885 = vmax.f32 %v7740, 0.0
        %v7886 = vmax.f32 %v7742, 0.0
        %v7887 = vmax.f32 %v7744, 0.0
        %v7888 = vmax.f32 %v7748, 0.0
        %v7889 = vmax.f32 %v7750, 0.0
        %v7890 = vmax.f32 %v7752, 0.0
        %v7891 = vmax.f32 %v7754, 0.0
        %v7892 = vmax.f32 %v7758, 0.0
        %v7893 = vmax.f32 %v7760, 0.0
        %v7894 = vmax.f32 %v7762, 0.0
        %v7895 = vmax.f32 %v7764, 0.0
        %v7896 = vmax.f32 %v7768, 0.0
        %v7897 = vmax.f32 %v7770, 0.0
        %v7898 = vmax.f32 %v7772, 0.0
        %v7899 = vmax.f32 %v7774, 0.0
        %v7900 = vmax.f32 %v7778, 0.0
        %v7901 = vmax.f32 %v7780, 0.0
        %v7902 = vmax.f32 %v7782, 0.0
        %v7903 = vmax.f32 %v7784, 0.0
        %v7904 = vmax.f32 %v7788, 0.0
        %v7905 = vmax.f32 %v7790, 0.0
        %v7906 = vmax.f32 %v7792, 0.0
        %v7907 = vmax.f32 %v7794, 0.0
        %v7908 = vmax.f32 %v7798, 0.0
        %v7909 = vmax.f32 %v7800, 0.0
        %v7910 = vmax.f32 %v7802, 0.0
        %v7911 = vmax.f32 %v7804, 0.0
        %v7912 = vmax.f32 %v7808, 0.0
        %v7913 = vmax.f32 %v7810, 0.0
        %v7914 = vmax.f32 %v7812, 0.0
        %v7915 = vmax.f32 %v7814, 0.0
        %v7916 = vmax.f32 %v7818, 0.0
        %v7917 = vmax.f32 %v7820, 0.0
        %v7918 = vmax.f32 %v7822, 0.0
        %v7919 = vmax.f32 %v7824, 0.0
        %v7920 = vmax.f32 %v7828, 0.0
        %v7921 = vmax.f32 %v7830, 0.0
        %v7922 = vmax.f32 %v7832, 0.0
        %v7923 = vmax.f32 %v7834, 0.0
        %v7924 = vmax.f32 %v7838, 0.0
        %v7925 = vmax.f32 %v7840, 0.0
        %v7926 = vmax.f32 %v7842, 0.0
        %v7927 = vmax.f32 %v7844, 0.0
        %v7928 = vmax.f32 %v7848, 0.0
        %v7929 = vmax.f32 %v7850, 0.0
        %v7930 = vmax.f32 %v7852, 0.0
        %v7931 = vmax.f32 %v7854, 0.0
        %v7932 = vmax.f32 %v7858, 0.0
        %v7933 = vmax.f32 %v7860, 0.0
        %v7934 = vmax.f32 %v7862, 0.0
        %v7935 = vmax.f32 %v7864, 0.0
        %v7936 = vmax.f32 %v7868, 0.0
        %v7937 = vmax.f32 %v7870, 0.0
        %v7938 = vmax.f32 %v7872, 0.0
        %v7939 = vmax.f32 %v7874, 0.0
        %v7940 = vpack.c.bf16 %v7878, %v7876
        %v7941 = vpack.c.bf16 %v7879, %v7877
        %v7942 = vpack.c.bf16 %v7882, %v7880
        %v7943 = vpack.c.bf16 %v7883, %v7881
        %v7944 = vpack.c.bf16 %v7886, %v7884
        %v7945 = vpack.c.bf16 %v7887, %v7885
        %v7946 = vpack.c.bf16 %v7890, %v7888
        %v7947 = vpack.c.bf16 %v7891, %v7889
        %v7948 = vpack.c.bf16 %v7894, %v7892
        %v7949 = vpack.c.bf16 %v7895, %v7893
        %v7950 = vpack.c.bf16 %v7898, %v7896
        %v7951 = vpack.c.bf16 %v7899, %v7897
        %v7952 = vpack.c.bf16 %v7902, %v7900
        %v7953 = vpack.c.bf16 %v7903, %v7901
        %v7954 = vpack.c.bf16 %v7906, %v7904
        %v7955 = vpack.c.bf16 %v7907, %v7905
        %v7956 = vpack.c.bf16 %v7910, %v7908
        %v7957 = vpack.c.bf16 %v7911, %v7909
        %v7958 = vpack.c.bf16 %v7914, %v7912
        %v7959 = vpack.c.bf16 %v7915, %v7913
        %v7960 = vpack.c.bf16 %v7918, %v7916
        %v7961 = vpack.c.bf16 %v7919, %v7917
        %v7962 = vpack.c.bf16 %v7922, %v7920
        %v7963 = vpack.c.bf16 %v7923, %v7921
        %v7964 = vpack.c.bf16 %v7926, %v7924
        %v7965 = vpack.c.bf16 %v7927, %v7925
        %v7966 = vpack.c.bf16 %v7930, %v7928
        %v7967 = vpack.c.bf16 %v7931, %v7929
        %v7968 = vpack.c.bf16 %v7934, %v7932
        %v7969 = vpack.c.bf16 %v7935, %v7933
        %v7970 = vpack.c.bf16 %v7938, %v7936
        %v7971 = vpack.c.bf16 %v7939, %v7937
        %v7972 = vld [vmem:[#allocation2] sm:$0xf]
        %v7973 = vld [vmem:[#allocation2 + $0x4] sm:$0xf]
        %v7974 = vld [vmem:[#allocation2 + $0x8] sm:$0xf]
        %v7975 = vld [vmem:[#allocation2 + $0xc] sm:$0xf]
        %v7976 = vld [vmem:[#allocation2 + $0x10] sm:$0xf]
        %v7977 = vld [vmem:[#allocation2 + $0x14] sm:$0xf]
        %v7978 = vld [vmem:[#allocation2 + $0x18] sm:$0xf]
        %v7979 = vld [vmem:[#allocation2 + $0x1c] sm:$0xf]
        %v7980 = vld [vmem:[#allocation2 + $0x20] sm:$0xf]
        %v7981 = vld [vmem:[#allocation2 + $0x24] sm:$0xf]
        %v7982 = vld [vmem:[#allocation2 + $0x28] sm:$0xf]
        %v7983 = vld [vmem:[#allocation2 + $0x2c] sm:$0xf]
        %v7984 = vld [vmem:[#allocation2 + $0x30] sm:$0xf]
        %v7985 = vld [vmem:[#allocation2 + $0x34] sm:$0xf]
        %v7986 = vld [vmem:[#allocation2 + $0x38] sm:$0xf]
        %v7987 = vld [vmem:[#allocation2 + $0x3c] sm:$0xf]
        %v7988 = vld [vmem:[#allocation2 + $0x40] sm:$0xf]
        %v7989 = vld [vmem:[#allocation2 + $0x44] sm:$0xf]
        %v7990 = vld [vmem:[#allocation2 + $0x48] sm:$0xf]
        %v7991 = vld [vmem:[#allocation2 + $0x4c] sm:$0xf]
        %v7992 = vld [vmem:[#allocation2 + $0x50] sm:$0xf]
        %v7993 = vld [vmem:[#allocation2 + $0x54] sm:$0xf]
        %v7994 = vld [vmem:[#allocation2 + $0x58] sm:$0xf]
        %v7995 = vld [vmem:[#allocation2 + $0x5c] sm:$0xf]
        %v7996 = vld [vmem:[#allocation2 + $0x60] sm:$0xf]
        %v7997 = vld [vmem:[#allocation2 + $0x64] sm:$0xf]
        %v7998 = vld [vmem:[#allocation2 + $0x68] sm:$0xf]
        %v7999 = vld [vmem:[#allocation2 + $0x6c] sm:$0xf]
        %v8000 = vld [vmem:[#allocation2 + $0x70] sm:$0xf]
        %v8001 = vld [vmem:[#allocation2 + $0x74] sm:$0xf]
        %v8002 = vld [vmem:[#allocation2 + $0x78] sm:$0xf]
        %v8003 = vld [vmem:[#allocation2 + $0x7c] sm:$0xf]
        %v8004 = vld [vmem:[%s8] sm:$0x1]
        %v8006 = vlaneseq
        %v8007 = vshrl.u32 %v8006, 7
        %v8008 = vsub.s32 0, %v8007
        %v8009 = vrot.slane %v8004, %v8008
        %v8043 = vunpack.c.l.b16 %v7972
        %v8044 = vunpack.c.l.b16 %v7973
        %v8045 = vunpack.c.l.b16 %v7974
        %v8046 = vunpack.c.l.b16 %v7975
        %v8047 = vunpack.c.l.b16 %v7976
        %v8048 = vunpack.c.l.b16 %v7977
        %v8049 = vunpack.c.l.b16 %v7978
        %v8050 = vunpack.c.l.b16 %v7979
        %v8051 = vunpack.c.l.b16 %v7980
        %v8052 = vunpack.c.l.b16 %v7981
        %v8053 = vunpack.c.l.b16 %v7982
        %v8054 = vunpack.c.l.b16 %v7983
        %v8055 = vunpack.c.l.b16 %v7984
        %v8056 = vunpack.c.l.b16 %v7985
        %v8057 = vunpack.c.l.b16 %v7986
        %v8058 = vunpack.c.l.b16 %v7987
        %v8059 = vunpack.c.l.b16 %v7988
        %v8060 = vunpack.c.l.b16 %v7989
        %v8061 = vunpack.c.l.b16 %v7990
        %v8062 = vunpack.c.l.b16 %v7991
        %v8063 = vunpack.c.l.b16 %v7992
        %v8064 = vunpack.c.l.b16 %v7993
        %v8065 = vunpack.c.l.b16 %v7994
        %v8066 = vunpack.c.l.b16 %v7995
        %v8067 = vunpack.c.l.b16 %v7996
        %v8068 = vunpack.c.l.b16 %v7997
        %v8069 = vunpack.c.l.b16 %v7998
        %v8070 = vunpack.c.l.b16 %v7999
        %v8071 = vunpack.c.l.b16 %v8000
        %v8072 = vunpack.c.l.b16 %v8001
        %v8073 = vunpack.c.l.b16 %v8002
        %v8074 = vunpack.c.l.b16 %v8003
        %v8075 = vpack.c.b16 %v8044, %v8043
        %v8076 = vpack.c.b16 %v8046, %v8045
        %v8077 = vpack.c.b16 %v8048, %v8047
        %v8078 = vpack.c.b16 %v8050, %v8049
        %v8079 = vpack.c.b16 %v8052, %v8051
        %v8080 = vpack.c.b16 %v8054, %v8053
        %v8081 = vpack.c.b16 %v8056, %v8055
        %v8082 = vpack.c.b16 %v8058, %v8057
        %v8083 = vpack.c.b16 %v8060, %v8059
        %v8084 = vpack.c.b16 %v8062, %v8061
        %v8085 = vpack.c.b16 %v8064, %v8063
        %v8086 = vpack.c.b16 %v8066, %v8065
        %v8087 = vpack.c.b16 %v8068, %v8067
        %v8088 = vpack.c.b16 %v8070, %v8069
        %v8089 = vpack.c.b16 %v8072, %v8071
        %v8090 = vpack.c.b16 %v8074, %v8073
        %8107 = vmatprep.subr.bf16.mxu0 0
        %8108 = vmatpush1.bf16.msra.mxu0 %v8075
        %8109 = vmatprep.subr.bf16.mxu0 0
        %8110 = vmatpush1.bf16.msra.mxu0 %v8076
        %8111 = vmatprep.subr.bf16.mxu0 0
        %8112 = vmatpush1.bf16.msra.mxu0 %v8077
        %8113 = vmatprep.subr.bf16.mxu0 0
        %8114 = vmatpush1.bf16.msra.mxu0 %v8078
        %8115 = vmatprep.subr.bf16.mxu0 0
        %8116 = vmatpush1.bf16.msra.mxu0 %v8079
        %8117 = vmatprep.subr.bf16.mxu0 0
        %8118 = vmatpush1.bf16.msra.mxu0 %v8080
        %8119 = vmatprep.subr.bf16.mxu0 0
        %8120 = vmatpush1.bf16.msra.mxu0 %v8081
        %8121 = vmatprep.subr.bf16.mxu0 0
        %8122 = vmatpush1.bf16.msra.mxu0 %v8082
        %8123 = vmatprep.subr.bf16.mxu0 0
        %8124 = vmatpush1.bf16.msra.mxu0 %v8083
        %8125 = vmatprep.subr.bf16.mxu0 0
        %8126 = vmatpush1.bf16.msra.mxu0 %v8084
        %8127 = vmatprep.subr.bf16.mxu0 0
        %8128 = vmatpush1.bf16.msra.mxu0 %v8085
        %8129 = vmatprep.subr.bf16.mxu0 0
        %8130 = vmatpush1.bf16.msra.mxu0 %v8086
        %8131 = vmatprep.subr.bf16.mxu0 0
        %8132 = vmatpush1.bf16.msra.mxu0 %v8087
        %8133 = vmatprep.subr.bf16.mxu0 0
        %8134 = vmatpush1.bf16.msra.mxu0 %v8088
        %8135 = vmatprep.subr.bf16.mxu0 0
        %8136 = vmatpush1.bf16.msra.mxu0 %v8089
        %8137 = vmatprep.subr.bf16.mxu0 0
        %8138 = vmatpush1.bf16.msra.mxu0 %v8090
        %8139 = vmatprep.mubr.bf16.mxu0 %v7941
        %8140 = vmatmul.mubr.bf16.gmra.mrb[0].mxu0 %v7940
        %v8141 = vpop.f32.mrb[0].mxu0
        %v8142 = vadd.f32 %v8009, %v8141
        %v8143 = vpop.f32.mrb[0].mxu0
        %v8144 = vpop.f32.mrb[0].mxu0
        %v8145 = vadd.f32 %v8009, %v8144
        %v8146 = vpop.f32.mrb[0].mxu0
        %8147 = vmatprep.mubr.bf16.mxu0 %v7943
        %8148 = vmatmul.mubr.bf16.gmra.mrb[0].mxu0 %v7942
        %v8149 = vpop.f32.mrb[0].mxu0
        %v8150 = vadd.f32 %v8009, %v8149
        %v8151 = vpop.f32.mrb[0].mxu0
        %v8152 = vpop.f32.mrb[0].mxu0
        %v8153 = vadd.f32 %v8009, %v8152
        %v8154 = vpop.f32.mrb[0].mxu0
        %8155 = vmatprep.mubr.bf16.mxu0 %v7945
        %8156 = vmatmul.mubr.bf16.gmra.mrb[0].mxu0 %v7944
        %v8157 = vpop.f32.mrb[0].mxu0
        %v8158 = vadd.f32 %v8009, %v8157
        %v8159 = vpop.f32.mrb[0].mxu0
        %v8160 = vpop.f32.mrb[0].mxu0
        %v8161 = vadd.f32 %v8009, %v8160
        %v8162 = vpop.f32.mrb[0].mxu0
        %8163 = vmatprep.mubr.bf16.mxu0 %v7947
        %8164 = vmatmul.mubr.bf16.gmra.mrb[0].mxu0 %v7946
        %v8165 = vpop.f32.mrb[0].mxu0
        %v8166 = vadd.f32 %v8009, %v8165
        %v8167 = vpop.f32.mrb[0].mxu0
        %v8168 = vpop.f32.mrb[0].mxu0
        %v8169 = vadd.f32 %v8009, %v8168
        %v8170 = vpop.f32.mrb[0].mxu0
        %8171 = vmatprep.mubr.bf16.mxu0 %v7949
        %8172 = vmatmul.mubr.bf16.gmra.mrb[0].mxu0 %v7948
        %v8173 = vpop.f32.mrb[0].mxu0
        %v8174 = vadd.f32 %v8009, %v8173
        %v8175 = vpop.f32.mrb[0].mxu0
        %v8176 = vpop.f32.mrb[0].mxu0
        %v8177 = vadd.f32 %v8009, %v8176
        %v8178 = vpop.f32.mrb[0].mxu0
        %8179 = vmatprep.mubr.bf16.mxu0 %v7951
        %8180 = vmatmul.mubr.bf16.gmra.mrb[0].mxu0 %v7950
        %v8181 = vpop.f32.mrb[0].mxu0
        %v8182 = vadd.f32 %v8009, %v8181
        %v8183 = vpop.f32.mrb[0].mxu0
        %v8184 = vpop.f32.mrb[0].mxu0
        %v8185 = vadd.f32 %v8009, %v8184
        %v8186 = vpop.f32.mrb[0].mxu0
        %8187 = vmatprep.mubr.bf16.mxu0 %v7953
        %8188 = vmatmul.mubr.bf16.gmra.mrb[0].mxu0 %v7952
        %v8189 = vpop.f32.mrb[0].mxu0
        %v8190 = vadd.f32 %v8009, %v8189
        %v8191 = vpop.f32.mrb[0].mxu0
        %v8192 = vpop.f32.mrb[0].mxu0
        %v8193 = vadd.f32 %v8009, %v8192
        %v8194 = vpop.f32.mrb[0].mxu0
        %8195 = vmatprep.mubr.bf16.mxu0 %v7955
        %8196 = vmatmul.mubr.bf16.gmra.mrb[0].mxu0 %v7954
        %v8197 = vpop.f32.mrb[0].mxu0
        %v8198 = vadd.f32 %v8009, %v8197
        %v8199 = vpop.f32.mrb[0].mxu0
        %v8200 = vpop.f32.mrb[0].mxu0
        %v8201 = vadd.f32 %v8009, %v8200
        %v8202 = vpop.f32.mrb[0].mxu0
        %8203 = vmatprep.mubr.bf16.mxu0 %v7957
        %8204 = vmatmul.mubr.bf16.gmra.mrb[0].mxu0 %v7956
        %v8205 = vpop.f32.mrb[0].mxu0
        %v8206 = vadd.f32 %v8009, %v8205
        %v8207 = vpop.f32.mrb[0].mxu0
        %v8208 = vpop.f32.mrb[0].mxu0
        %v8209 = vadd.f32 %v8009, %v8208
        %v8210 = vpop.f32.mrb[0].mxu0
        %8211 = vmatprep.mubr.bf16.mxu0 %v7959
        %8212 = vmatmul.mubr.bf16.gmra.mrb[0].mxu0 %v7958
        %v8213 = vpop.f32.mrb[0].mxu0
        %v8214 = vadd.f32 %v8009, %v8213
        %v8215 = vpop.f32.mrb[0].mxu0
        %v8216 = vpop.f32.mrb[0].mxu0
        %v8217 = vadd.f32 %v8009, %v8216
        %v8218 = vpop.f32.mrb[0].mxu0
        %8219 = vmatprep.mubr.bf16.mxu0 %v7961
        %8220 = vmatmul.mubr.bf16.gmra.mrb[0].mxu0 %v7960
        %v8221 = vpop.f32.mrb[0].mxu0
        %v8222 = vadd.f32 %v8009, %v8221
        %v8223 = vpop.f32.mrb[0].mxu0
        %v8224 = vpop.f32.mrb[0].mxu0
        %v8225 = vadd.f32 %v8009, %v8224
        %v8226 = vpop.f32.mrb[0].mxu0
        %8227 = vmatprep.mubr.bf16.mxu0 %v7963
        %8228 = vmatmul.mubr.bf16.gmra.mrb[0].mxu0 %v7962
        %v8229 = vpop.f32.mrb[0].mxu0
        %v8230 = vadd.f32 %v8009, %v8229
        %v8231 = vpop.f32.mrb[0].mxu0
        %v8232 = vpop.f32.mrb[0].mxu0
        %v8233 = vadd.f32 %v8009, %v8232
        %v8234 = vpop.f32.mrb[0].mxu0
        %8235 = vmatprep.mubr.bf16.mxu0 %v7965
        %8236 = vmatmul.mubr.bf16.gmra.mrb[0].mxu0 %v7964
        %v8237 = vpop.f32.mrb[0].mxu0
        %v8238 = vadd.f32 %v8009, %v8237
        %v8239 = vpop.f32.mrb[0].mxu0
        %v8240 = vpop.f32.mrb[0].mxu0
        %v8241 = vadd.f32 %v8009, %v8240
        %v8242 = vpop.f32.mrb[0].mxu0
        %8243 = vmatprep.mubr.bf16.mxu0 %v7967
        %8244 = vmatmul.mubr.bf16.gmra.mrb[0].mxu0 %v7966
        %v8245 = vpop.f32.mrb[0].mxu0
        %v8246 = vadd.f32 %v8009, %v8245
        %v8247 = vpop.f32.mrb[0].mxu0
        %v8248 = vpop.f32.mrb[0].mxu0
        %v8249 = vadd.f32 %v8009, %v8248
        %v8250 = vpop.f32.mrb[0].mxu0
        %8251 = vmatprep.mubr.bf16.mxu0 %v7969
        %8252 = vmatmul.mubr.bf16.gmra.mrb[0].mxu0 %v7968
        %v8253 = vpop.f32.mrb[0].mxu0
        %v8254 = vadd.f32 %v8009, %v8253
        %v8255 = vpop.f32.mrb[0].mxu0
        %v8256 = vpop.f32.mrb[0].mxu0
        %v8257 = vadd.f32 %v8009, %v8256
        %v8258 = vpop.f32.mrb[0].mxu0
        %8259 = vmatprep.mubr.bf16.mxu0 %v7971
        %8260 = vmatmul.mubr.bf16.gmra.mrb[0].mxu0 %v7970
        %v8261 = vpop.f32.mrb[0].mxu0
        %v8262 = vadd.f32 %v8009, %v8261
        %v8263 = vpop.f32.mrb[0].mxu0
        %v8264 = vpop.f32.mrb[0].mxu0
        %v8265 = vadd.f32 %v8009, %v8264
        %v8266 = vpop.f32.mrb[0].mxu0
        %8267 = vdwg.mxu0
        %v8268 = vmax.f32 %v8142, 0.0
        %v8269 = vmax.f32 %v8145, 0.0
        %v8270 = vmax.f32 %v8150, 0.0
        %v8271 = vmax.f32 %v8153, 0.0
        %v8272 = vmax.f32 %v8158, 0.0
        %v8273 = vmax.f32 %v8161, 0.0
        %v8274 = vmax.f32 %v8166, 0.0
        %v8275 = vmax.f32 %v8169, 0.0
        %v8276 = vmax.f32 %v8174, 0.0
        %v8277 = vmax.f32 %v8177, 0.0
        %v8278 = vmax.f32 %v8182, 0.0
        %v8279 = vmax.f32 %v8185, 0.0
        %v8280 = vmax.f32 %v8190, 0.0
        %v8281 = vmax.f32 %v8193, 0.0
        %v8282 = vmax.f32 %v8198, 0.0
        %v8283 = vmax.f32 %v8201, 0.0
        %v8284 = vmax.f32 %v8206, 0.0
        %v8285 = vmax.f32 %v8209, 0.0
        %v8286 = vmax.f32 %v8214, 0.0
        %v8287 = vmax.f32 %v8217, 0.0
        %v8288 = vmax.f32 %v8222, 0.0
        %v8289 = vmax.f32 %v8225, 0.0
        %v8290 = vmax.f32 %v8230, 0.0
        %v8291 = vmax.f32 %v8233, 0.0
        %v8292 = vmax.f32 %v8238, 0.0
        %v8293 = vmax.f32 %v8241, 0.0
        %v8294 = vmax.f32 %v8246, 0.0
        %v8295 = vmax.f32 %v8249, 0.0
        %v8296 = vmax.f32 %v8254, 0.0
        %v8297 = vmax.f32 %v8257, 0.0
        %v8298 = vmax.f32 %v8262, 0.0
        %v8299 = vmax.f32 %v8265, 0.0
        %v8300 = vpack.c.bf16 %v8269, %v8268
        %v8301 = vpack.c.bf16 %v8271, %v8270
        %v8302 = vpack.c.bf16 %v8273, %v8272
        %v8303 = vpack.c.bf16 %v8275, %v8274
        %v8304 = vpack.c.bf16 %v8277, %v8276
        %v8305 = vpack.c.bf16 %v8279, %v8278
        %v8306 = vpack.c.bf16 %v8281, %v8280
        %v8307 = vpack.c.bf16 %v8283, %v8282
        %v8308 = vpack.c.bf16 %v8285, %v8284
        %v8309 = vpack.c.bf16 %v8287, %v8286
        %v8310 = vpack.c.bf16 %v8289, %v8288
        %v8311 = vpack.c.bf16 %v8291, %v8290
        %v8312 = vpack.c.bf16 %v8293, %v8292
        %v8313 = vpack.c.bf16 %v8295, %v8294
        %v8314 = vpack.c.bf16 %v8297, %v8296
        %v8315 = vpack.c.bf16 %v8299, %v8298
        %v8316 = vld [vmem:[%s9] sm:$0xf]
        %v8317 = vld [vmem:[%s9 + $0x4] sm:$0xf]
        %v8318 = vld [vmem:[%s9 + $0x8] sm:$0xf]
        %v8319 = vld [vmem:[%s9 + $0xc] sm:$0xf]
        %v8320 = vld [vmem:[%s9 + $0x10] sm:$0xf]
        %v8321 = vld [vmem:[%s9 + $0x14] sm:$0xf]
        %v8322 = vld [vmem:[%s9 + $0x18] sm:$0xf]
        %v8323 = vld [vmem:[%s9 + $0x1c] sm:$0xf]
        %v8324 = vld [vmem:[%s9 + $0x20] sm:$0xf]
        %v8325 = vld [vmem:[%s9 + $0x24] sm:$0xf]
        %v8326 = vld [vmem:[%s9 + $0x28] sm:$0xf]
        %v8327 = vld [vmem:[%s9 + $0x2c] sm:$0xf]
        %v8328 = vld [vmem:[%s9 + $0x30] sm:$0xf]
        %v8329 = vld [vmem:[%s9 + $0x34] sm:$0xf]
        %v8330 = vld [vmem:[%s9 + $0x38] sm:$0xf]
        %v8331 = vld [vmem:[%s9 + $0x3c] sm:$0xf]
        %v8332 = vld [vmem:[%s10] sm:$0x1]
        %v8334 = vlaneseq
        %v8335 = vshrl.u32 %v8334, 7
        %v8336 = vsub.s32 0, %v8335
        %v8337 = vrot.slane %v8332, %v8336
        %v8355 = vunpack.c.l.b16 %v8316
        %v8356 = vunpack.c.l.b16 %v8317
        %v8357 = vunpack.c.l.b16 %v8318
        %v8358 = vunpack.c.l.b16 %v8319
        %v8359 = vunpack.c.l.b16 %v8320
        %v8360 = vunpack.c.l.b16 %v8321
        %v8361 = vunpack.c.l.b16 %v8322
        %v8362 = vunpack.c.l.b16 %v8323
        %v8363 = vunpack.c.l.b16 %v8324
        %v8364 = vunpack.c.l.b16 %v8325
        %v8365 = vunpack.c.l.b16 %v8326
        %v8366 = vunpack.c.l.b16 %v8327
        %v8367 = vunpack.c.l.b16 %v8328
        %v8368 = vunpack.c.l.b16 %v8329
        %v8369 = vunpack.c.l.b16 %v8330
        %v8370 = vunpack.c.l.b16 %v8331
        %v8371 = vpack.c.b16 %v8356, %v8355
        %v8372 = vpack.c.b16 %v8358, %v8357
        %v8373 = vpack.c.b16 %v8360, %v8359
        %v8374 = vpack.c.b16 %v8362, %v8361
        %v8375 = vpack.c.b16 %v8364, %v8363
        %v8376 = vpack.c.b16 %v8366, %v8365
        %v8377 = vpack.c.b16 %v8368, %v8367
        %v8378 = vpack.c.b16 %v8370, %v8369
        %8387 = vmatprep.subr.bf16.mxu0 0
        %8388 = vmatpush1.bf16.msra.mxu0 %v8371
        %8389 = vmatprep.subr.bf16.mxu0 0
        %8390 = vmatpush1.bf16.msra.mxu0 %v8372
        %8391 = vmatprep.subr.bf16.mxu0 0
        %8392 = vmatpush1.bf16.msra.mxu0 %v8373
        %8393 = vmatprep.subr.bf16.mxu0 0
        %8394 = vmatpush1.bf16.msra.mxu0 %v8374
        %8395 = vmatprep.subr.bf16.mxu0 0
        %8396 = vmatpush1.bf16.msra.mxu0 %v8375
        %8397 = vmatprep.subr.bf16.mxu0 0
        %8398 = vmatpush1.bf16.msra.mxu0 %v8376
        %8399 = vmatprep.subr.bf16.mxu0 0
        %8400 = vmatpush1.bf16.msra.mxu0 %v8377
        %8401 = vmatprep.subr.bf16.mxu0 0
        %8402 = vmatpush1.bf16.msra.mxu0 %v8378
        %8403 = vmatprep.subr.bf16.mxu0 0
        %8404 = vmatpush1.bf16.msra.mxu0 0
        %8405 = vmatprep.subr.bf16.mxu0 0
        %8406 = vmatpush1.bf16.msra.mxu0 0
        %8407 = vmatprep.subr.bf16.mxu0 0
        %8408 = vmatpush1.bf16.msra.mxu0 0
        %8409 = vmatprep.subr.bf16.mxu0 0
        %8410 = vmatpush1.bf16.msra.mxu0 0
        %8411 = vmatprep.subr.bf16.mxu0 0
        %8412 = vmatpush1.bf16.msra.mxu0 0
        %8413 = vmatprep.subr.bf16.mxu0 0
        %8414 = vmatpush1.bf16.msra.mxu0 0
        %8415 = vmatprep.subr.bf16.mxu0 0
        %8416 = vmatpush1.bf16.msra.mxu0 0
        %8417 = vmatprep.subr.bf16.mxu0 0
        %8418 = vmatpush1.bf16.msra.mxu0 0
        %8419 = vmatprep.mubr.bf16.mxu0 0
        %8420 = vmatmul.mubr.bf16.gmra.mrb[0].mxu0 %v8300
        %v8421 = vpop.f32.mrb[0].mxu0
        %v8422 = vadd.f32 %v8337, %v8421
        %v8423 = vpop.f32.mrb[0].mxu0
        %v8424 = vpop.f32.mrb[0].mxu0
        %v8425 = vadd.f32 %v8337, %v8424
        %v8426 = vpop.f32.mrb[0].mxu0
        %8427 = vmatprep.mubr.bf16.mxu0 0
        %8428 = vmatmul.mubr.bf16.gmra.mrb[0].mxu0 %v8301
        %v8429 = vpop.f32.mrb[0].mxu0
        %v8430 = vadd.f32 %v8337, %v8429
        %v8431 = vpop.f32.mrb[0].mxu0
        %v8432 = vpop.f32.mrb[0].mxu0
        %v8433 = vadd.f32 %v8337, %v8432
        %v8434 = vpop.f32.mrb[0].mxu0
        %8435 = vmatprep.mubr.bf16.mxu0 0
        %8436 = vmatmul.mubr.bf16.gmra.mrb[0].mxu0 %v8302
        %v8437 = vpop.f32.mrb[0].mxu0
        %v8438 = vadd.f32 %v8337, %v8437
        %v8439 = vpop.f32.mrb[0].mxu0
        %v8440 = vpop.f32.mrb[0].mxu0
        %v8441 = vadd.f32 %v8337, %v8440
        %v8442 = vpop.f32.mrb[0].mxu0
        %8443 = vmatprep.mubr.bf16.mxu0 0
        %8444 = vmatmul.mubr.bf16.gmra.mrb[0].mxu0 %v8303
        %v8445 = vpop.f32.mrb[0].mxu0
        %v8446 = vadd.f32 %v8337, %v8445
        %v8447 = vpop.f32.mrb[0].mxu0
        %v8448 = vpop.f32.mrb[0].mxu0
        %v8449 = vadd.f32 %v8337, %v8448
        %v8450 = vpop.f32.mrb[0].mxu0
        %8451 = vmatprep.mubr.bf16.mxu0 0
        %8452 = vmatmul.mubr.bf16.gmra.mrb[0].mxu0 %v8304
        %v8453 = vpop.f32.mrb[0].mxu0
        %v8454 = vadd.f32 %v8337, %v8453
        %v8455 = vpop.f32.mrb[0].mxu0
        %v8456 = vpop.f32.mrb[0].mxu0
        %v8457 = vadd.f32 %v8337, %v8456
        %v8458 = vpop.f32.mrb[0].mxu0
        %8459 = vmatprep.mubr.bf16.mxu0 0
        %8460 = vmatmul.mubr.bf16.gmra.mrb[0].mxu0 %v8305
        %v8461 = vpop.f32.mrb[0].mxu0
        %v8462 = vadd.f32 %v8337, %v8461
        %v8463 = vpop.f32.mrb[0].mxu0
        %v8464 = vpop.f32.mrb[0].mxu0
        %v8465 = vadd.f32 %v8337, %v8464
        %v8466 = vpop.f32.mrb[0].mxu0
        %8467 = vmatprep.mubr.bf16.mxu0 0
        %8468 = vmatmul.mubr.bf16.gmra.mrb[0].mxu0 %v8306
        %v8469 = vpop.f32.mrb[0].mxu0
        %v8470 = vadd.f32 %v8337, %v8469
        %v8471 = vpop.f32.mrb[0].mxu0
        %v8472 = vpop.f32.mrb[0].mxu0
        %v8473 = vadd.f32 %v8337, %v8472
        %v8474 = vpop.f32.mrb[0].mxu0
        %8475 = vmatprep.mubr.bf16.mxu0 0
        %8476 = vmatmul.mubr.bf16.gmra.mrb[0].mxu0 %v8307
        %v8477 = vpop.f32.mrb[0].mxu0
        %v8478 = vadd.f32 %v8337, %v8477
        %v8479 = vpop.f32.mrb[0].mxu0
        %v8480 = vpop.f32.mrb[0].mxu0
        %v8481 = vadd.f32 %v8337, %v8480
        %v8482 = vpop.f32.mrb[0].mxu0
        %8483 = vmatprep.mubr.bf16.mxu0 0
        %8484 = vmatmul.mubr.bf16.gmra.mrb[0].mxu0 %v8308
        %v8485 = vpop.f32.mrb[0].mxu0
        %v8486 = vadd.f32 %v8337, %v8485
        %v8487 = vpop.f32.mrb[0].mxu0
        %v8488 = vpop.f32.mrb[0].mxu0
        %v8489 = vadd.f32 %v8337, %v8488
        %v8490 = vpop.f32.mrb[0].mxu0
        %8491 = vmatprep.mubr.bf16.mxu0 0
        %8492 = vmatmul.mubr.bf16.gmra.mrb[0].mxu0 %v8309
        %v8493 = vpop.f32.mrb[0].mxu0
        %v8494 = vadd.f32 %v8337, %v8493
        %v8495 = vpop.f32.mrb[0].mxu0
        %v8496 = vpop.f32.mrb[0].mxu0
        %v8497 = vadd.f32 %v8337, %v8496
        %v8498 = vpop.f32.mrb[0].mxu0
        %8499 = vmatprep.mubr.bf16.mxu0 0
        %8500 = vmatmul.mubr.bf16.gmra.mrb[0].mxu0 %v8310
        %v8501 = vpop.f32.mrb[0].mxu0
        %v8502 = vadd.f32 %v8337, %v8501
        %v8503 = vpop.f32.mrb[0].mxu0
        %v8504 = vpop.f32.mrb[0].mxu0
        %v8505 = vadd.f32 %v8337, %v8504
        %v8506 = vpop.f32.mrb[0].mxu0
        %8507 = vmatprep.mubr.bf16.mxu0 0
        %8508 = vmatmul.mubr.bf16.gmra.mrb[0].mxu0 %v8311
        %v8509 = vpop.f32.mrb[0].mxu0
        %v8510 = vadd.f32 %v8337, %v8509
        %v8511 = vpop.f32.mrb[0].mxu0
        %v8512 = vpop.f32.mrb[0].mxu0
        %v8513 = vadd.f32 %v8337, %v8512
        %v8514 = vpop.f32.mrb[0].mxu0
        %8515 = vmatprep.mubr.bf16.mxu0 0
        %8516 = vmatmul.mubr.bf16.gmra.mrb[0].mxu0 %v8312
        %v8517 = vpop.f32.mrb[0].mxu0
        %v8518 = vadd.f32 %v8337, %v8517
        %v8519 = vpop.f32.mrb[0].mxu0
        %v8520 = vpop.f32.mrb[0].mxu0
        %v8521 = vadd.f32 %v8337, %v8520
        %v8522 = vpop.f32.mrb[0].mxu0
        %8523 = vmatprep.mubr.bf16.mxu0 0
        %8524 = vmatmul.mubr.bf16.gmra.mrb[0].mxu0 %v8313
        %v8525 = vpop.f32.mrb[0].mxu0
        %v8526 = vadd.f32 %v8337, %v8525
        %v8527 = vpop.f32.mrb[0].mxu0
        %v8528 = vpop.f32.mrb[0].mxu0
        %v8529 = vadd.f32 %v8337, %v8528
        %v8530 = vpop.f32.mrb[0].mxu0
        %8531 = vmatprep.mubr.bf16.mxu0 0
        %8532 = vmatmul.mubr.bf16.gmra.mrb[0].mxu0 %v8314
        %v8533 = vpop.f32.mrb[0].mxu0
        %v8534 = vadd.f32 %v8337, %v8533
        %v8535 = vpop.f32.mrb[0].mxu0
        %v8536 = vpop.f32.mrb[0].mxu0
        %v8537 = vadd.f32 %v8337, %v8536
        %v8538 = vpop.f32.mrb[0].mxu0
        %8539 = vmatprep.mubr.bf16.mxu0 0
        %8540 = vmatmul.mubr.bf16.gmra.mrb[0].mxu0 %v8315
        %v8541 = vpop.f32.mrb[0].mxu0
        %v8542 = vadd.f32 %v8337, %v8541
        %v8543 = vpop.f32.mrb[0].mxu0
        %v8544 = vpop.f32.mrb[0].mxu0
        %v8545 = vadd.f32 %v8337, %v8544
        %v8546 = vpop.f32.mrb[0].mxu0
        %8547 = vdwg.mxu0
        %8548 = vst [vmem:[%s397] sm:$0xff] %v8422
        %8549 = vst [vmem:[%s397 + $0x8] sm:$0xff] %v8425
        %8550 = vst [vmem:[%s397 + $0x10] sm:$0xff] %v8430
        %8551 = vst [vmem:[%s397 + $0x18] sm:$0xff] %v8433
        %8552 = vst [vmem:[%s397 + $0x20] sm:$0xff] %v8438
        %8553 = vst [vmem:[%s397 + $0x28] sm:$0xff] %v8441
        %8554 = vst [vmem:[%s397 + $0x30] sm:$0xff] %v8446
        %8555 = vst [vmem:[%s397 + $0x38] sm:$0xff] %v8449
        %8556 = vst [vmem:[%s397 + $0x40] sm:$0xff] %v8454
        %8557 = vst [vmem:[%s397 + $0x48] sm:$0xff] %v8457
        %8558 = vst [vmem:[%s397 + $0x50] sm:$0xff] %v8462
        %8559 = vst [vmem:[%s397 + $0x58] sm:$0xff] %v8465
        %8560 = vst [vmem:[%s397 + $0x60] sm:$0xff] %v8470
        %8561 = vst [vmem:[%s397 + $0x68] sm:$0xff] %v8473
        %8562 = vst [vmem:[%s397 + $0x70] sm:$0xff] %v8478
        %8563 = vst [vmem:[%s397 + $0x78] sm:$0xff] %v8481
        %8564 = vst [vmem:[%s397 + $0x80] sm:$0xff] %v8486
        %8565 = vst [vmem:[%s397 + $0x88] sm:$0xff] %v8489
        %8566 = vst [vmem:[%s397 + $0x90] sm:$0xff] %v8494
        %8567 = vst [vmem:[%s397 + $0x98] sm:$0xff] %v8497
        %8568 = vst [vmem:[%s397 + $0xa0] sm:$0xff] %v8502
        %8569 = vst [vmem:[%s397 + $0xa8] sm:$0xff] %v8505
        %8570 = vst [vmem:[%s397 + $0xb0] sm:$0xff] %v8510
        %8571 = vst [vmem:[%s397 + $0xb8] sm:$0xff] %v8513
        %8572 = vst [vmem:[%s397 + $0xc0] sm:$0xff] %v8518
        %8573 = vst [vmem:[%s397 + $0xc8] sm:$0xff] %v8521
        %8574 = vst [vmem:[%s397 + $0xd0] sm:$0xff] %v8526
        %8575 = vst [vmem:[%s397 + $0xd8] sm:$0xff] %v8529
        %8576 = vst [vmem:[%s397 + $0xe0] sm:$0xff] %v8534
        %8577 = vst [vmem:[%s397 + $0xe8] sm:$0xff] %v8537
        %8578 = vst [vmem:[%s397 + $0xf0] sm:$0xff] %v8542
        %8579 = vst [vmem:[%s397 + $0xf8] sm:$0xff] %v8545
        %s8580 = sand.u32 %s270, 1
        %s8581 = scalar_lea.sflag [#allocation4], %s8580
        %s8582 = sand.u32 %s270, 1
        %s8583 = smul.addr %s8582, 256
        %s8584 = scalar_lea.vmem [#allocation5], %s8583
        // Predicated region
        $region69: #{tpu_custom_call.1} parent=63 // pred_check
          %p8585 = pneg %p280
        $region70: #{tpu_custom_call.1} parent=63 // pred_check_branch
          %8587 = sbr.rel (%p8585) target = $region72
        $region71: #{tpu_custom_call.1} parent=63 // pred_region
          %s8588 = smul.u32 32, %s26
          %s8590 = ssub.s32 4096, 4096
          %8591 = vsyncadd %s8581, %s8590
          %s8592 = smul.addr %s8588, 128
          %s8593 = scalar_lea.hbm %s11, %s8592
          %s8594 = sshll.u32 %s8584, 4
          %s8595 = int_to_ptr.vmem [resolvable:$true] %s8594
          %8600 = dma.vmem_to_hbm [thread:$0]  %s8595, 4096, %s8593, %s8581, 128, 128, 8
        $region72: #{tpu_custom_call.1} parent=63 // pred_fallthru
          _
      $region64: #{tpu_custom_call.1} parent=5 // pred_fallthru
        _
      %p8601 = scmp.le.s32.totalorder 2, %s21
      // Predicated region
      $region73: #{tpu_custom_call.1} parent=5 // pred_check
        %p8602 = pneg %p8601
      $region74: #{tpu_custom_call.1} parent=5 // pred_check_branch
        %8604 = sbr.rel (%p8602) target = $region76
      $region75: #{tpu_custom_call.1} parent=5 // pred_region
        %s8605 = ssub.s32 %s21, 2
        // Predicated region
        $region77: #{tpu_custom_call.1} parent=75 // pred_check
          %p8606 = pneg %p286
        $region78: #{tpu_custom_call.1} parent=75 // pred_check_branch
          %8608 = sbr.rel (%p8606) target = $region80
        $region79: #{tpu_custom_call.1} parent=75 // pred_region
          %s8609 = sand.u32 %s271, 1
          %s8610 = scalar_lea.sflag [#allocation4], %s8609
          %s8611 = sand.u32 %s271, 1
          %s8612 = smul.addr %s8611, 256
          %s8613 = scalar_lea.vmem [#allocation5], %s8612
          %8614 = dma.done %s8610, 4096
        $region80: #{tpu_custom_call.1} parent=75 // pred_fallthru
          _
      $region76: #{tpu_custom_call.1} parent=5 // pred_fallthru
        _
    $region6: #{tpu_custom_call.1} parent=1 // loop_footer
      %s25 = sadd.s32 1, %s21
    $region7: #{tpu_custom_call.1} parent=1 // loop_footer_branch
      %20 = sbr.rel target = $region3
    $region8: #{tpu_custom_call.1} parent=1 // loop_exit
      _
    %8615 = vsyncpa [#allocation3], 1
    %s8616 = scalar_lea.sflag [#allocation3], 1
    %8617 = vsyncpa %s8616, 1
    %8618 = vsyncpa [#allocation4], 1
    %s8619 = scalar_lea.sflag [#allocation4], 1
    %8620 = vsyncpa %s8619, 1

</llo_original>
